<compile_context>
chip_gen: v6e
topology: v6e:2x2x1
jax: 0.10.0
libtpu: 0.0.40
codegen_flags: <defaults>
</compile_context>

<pallas_src>
import functools

import jax
import jax.numpy as jnp
import numpy as np
from jax.experimental import pallas as pl
from jax.experimental.pallas import tpu as pltpu

EPS = 1e-5          # nn.GroupNorm default eps
LANES = 128         # lane width; consider rounding CP to 256 on v6e/v7x (2x256 MXU)
HALO_DTYPE = jnp.float32   # set jnp.bfloat16 on v6e/v7x (bf16 VALUs); keep f32 on v5e


def _round_up(v, m):
    return (v + m - 1) // m * m


def _separable_block_kernel(x_ref,
                            wd1_ref, g1_ref, b1_ref, wp1_ref,
                            wd2_ref, g2_ref, b2_ref, wp2_ref,
                            wd3_ref, g3_ref, b3_ref, wp3_ref,
                            wsc_ref,
                            o_ref,
                            pad_ref,
                            *, H, W, WP, CP, n1, n2):
    # --- zero ONLY the guard regions of the shared halo scratch, once per grid
    #     step (unconditional => megacore-safe).  Interior columns [0, W) of
    #     rows [1, H] are fully overwritten by every depthwise stage; the guard
    #     rows/columns never receive data.
    pad_ref[0:1, :, :] = jnp.zeros((1, WP, CP), HALO_DTYPE)
    pad_ref[H + 1:H + 2, :, :] = jnp.zeros((1, WP, CP), HALO_DTYPE)
    pad_ref[1:H + 1, W:WP, :] = jnp.zeros((H, WP - W, CP), HALO_DTYPE)

    def depthwise3x3(inp, w9):
        # Interior store at column 0 (aligned).  For each kh, one aligned
        # full-width row-slab load; the +-1 column shifts are static sublane
        # rotations (pltpu.roll, XLU slot) followed by an aligned [0:W) slice,
        # so no sublane-misaligned access ever reaches VMEM.  Wraparound from
        # the roll pulls in the zeroed guard columns => conv zero padding.
        pad_ref[1:H + 1, 0:W, :] = inp.astype(HALO_DTYPE)
        acc = None
        for kh in range(3):
            row = pad_ref[kh:kh + H, :, :]                       # (H, WP, CP)
            left = pltpu.roll(row, 1, axis=1)[:, 0:W, :]         # col w <- w-1
            cent = row[:, 0:W, :]
            right = pltpu.roll(row, WP - 1, axis=1)[:, 0:W, :]   # col w <- w+1
            t = (left * w9[3 * kh + 0]
                 + cent * w9[3 * kh + 1]
                 + right * w9[3 * kh + 2])
            acc = t if acc is None else acc + t
        return acc

    def gn_tanhexp(y, gamma, beta, count):
        # GroupNorm(num_groups=1), single sweep (sum + sum-of-squares), with
        # the affine folded into a per-channel scale/shift: z = y*a + b where
        # a = inv*gamma, b = beta - mean*a  (2 VALU ops/elem instead of 4).
        # `count` is the REAL element count (H*W*C_real); padded lanes carry
        # exactly zero (padded gamma/beta/weights are zero) so stats are exact.
        s = jnp.sum(y)
        ss = jnp.sum(y * y)
        mean = s / count
        var = jnp.maximum(ss / count - mean * mean, 0.0)
        inv = jax.lax.rsqrt(var + EPS)
        a = gamma * inv
        b = beta - mean * a
        z = y * a + b
        return z * jnp.tanh(jnp.exp(z))          # tanhexp activation

    def stage(inp, wd_ref, g_ref, b_ref, wp_ref, count):
        y = depthwise3x3(inp, wd_ref[...])
        z = gn_tanhexp(y, g_ref[0], b_ref[0], count)
        # 1x1 conv = (H*W, CP) @ (CP, CP) on the MXU, bf16 operands, f32 acc.
        return jnp.dot(z.reshape(H * W, CP).astype(jnp.bfloat16), wp_ref[...],
                       preferred_element_type=jnp.float32).reshape(H, W, CP)

    x = x_ref[0]                                          # (H, W, CP) f32
    h = stage(x, wd1_ref, g1_ref, b1_ref, wp1_ref, n1)
    h = stage(h, wd2_ref, g2_ref, b2_ref, wp2_ref, n2)
    h = stage(h, wd3_ref, g3_ref, b3_ref, wp3_ref, n2)

    # Shortcut 1x1: the input block is VMEM-resident for the whole grid step,
    # so just re-read it here; adding before the single output store removes
    # the previous o_ref stash round-trip (one full store + load + add pass).
    sc = jnp.dot(x_ref[0].reshape(H * W, CP).astype(jnp.bfloat16), wsc_ref[...],
                 preferred_element_type=jnp.float32).reshape(H, W, CP)
    o_ref[0] = h + sc


def separable_block(x, params):
    """x: (N, H, W, Cin) float32 NHWC.  Returns (N, H, W, Cout) float32."""
    N, H, W, Cin = x.shape
    Cout = params["wp1"].shape[1]
    CP = _round_up(max(Cin, Cout, LANES), LANES)   # lane-dense channel width
    WP = _round_up(W + 1, 8)                       # >=1 zero guard col, aligned alloc

    def padc(a, axis, target):
        widths = [(0, 0)] * a.ndim
        widths[axis] = (0, target - a.shape[axis])
        return jnp.pad(a, widths)

    # TODO(synk): for a chain of SeparableBlocks, keep activations CP-wide (and
    # optionally bf16) between blocks so this channel pad and the final
    # [..., :Cout] slice do not add full extra HBM read/write passes.
    xp = padc(x, 3, CP)
    wd1 = padc(params["wd1"].reshape(9, Cin), 1, CP)
    wd2 = padc(params["wd2"].reshape(9, Cout), 1, CP)
    wd3 = padc(params["wd3"].reshape(9, Cout), 1, CP)
    wp1 = padc(padc(params["wp1"], 0, CP), 1, CP).astype(jnp.bfloat16)
    wp2 = padc(padc(params["wp2"], 0, CP), 1, CP).astype(jnp.bfloat16)
    wp3 = padc(padc(params["wp3"], 0, CP), 1, CP).astype(jnp.bfloat16)
    wsc = padc(padc(params["wsc"], 0, CP), 1, CP).astype(jnp.bfloat16)
    g1 = padc(params["g1"].reshape(1, Cin), 1, CP)
    b1 = padc(params["b1"].reshape(1, Cin), 1, CP)
    g2 = padc(params["g2"].reshape(1, Cout), 1, CP)
    b2 = padc(params["b2"].reshape(1, Cout), 1, CP)
    g3 = padc(params["g3"].reshape(1, Cout), 1, CP)
    b3 = padc(params["b3"].reshape(1, Cout), 1, CP)

    def full(shape):
        nd = len(shape)
        return pl.BlockSpec(shape, lambda n, _nd=nd: (0,) * _nd)

    kernel = functools.partial(
        _separable_block_kernel,
        H=H, W=W, WP=WP, CP=CP,
        n1=float(H * W * Cin),     # real GN element counts (stage 1 / stages 2-3)
        n2=float(H * W * Cout))

    grid_spec = pltpu.PrefetchScalarGridSpec(
        num_scalar_prefetch=0,
        grid=(N,),
        in_specs=[
            pl.BlockSpec((1, H, W, CP), lambda n: (n, 0, 0, 0)),
            full((9, CP)), full((1, CP)), full((1, CP)), full((CP, CP)),
            full((9, CP)), full((1, CP)), full((1, CP)), full((CP, CP)),
            full((9, CP)), full((1, CP)), full((1, CP)), full((CP, CP)),
            full((CP, CP)),
        ],
        out_specs=pl.BlockSpec((1, H, W, CP), lambda n: (n, 0, 0, 0)),
        scratch_shapes=[
            # single shared halo scratch (interior at column 0, guard cols on
            # the right) reused by all three depthwise stages
            pltpu.VMEM((H + 2, WP, CP), HALO_DTYPE),
        ],
    )

    # VMEM budget from actual sizes (double-buffered in/out blocks + weights +
    # scratch), with 2x headroom, instead of a flat 32 MB cap.
    blk_bytes = H * W * CP * 4
    wt_bytes = 3 * (9 + 2) * CP * 4 + 4 * CP * CP * 2
    halo_bytes = (H + 2) * WP * CP * jnp.dtype(HALO_DTYPE).itemsize
    need = 4 * blk_bytes + 2 * wt_bytes + halo_bytes
    vmem_limit = int(min(100 * 2**20, max(32 * 2**20, 2 * need)))

    out = pl.pallas_call(
        kernel,
        out_shape=jax.ShapeDtypeStruct((N, H, W, CP), jnp.float32),
        grid_spec=grid_spec,
        compiler_params=pltpu.CompilerParams(
            dimension_semantics=("parallel",),
            vmem_limit_bytes=vmem_limit),
    )(xp, wd1, g1, b1, wp1, wd2, g2, b2, wp2, wd3, g3, b3, wp3, wsc)

    return out[..., :Cout]


# ---------------------------- pure-JAX reference ----------------------------
def _ref_separable_block(x, p):
    def dwconv(x, w):  # w: (3, 3, C)
        C = x.shape[-1]
        return jax.lax.conv_general_dilated(
            x, w.reshape(3, 3, 1, C), window_strides=(1, 1),
            padding=((1, 1), (1, 1)),
            dimension_numbers=("NHWC", "HWIO", "NHWC"),
            feature_group_count=C)

    def pwconv(x, w):  # w: (Cin, Cout)
        return jnp.einsum("nhwc,cd->nhwd", x, w)

    def gn(x, g, b):
        mean = jnp.mean(x, axis=(1, 2, 3), keepdims=True)
        var = jnp.mean((x - mean) ** 2, axis=(1, 2, 3), keepdims=True)
        xn = (x - mean) / jnp.sqrt(var + EPS)
        return xn * g.reshape(1, 1, 1, -1) + b.reshape(1, 1, 1, -1)

    def te(x):
        return x * jnp.tanh(jnp.exp(x))

    h = pwconv(te(gn(dwconv(x, p["wd1"]), p["g1"], p["b1"])), p["wp1"])
    h = pwconv(te(gn(dwconv(h, p["wd2"]), p["g2"], p["b2"])), p["wp2"])
    h = pwconv(te(gn(dwconv(h, p["wd3"]), p["g3"], p["b3"])), p["wp3"])
    return h + pwconv(x, p["wsc"])


# ---------------------------------- main -------------------------------------
if __name__ == "__main__":
    N, H, W = 2, 16, 16
    Cin, Cout = 4, 8

    key = jax.random.PRNGKey(0)
    keys = jax.random.split(key, 16)

    x = jax.random.normal(keys[0], (N, H, W, Cin), dtype=jnp.float32)

    s = 0.2
    params = {
        # depthwise 3x3 weights stored as (kh, kw, C)
        "wd1": s * jax.random.normal(keys[1], (3, 3, Cin), jnp.float32),
        "wd2": s * jax.random.normal(keys[2], (3, 3, Cout), jnp.float32),
        "wd3": s * jax.random.normal(keys[3], (3, 3, Cout), jnp.float32),
        # pointwise 1x1 weights stored as (Cin, Cout) — transposed PyTorch (out,in)
        "wp1": s * jax.random.normal(keys[4], (Cin, Cout), jnp.float32),
        "wp2": s * jax.random.normal(keys[5], (Cout, Cout), jnp.float32),
        "wp3": s * jax.random.normal(keys[6], (Cout, Cout), jnp.float32),
        "wsc": s * jax.random.normal(keys[7], (Cin, Cout), jnp.float32),
        # GroupNorm affine params (perturbed from gamma=1, beta=0)
        "g1": 1.0 + 0.1 * jax.random.normal(keys[8], (Cin,), jnp.float32),
        "b1": 0.1 * jax.random.normal(keys[9], (Cin,), jnp.float32),
        "g2": 1.0 + 0.1 * jax.random.normal(keys[10], (Cout,), jnp.float32),
        "b2": 0.1 * jax.random.normal(keys[11], (Cout,), jnp.float32),
        "g3": 1.0 + 0.1 * jax.random.normal(keys[12], (Cout,), jnp.float32),
        "b3": 0.1 * jax.random.normal(keys[13], (Cout,), jnp.float32),
    }

    out = jax.block_until_ready(separable_block(x, params))
    ref = jax.block_until_ready(_ref_separable_block(x, params))

    # Kernel intentionally uses bf16 operands for the 1x1-conv / shortcut MXU
    # matmuls (f32 accumulation); reference is pure f32, so allow bf16-level
    # error compounded over 3 stages.
    np.testing.assert_allclose(np.asarray(out), np.asarray(ref),
                               rtol=2e-2, atol=2e-2)

    print("KERNEL_OK")
</pallas_src>

<mosaic_0001>
module attributes {stable_mosaic.version = 11 : i64} {
  func.func @_separable_block_kernel(%arg0: i32, %arg1: memref<1x16x16x128xf32, #tpu.memory_space<vmem>>, %arg2: memref<9x128xf32, #tpu.memory_space<vmem>>, %arg3: memref<1x128xf32, #tpu.memory_space<vmem>>, %arg4: memref<1x128xf32, #tpu.memory_space<vmem>>, %arg5: memref<128x128xbf16, #tpu.memory_space<vmem>>, %arg6: memref<9x128xf32, #tpu.memory_space<vmem>>, %arg7: memref<1x128xf32, #tpu.memory_space<vmem>>, %arg8: memref<1x128xf32, #tpu.memory_space<vmem>>, %arg9: memref<128x128xbf16, #tpu.memory_space<vmem>>, %arg10: memref<9x128xf32, #tpu.memory_space<vmem>>, %arg11: memref<1x128xf32, #tpu.memory_space<vmem>>, %arg12: memref<1x128xf32, #tpu.memory_space<vmem>>, %arg13: memref<128x128xbf16, #tpu.memory_space<vmem>>, %arg14: memref<128x128xbf16, #tpu.memory_space<vmem>>, %arg15: memref<1x16x16x128xf32, #tpu.memory_space<vmem>>, %arg16: memref<18x24x128xf32, #tpu.memory_space<vmem>>) attributes {dimension_semantics = [#tpu.dimension_semantics<parallel>], iteration_bounds = array<i64: 2>, scalar_prefetch = 0 : i64, scratch_operands = 1 : i64, tpu.core_type = #tpu.core_type<tc>, window_params = [{transform_indices = @transform_0, window_bounds = array<i64: 1, 16, 16, 128>}, {pipeline_mode = #tpu.pipeline_mode<synchronous>, transform_indices = @transform_1, window_bounds = array<i64: 9, 128>}, {pipeline_mode = #tpu.pipeline_mode<synchronous>, transform_indices = @transform_2, window_bounds = array<i64: 1, 128>}, {pipeline_mode = #tpu.pipeline_mode<synchronous>, transform_indices = @transform_3, window_bounds = array<i64: 1, 128>}, {pipeline_mode = #tpu.pipeline_mode<synchronous>, transform_indices = @transform_4, window_bounds = array<i64: 128, 128>}, {pipeline_mode = #tpu.pipeline_mode<synchronous>, transform_indices = @transform_5, window_bounds = array<i64: 9, 128>}, {pipeline_mode = #tpu.pipeline_mode<synchronous>, transform_indices = @transform_6, window_bounds = array<i64: 1, 128>}, {pipeline_mode = #tpu.pipeline_mode<synchronous>, transform_indices = @transform_7, window_bounds = array<i64: 1, 128>}, {pipeline_mode = #tpu.pipeline_mode<synchronous>, transform_indices = @transform_8, window_bounds = array<i64: 128, 128>}, {pipeline_mode = #tpu.pipeline_mode<synchronous>, transform_indices = @transform_9, window_bounds = array<i64: 9, 128>}, {pipeline_mode = #tpu.pipeline_mode<synchronous>, transform_indices = @transform_10, window_bounds = array<i64: 1, 128>}, {pipeline_mode = #tpu.pipeline_mode<synchronous>, transform_indices = @transform_11, window_bounds = array<i64: 1, 128>}, {pipeline_mode = #tpu.pipeline_mode<synchronous>, transform_indices = @transform_12, window_bounds = array<i64: 128, 128>}, {pipeline_mode = #tpu.pipeline_mode<synchronous>, transform_indices = @transform_13, window_bounds = array<i64: 128, 128>}, {transform_indices = @transform_14, window_bounds = array<i64: 1, 16, 16, 128>}]} {
    %cst = arith.constant 0.000000e+00 : f32
    %0 = vector.broadcast %cst : f32 to vector<1x24x128xf32>
    %c0 = arith.constant 0 : index
    %c0_0 = arith.constant 0 : index
    %c0_1 = arith.constant 0 : index
    %1 = vector.load %arg16[%c0, %c0_0, %c0_1] : memref<18x24x128xf32, #tpu.memory_space<vmem>>, vector<1x24x128xf32>
    tpu.vector_store %arg16[%c0, %c0_0, %c0_1], %0 {strides = array<i32>} : memref<18x24x128xf32, #tpu.memory_space<vmem>>, vector<1x24x128xf32>,
    %cst_2 = arith.constant 0.000000e+00 : f32
    %2 = vector.broadcast %cst_2 : f32 to vector<1x24x128xf32>
    %c17 = arith.constant 17 : index
    %c0_3 = arith.constant 0 : index
    %c0_4 = arith.constant 0 : index
    %3 = vector.load %arg16[%c17, %c0_3, %c0_4] : memref<18x24x128xf32, #tpu.memory_space<vmem>>, vector<1x24x128xf32>
    tpu.vector_store %arg16[%c17, %c0_3, %c0_4], %2 {strides = array<i32>} : memref<18x24x128xf32, #tpu.memory_space<vmem>>, vector<1x24x128xf32>,
    %cst_5 = arith.constant 0.000000e+00 : f32
    %4 = vector.broadcast %cst_5 : f32 to vector<16x8x128xf32>
    %c1 = arith.constant 1 : index
    %c16 = arith.constant 16 : index
    %c0_6 = arith.constant 0 : index
    %5 = vector.load %arg16[%c1, %c16, %c0_6] : memref<18x24x128xf32, #tpu.memory_space<vmem>>, vector<16x8x128xf32>
    tpu.vector_store %arg16[%c1, %c16, %c0_6], %4 {strides = array<i32>} : memref<18x24x128xf32, #tpu.memory_space<vmem>>, vector<16x8x128xf32>,
    %c0_7 = arith.constant 0 : index
    %c0_8 = arith.constant 0 : index
    %c0_9 = arith.constant 0 : index
    %c0_10 = arith.constant 0 : index
    %6 = vector.load %arg1[%c0_7, %c0_8, %c0_9, %c0_10] : memref<1x16x16x128xf32, #tpu.memory_space<vmem>>, vector<1x16x16x128xf32>
    %7 = vector.shape_cast %6 : vector<1x16x16x128xf32> to vector<16x16x128xf32>
    %c0_11 = arith.constant 0 : index
    %c0_12 = arith.constant 0 : index
    %8 = vector.load %arg2[%c0_11, %c0_12] : memref<9x128xf32, #tpu.memory_space<vmem>>, vector<9x128xf32>
    %c1_13 = arith.constant 1 : index
    %c0_14 = arith.constant 0 : index
    %c0_15 = arith.constant 0 : index
    %9 = vector.load %arg16[%c1_13, %c0_14, %c0_15] : memref<18x24x128xf32, #tpu.memory_space<vmem>>, vector<16x16x128xf32>
    tpu.vector_store %arg16[%c1_13, %c0_14, %c0_15], %7 {strides = array<i32>} : memref<18x24x128xf32, #tpu.memory_space<vmem>>, vector<16x16x128xf32>,
    %c0_16 = arith.constant 0 : index
    %c0_17 = arith.constant 0 : index
    %c0_18 = arith.constant 0 : index
    %10 = vector.load %arg16[%c0_16, %c0_17, %c0_18] : memref<18x24x128xf32, #tpu.memory_space<vmem>>, vector<16x24x128xf32>
    %c1_i32 = arith.constant 1 : i32
    %11 = tpu.dynamic_rotate %10 by %c1_i32 dim 1 : vector<16x24x128xf32>, i32 -> vector<16x24x128xf32>
    %12 = vector.extract_strided_slice %11 {offsets = [0, 0, 0], sizes = [16, 16, 128], strides = [1, 1, 1]} : vector<16x24x128xf32> to vector<16x16x128xf32>
    %13 = vector.extract_strided_slice %10 {offsets = [0, 0, 0], sizes = [16, 16, 128], strides = [1, 1, 1]} : vector<16x24x128xf32> to vector<16x16x128xf32>
    %c23_i32 = arith.constant 23 : i32
    %14 = tpu.dynamic_rotate %10 by %c23_i32 dim 1 : vector<16x24x128xf32>, i32 -> vector<16x24x128xf32>
    %15 = vector.extract_strided_slice %14 {offsets = [0, 0, 0], sizes = [16, 16, 128], strides = [1, 1, 1]} : vector<16x24x128xf32> to vector<16x16x128xf32>
    %16 = vector.extract_strided_slice %8 {offsets = [0, 0], sizes = [1, 128], strides = [1, 1]} : vector<9x128xf32> to vector<1x128xf32>
    %17 = vector.shape_cast %16 : vector<1x128xf32> to vector<128xf32>
    %18 = vector.shape_cast %17 : vector<128xf32> to vector<1x1x128xf32>
    %19 = vector.broadcast %18 : vector<1x1x128xf32> to vector<16x16x128xf32>
    %20 = arith.mulf %12, %19 : vector<16x16x128xf32>
    %21 = vector.extract_strided_slice %8 {offsets = [1, 0], sizes = [1, 128], strides = [1, 1]} : vector<9x128xf32> to vector<1x128xf32>
    %22 = vector.shape_cast %21 : vector<1x128xf32> to vector<128xf32>
    %23 = vector.shape_cast %22 : vector<128xf32> to vector<1x1x128xf32>
    %24 = vector.broadcast %23 : vector<1x1x128xf32> to vector<16x16x128xf32>
    %25 = arith.mulf %13, %24 : vector<16x16x128xf32>
    %26 = arith.addf %20, %25 : vector<16x16x128xf32>
    %27 = vector.extract_strided_slice %8 {offsets = [2, 0], sizes = [1, 128], strides = [1, 1]} : vector<9x128xf32> to vector<1x128xf32>
    %28 = vector.shape_cast %27 : vector<1x128xf32> to vector<128xf32>
    %29 = vector.shape_cast %28 : vector<128xf32> to vector<1x1x128xf32>
    %30 = vector.broadcast %29 : vector<1x1x128xf32> to vector<16x16x128xf32>
    %31 = arith.mulf %15, %30 : vector<16x16x128xf32>
    %32 = arith.addf %26, %31 : vector<16x16x128xf32>
    %c1_19 = arith.constant 1 : index
    %c0_20 = arith.constant 0 : index
    %c0_21 = arith.constant 0 : index
    %33 = vector.load %arg16[%c1_19, %c0_20, %c0_21] : memref<18x24x128xf32, #tpu.memory_space<vmem>>, vector<16x24x128xf32>
    %c1_i32_22 = arith.constant 1 : i32
    %34 = tpu.dynamic_rotate %33 by %c1_i32_22 dim 1 : vector<16x24x128xf32>, i32 -> vector<16x24x128xf32>
    %35 = vector.extract_strided_slice %34 {offsets = [0, 0, 0], sizes = [16, 16, 128], strides = [1, 1, 1]} : vector<16x24x128xf32> to vector<16x16x128xf32>
    %36 = vector.extract_strided_slice %33 {offsets = [0, 0, 0], sizes = [16, 16, 128], strides = [1, 1, 1]} : vector<16x24x128xf32> to vector<16x16x128xf32>
    %c23_i32_23 = arith.constant 23 : i32
    %37 = tpu.dynamic_rotate %33 by %c23_i32_23 dim 1 : vector<16x24x128xf32>, i32 -> vector<16x24x128xf32>
    %38 = vector.extract_strided_slice %37 {offsets = [0, 0, 0], sizes = [16, 16, 128], strides = [1, 1, 1]} : vector<16x24x128xf32> to vector<16x16x128xf32>
    %39 = vector.extract_strided_slice %8 {offsets = [3, 0], sizes = [1, 128], strides = [1, 1]} : vector<9x128xf32> to vector<1x128xf32>
    %40 = vector.shape_cast %39 : vector<1x128xf32> to vector<128xf32>
    %41 = vector.shape_cast %40 : vector<128xf32> to vector<1x1x128xf32>
    %42 = vector.broadcast %41 : vector<1x1x128xf32> to vector<16x16x128xf32>
    %43 = arith.mulf %35, %42 : vector<16x16x128xf32>
    %44 = vector.extract_strided_slice %8 {offsets = [4, 0], sizes = [1, 128], strides = [1, 1]} : vector<9x128xf32> to vector<1x128xf32>
    %45 = vector.shape_cast %44 : vector<1x128xf32> to vector<128xf32>
    %46 = vector.shape_cast %45 : vector<128xf32> to vector<1x1x128xf32>
    %47 = vector.broadcast %46 : vector<1x1x128xf32> to vector<16x16x128xf32>
    %48 = arith.mulf %36, %47 : vector<16x16x128xf32>
    %49 = arith.addf %43, %48 : vector<16x16x128xf32>
    %50 = vector.extract_strided_slice %8 {offsets = [5, 0], sizes = [1, 128], strides = [1, 1]} : vector<9x128xf32> to vector<1x128xf32>
    %51 = vector.shape_cast %50 : vector<1x128xf32> to vector<128xf32>
    %52 = vector.shape_cast %51 : vector<128xf32> to vector<1x1x128xf32>
    %53 = vector.broadcast %52 : vector<1x1x128xf32> to vector<16x16x128xf32>
    %54 = arith.mulf %38, %53 : vector<16x16x128xf32>
    %55 = arith.addf %49, %54 : vector<16x16x128xf32>
    %56 = arith.addf %32, %55 : vector<16x16x128xf32>
    %c2 = arith.constant 2 : index
    %c0_24 = arith.constant 0 : index
    %c0_25 = arith.constant 0 : index
    %57 = vector.load %arg16[%c2, %c0_24, %c0_25] : memref<18x24x128xf32, #tpu.memory_space<vmem>>, vector<16x24x128xf32>
    %c1_i32_26 = arith.constant 1 : i32
    %58 = tpu.dynamic_rotate %57 by %c1_i32_26 dim 1 : vector<16x24x128xf32>, i32 -> vector<16x24x128xf32>
    %59 = vector.extract_strided_slice %58 {offsets = [0, 0, 0], sizes = [16, 16, 128], strides = [1, 1, 1]} : vector<16x24x128xf32> to vector<16x16x128xf32>
    %60 = vector.extract_strided_slice %57 {offsets = [0, 0, 0], sizes = [16, 16, 128], strides = [1, 1, 1]} : vector<16x24x128xf32> to vector<16x16x128xf32>
    %c23_i32_27 = arith.constant 23 : i32
    %61 = tpu.dynamic_rotate %57 by %c23_i32_27 dim 1 : vector<16x24x128xf32>, i32 -> vector<16x24x128xf32>
    %62 = vector.extract_strided_slice %61 {offsets = [0, 0, 0], sizes = [16, 16, 128], strides = [1, 1, 1]} : vector<16x24x128xf32> to vector<16x16x128xf32>
    %63 = vector.extract_strided_slice %8 {offsets = [6, 0], sizes = [1, 128], strides = [1, 1]} : vector<9x128xf32> to vector<1x128xf32>
    %64 = vector.shape_cast %63 : vector<1x128xf32> to vector<128xf32>
    %65 = vector.shape_cast %64 : vector<128xf32> to vector<1x1x128xf32>
    %66 = vector.broadcast %65 : vector<1x1x128xf32> to vector<16x16x128xf32>
    %67 = arith.mulf %59, %66 : vector<16x16x128xf32>
    %68 = vector.extract_strided_slice %8 {offsets = [7, 0], sizes = [1, 128], strides = [1, 1]} : vector<9x128xf32> to vector<1x128xf32>
    %69 = vector.shape_cast %68 : vector<1x128xf32> to vector<128xf32>
    %70 = vector.shape_cast %69 : vector<128xf32> to vector<1x1x128xf32>
    %71 = vector.broadcast %70 : vector<1x1x128xf32> to vector<16x16x128xf32>
    %72 = arith.mulf %60, %71 : vector<16x16x128xf32>
    %73 = arith.addf %67, %72 : vector<16x16x128xf32>
    %74 = vector.extract_strided_slice %8 {offsets = [8, 0], sizes = [1, 128], strides = [1, 1]} : vector<9x128xf32> to vector<1x128xf32>
    %75 = vector.shape_cast %74 : vector<1x128xf32> to vector<128xf32>
    %76 = vector.shape_cast %75 : vector<128xf32> to vector<1x1x128xf32>
    %77 = vector.broadcast %76 : vector<1x1x128xf32> to vector<16x16x128xf32>
    %78 = arith.mulf %62, %77 : vector<16x16x128xf32>
    %79 = arith.addf %73, %78 : vector<16x16x128xf32>
    %80 = arith.addf %56, %79 : vector<16x16x128xf32>
    %c0_28 = arith.constant 0 : index
    %c0_29 = arith.constant 0 : index
    %81 = vector.load %arg3[%c0_28, %c0_29] : memref<1x128xf32, #tpu.memory_space<vmem>>, vector<1x128xf32>
    %82 = vector.shape_cast %81 : vector<1x128xf32> to vector<128xf32>
    %c0_30 = arith.constant 0 : index
    %c0_31 = arith.constant 0 : index
    %83 = vector.load %arg4[%c0_30, %c0_31] : memref<1x128xf32, #tpu.memory_space<vmem>>, vector<1x128xf32>
    %84 = vector.shape_cast %83 : vector<1x128xf32> to vector<128xf32>
    %85 = vector.shape_cast %80 : vector<16x16x128xf32> to vector<1x16x16x128xf32>
    %cst_32 = arith.constant dense<0.000000e+00> : vector<1xf32>
    %86 = vector.multi_reduction <add>, %85, %cst_32 [1, 2, 3] : vector<1x16x16x128xf32> to vector<1xf32>
    %87 = vector.shape_cast %86 : vector<1xf32> to vector<1x1x1x1xf32>
    %88 = vector.extract %87[0, 0, 0, 0] : f32 from vector<1x1x1x1xf32>
    %89 = arith.mulf %80, %80 : vector<16x16x128xf32>
    %90 = vector.shape_cast %89 : vector<16x16x128xf32> to vector<1x16x16x128xf32>
    %cst_33 = arith.constant dense<0.000000e+00> : vector<1xf32>
    %91 = vector.multi_reduction <add>, %90, %cst_33 [1, 2, 3] : vector<1x16x16x128xf32> to vector<1xf32>
    %92 = vector.shape_cast %91 : vector<1xf32> to vector<1x1x1x1xf32>
    %93 = vector.extract %92[0, 0, 0, 0] : f32 from vector<1x1x1x1xf32>
    %cst_34 = arith.constant 1.024000e+03 : f32
    %94 = arith.divf %88, %cst_34 : f32
    %cst_35 = arith.constant 1.024000e+03 : f32
    %95 = arith.divf %93, %cst_35 : f32
    %96 = arith.mulf %94, %94 : f32
    %97 = arith.subf %95, %96 : f32
    %cst_36 = arith.constant 0.000000e+00 : f32
    %98 = arith.maximumf %97, %cst_36 : f32
    %cst_37 = arith.constant 9.99999974E-6 : f32
    %99 = arith.addf %98, %cst_37 : f32
    %100 = math.rsqrt %99 : f32
    %101 = vector.broadcast %100 : f32 to vector<128xf32>
    %102 = arith.mulf %82, %101 : vector<128xf32>
    %103 = vector.broadcast %94 : f32 to vector<128xf32>
    %104 = arith.mulf %103, %102 : vector<128xf32>
    %105 = arith.subf %84, %104 : vector<128xf32>
    %106 = vector.shape_cast %102 : vector<128xf32> to vector<1x1x128xf32>
    %107 = vector.broadcast %106 : vector<1x1x128xf32> to vector<16x16x128xf32>
    %108 = arith.mulf %80, %107 : vector<16x16x128xf32>
    %109 = vector.shape_cast %105 : vector<128xf32> to vector<1x1x128xf32>
    %110 = vector.broadcast %109 : vector<1x1x128xf32> to vector<16x16x128xf32>
    %111 = arith.addf %108, %110 : vector<16x16x128xf32>
    %112 = math.exp %111 : vector<16x16x128xf32>
    %113 = math.tanh %112 : vector<16x16x128xf32>
    %114 = arith.mulf %111, %113 : vector<16x16x128xf32>
    %115 = vector.shape_cast %114 : vector<16x16x128xf32> to vector<256x128xf32>
    %116 = arith.truncf %115 : vector<256x128xf32> to vector<256x128xbf16>
    %c0_38 = arith.constant 0 : index
    %c0_39 = arith.constant 0 : index
    %117 = vector.load %arg5[%c0_38, %c0_39] : memref<128x128xbf16, #tpu.memory_space<vmem>>, vector<128x128xbf16>
    %cst_40 = arith.constant dense<0.000000e+00> : vector<256x128xf32>
    %118 = tpu.matmul %116, %117, %cst_40 {dimension_numbers = #tpu.dot_dimension_numbers<[1], [0], [0], [1], [0, 0, 1, 1], [], []>} : vector<256x128xbf16>, vector<128x128xbf16>, vector<256x128xf32> -> vector<256x128xf32>
    %119 = vector.shape_cast %118 : vector<256x128xf32> to vector<16x16x128xf32>
    %c0_41 = arith.constant 0 : index
    %c0_42 = arith.constant 0 : index
    %120 = vector.load %arg6[%c0_41, %c0_42] : memref<9x128xf32, #tpu.memory_space<vmem>>, vector<9x128xf32>
    %c1_43 = arith.constant 1 : index
    %c0_44 = arith.constant 0 : index
    %c0_45 = arith.constant 0 : index
    %121 = vector.load %arg16[%c1_43, %c0_44, %c0_45] : memref<18x24x128xf32, #tpu.memory_space<vmem>>, vector<16x16x128xf32>
    tpu.vector_store %arg16[%c1_43, %c0_44, %c0_45], %119 {strides = array<i32>} : memref<18x24x128xf32, #tpu.memory_space<vmem>>, vector<16x16x128xf32>,
    %c0_46 = arith.constant 0 : index
    %c0_47 = arith.constant 0 : index
    %c0_48 = arith.constant 0 : index
    %122 = vector.load %arg16[%c0_46, %c0_47, %c0_48] : memref<18x24x128xf32, #tpu.memory_space<vmem>>, vector<16x24x128xf32>
    %c1_i32_49 = arith.constant 1 : i32
    %123 = tpu.dynamic_rotate %122 by %c1_i32_49 dim 1 : vector<16x24x128xf32>, i32 -> vector<16x24x128xf32>
    %124 = vector.extract_strided_slice %123 {offsets = [0, 0, 0], sizes = [16, 16, 128], strides = [1, 1, 1]} : vector<16x24x128xf32> to vector<16x16x128xf32>
    %125 = vector.extract_strided_slice %122 {offsets = [0, 0, 0], sizes = [16, 16, 128], strides = [1, 1, 1]} : vector<16x24x128xf32> to vector<16x16x128xf32>
    %c23_i32_50 = arith.constant 23 : i32
    %126 = tpu.dynamic_rotate %122 by %c23_i32_50 dim 1 : vector<16x24x128xf32>, i32 -> vector<16x24x128xf32>
    %127 = vector.extract_strided_slice %126 {offsets = [0, 0, 0], sizes = [16, 16, 128], strides = [1, 1, 1]} : vector<16x24x128xf32> to vector<16x16x128xf32>
    %128 = vector.extract_strided_slice %120 {offsets = [0, 0], sizes = [1, 128], strides = [1, 1]} : vector<9x128xf32> to vector<1x128xf32>
    %129 = vector.shape_cast %128 : vector<1x128xf32> to vector<128xf32>
    %130 = vector.shape_cast %129 : vector<128xf32> to vector<1x1x128xf32>
    %131 = vector.broadcast %130 : vector<1x1x128xf32> to vector<16x16x128xf32>
    %132 = arith.mulf %124, %131 : vector<16x16x128xf32>
    %133 = vector.extract_strided_slice %120 {offsets = [1, 0], sizes = [1, 128], strides = [1, 1]} : vector<9x128xf32> to vector<1x128xf32>
    %134 = vector.shape_cast %133 : vector<1x128xf32> to vector<128xf32>
    %135 = vector.shape_cast %134 : vector<128xf32> to vector<1x1x128xf32>
    %136 = vector.broadcast %135 : vector<1x1x128xf32> to vector<16x16x128xf32>
    %137 = arith.mulf %125, %136 : vector<16x16x128xf32>
    %138 = arith.addf %132, %137 : vector<16x16x128xf32>
    %139 = vector.extract_strided_slice %120 {offsets = [2, 0], sizes = [1, 128], strides = [1, 1]} : vector<9x128xf32> to vector<1x128xf32>
    %140 = vector.shape_cast %139 : vector<1x128xf32> to vector<128xf32>
    %141 = vector.shape_cast %140 : vector<128xf32> to vector<1x1x128xf32>
    %142 = vector.broadcast %141 : vector<1x1x128xf32> to vector<16x16x128xf32>
    %143 = arith.mulf %127, %142 : vector<16x16x128xf32>
    %144 = arith.addf %138, %143 : vector<16x16x128xf32>
    %c1_51 = arith.constant 1 : index
    %c0_52 = arith.constant 0 : index
    %c0_53 = arith.constant 0 : index
    %145 = vector.load %arg16[%c1_51, %c0_52, %c0_53] : memref<18x24x128xf32, #tpu.memory_space<vmem>>, vector<16x24x128xf32>
    %c1_i32_54 = arith.constant 1 : i32
    %146 = tpu.dynamic_rotate %145 by %c1_i32_54 dim 1 : vector<16x24x128xf32>, i32 -> vector<16x24x128xf32>
    %147 = vector.extract_strided_slice %146 {offsets = [0, 0, 0], sizes = [16, 16, 128], strides = [1, 1, 1]} : vector<16x24x128xf32> to vector<16x16x128xf32>
    %148 = vector.extract_strided_slice %145 {offsets = [0, 0, 0], sizes = [16, 16, 128], strides = [1, 1, 1]} : vector<16x24x128xf32> to vector<16x16x128xf32>
    %c23_i32_55 = arith.constant 23 : i32
    %149 = tpu.dynamic_rotate %145 by %c23_i32_55 dim 1 : vector<16x24x128xf32>, i32 -> vector<16x24x128xf32>
    %150 = vector.extract_strided_slice %149 {offsets = [0, 0, 0], sizes = [16, 16, 128], strides = [1, 1, 1]} : vector<16x24x128xf32> to vector<16x16x128xf32>
    %151 = vector.extract_strided_slice %120 {offsets = [3, 0], sizes = [1, 128], strides = [1, 1]} : vector<9x128xf32> to vector<1x128xf32>
    %152 = vector.shape_cast %151 : vector<1x128xf32> to vector<128xf32>
    %153 = vector.shape_cast %152 : vector<128xf32> to vector<1x1x128xf32>
    %154 = vector.broadcast %153 : vector<1x1x128xf32> to vector<16x16x128xf32>
    %155 = arith.mulf %147, %154 : vector<16x16x128xf32>
    %156 = vector.extract_strided_slice %120 {offsets = [4, 0], sizes = [1, 128], strides = [1, 1]} : vector<9x128xf32> to vector<1x128xf32>
    %157 = vector.shape_cast %156 : vector<1x128xf32> to vector<128xf32>
    %158 = vector.shape_cast %157 : vector<128xf32> to vector<1x1x128xf32>
    %159 = vector.broadcast %158 : vector<1x1x128xf32> to vector<16x16x128xf32>
    %160 = arith.mulf %148, %159 : vector<16x16x128xf32>
    %161 = arith.addf %155, %160 : vector<16x16x128xf32>
    %162 = vector.extract_strided_slice %120 {offsets = [5, 0], sizes = [1, 128], strides = [1, 1]} : vector<9x128xf32> to vector<1x128xf32>
    %163 = vector.shape_cast %162 : vector<1x128xf32> to vector<128xf32>
    %164 = vector.shape_cast %163 : vector<128xf32> to vector<1x1x128xf32>
    %165 = vector.broadcast %164 : vector<1x1x128xf32> to vector<16x16x128xf32>
    %166 = arith.mulf %150, %165 : vector<16x16x128xf32>
    %167 = arith.addf %161, %166 : vector<16x16x128xf32>
    %168 = arith.addf %144, %167 : vector<16x16x128xf32>
    %c2_56 = arith.constant 2 : index
    %c0_57 = arith.constant 0 : index
    %c0_58 = arith.constant 0 : index
    %169 = vector.load %arg16[%c2_56, %c0_57, %c0_58] : memref<18x24x128xf32, #tpu.memory_space<vmem>>, vector<16x24x128xf32>
    %c1_i32_59 = arith.constant 1 : i32
    %170 = tpu.dynamic_rotate %169 by %c1_i32_59 dim 1 : vector<16x24x128xf32>, i32 -> vector<16x24x128xf32>
    %171 = vector.extract_strided_slice %170 {offsets = [0, 0, 0], sizes = [16, 16, 128], strides = [1, 1, 1]} : vector<16x24x128xf32> to vector<16x16x128xf32>
    %172 = vector.extract_strided_slice %169 {offsets = [0, 0, 0], sizes = [16, 16, 128], strides = [1, 1, 1]} : vector<16x24x128xf32> to vector<16x16x128xf32>
    %c23_i32_60 = arith.constant 23 : i32
    %173 = tpu.dynamic_rotate %169 by %c23_i32_60 dim 1 : vector<16x24x128xf32>, i32 -> vector<16x24x128xf32>
    %174 = vector.extract_strided_slice %173 {offsets = [0, 0, 0], sizes = [16, 16, 128], strides = [1, 1, 1]} : vector<16x24x128xf32> to vector<16x16x128xf32>
    %175 = vector.extract_strided_slice %120 {offsets = [6, 0], sizes = [1, 128], strides = [1, 1]} : vector<9x128xf32> to vector<1x128xf32>
    %176 = vector.shape_cast %175 : vector<1x128xf32> to vector<128xf32>
    %177 = vector.shape_cast %176 : vector<128xf32> to vector<1x1x128xf32>
    %178 = vector.broadcast %177 : vector<1x1x128xf32> to vector<16x16x128xf32>
    %179 = arith.mulf %171, %178 : vector<16x16x128xf32>
    %180 = vector.extract_strided_slice %120 {offsets = [7, 0], sizes = [1, 128], strides = [1, 1]} : vector<9x128xf32> to vector<1x128xf32>
    %181 = vector.shape_cast %180 : vector<1x128xf32> to vector<128xf32>
    %182 = vector.shape_cast %181 : vector<128xf32> to vector<1x1x128xf32>
    %183 = vector.broadcast %182 : vector<1x1x128xf32> to vector<16x16x128xf32>
    %184 = arith.mulf %172, %183 : vector<16x16x128xf32>
    %185 = arith.addf %179, %184 : vector<16x16x128xf32>
    %186 = vector.extract_strided_slice %120 {offsets = [8, 0], sizes = [1, 128], strides = [1, 1]} : vector<9x128xf32> to vector<1x128xf32>
    %187 = vector.shape_cast %186 : vector<1x128xf32> to vector<128xf32>
    %188 = vector.shape_cast %187 : vector<128xf32> to vector<1x1x128xf32>
    %189 = vector.broadcast %188 : vector<1x1x128xf32> to vector<16x16x128xf32>
    %190 = arith.mulf %174, %189 : vector<16x16x128xf32>
    %191 = arith.addf %185, %190 : vector<16x16x128xf32>
    %192 = arith.addf %168, %191 : vector<16x16x128xf32>
    %c0_61 = arith.constant 0 : index
    %c0_62 = arith.constant 0 : index
    %193 = vector.load %arg7[%c0_61, %c0_62] : memref<1x128xf32, #tpu.memory_space<vmem>>, vector<1x128xf32>
    %194 = vector.shape_cast %193 : vector<1x128xf32> to vector<128xf32>
    %c0_63 = arith.constant 0 : index
    %c0_64 = arith.constant 0 : index
    %195 = vector.load %arg8[%c0_63, %c0_64] : memref<1x128xf32, #tpu.memory_space<vmem>>, vector<1x128xf32>
    %196 = vector.shape_cast %195 : vector<1x128xf32> to vector<128xf32>
    %197 = vector.shape_cast %192 : vector<16x16x128xf32> to vector<1x16x16x128xf32>
    %cst_65 = arith.constant dense<0.000000e+00> : vector<1xf32>
    %198 = vector.multi_reduction <add>, %197, %cst_65 [1, 2, 3] : vector<1x16x16x128xf32> to vector<1xf32>
    %199 = vector.shape_cast %198 : vector<1xf32> to vector<1x1x1x1xf32>
    %200 = vector.extract %199[0, 0, 0, 0] : f32 from vector<1x1x1x1xf32>
    %201 = arith.mulf %192, %192 : vector<16x16x128xf32>
    %202 = vector.shape_cast %201 : vector<16x16x128xf32> to vector<1x16x16x128xf32>
    %cst_66 = arith.constant dense<0.000000e+00> : vector<1xf32>
    %203 = vector.multi_reduction <add>, %202, %cst_66 [1, 2, 3] : vector<1x16x16x128xf32> to vector<1xf32>
    %204 = vector.shape_cast %203 : vector<1xf32> to vector<1x1x1x1xf32>
    %205 = vector.extract %204[0, 0, 0, 0] : f32 from vector<1x1x1x1xf32>
    %cst_67 = arith.constant 2.048000e+03 : f32
    %206 = arith.divf %200, %cst_67 : f32
    %cst_68 = arith.constant 2.048000e+03 : f32
    %207 = arith.divf %205, %cst_68 : f32
    %208 = arith.mulf %206, %206 : f32
    %209 = arith.subf %207, %208 : f32
    %cst_69 = arith.constant 0.000000e+00 : f32
    %210 = arith.maximumf %209, %cst_69 : f32
    %cst_70 = arith.constant 9.99999974E-6 : f32
    %211 = arith.addf %210, %cst_70 : f32
    %212 = math.rsqrt %211 : f32
    %213 = vector.broadcast %212 : f32 to vector<128xf32>
    %214 = arith.mulf %194, %213 : vector<128xf32>
    %215 = vector.broadcast %206 : f32 to vector<128xf32>
    %216 = arith.mulf %215, %214 : vector<128xf32>
    %217 = arith.subf %196, %216 : vector<128xf32>
    %218 = vector.shape_cast %214 : vector<128xf32> to vector<1x1x128xf32>
    %219 = vector.broadcast %218 : vector<1x1x128xf32> to vector<16x16x128xf32>
    %220 = arith.mulf %192, %219 : vector<16x16x128xf32>
    %221 = vector.shape_cast %217 : vector<128xf32> to vector<1x1x128xf32>
    %222 = vector.broadcast %221 : vector<1x1x128xf32> to vector<16x16x128xf32>
    %223 = arith.addf %220, %222 : vector<16x16x128xf32>
    %224 = math.exp %223 : vector<16x16x128xf32>
    %225 = math.tanh %224 : vector<16x16x128xf32>
    %226 = arith.mulf %223, %225 : vector<16x16x128xf32>
    %227 = vector.shape_cast %226 : vector<16x16x128xf32> to vector<256x128xf32>
    %228 = arith.truncf %227 : vector<256x128xf32> to vector<256x128xbf16>
    %c0_71 = arith.constant 0 : index
    %c0_72 = arith.constant 0 : index
    %229 = vector.load %arg9[%c0_71, %c0_72] : memref<128x128xbf16, #tpu.memory_space<vmem>>, vector<128x128xbf16>
    %cst_73 = arith.constant dense<0.000000e+00> : vector<256x128xf32>
    %230 = tpu.matmul %228, %229, %cst_73 {dimension_numbers = #tpu.dot_dimension_numbers<[1], [0], [0], [1], [0, 0, 1, 1], [], []>} : vector<256x128xbf16>, vector<128x128xbf16>, vector<256x128xf32> -> vector<256x128xf32>
    %231 = vector.shape_cast %230 : vector<256x128xf32> to vector<16x16x128xf32>
    %c0_74 = arith.constant 0 : index
    %c0_75 = arith.constant 0 : index
    %232 = vector.load %arg10[%c0_74, %c0_75] : memref<9x128xf32, #tpu.memory_space<vmem>>, vector<9x128xf32>
    %c1_76 = arith.constant 1 : index
    %c0_77 = arith.constant 0 : index
    %c0_78 = arith.constant 0 : index
    %233 = vector.load %arg16[%c1_76, %c0_77, %c0_78] : memref<18x24x128xf32, #tpu.memory_space<vmem>>, vector<16x16x128xf32>
    tpu.vector_store %arg16[%c1_76, %c0_77, %c0_78], %231 {strides = array<i32>} : memref<18x24x128xf32, #tpu.memory_space<vmem>>, vector<16x16x128xf32>,
    %c0_79 = arith.constant 0 : index
    %c0_80 = arith.constant 0 : index
    %c0_81 = arith.constant 0 : index
    %234 = vector.load %arg16[%c0_79, %c0_80, %c0_81] : memref<18x24x128xf32, #tpu.memory_space<vmem>>, vector<16x24x128xf32>
    %c1_i32_82 = arith.constant 1 : i32
    %235 = tpu.dynamic_rotate %234 by %c1_i32_82 dim 1 : vector<16x24x128xf32>, i32 -> vector<16x24x128xf32>
    %236 = vector.extract_strided_slice %235 {offsets = [0, 0, 0], sizes = [16, 16, 128], strides = [1, 1, 1]} : vector<16x24x128xf32> to vector<16x16x128xf32>
    %237 = vector.extract_strided_slice %234 {offsets = [0, 0, 0], sizes = [16, 16, 128], strides = [1, 1, 1]} : vector<16x24x128xf32> to vector<16x16x128xf32>
    %c23_i32_83 = arith.constant 23 : i32
    %238 = tpu.dynamic_rotate %234 by %c23_i32_83 dim 1 : vector<16x24x128xf32>, i32 -> vector<16x24x128xf32>
    %239 = vector.extract_strided_slice %238 {offsets = [0, 0, 0], sizes = [16, 16, 128], strides = [1, 1, 1]} : vector<16x24x128xf32> to vector<16x16x128xf32>
    %240 = vector.extract_strided_slice %232 {offsets = [0, 0], sizes = [1, 128], strides = [1, 1]} : vector<9x128xf32> to vector<1x128xf32>
    %241 = vector.shape_cast %240 : vector<1x128xf32> to vector<128xf32>
    %242 = vector.shape_cast %241 : vector<128xf32> to vector<1x1x128xf32>
    %243 = vector.broadcast %242 : vector<1x1x128xf32> to vector<16x16x128xf32>
    %244 = arith.mulf %236, %243 : vector<16x16x128xf32>
    %245 = vector.extract_strided_slice %232 {offsets = [1, 0], sizes = [1, 128], strides = [1, 1]} : vector<9x128xf32> to vector<1x128xf32>
    %246 = vector.shape_cast %245 : vector<1x128xf32> to vector<128xf32>
    %247 = vector.shape_cast %246 : vector<128xf32> to vector<1x1x128xf32>
    %248 = vector.broadcast %247 : vector<1x1x128xf32> to vector<16x16x128xf32>
    %249 = arith.mulf %237, %248 : vector<16x16x128xf32>
    %250 = arith.addf %244, %249 : vector<16x16x128xf32>
    %251 = vector.extract_strided_slice %232 {offsets = [2, 0], sizes = [1, 128], strides = [1, 1]} : vector<9x128xf32> to vector<1x128xf32>
    %252 = vector.shape_cast %251 : vector<1x128xf32> to vector<128xf32>
    %253 = vector.shape_cast %252 : vector<128xf32> to vector<1x1x128xf32>
    %254 = vector.broadcast %253 : vector<1x1x128xf32> to vector<16x16x128xf32>
    %255 = arith.mulf %239, %254 : vector<16x16x128xf32>
    %256 = arith.addf %250, %255 : vector<16x16x128xf32>
    %c1_84 = arith.constant 1 : index
    %c0_85 = arith.constant 0 : index
    %c0_86 = arith.constant 0 : index
    %257 = vector.load %arg16[%c1_84, %c0_85, %c0_86] : memref<18x24x128xf32, #tpu.memory_space<vmem>>, vector<16x24x128xf32>
    %c1_i32_87 = arith.constant 1 : i32
    %258 = tpu.dynamic_rotate %257 by %c1_i32_87 dim 1 : vector<16x24x128xf32>, i32 -> vector<16x24x128xf32>
    %259 = vector.extract_strided_slice %258 {offsets = [0, 0, 0], sizes = [16, 16, 128], strides = [1, 1, 1]} : vector<16x24x128xf32> to vector<16x16x128xf32>
    %260 = vector.extract_strided_slice %257 {offsets = [0, 0, 0], sizes = [16, 16, 128], strides = [1, 1, 1]} : vector<16x24x128xf32> to vector<16x16x128xf32>
    %c23_i32_88 = arith.constant 23 : i32
    %261 = tpu.dynamic_rotate %257 by %c23_i32_88 dim 1 : vector<16x24x128xf32>, i32 -> vector<16x24x128xf32>
    %262 = vector.extract_strided_slice %261 {offsets = [0, 0, 0], sizes = [16, 16, 128], strides = [1, 1, 1]} : vector<16x24x128xf32> to vector<16x16x128xf32>
    %263 = vector.extract_strided_slice %232 {offsets = [3, 0], sizes = [1, 128], strides = [1, 1]} : vector<9x128xf32> to vector<1x128xf32>
    %264 = vector.shape_cast %263 : vector<1x128xf32> to vector<128xf32>
    %265 = vector.shape_cast %264 : vector<128xf32> to vector<1x1x128xf32>
    %266 = vector.broadcast %265 : vector<1x1x128xf32> to vector<16x16x128xf32>
    %267 = arith.mulf %259, %266 : vector<16x16x128xf32>
    %268 = vector.extract_strided_slice %232 {offsets = [4, 0], sizes = [1, 128], strides = [1, 1]} : vector<9x128xf32> to vector<1x128xf32>
    %269 = vector.shape_cast %268 : vector<1x128xf32> to vector<128xf32>
    %270 = vector.shape_cast %269 : vector<128xf32> to vector<1x1x128xf32>
    %271 = vector.broadcast %270 : vector<1x1x128xf32> to vector<16x16x128xf32>
    %272 = arith.mulf %260, %271 : vector<16x16x128xf32>
    %273 = arith.addf %267, %272 : vector<16x16x128xf32>
    %274 = vector.extract_strided_slice %232 {offsets = [5, 0], sizes = [1, 128], strides = [1, 1]} : vector<9x128xf32> to vector<1x128xf32>
    %275 = vector.shape_cast %274 : vector<1x128xf32> to vector<128xf32>
    %276 = vector.shape_cast %275 : vector<128xf32> to vector<1x1x128xf32>
    %277 = vector.broadcast %276 : vector<1x1x128xf32> to vector<16x16x128xf32>
    %278 = arith.mulf %262, %277 : vector<16x16x128xf32>
    %279 = arith.addf %273, %278 : vector<16x16x128xf32>
    %280 = arith.addf %256, %279 : vector<16x16x128xf32>
    %c2_89 = arith.constant 2 : index
    %c0_90 = arith.constant 0 : index
    %c0_91 = arith.constant 0 : index
    %281 = vector.load %arg16[%c2_89, %c0_90, %c0_91] : memref<18x24x128xf32, #tpu.memory_space<vmem>>, vector<16x24x128xf32>
    %c1_i32_92 = arith.constant 1 : i32
    %282 = tpu.dynamic_rotate %281 by %c1_i32_92 dim 1 : vector<16x24x128xf32>, i32 -> vector<16x24x128xf32>
    %283 = vector.extract_strided_slice %282 {offsets = [0, 0, 0], sizes = [16, 16, 128], strides = [1, 1, 1]} : vector<16x24x128xf32> to vector<16x16x128xf32>
    %284 = vector.extract_strided_slice %281 {offsets = [0, 0, 0], sizes = [16, 16, 128], strides = [1, 1, 1]} : vector<16x24x128xf32> to vector<16x16x128xf32>
    %c23_i32_93 = arith.constant 23 : i32
    %285 = tpu.dynamic_rotate %281 by %c23_i32_93 dim 1 : vector<16x24x128xf32>, i32 -> vector<16x24x128xf32>
    %286 = vector.extract_strided_slice %285 {offsets = [0, 0, 0], sizes = [16, 16, 128], strides = [1, 1, 1]} : vector<16x24x128xf32> to vector<16x16x128xf32>
    %287 = vector.extract_strided_slice %232 {offsets = [6, 0], sizes = [1, 128], strides = [1, 1]} : vector<9x128xf32> to vector<1x128xf32>
    %288 = vector.shape_cast %287 : vector<1x128xf32> to vector<128xf32>
    %289 = vector.shape_cast %288 : vector<128xf32> to vector<1x1x128xf32>
    %290 = vector.broadcast %289 : vector<1x1x128xf32> to vector<16x16x128xf32>
    %291 = arith.mulf %283, %290 : vector<16x16x128xf32>
    %292 = vector.extract_strided_slice %232 {offsets = [7, 0], sizes = [1, 128], strides = [1, 1]} : vector<9x128xf32> to vector<1x128xf32>
    %293 = vector.shape_cast %292 : vector<1x128xf32> to vector<128xf32>
    %294 = vector.shape_cast %293 : vector<128xf32> to vector<1x1x128xf32>
    %295 = vector.broadcast %294 : vector<1x1x128xf32> to vector<16x16x128xf32>
    %296 = arith.mulf %284, %295 : vector<16x16x128xf32>
    %297 = arith.addf %291, %296 : vector<16x16x128xf32>
    %298 = vector.extract_strided_slice %232 {offsets = [8, 0], sizes = [1, 128], strides = [1, 1]} : vector<9x128xf32> to vector<1x128xf32>
    %299 = vector.shape_cast %298 : vector<1x128xf32> to vector<128xf32>
    %300 = vector.shape_cast %299 : vector<128xf32> to vector<1x1x128xf32>
    %301 = vector.broadcast %300 : vector<1x1x128xf32> to vector<16x16x128xf32>
    %302 = arith.mulf %286, %301 : vector<16x16x128xf32>
    %303 = arith.addf %297, %302 : vector<16x16x128xf32>
    %304 = arith.addf %280, %303 : vector<16x16x128xf32>
    %c0_94 = arith.constant 0 : index
    %c0_95 = arith.constant 0 : index
    %305 = vector.load %arg11[%c0_94, %c0_95] : memref<1x128xf32, #tpu.memory_space<vmem>>, vector<1x128xf32>
    %306 = vector.shape_cast %305 : vector<1x128xf32> to vector<128xf32>
    %c0_96 = arith.constant 0 : index
    %c0_97 = arith.constant 0 : index
    %307 = vector.load %arg12[%c0_96, %c0_97] : memref<1x128xf32, #tpu.memory_space<vmem>>, vector<1x128xf32>
    %308 = vector.shape_cast %307 : vector<1x128xf32> to vector<128xf32>
    %309 = vector.shape_cast %304 : vector<16x16x128xf32> to vector<1x16x16x128xf32>
    %cst_98 = arith.constant dense<0.000000e+00> : vector<1xf32>
    %310 = vector.multi_reduction <add>, %309, %cst_98 [1, 2, 3] : vector<1x16x16x128xf32> to vector<1xf32>
    %311 = vector.shape_cast %310 : vector<1xf32> to vector<1x1x1x1xf32>
    %312 = vector.extract %311[0, 0, 0, 0] : f32 from vector<1x1x1x1xf32>
    %313 = arith.mulf %304, %304 : vector<16x16x128xf32>
    %314 = vector.shape_cast %313 : vector<16x16x128xf32> to vector<1x16x16x128xf32>
    %cst_99 = arith.constant dense<0.000000e+00> : vector<1xf32>
    %315 = vector.multi_reduction <add>, %314, %cst_99 [1, 2, 3] : vector<1x16x16x128xf32> to vector<1xf32>
    %316 = vector.shape_cast %315 : vector<1xf32> to vector<1x1x1x1xf32>
    %317 = vector.extract %316[0, 0, 0, 0] : f32 from vector<1x1x1x1xf32>
    %cst_100 = arith.constant 2.048000e+03 : f32
    %318 = arith.divf %312, %cst_100 : f32
    %cst_101 = arith.constant 2.048000e+03 : f32
    %319 = arith.divf %317, %cst_101 : f32
    %320 = arith.mulf %318, %318 : f32
    %321 = arith.subf %319, %320 : f32
    %cst_102 = arith.constant 0.000000e+00 : f32
    %322 = arith.maximumf %321, %cst_102 : f32
    %cst_103 = arith.constant 9.99999974E-6 : f32
    %323 = arith.addf %322, %cst_103 : f32
    %324 = math.rsqrt %323 : f32
    %325 = vector.broadcast %324 : f32 to vector<128xf32>
    %326 = arith.mulf %306, %325 : vector<128xf32>
    %327 = vector.broadcast %318 : f32 to vector<128xf32>
    %328 = arith.mulf %327, %326 : vector<128xf32>
    %329 = arith.subf %308, %328 : vector<128xf32>
    %330 = vector.shape_cast %326 : vector<128xf32> to vector<1x1x128xf32>
    %331 = vector.broadcast %330 : vector<1x1x128xf32> to vector<16x16x128xf32>
    %332 = arith.mulf %304, %331 : vector<16x16x128xf32>
    %333 = vector.shape_cast %329 : vector<128xf32> to vector<1x1x128xf32>
    %334 = vector.broadcast %333 : vector<1x1x128xf32> to vector<16x16x128xf32>
    %335 = arith.addf %332, %334 : vector<16x16x128xf32>
    %336 = math.exp %335 : vector<16x16x128xf32>
    %337 = math.tanh %336 : vector<16x16x128xf32>
    %338 = arith.mulf %335, %337 : vector<16x16x128xf32>
    %339 = vector.shape_cast %338 : vector<16x16x128xf32> to vector<256x128xf32>
    %340 = arith.truncf %339 : vector<256x128xf32> to vector<256x128xbf16>
    %c0_104 = arith.constant 0 : index
    %c0_105 = arith.constant 0 : index
    %341 = vector.load %arg13[%c0_104, %c0_105] : memref<128x128xbf16, #tpu.memory_space<vmem>>, vector<128x128xbf16>
    %cst_106 = arith.constant dense<0.000000e+00> : vector<256x128xf32>
    %342 = tpu.matmul %340, %341, %cst_106 {dimension_numbers = #tpu.dot_dimension_numbers<[1], [0], [0], [1], [0, 0, 1, 1], [], []>} : vector<256x128xbf16>, vector<128x128xbf16>, vector<256x128xf32> -> vector<256x128xf32>
    %343 = vector.shape_cast %342 : vector<256x128xf32> to vector<16x16x128xf32>
    %c0_107 = arith.constant 0 : index
    %c0_108 = arith.constant 0 : index
    %c0_109 = arith.constant 0 : index
    %c0_110 = arith.constant 0 : index
    %344 = vector.load %arg1[%c0_107, %c0_108, %c0_109, %c0_110] : memref<1x16x16x128xf32, #tpu.memory_space<vmem>>, vector<1x16x16x128xf32>
    %345 = vector.shape_cast %344 : vector<1x16x16x128xf32> to vector<16x16x128xf32>
    %346 = vector.shape_cast %345 : vector<16x16x128xf32> to vector<256x128xf32>
    %347 = arith.truncf %346 : vector<256x128xf32> to vector<256x128xbf16>
    %c0_111 = arith.constant 0 : index
    %c0_112 = arith.constant 0 : index
    %348 = vector.load %arg14[%c0_111, %c0_112] : memref<128x128xbf16, #tpu.memory_space<vmem>>, vector<128x128xbf16>
    %cst_113 = arith.constant dense<0.000000e+00> : vector<256x128xf32>
    %349 = tpu.matmul %347, %348, %cst_113 {dimension_numbers = #tpu.dot_dimension_numbers<[1], [0], [0], [1], [0, 0, 1, 1], [], []>} : vector<256x128xbf16>, vector<128x128xbf16>, vector<256x128xf32> -> vector<256x128xf32>
    %350 = vector.shape_cast %349 : vector<256x128xf32> to vector<16x16x128xf32>
    %351 = arith.addf %343, %350 : vector<16x16x128xf32>
    %c0_114 = arith.constant 0 : index
    %c0_115 = arith.constant 0 : index
    %c0_116 = arith.constant 0 : index
    %c0_117 = arith.constant 0 : index
    %352 = vector.load %arg15[%c0_114, %c0_115, %c0_116, %c0_117] : memref<1x16x16x128xf32, #tpu.memory_space<vmem>>, vector<1x16x16x128xf32>
    %353 = vector.shape_cast %352 : vector<1x16x16x128xf32> to vector<16x16x128xf32>
    %354 = vector.shape_cast %351 : vector<16x16x128xf32> to vector<1x16x16x128xf32>
    tpu.vector_store %arg15[%c0_114, %c0_115, %c0_116, %c0_117], %354 {strides = array<i32>} : memref<1x16x16x128xf32, #tpu.memory_space<vmem>>, vector<1x16x16x128xf32>,
    return
  }
  func.func @transform_0(%arg0: i32) -> (i32, i32, i32, i32) {
    %c0_i32 = arith.constant 0 : i32
    %c0_i32_0 = arith.constant 0 : i32
    %c0_i32_1 = arith.constant 0 : i32
    %c0_i32_2 = arith.constant 0 : i32
    return %arg0, %c0_i32, %c0_i32_0, %c0_i32_1 : i32, i32, i32, i32
  }
  func.func @transform_1(%arg0: i32) -> (i32, i32) {
    %c0_i32 = arith.constant 0 : i32
    %c0_i32_0 = arith.constant 0 : i32
    %c0_i32_1 = arith.constant 0 : i32
    return %c0_i32, %c0_i32_0 : i32, i32
  }
  func.func @transform_2(%arg0: i32) -> (i32, i32) {
    %c0_i32 = arith.constant 0 : i32
    %c0_i32_0 = arith.constant 0 : i32
    %c0_i32_1 = arith.constant 0 : i32
    return %c0_i32, %c0_i32_0 : i32, i32
  }
  func.func @transform_3(%arg0: i32) -> (i32, i32) {
    %c0_i32 = arith.constant 0 : i32
    %c0_i32_0 = arith.constant 0 : i32
    %c0_i32_1 = arith.constant 0 : i32
    return %c0_i32, %c0_i32_0 : i32, i32
  }
  func.func @transform_4(%arg0: i32) -> (i32, i32) {
    %c0_i32 = arith.constant 0 : i32
    %c0_i32_0 = arith.constant 0 : i32
    %c0_i32_1 = arith.constant 0 : i32
    return %c0_i32, %c0_i32_0 : i32, i32
  }
  func.func @transform_5(%arg0: i32) -> (i32, i32) {
    %c0_i32 = arith.constant 0 : i32
    %c0_i32_0 = arith.constant 0 : i32
    %c0_i32_1 = arith.constant 0 : i32
    return %c0_i32, %c0_i32_0 : i32, i32
  }
  func.func @transform_6(%arg0: i32) -> (i32, i32) {
    %c0_i32 = arith.constant 0 : i32
    %c0_i32_0 = arith.constant 0 : i32
    %c0_i32_1 = arith.constant 0 : i32
    return %c0_i32, %c0_i32_0 : i32, i32
  }
  func.func @transform_7(%arg0: i32) -> (i32, i32) {
    %c0_i32 = arith.constant 0 : i32
    %c0_i32_0 = arith.constant 0 : i32
    %c0_i32_1 = arith.constant 0 : i32
    return %c0_i32, %c0_i32_0 : i32, i32
  }
  func.func @transform_8(%arg0: i32) -> (i32, i32) {
    %c0_i32 = arith.constant 0 : i32
    %c0_i32_0 = arith.constant 0 : i32
    %c0_i32_1 = arith.constant 0 : i32
    return %c0_i32, %c0_i32_0 : i32, i32
  }
  func.func @transform_9(%arg0: i32) -> (i32, i32) {
    %c0_i32 = arith.constant 0 : i32
    %c0_i32_0 = arith.constant 0 : i32
    %c0_i32_1 = arith.constant 0 : i32
    return %c0_i32, %c0_i32_0 : i32, i32
  }
  func.func @transform_10(%arg0: i32) -> (i32, i32) {
    %c0_i32 = arith.constant 0 : i32
    %c0_i32_0 = arith.constant 0 : i32
    %c0_i32_1 = arith.constant 0 : i32
    return %c0_i32, %c0_i32_0 : i32, i32
  }
  func.func @transform_11(%arg0: i32) -> (i32, i32) {
    %c0_i32 = arith.constant 0 : i32
    %c0_i32_0 = arith.constant 0 : i32
    %c0_i32_1 = arith.constant 0 : i32
    return %c0_i32, %c0_i32_0 : i32, i32
  }
  func.func @transform_12(%arg0: i32) -> (i32, i32) {
    %c0_i32 = arith.constant 0 : i32
    %c0_i32_0 = arith.constant 0 : i32
    %c0_i32_1 = arith.constant 0 : i32
    return %c0_i32, %c0_i32_0 : i32, i32
  }
  func.func @transform_13(%arg0: i32) -> (i32, i32) {
    %c0_i32 = arith.constant 0 : i32
    %c0_i32_0 = arith.constant 0 : i32
    %c0_i32_1 = arith.constant 0 : i32
    return %c0_i32, %c0_i32_0 : i32, i32
  }
  func.func @transform_14(%arg0: i32) -> (i32, i32, i32, i32) {
    %c0_i32 = arith.constant 0 : i32
    %c0_i32_0 = arith.constant 0 : i32
    %c0_i32_1 = arith.constant 0 : i32
    %c0_i32_2 = arith.constant 0 : i32
    return %arg0, %c0_i32, %c0_i32_0, %c0_i32_1 : i32, i32, i32, i32
  }
}

</mosaic_0001>

<llo_original>
// kernel: tpu_custom_call.1
$region0: #{tpu_custom_call.1}
  #allocation0 [shape = 'u32[]', space=smem, size = 0x4, offset = 0x4, fixed_abs, tag = 'smem constant byte address 0x4 - core index']
  #allocation1 [shape = 'u32[144,128]{1,0:T(1,128)}', space=vmem, size = 0x12000, scoped, tag = 'internal scratch']
  #allocation2 [shape = 'f32[18,24,128]{2,1,0:T(8,128)}', space=vmem, size = 0x36000, scoped, tag = 'scratch operand']
  %s0 = inlined_call_operand.hbm [shape: f32[2,16,16,128], index: 0, kind: input, shape index: {}]
  %s1 = inlined_call_operand.hbm [shape: f32[9,128], index: 1, kind: input, shape index: {}]
  %s2 = inlined_call_operand.hbm [shape: f32[1,128], index: 2, kind: input, shape index: {}]
  %s3 = inlined_call_operand.hbm [shape: f32[1,128], index: 3, kind: input, shape index: {}]
  %s4 = inlined_call_operand.hbm [shape: bf16[128,128], index: 4, kind: input, shape index: {}]
  %s5 = inlined_call_operand.hbm [shape: f32[9,128], index: 5, kind: input, shape index: {}]
  %s6 = inlined_call_operand.hbm [shape: f32[1,128], index: 6, kind: input, shape index: {}]
  %s7 = inlined_call_operand.hbm [shape: f32[1,128], index: 7, kind: input, shape index: {}]
  %s8 = inlined_call_operand.hbm [shape: bf16[128,128], index: 8, kind: input, shape index: {}]
  %s9 = inlined_call_operand.vmem [shape: f32[9,128], index: 9, kind: input, shape index: {}]
  %s10 = inlined_call_operand.vmem [shape: f32[1,128], index: 10, kind: input, shape index: {}]
  %s11 = inlined_call_operand.vmem [shape: f32[1,128], index: 11, kind: input, shape index: {}]
  %s12 = inlined_call_operand.hbm [shape: bf16[128,128], index: 12, kind: input, shape index: {}]
  %s13 = inlined_call_operand.hbm [shape: bf16[128,128], index: 13, kind: input, shape index: {}]
  %s14 = inlined_call_operand.hbm [shape: f32[2,16,16,128], index: 14, kind: output, shape index: {}]
  %s15 = sld [smem:[#allocation0]]
  $region133: #{tpu_custom_call.1} parent=0
    _
  %s17 = ssub.s32 1, %s15
  %s18 = scalar_select 0, %s17, %s15
  $region1: #{tpu_custom_call.1} parent=0
    #allocation3 [shape = 'u8[262144]{0}', space=vmem, size = 0x40000, scoped, tag = 'input window, operand 0']
    #allocation4 [shape = 's32[2]{0}', space=sflag, size = 0x8, scoped, tag = 'scoped memory for tpu_custom_call.1']
    #allocation5 [shape = 's32[2]{0}', space=sflag, size = 0x8, scoped, tag = 'scoped memory for tpu_custom_call.1']
    #allocation6 [shape = 'u8[8192]{0}', space=vmem, size = 0x2000, scoped, tag = 'input window, operand 1, single buffered']
    #allocation7 [shape = 's32[1]{0}', space=sflag, size = 0x4, scoped, tag = 'scoped memory for tpu_custom_call.1']
    #allocation8 [shape = 'u8[512]{0}', space=vmem, size = 0x400, scoped, tag = 'input window, operand 2, single buffered']
    #allocation9 [shape = 'u8[512]{0}', space=vmem, size = 0x400, scoped, tag = 'input window, operand 3, single buffered']
    #allocation10 [shape = 's32[1]{0}', space=sflag, size = 0x4, scoped, tag = 'scoped memory for tpu_custom_call.1']
    #allocation11 [shape = 'u8[32768]{0}', space=vmem, size = 0x8000, scoped, tag = 'input window, operand 4, single buffered']
    #allocation12 [shape = 'u8[8192]{0}', space=vmem, size = 0x2000, scoped, tag = 'input window, operand 5, single buffered']
    #allocation13 [shape = 's32[1]{0}', space=sflag, size = 0x4, scoped, tag = 'scoped memory for tpu_custom_call.1']
    #allocation14 [shape = 'u8[512]{0}', space=vmem, size = 0x400, scoped, tag = 'input window, operand 6, single buffered']
    #allocation15 [shape = 'u8[512]{0}', space=vmem, size = 0x400, scoped, tag = 'input window, operand 7, single buffered']
    #allocation16 [shape = 's32[1]{0}', space=sflag, size = 0x4, scoped, tag = 'scoped memory for tpu_custom_call.1']
    #allocation17 [shape = 'u8[32768]{0}', space=vmem, size = 0x8000, scoped, tag = 'input window, operand 8, single buffered']
    #allocation18 [shape = 'u8[32768]{0}', space=vmem, size = 0x8000, scoped, tag = 'input window, operand 12, single buffered']
    #allocation19 [shape = 's32[1]{0}', space=sflag, size = 0x4, scoped, tag = 'scoped memory for tpu_custom_call.1']
    #allocation20 [shape = 'u8[32768]{0}', space=vmem, size = 0x8000, scoped, tag = 'input window, operand 13, single buffered']
    #allocation21 [shape = 'u8[262144]{0}', space=vmem, size = 0x40000, scoped, tag = 'output window, operand 0']
    %19 = vsyncpa [#allocation4], 0
    %s20 = scalar_lea.sflag [#allocation4], 1
    %21 = vsyncpa %s20, 0
    %22 = vsyncpa [#allocation7], 0
    %23 = vsyncpa [#allocation10], 0
    %24 = vsyncpa [#allocation13], 0
    %25 = vsyncpa [#allocation16], 0
    %26 = vsyncpa [#allocation19], 0
    %27 = vsyncpa [#allocation5], 0
    %s28 = scalar_lea.sflag [#allocation5], 1
    %29 = vsyncpa %s28, 0
    loop: start=0, step=1, limit=4
    $region2: #{tpu_custom_call.1} parent=1 // loop_pre_header
      _
    $region3: #{tpu_custom_call.1} parent=1 // loop_header
      %s31 = sphi 0, %s35
      %p32 = scmp.ge.s32.totalorder %s31, 4
      %s41 = sphi 0, %s43
      %s44 = sphi 0, %s41
      %s45 = sphi 0, %s44
      %s61 = sphi 0, %s45
      %s65 = sphi 0, %s65
      %s67 = sphi 0, %s65
      %s68 = sphi 0, %s67
      %s82 = sphi 0, %s68
      %s86 = sphi 0, %s86
      %s88 = sphi 0, %s86
      %s89 = sphi 0, %s88
      %s103 = sphi 0, %s89
      %s107 = sphi 0, %s107
      %s109 = sphi 0, %s107
      %s110 = sphi 0, %s109
      %s124 = sphi 0, %s110
      %s128 = sphi 0, %s128
      %s130 = sphi 0, %s128
      %s131 = sphi 0, %s130
      %s145 = sphi 0, %s131
      %s149 = sphi 0, %s149
      %s151 = sphi 0, %s149
      %s152 = sphi 0, %s151
      %s166 = sphi 0, %s152
      %s170 = sphi 0, %s170
      %s172 = sphi 0, %s170
      %s173 = sphi 0, %s172
      %s187 = sphi 0, %s173
      %s191 = sphi 0, %s191
      %s193 = sphi 0, %s191
      %s194 = sphi 0, %s193
      %s208 = sphi 0, %s194
      %s212 = sphi 0, %s212
      %s214 = sphi 0, %s212
      %s215 = sphi 0, %s214
      %s229 = sphi 0, %s215
      %s233 = sphi 0, %s233
      %s235 = sphi 0, %s233
      %s236 = sphi 0, %s235
      %s250 = sphi 0, %s236
      %s254 = sphi 0, %s254
      %s256 = sphi 0, %s254
      %s257 = sphi 0, %s256
      %s271 = sphi 0, %s257
      %s275 = sphi 0, %s275
      %s277 = sphi 0, %s275
      %s278 = sphi 0, %s277
      %s292 = sphi 0, %s278
      %s296 = sphi 0, %s296
      %s298 = sphi 0, %s296
      %s299 = sphi 0, %s298
      %s313 = sphi 0, %s299
      %s317 = sphi 0, %s317
      %s319 = sphi 0, %s317
      %s320 = sphi 0, %s319
      %s334 = sphi 0, %s320
      %s340 = sphi 0, %s342
      %s343 = sphi 0, %s340
      %s344 = sphi 0, %s343
      %s360 = sphi 0, %s344
    $region4: #{tpu_custom_call.1} parent=1 // loop_header_branch
      %34 = sbr.rel (%p32) target = $region8
    $region5: #{tpu_custom_call.1} parent=1 // loop_body
      %s36 = ssub.s32 %s31, 1
      %s37 = ssub.s32 %s31, 2
      %s38 = sadd.s32 %s31, 1
      %s39 = ssub.s32 %s31, %s38
      %p40 = scmp.eq.s32.totalorder %s39, 0
      %s42 = sadd.s32 %s41, 1
      %s43 = scalar_select %p40, %s41, %s42
      %p46 = pneg %p40
      %p47 = scmp.eq.s32.totalorder %s31, 1
      %p48 = por %p46, %p47
      %p49 = scmp.ne.s32.totalorder %s41, %s44
      %p50 = scmp.eq.s32.totalorder %s31, 0
      %p51 = por %p49, %p50
      %p52 = scmp.ne.s32.totalorder %s41, %s44
      %p53 = scmp.eq.s32.totalorder %s36, 1
      %p54 = por %p52, %p53
      %p55 = scmp.ne.s32.totalorder %s44, %s45
      %p56 = scmp.eq.s32.totalorder %s36, 0
      %p57 = por %p55, %p56
      %p58 = scmp.ne.s32.totalorder %s44, %s45
      %p59 = scmp.eq.s32.totalorder %s37, 1
      %p60 = por %p58, %p59
      %p62 = scmp.ne.s32.totalorder %s45, %s61
      %p63 = scmp.eq.s32.totalorder %s37, 0
      %p64 = por %p62, %p63
      %s66 = sadd.s32 %s65, 1
      %p69 = scmp.eq.s32.totalorder %s31, 1
      %p70 = scmp.ne.s32.totalorder %s65, %s67
      %p71 = scmp.eq.s32.totalorder %s31, 0
      %p72 = por %p70, %p71
      %p73 = scmp.ne.s32.totalorder %s65, %s67
      %p74 = scmp.eq.s32.totalorder %s36, 1
      %p75 = por %p73, %p74
      %p76 = scmp.ne.s32.totalorder %s67, %s68
      %p77 = scmp.eq.s32.totalorder %s36, 0
      %p78 = por %p76, %p77
      %p79 = scmp.ne.s32.totalorder %s67, %s68
      %p80 = scmp.eq.s32.totalorder %s37, 1
      %p81 = por %p79, %p80
      %p83 = scmp.ne.s32.totalorder %s68, %s82
      %p84 = scmp.eq.s32.totalorder %s37, 0
      %p85 = por %p83, %p84
      %s87 = sadd.s32 %s86, 1
      %p90 = scmp.eq.s32.totalorder %s31, 1
      %p91 = scmp.ne.s32.totalorder %s86, %s88
      %p92 = scmp.eq.s32.totalorder %s31, 0
      %p93 = por %p91, %p92
      %p94 = scmp.ne.s32.totalorder %s86, %s88
      %p95 = scmp.eq.s32.totalorder %s36, 1
      %p96 = por %p94, %p95
      %p97 = scmp.ne.s32.totalorder %s88, %s89
      %p98 = scmp.eq.s32.totalorder %s36, 0
      %p99 = por %p97, %p98
      %p100 = scmp.ne.s32.totalorder %s88, %s89
      %p101 = scmp.eq.s32.totalorder %s37, 1
      %p102 = por %p100, %p101
      %p104 = scmp.ne.s32.totalorder %s89, %s103
      %p105 = scmp.eq.s32.totalorder %s37, 0
      %p106 = por %p104, %p105
      %s108 = sadd.s32 %s107, 1
      %p111 = scmp.eq.s32.totalorder %s31, 1
      %p112 = scmp.ne.s32.totalorder %s107, %s109
      %p113 = scmp.eq.s32.totalorder %s31, 0
      %p114 = por %p112, %p113
      %p115 = scmp.ne.s32.totalorder %s107, %s109
      %p116 = scmp.eq.s32.totalorder %s36, 1
      %p117 = por %p115, %p116
      %p118 = scmp.ne.s32.totalorder %s109, %s110
      %p119 = scmp.eq.s32.totalorder %s36, 0
      %p120 = por %p118, %p119
      %p121 = scmp.ne.s32.totalorder %s109, %s110
      %p122 = scmp.eq.s32.totalorder %s37, 1
      %p123 = por %p121, %p122
      %p125 = scmp.ne.s32.totalorder %s110, %s124
      %p126 = scmp.eq.s32.totalorder %s37, 0
      %p127 = por %p125, %p126
      %s129 = sadd.s32 %s128, 1
      %p132 = scmp.eq.s32.totalorder %s31, 1
      %p133 = scmp.ne.s32.totalorder %s128, %s130
      %p134 = scmp.eq.s32.totalorder %s31, 0
      %p135 = por %p133, %p134
      %p136 = scmp.ne.s32.totalorder %s128, %s130
      %p137 = scmp.eq.s32.totalorder %s36, 1
      %p138 = por %p136, %p137
      %p139 = scmp.ne.s32.totalorder %s130, %s131
      %p140 = scmp.eq.s32.totalorder %s36, 0
      %p141 = por %p139, %p140
      %p142 = scmp.ne.s32.totalorder %s130, %s131
      %p143 = scmp.eq.s32.totalorder %s37, 1
      %p144 = por %p142, %p143
      %p146 = scmp.ne.s32.totalorder %s131, %s145
      %p147 = scmp.eq.s32.totalorder %s37, 0
      %p148 = por %p146, %p147
      %s150 = sadd.s32 %s149, 1
      %p153 = scmp.eq.s32.totalorder %s31, 1
      %p154 = scmp.ne.s32.totalorder %s149, %s151
      %p155 = scmp.eq.s32.totalorder %s31, 0
      %p156 = por %p154, %p155
      %p157 = scmp.ne.s32.totalorder %s149, %s151
      %p158 = scmp.eq.s32.totalorder %s36, 1
      %p159 = por %p157, %p158
      %p160 = scmp.ne.s32.totalorder %s151, %s152
      %p161 = scmp.eq.s32.totalorder %s36, 0
      %p162 = por %p160, %p161
      %p163 = scmp.ne.s32.totalorder %s151, %s152
      %p164 = scmp.eq.s32.totalorder %s37, 1
      %p165 = por %p163, %p164
      %p167 = scmp.ne.s32.totalorder %s152, %s166
      %p168 = scmp.eq.s32.totalorder %s37, 0
      %p169 = por %p167, %p168
      %s171 = sadd.s32 %s170, 1
      %p174 = scmp.eq.s32.totalorder %s31, 1
      %p175 = scmp.ne.s32.totalorder %s170, %s172
      %p176 = scmp.eq.s32.totalorder %s31, 0
      %p177 = por %p175, %p176
      %p178 = scmp.ne.s32.totalorder %s170, %s172
      %p179 = scmp.eq.s32.totalorder %s36, 1
      %p180 = por %p178, %p179
      %p181 = scmp.ne.s32.totalorder %s172, %s173
      %p182 = scmp.eq.s32.totalorder %s36, 0
      %p183 = por %p181, %p182
      %p184 = scmp.ne.s32.totalorder %s172, %s173
      %p185 = scmp.eq.s32.totalorder %s37, 1
      %p186 = por %p184, %p185
      %p188 = scmp.ne.s32.totalorder %s173, %s187
      %p189 = scmp.eq.s32.totalorder %s37, 0
      %p190 = por %p188, %p189
      %s192 = sadd.s32 %s191, 1
      %p195 = scmp.eq.s32.totalorder %s31, 1
      %p196 = scmp.ne.s32.totalorder %s191, %s193
      %p197 = scmp.eq.s32.totalorder %s31, 0
      %p198 = por %p196, %p197
      %p199 = scmp.ne.s32.totalorder %s191, %s193
      %p200 = scmp.eq.s32.totalorder %s36, 1
      %p201 = por %p199, %p200
      %p202 = scmp.ne.s32.totalorder %s193, %s194
      %p203 = scmp.eq.s32.totalorder %s36, 0
      %p204 = por %p202, %p203
      %p205 = scmp.ne.s32.totalorder %s193, %s194
      %p206 = scmp.eq.s32.totalorder %s37, 1
      %p207 = por %p205, %p206
      %p209 = scmp.ne.s32.totalorder %s194, %s208
      %p210 = scmp.eq.s32.totalorder %s37, 0
      %p211 = por %p209, %p210
      %s213 = sadd.s32 %s212, 1
      %p216 = scmp.eq.s32.totalorder %s31, 1
      %p217 = scmp.ne.s32.totalorder %s212, %s214
      %p218 = scmp.eq.s32.totalorder %s31, 0
      %p219 = por %p217, %p218
      %p220 = scmp.ne.s32.totalorder %s212, %s214
      %p221 = scmp.eq.s32.totalorder %s36, 1
      %p222 = por %p220, %p221
      %p223 = scmp.ne.s32.totalorder %s214, %s215
      %p224 = scmp.eq.s32.totalorder %s36, 0
      %p225 = por %p223, %p224
      %p226 = scmp.ne.s32.totalorder %s214, %s215
      %p227 = scmp.eq.s32.totalorder %s37, 1
      %p228 = por %p226, %p227
      %p230 = scmp.ne.s32.totalorder %s215, %s229
      %p231 = scmp.eq.s32.totalorder %s37, 0
      %p232 = por %p230, %p231
      %s234 = sadd.s32 %s233, 1
      %p237 = scmp.eq.s32.totalorder %s31, 1
      %p238 = scmp.ne.s32.totalorder %s233, %s235
      %p239 = scmp.eq.s32.totalorder %s31, 0
      %p240 = por %p238, %p239
      %p241 = scmp.ne.s32.totalorder %s233, %s235
      %p242 = scmp.eq.s32.totalorder %s36, 1
      %p243 = por %p241, %p242
      %p244 = scmp.ne.s32.totalorder %s235, %s236
      %p245 = scmp.eq.s32.totalorder %s36, 0
      %p246 = por %p244, %p245
      %p247 = scmp.ne.s32.totalorder %s235, %s236
      %p248 = scmp.eq.s32.totalorder %s37, 1
      %p249 = por %p247, %p248
      %p251 = scmp.ne.s32.totalorder %s236, %s250
      %p252 = scmp.eq.s32.totalorder %s37, 0
      %p253 = por %p251, %p252
      %s255 = sadd.s32 %s254, 1
      %p258 = scmp.eq.s32.totalorder %s31, 1
      %p259 = scmp.ne.s32.totalorder %s254, %s256
      %p260 = scmp.eq.s32.totalorder %s31, 0
      %p261 = por %p259, %p260
      %p262 = scmp.ne.s32.totalorder %s254, %s256
      %p263 = scmp.eq.s32.totalorder %s36, 1
      %p264 = por %p262, %p263
      %p265 = scmp.ne.s32.totalorder %s256, %s257
      %p266 = scmp.eq.s32.totalorder %s36, 0
      %p267 = por %p265, %p266
      %p268 = scmp.ne.s32.totalorder %s256, %s257
      %p269 = scmp.eq.s32.totalorder %s37, 1
      %p270 = por %p268, %p269
      %p272 = scmp.ne.s32.totalorder %s257, %s271
      %p273 = scmp.eq.s32.totalorder %s37, 0
      %p274 = por %p272, %p273
      %s276 = sadd.s32 %s275, 1
      %p279 = scmp.eq.s32.totalorder %s31, 1
      %p280 = scmp.ne.s32.totalorder %s275, %s277
      %p281 = scmp.eq.s32.totalorder %s31, 0
      %p282 = por %p280, %p281
      %p283 = scmp.ne.s32.totalorder %s275, %s277
      %p284 = scmp.eq.s32.totalorder %s36, 1
      %p285 = por %p283, %p284
      %p286 = scmp.ne.s32.totalorder %s277, %s278
      %p287 = scmp.eq.s32.totalorder %s36, 0
      %p288 = por %p286, %p287
      %p289 = scmp.ne.s32.totalorder %s277, %s278
      %p290 = scmp.eq.s32.totalorder %s37, 1
      %p291 = por %p289, %p290
      %p293 = scmp.ne.s32.totalorder %s278, %s292
      %p294 = scmp.eq.s32.totalorder %s37, 0
      %p295 = por %p293, %p294
      %s297 = sadd.s32 %s296, 1
      %p300 = scmp.eq.s32.totalorder %s31, 1
      %p301 = scmp.ne.s32.totalorder %s296, %s298
      %p302 = scmp.eq.s32.totalorder %s31, 0
      %p303 = por %p301, %p302
      %p304 = scmp.ne.s32.totalorder %s296, %s298
      %p305 = scmp.eq.s32.totalorder %s36, 1
      %p306 = por %p304, %p305
      %p307 = scmp.ne.s32.totalorder %s298, %s299
      %p308 = scmp.eq.s32.totalorder %s36, 0
      %p309 = por %p307, %p308
      %p310 = scmp.ne.s32.totalorder %s298, %s299
      %p311 = scmp.eq.s32.totalorder %s37, 1
      %p312 = por %p310, %p311
      %p314 = scmp.ne.s32.totalorder %s299, %s313
      %p315 = scmp.eq.s32.totalorder %s37, 0
      %p316 = por %p314, %p315
      %s318 = sadd.s32 %s317, 1
      %p321 = scmp.eq.s32.totalorder %s31, 1
      %p322 = scmp.ne.s32.totalorder %s317, %s319
      %p323 = scmp.eq.s32.totalorder %s31, 0
      %p324 = por %p322, %p323
      %p325 = scmp.ne.s32.totalorder %s317, %s319
      %p326 = scmp.eq.s32.totalorder %s36, 1
      %p327 = por %p325, %p326
      %p328 = scmp.ne.s32.totalorder %s319, %s320
      %p329 = scmp.eq.s32.totalorder %s36, 0
      %p330 = por %p328, %p329
      %p331 = scmp.ne.s32.totalorder %s319, %s320
      %p332 = scmp.eq.s32.totalorder %s37, 1
      %p333 = por %p331, %p332
      %p335 = scmp.ne.s32.totalorder %s320, %s334
      %p336 = scmp.eq.s32.totalorder %s37, 0
      %p337 = por %p335, %p336
      %s338 = ssub.s32 %s31, %s38
      %p339 = scmp.eq.s32.totalorder %s338, 0
      %s341 = sadd.s32 %s340, 1
      %s342 = scalar_select %p339, %s340, %s341
      %p345 = pneg %p339
      %p346 = scmp.eq.s32.totalorder %s31, 1
      %p347 = por %p345, %p346
      %p348 = scmp.ne.s32.totalorder %s340, %s343
      %p349 = scmp.eq.s32.totalorder %s31, 0
      %p350 = por %p348, %p349
      %p351 = scmp.ne.s32.totalorder %s340, %s343
      %p352 = scmp.eq.s32.totalorder %s36, 1
      %p353 = por %p351, %p352
      %p354 = scmp.ne.s32.totalorder %s343, %s344
      %p355 = scmp.eq.s32.totalorder %s36, 0
      %p356 = por %p354, %p355
      %p357 = scmp.ne.s32.totalorder %s343, %s344
      %p358 = scmp.eq.s32.totalorder %s37, 1
      %p359 = por %p357, %p358
      %p361 = scmp.ne.s32.totalorder %s344, %s360
      %p362 = scmp.eq.s32.totalorder %s37, 0
      %p363 = por %p361, %p362
      %p364 = scmp.le.s32.totalorder 1, %s31
      %p365 = scmp.lt.s32.totalorder %s31, 3
      %p366 = pnand %p364, %p365
      %p367 = pneg %p366
      // Predicated region
      $region9: #{tpu_custom_call.1} parent=5 // pred_check
        _
      $region10: #{tpu_custom_call.1} parent=5 // pred_check_branch
        %369 = sbr.rel (%p366) target = $region12
      $region11: #{tpu_custom_call.1} parent=5 // pred_region
        %s370 = ssub.s32 %s31, 1
        // Predicated region
        $region13: #{tpu_custom_call.1} parent=11 // pred_check
          %p371 = pneg %p78
        $region14: #{tpu_custom_call.1} parent=11 // pred_check_branch
          %373 = sbr.rel (%p371) target = $region16
        $region15: #{tpu_custom_call.1} parent=11 // pred_region
          %s375 = ssub.s32 256, 256
          %376 = vsyncadd [#allocation7], %s375
          %s377 = sshll.u32 [#allocation6], 4
          %s378 = int_to_ptr.vmem [resolvable:$true] %s377
          %383 = dma.hbm_to_vmem [thread:$0]  %s1, 256, %s378, [#allocation7], 128, 128, 8
        $region16: #{tpu_custom_call.1} parent=11 // pred_fallthru
          _
        // Predicated region
        $region17: #{tpu_custom_call.1} parent=11 // pred_check
          %p384 = pneg %p99
        $region18: #{tpu_custom_call.1} parent=11 // pred_check_branch
          %386 = sbr.rel (%p384) target = $region20
        $region19: #{tpu_custom_call.1} parent=11 // pred_region
          %s388 = ssub.s32 16, 16
          %389 = vsyncadd [#allocation7], %s388
          %s391 = sshll.u32 [#allocation8], 4
          %s392 = int_to_ptr.vmem [resolvable:$true] %s391
          %394 = dma.hbm_to_vmem [thread:$0]  %s2, 16, %s392, [#allocation7]
        $region20: #{tpu_custom_call.1} parent=11 // pred_fallthru
          _
        // Predicated region
        $region21: #{tpu_custom_call.1} parent=11 // pred_check
          %p395 = pneg %p120
        $region22: #{tpu_custom_call.1} parent=11 // pred_check_branch
          %397 = sbr.rel (%p395) target = $region24
        $region23: #{tpu_custom_call.1} parent=11 // pred_region
          %s399 = ssub.s32 16, 16
          %400 = vsyncadd [#allocation10], %s399
          %s402 = sshll.u32 [#allocation9], 4
          %s403 = int_to_ptr.vmem [resolvable:$true] %s402
          %405 = dma.hbm_to_vmem [thread:$0]  %s3, 16, %s403, [#allocation10]
        $region24: #{tpu_custom_call.1} parent=11 // pred_fallthru
          _
        // Predicated region
        $region25: #{tpu_custom_call.1} parent=11 // pred_check
          %p406 = pneg %p141
        $region26: #{tpu_custom_call.1} parent=11 // pred_check_branch
          %408 = sbr.rel (%p406) target = $region28
        $region27: #{tpu_custom_call.1} parent=11 // pred_region
          %s410 = ssub.s32 1024, 1024
          %411 = vsyncadd [#allocation10], %s410
          %s412 = sshll.u32 [#allocation11], 4
          %s413 = int_to_ptr.vmem [resolvable:$true] %s412
          %418 = dma.hbm_to_vmem [thread:$0]  %s4, 1024, %s413, [#allocation10], 64, 64, 4
        $region28: #{tpu_custom_call.1} parent=11 // pred_fallthru
          _
        // Predicated region
        $region29: #{tpu_custom_call.1} parent=11 // pred_check
          %p419 = pneg %p162
        $region30: #{tpu_custom_call.1} parent=11 // pred_check_branch
          %421 = sbr.rel (%p419) target = $region32
        $region31: #{tpu_custom_call.1} parent=11 // pred_region
          %s423 = ssub.s32 256, 256
          %424 = vsyncadd [#allocation13], %s423
          %s425 = sshll.u32 [#allocation12], 4
          %s426 = int_to_ptr.vmem [resolvable:$true] %s425
          %431 = dma.hbm_to_vmem [thread:$0]  %s5, 256, %s426, [#allocation13], 128, 128, 8
        $region32: #{tpu_custom_call.1} parent=11 // pred_fallthru
          _
        // Predicated region
        $region33: #{tpu_custom_call.1} parent=11 // pred_check
          %p432 = pneg %p183
        $region34: #{tpu_custom_call.1} parent=11 // pred_check_branch
          %434 = sbr.rel (%p432) target = $region36
        $region35: #{tpu_custom_call.1} parent=11 // pred_region
          %s436 = ssub.s32 16, 16
          %437 = vsyncadd [#allocation13], %s436
          %s439 = sshll.u32 [#allocation14], 4
          %s440 = int_to_ptr.vmem [resolvable:$true] %s439
          %442 = dma.hbm_to_vmem [thread:$0]  %s6, 16, %s440, [#allocation13]
        $region36: #{tpu_custom_call.1} parent=11 // pred_fallthru
          _
        // Predicated region
        $region37: #{tpu_custom_call.1} parent=11 // pred_check
          %p443 = pneg %p204
        $region38: #{tpu_custom_call.1} parent=11 // pred_check_branch
          %445 = sbr.rel (%p443) target = $region40
        $region39: #{tpu_custom_call.1} parent=11 // pred_region
          %s447 = ssub.s32 16, 16
          %448 = vsyncadd [#allocation16], %s447
          %s450 = sshll.u32 [#allocation15], 4
          %s451 = int_to_ptr.vmem [resolvable:$true] %s450
          %453 = dma.hbm_to_vmem [thread:$0]  %s7, 16, %s451, [#allocation16]
        $region40: #{tpu_custom_call.1} parent=11 // pred_fallthru
          _
        // Predicated region
        $region41: #{tpu_custom_call.1} parent=11 // pred_check
          %p454 = pneg %p225
        $region42: #{tpu_custom_call.1} parent=11 // pred_check_branch
          %456 = sbr.rel (%p454) target = $region44
        $region43: #{tpu_custom_call.1} parent=11 // pred_region
          %s458 = ssub.s32 1024, 1024
          %459 = vsyncadd [#allocation16], %s458
          %s460 = sshll.u32 [#allocation17], 4
          %s461 = int_to_ptr.vmem [resolvable:$true] %s460
          %466 = dma.hbm_to_vmem [thread:$0]  %s8, 1024, %s461, [#allocation16], 64, 64, 4
        $region44: #{tpu_custom_call.1} parent=11 // pred_fallthru
          _
        // Predicated region
        $region45: #{tpu_custom_call.1} parent=11 // pred_check
          %p467 = pneg %p246
        $region46: #{tpu_custom_call.1} parent=11 // pred_check_branch
          %469 = sbr.rel (%p467) target = $region48
        $region47: #{tpu_custom_call.1} parent=11 // pred_region
          _
        $region48: #{tpu_custom_call.1} parent=11 // pred_fallthru
          _
        // Predicated region
        $region49: #{tpu_custom_call.1} parent=11 // pred_check
          %p470 = pneg %p267
        $region50: #{tpu_custom_call.1} parent=11 // pred_check_branch
          %472 = sbr.rel (%p470) target = $region52
        $region51: #{tpu_custom_call.1} parent=11 // pred_region
          _
        $region52: #{tpu_custom_call.1} parent=11 // pred_fallthru
          _
        // Predicated region
        $region53: #{tpu_custom_call.1} parent=11 // pred_check
          %p473 = pneg %p288
        $region54: #{tpu_custom_call.1} parent=11 // pred_check_branch
          %475 = sbr.rel (%p473) target = $region56
        $region55: #{tpu_custom_call.1} parent=11 // pred_region
          _
        $region56: #{tpu_custom_call.1} parent=11 // pred_fallthru
          _
        // Predicated region
        $region57: #{tpu_custom_call.1} parent=11 // pred_check
          %p476 = pneg %p309
        $region58: #{tpu_custom_call.1} parent=11 // pred_check_branch
          %478 = sbr.rel (%p476) target = $region60
        $region59: #{tpu_custom_call.1} parent=11 // pred_region
          %s480 = ssub.s32 1024, 1024
          %481 = vsyncadd [#allocation19], %s480
          %s482 = sshll.u32 [#allocation18], 4
          %s483 = int_to_ptr.vmem [resolvable:$true] %s482
          %488 = dma.hbm_to_vmem [thread:$0]  %s12, 1024, %s483, [#allocation19], 64, 64, 4
        $region60: #{tpu_custom_call.1} parent=11 // pred_fallthru
          _
        // Predicated region
        $region61: #{tpu_custom_call.1} parent=11 // pred_check
          %p489 = pneg %p330
        $region62: #{tpu_custom_call.1} parent=11 // pred_check_branch
          %491 = sbr.rel (%p489) target = $region64
        $region63: #{tpu_custom_call.1} parent=11 // pred_region
          %s493 = ssub.s32 1024, 1024
          %494 = vsyncadd [#allocation19], %s493
          %s495 = sshll.u32 [#allocation20], 4
          %s496 = int_to_ptr.vmem [resolvable:$true] %s495
          %501 = dma.hbm_to_vmem [thread:$0]  %s13, 1024, %s496, [#allocation19], 64, 64, 4
        $region64: #{tpu_custom_call.1} parent=11 // pred_fallthru
          _
      $region12: #{tpu_custom_call.1} parent=5 // pred_fallthru
        _
      %p502 = scmp.lt.s32.totalorder %s31, 2
      // Predicated region
      $region65: #{tpu_custom_call.1} parent=5 // pred_check
        %p503 = pneg %p502
      $region66: #{tpu_custom_call.1} parent=5 // pred_check_branch
        %505 = sbr.rel (%p503) target = $region68
      $region67: #{tpu_custom_call.1} parent=5 // pred_region
        // Predicated region
        $region69: #{tpu_custom_call.1} parent=67 // pred_check
          %p506 = pneg %p51
        $region70: #{tpu_custom_call.1} parent=67 // pred_check_branch
          %508 = sbr.rel (%p506) target = $region72
        $region71: #{tpu_custom_call.1} parent=67 // pred_region
          %s509 = sand.u32 %s41, 1
          %s510 = scalar_lea.sflag [#allocation4], %s509
          %s511 = sand.u32 %s41, 1
          %s512 = smul.addr %s511, 256
          %s513 = scalar_lea.vmem [#allocation3], %s512
          %s515 = ssub.s32 4096, 4096
          %516 = vsyncadd %s510, %s515
          %s517 = smul.addr %s31, 32
          %s518 = smul.addr %s517, 128
          %s519 = scalar_lea.hbm %s0, %s518
          %s520 = sshll.u32 %s513, 4
          %s521 = int_to_ptr.vmem [resolvable:$true] %s520
          %526 = dma.hbm_to_vmem [thread:$0]  %s519, 4096, %s521, %s510, 128, 128, 8
        $region72: #{tpu_custom_call.1} parent=67 // pred_fallthru
          _
      $region68: #{tpu_custom_call.1} parent=5 // pred_fallthru
        _
      %p527 = scmp.le.s32.totalorder 1, %s31
      %p528 = scmp.lt.s32.totalorder %s31, 3
      %p529 = pnand %p527, %p528
      %p530 = pneg %p529
      // Predicated region
      $region73: #{tpu_custom_call.1} parent=5 // pred_check
        _
      $region74: #{tpu_custom_call.1} parent=5 // pred_check_branch
        %532 = sbr.rel (%p529) target = $region76
      $region75: #{tpu_custom_call.1} parent=5 // pred_region
        %s533 = ssub.s32 %s31, 1
        %s534 = sand.u32 %s44, 1
        %s535 = scalar_lea.sflag [#allocation4], %s534
        %s536 = sand.u32 %s44, 1
        %s537 = smul.addr %s536, 256
        %s538 = scalar_lea.vmem [#allocation3], %s537
        // Predicated region
        $region77: #{tpu_custom_call.1} parent=75 // pred_check
          %p539 = pneg %p57
        $region78: #{tpu_custom_call.1} parent=75 // pred_check_branch
          %541 = sbr.rel (%p539) target = $region80
        $region79: #{tpu_custom_call.1} parent=75 // pred_region
          %542 = dma.done %s535, 4096
        $region80: #{tpu_custom_call.1} parent=75 // pred_fallthru
          _
        // Predicated region
        $region81: #{tpu_custom_call.1} parent=75 // pred_check
          %p543 = pneg %p78
        $region82: #{tpu_custom_call.1} parent=75 // pred_check_branch
          %545 = sbr.rel (%p543) target = $region84
        $region83: #{tpu_custom_call.1} parent=75 // pred_region
          %546 = dma.done [#allocation7], 256
        $region84: #{tpu_custom_call.1} parent=75 // pred_fallthru
          _
        // Predicated region
        $region85: #{tpu_custom_call.1} parent=75 // pred_check
          %p547 = pneg %p99
        $region86: #{tpu_custom_call.1} parent=75 // pred_check_branch
          %549 = sbr.rel (%p547) target = $region88
        $region87: #{tpu_custom_call.1} parent=75 // pred_region
          %550 = dma.done [#allocation7], 16
        $region88: #{tpu_custom_call.1} parent=75 // pred_fallthru
          _
        // Predicated region
        $region89: #{tpu_custom_call.1} parent=75 // pred_check
          %p551 = pneg %p120
        $region90: #{tpu_custom_call.1} parent=75 // pred_check_branch
          %553 = sbr.rel (%p551) target = $region92
        $region91: #{tpu_custom_call.1} parent=75 // pred_region
          %554 = dma.done [#allocation10], 16
        $region92: #{tpu_custom_call.1} parent=75 // pred_fallthru
          _
        // Predicated region
        $region93: #{tpu_custom_call.1} parent=75 // pred_check
          %p555 = pneg %p141
        $region94: #{tpu_custom_call.1} parent=75 // pred_check_branch
          %557 = sbr.rel (%p555) target = $region96
        $region95: #{tpu_custom_call.1} parent=75 // pred_region
          %558 = dma.done [#allocation10], 1024
        $region96: #{tpu_custom_call.1} parent=75 // pred_fallthru
          _
        // Predicated region
        $region97: #{tpu_custom_call.1} parent=75 // pred_check
          %p559 = pneg %p162
        $region98: #{tpu_custom_call.1} parent=75 // pred_check_branch
          %561 = sbr.rel (%p559) target = $region100
        $region99: #{tpu_custom_call.1} parent=75 // pred_region
          %562 = dma.done [#allocation13], 256
        $region100: #{tpu_custom_call.1} parent=75 // pred_fallthru
          _
        // Predicated region
        $region101: #{tpu_custom_call.1} parent=75 // pred_check
          %p563 = pneg %p183
        $region102: #{tpu_custom_call.1} parent=75 // pred_check_branch
          %565 = sbr.rel (%p563) target = $region104
        $region103: #{tpu_custom_call.1} parent=75 // pred_region
          %566 = dma.done [#allocation13], 16
        $region104: #{tpu_custom_call.1} parent=75 // pred_fallthru
          _
        // Predicated region
        $region105: #{tpu_custom_call.1} parent=75 // pred_check
          %p567 = pneg %p204
        $region106: #{tpu_custom_call.1} parent=75 // pred_check_branch
          %569 = sbr.rel (%p567) target = $region108
        $region107: #{tpu_custom_call.1} parent=75 // pred_region
          %570 = dma.done [#allocation16], 16
        $region108: #{tpu_custom_call.1} parent=75 // pred_fallthru
          _
        // Predicated region
        $region109: #{tpu_custom_call.1} parent=75 // pred_check
          %p571 = pneg %p225
        $region110: #{tpu_custom_call.1} parent=75 // pred_check_branch
          %573 = sbr.rel (%p571) target = $region112
        $region111: #{tpu_custom_call.1} parent=75 // pred_region
          %574 = dma.done [#allocation16], 1024
        $region112: #{tpu_custom_call.1} parent=75 // pred_fallthru
          _
        // Predicated region
        $region113: #{tpu_custom_call.1} parent=75 // pred_check
          %p575 = pneg %p309
        $region114: #{tpu_custom_call.1} parent=75 // pred_check_branch
          %577 = sbr.rel (%p575) target = $region116
        $region115: #{tpu_custom_call.1} parent=75 // pred_region
          %578 = dma.done [#allocation19], 1024
        $region116: #{tpu_custom_call.1} parent=75 // pred_fallthru
          _
        // Predicated region
        $region117: #{tpu_custom_call.1} parent=75 // pred_check
          %p579 = pneg %p330
        $region118: #{tpu_custom_call.1} parent=75 // pred_check_branch
          %581 = sbr.rel (%p579) target = $region120
        $region119: #{tpu_custom_call.1} parent=75 // pred_region
          %582 = dma.done [#allocation19], 1024
        $region120: #{tpu_custom_call.1} parent=75 // pred_fallthru
          _
        %s583 = sand.u32 %s44, 1
        %s584 = scalar_lea.sflag [#allocation4], %s583
        %s585 = sand.u32 %s44, 1
        %s586 = smul.addr %s585, 256
        %s587 = scalar_lea.vmem [#allocation3], %s586
        %p588 = pneg %p57
        %p589 = pneg %p54
        %p590 = pneg %p78
        %p591 = pneg %p75
        %p592 = pneg %p99
        %p593 = pneg %p96
        %p594 = pneg %p120
        %p595 = pneg %p117
        %p596 = pneg %p141
        %p597 = pneg %p138
        %p598 = pneg %p162
        %p599 = pneg %p159
        %p600 = pneg %p183
        %p601 = pneg %p180
        %p602 = pneg %p204
        %p603 = pneg %p201
        %p604 = pneg %p225
        %p605 = pneg %p222
        %p606 = pneg %p246
        %p607 = pneg %p243
        %p608 = pneg %p267
        %p609 = pneg %p264
        %p610 = pneg %p288
        %p611 = pneg %p285
        %p612 = pneg %p309
        %p613 = pneg %p306
        %p614 = pneg %p330
        %p615 = pneg %p327
        %p616 = pneg %p356
        %p617 = pneg %p353
        %s618 = sand.u32 %s343, 1
        %s619 = scalar_lea.sflag [#allocation5], %s618
        %s620 = sand.u32 %s343, 1
        %s621 = smul.addr %s620, 256
        %s622 = scalar_lea.vmem [#allocation21], %s621
        %624 = vst [vmem:[#allocation2] sm:$0xff] 0.0
        %625 = vst [vmem:[#allocation2 + $0x8] sm:$0xff] 0.0
        %626 = vst [vmem:[#allocation2 + $0x10] sm:$0xff] 0.0
        %s627 = scalar_lea.vmem [#allocation2], 408
        %628 = vst [vmem:[%s627] sm:$0xff] 0.0
        %629 = vst [vmem:[%s627 + $0x8] sm:$0xff] 0.0
        %630 = vst [vmem:[%s627 + $0x10] sm:$0xff] 0.0
        %s631 = scalar_lea.vmem [#allocation2], 24
        %632 = vst [vmem:[%s631 + $0x10] sm:$0xff] 0.0
        %633 = vst [vmem:[%s631 + $0x28] sm:$0xff] 0.0
        %634 = vst [vmem:[%s631 + $0x40] sm:$0xff] 0.0
        %635 = vst [vmem:[%s631 + $0x58] sm:$0xff] 0.0
        %636 = vst [vmem:[%s631 + $0x70] sm:$0xff] 0.0
        %637 = vst [vmem:[%s631 + $0x88] sm:$0xff] 0.0
        %638 = vst [vmem:[%s631 + $0xa0] sm:$0xff] 0.0
        %639 = vst [vmem:[%s631 + $0xb8] sm:$0xff] 0.0
        %640 = vst [vmem:[%s631 + $0xd0] sm:$0xff] 0.0
        %641 = vst [vmem:[%s631 + $0xe8] sm:$0xff] 0.0
        %642 = vst [vmem:[%s631 + $0x100] sm:$0xff] 0.0
        %643 = vst [vmem:[%s631 + $0x118] sm:$0xff] 0.0
        %644 = vst [vmem:[%s631 + $0x130] sm:$0xff] 0.0
        %645 = vst [vmem:[%s631 + $0x148] sm:$0xff] 0.0
        %646 = vst [vmem:[%s631 + $0x160] sm:$0xff] 0.0
        %647 = vst [vmem:[%s631 + $0x178] sm:$0xff] 0.0
        %v648 = vld [vmem:[%s538] sm:$0xff]
        %v649 = vld [vmem:[%s538 + $0x8] sm:$0xff]
        %v650 = vld [vmem:[%s538 + $0x10] sm:$0xff]
        %v651 = vld [vmem:[%s538 + $0x18] sm:$0xff]
        %v652 = vld [vmem:[%s538 + $0x20] sm:$0xff]
        %v653 = vld [vmem:[%s538 + $0x28] sm:$0xff]
        %v654 = vld [vmem:[%s538 + $0x30] sm:$0xff]
        %v655 = vld [vmem:[%s538 + $0x38] sm:$0xff]
        %v656 = vld [vmem:[%s538 + $0x40] sm:$0xff]
        %v657 = vld [vmem:[%s538 + $0x48] sm:$0xff]
        %v658 = vld [vmem:[%s538 + $0x50] sm:$0xff]
        %v659 = vld [vmem:[%s538 + $0x58] sm:$0xff]
        %v660 = vld [vmem:[%s538 + $0x60] sm:$0xff]
        %v661 = vld [vmem:[%s538 + $0x68] sm:$0xff]
        %v662 = vld [vmem:[%s538 + $0x70] sm:$0xff]
        %v663 = vld [vmem:[%s538 + $0x78] sm:$0xff]
        %v664 = vld [vmem:[%s538 + $0x80] sm:$0xff]
        %v665 = vld [vmem:[%s538 + $0x88] sm:$0xff]
        %v666 = vld [vmem:[%s538 + $0x90] sm:$0xff]
        %v667 = vld [vmem:[%s538 + $0x98] sm:$0xff]
        %v668 = vld [vmem:[%s538 + $0xa0] sm:$0xff]
        %v669 = vld [vmem:[%s538 + $0xa8] sm:$0xff]
        %v670 = vld [vmem:[%s538 + $0xb0] sm:$0xff]
        %v671 = vld [vmem:[%s538 + $0xb8] sm:$0xff]
        %v672 = vld [vmem:[%s538 + $0xc0] sm:$0xff]
        %v673 = vld [vmem:[%s538 + $0xc8] sm:$0xff]
        %v674 = vld [vmem:[%s538 + $0xd0] sm:$0xff]
        %v675 = vld [vmem:[%s538 + $0xd8] sm:$0xff]
        %v676 = vld [vmem:[%s538 + $0xe0] sm:$0xff]
        %v677 = vld [vmem:[%s538 + $0xe8] sm:$0xff]
        %v678 = vld [vmem:[%s538 + $0xf0] sm:$0xff]
        %v679 = vld [vmem:[%s538 + $0xf8] sm:$0xff]
        %v680 = vld [vmem:[#allocation6] sm:$0xff]
        %v681 = vld [vmem:[#allocation6 + $0x8] sm:$0x1]
        %682 = vst [vmem:[%s631] sm:$0xff] %v648
        %683 = vst [vmem:[%s631 + $0x8] sm:$0xff] %v649
        %684 = vst [vmem:[%s631 + $0x18] sm:$0xff] %v650
        %685 = vst [vmem:[%s631 + $0x20] sm:$0xff] %v651
        %686 = vst [vmem:[%s631 + $0x30] sm:$0xff] %v652
        %687 = vst [vmem:[%s631 + $0x38] sm:$0xff] %v653
        %688 = vst [vmem:[%s631 + $0x48] sm:$0xff] %v654
        %689 = vst [vmem:[%s631 + $0x50] sm:$0xff] %v655
        %690 = vst [vmem:[%s631 + $0x60] sm:$0xff] %v656
        %691 = vst [vmem:[%s631 + $0x68] sm:$0xff] %v657
        %692 = vst [vmem:[%s631 + $0x78] sm:$0xff] %v658
        %693 = vst [vmem:[%s631 + $0x80] sm:$0xff] %v659
        %694 = vst [vmem:[%s631 + $0x90] sm:$0xff] %v660
        %695 = vst [vmem:[%s631 + $0x98] sm:$0xff] %v661
        %696 = vst [vmem:[%s631 + $0xa8] sm:$0xff] %v662
        %697 = vst [vmem:[%s631 + $0xb0] sm:$0xff] %v663
        %698 = vst [vmem:[%s631 + $0xc0] sm:$0xff] %v664
        %699 = vst [vmem:[%s631 + $0xc8] sm:$0xff] %v665
        %700 = vst [vmem:[%s631 + $0xd8] sm:$0xff] %v666
        %701 = vst [vmem:[%s631 + $0xe0] sm:$0xff] %v667
        %702 = vst [vmem:[%s631 + $0xf0] sm:$0xff] %v668
        %703 = vst [vmem:[%s631 + $0xf8] sm:$0xff] %v669
        %704 = vst [vmem:[%s631 + $0x108] sm:$0xff] %v670
        %705 = vst [vmem:[%s631 + $0x110] sm:$0xff] %v671
        %706 = vst [vmem:[%s631 + $0x120] sm:$0xff] %v672
        %707 = vst [vmem:[%s631 + $0x128] sm:$0xff] %v673
        %708 = vst [vmem:[%s631 + $0x138] sm:$0xff] %v674
        %709 = vst [vmem:[%s631 + $0x140] sm:$0xff] %v675
        %710 = vst [vmem:[%s631 + $0x150] sm:$0xff] %v676
        %711 = vst [vmem:[%s631 + $0x158] sm:$0xff] %v677
        %712 = vst [vmem:[%s631 + $0x168] sm:$0xff] %v678
        %713 = vst [vmem:[%s631 + $0x170] sm:$0xff] %v679
        %v714 = vld [vmem:[#allocation2] sm:$0xff]
        %v715 = vld [vmem:[#allocation2 + $0x8] sm:$0xff]
        %v716 = vld [vmem:[#allocation2 + $0x10] sm:$0xff]
        %v717 = vld [vmem:[#allocation2 + $0x18] sm:$0xff]
        %v718 = vld [vmem:[#allocation2 + $0x20] sm:$0xff]
        %v719 = vld [vmem:[#allocation2 + $0x28] sm:$0xff]
        %v720 = vld [vmem:[#allocation2 + $0x30] sm:$0xff]
        %v721 = vld [vmem:[#allocation2 + $0x38] sm:$0xff]
        %v722 = vld [vmem:[#allocation2 + $0x40] sm:$0xff]
        %v723 = vld [vmem:[#allocation2 + $0x48] sm:$0xff]
        %v724 = vld [vmem:[#allocation2 + $0x50] sm:$0xff]
        %v725 = vld [vmem:[#allocation2 + $0x58] sm:$0xff]
        %v726 = vld [vmem:[#allocation2 + $0x60] sm:$0xff]
        %v727 = vld [vmem:[#allocation2 + $0x68] sm:$0xff]
        %v728 = vld [vmem:[#allocation2 + $0x70] sm:$0xff]
        %v729 = vld [vmem:[#allocation2 + $0x78] sm:$0xff]
        %v730 = vld [vmem:[#allocation2 + $0x80] sm:$0xff]
        %v731 = vld [vmem:[#allocation2 + $0x88] sm:$0xff]
        %v732 = vld [vmem:[#allocation2 + $0x90] sm:$0xff]
        %v733 = vld [vmem:[#allocation2 + $0x98] sm:$0xff]
        %v734 = vld [vmem:[#allocation2 + $0xa0] sm:$0xff]
        %v735 = vld [vmem:[#allocation2 + $0xa8] sm:$0xff]
        %v736 = vld [vmem:[#allocation2 + $0xb0] sm:$0xff]
        %v737 = vld [vmem:[#allocation2 + $0xb8] sm:$0xff]
        %v738 = vld [vmem:[#allocation2 + $0xc0] sm:$0xff]
        %v739 = vld [vmem:[#allocation2 + $0xc8] sm:$0xff]
        %v740 = vld [vmem:[#allocation2 + $0xd0] sm:$0xff]
        %v741 = vld [vmem:[#allocation2 + $0xd8] sm:$0xff]
        %v742 = vld [vmem:[#allocation2 + $0xe0] sm:$0xff]
        %v743 = vld [vmem:[#allocation2 + $0xe8] sm:$0xff]
        %v744 = vld [vmem:[#allocation2 + $0xf0] sm:$0xff]
        %v745 = vld [vmem:[#allocation2 + $0xf8] sm:$0xff]
        %v746 = vld [vmem:[#allocation2 + $0x100] sm:$0xff]
        %v747 = vld [vmem:[#allocation2 + $0x108] sm:$0xff]
        %v748 = vld [vmem:[#allocation2 + $0x110] sm:$0xff]
        %v749 = vld [vmem:[#allocation2 + $0x118] sm:$0xff]
        %v750 = vld [vmem:[#allocation2 + $0x120] sm:$0xff]
        %v751 = vld [vmem:[#allocation2 + $0x128] sm:$0xff]
        %v752 = vld [vmem:[#allocation2 + $0x130] sm:$0xff]
        %v753 = vld [vmem:[#allocation2 + $0x138] sm:$0xff]
        %v754 = vld [vmem:[#allocation2 + $0x140] sm:$0xff]
        %v755 = vld [vmem:[#allocation2 + $0x148] sm:$0xff]
        %v756 = vld [vmem:[#allocation2 + $0x150] sm:$0xff]
        %v757 = vld [vmem:[#allocation2 + $0x158] sm:$0xff]
        %v758 = vld [vmem:[#allocation2 + $0x160] sm:$0xff]
        %v759 = vld [vmem:[#allocation2 + $0x168] sm:$0xff]
        %v760 = vld [vmem:[#allocation2 + $0x170] sm:$0xff]
        %v761 = vld [vmem:[#allocation2 + $0x178] sm:$0xff]
        %v762 = vrot.slane %v714, 7
        %v763 = vrot.slane %v717, 7
        %v764 = vrot.slane %v720, 7
        %v765 = vrot.slane %v723, 7
        %v766 = vrot.slane %v726, 7
        %v767 = vrot.slane %v729, 7
        %v768 = vrot.slane %v732, 7
        %v769 = vrot.slane %v735, 7
        %v770 = vrot.slane %v738, 7
        %v771 = vrot.slane %v741, 7
        %v772 = vrot.slane %v744, 7
        %v773 = vrot.slane %v747, 7
        %v774 = vrot.slane %v750, 7
        %v775 = vrot.slane %v753, 7
        %v776 = vrot.slane %v756, 7
        %v777 = vrot.slane %v759, 7
        %v778 = vrot.slane %v715, 7
        %v779 = vrot.slane %v718, 7
        %v780 = vrot.slane %v721, 7
        %v781 = vrot.slane %v724, 7
        %v782 = vrot.slane %v727, 7
        %v783 = vrot.slane %v730, 7
        %v784 = vrot.slane %v733, 7
        %v785 = vrot.slane %v736, 7
        %v786 = vrot.slane %v739, 7
        %v787 = vrot.slane %v742, 7
        %v788 = vrot.slane %v745, 7
        %v789 = vrot.slane %v748, 7
        %v790 = vrot.slane %v751, 7
        %v791 = vrot.slane %v754, 7
        %v792 = vrot.slane %v757, 7
        %v793 = vrot.slane %v760, 7
        %v794 = vrot.slane %v716, 7
        %v795 = vrot.slane %v719, 7
        %v796 = vrot.slane %v722, 7
        %v797 = vrot.slane %v725, 7
        %v798 = vrot.slane %v728, 7
        %v799 = vrot.slane %v731, 7
        %v800 = vrot.slane %v734, 7
        %v801 = vrot.slane %v737, 7
        %v802 = vrot.slane %v740, 7
        %v803 = vrot.slane %v743, 7
        %v804 = vrot.slane %v746, 7
        %v805 = vrot.slane %v749, 7
        %v806 = vrot.slane %v752, 7
        %v807 = vrot.slane %v755, 7
        %v808 = vrot.slane %v758, 7
        %v809 = vrot.slane %v761, 7
        %v810 = vlaneseq
        %v811 = vshrl.u32 %v810, 7
        %vm812 = vcmp.lt.s32.totalorder %v811, 1
        %v813 = vsel %vm812, %v762, %v778
        %v814 = vsel %vm812, %v763, %v779
        %v815 = vsel %vm812, %v764, %v780
        %v816 = vsel %vm812, %v765, %v781
        %v817 = vsel %vm812, %v766, %v782
        %v818 = vsel %vm812, %v767, %v783
        %v819 = vsel %vm812, %v768, %v784
        %v820 = vsel %vm812, %v769, %v785
        %v821 = vsel %vm812, %v770, %v786
        %v822 = vsel %vm812, %v771, %v787
        %v823 = vsel %vm812, %v772, %v788
        %v824 = vsel %vm812, %v773, %v789
        %v825 = vsel %vm812, %v774, %v790
        %v826 = vsel %vm812, %v775, %v791
        %v827 = vsel %vm812, %v776, %v792
        %v828 = vsel %vm812, %v777, %v793
        %v829 = vsel %vm812, %v794, %v762
        %v830 = vsel %vm812, %v795, %v763
        %v831 = vsel %vm812, %v796, %v764
        %v832 = vsel %vm812, %v797, %v765
        %v833 = vsel %vm812, %v798, %v766
        %v834 = vsel %vm812, %v799, %v767
        %v835 = vsel %vm812, %v800, %v768
        %v836 = vsel %vm812, %v801, %v769
        %v837 = vsel %vm812, %v802, %v770
        %v838 = vsel %vm812, %v803, %v771
        %v839 = vsel %vm812, %v804, %v772
        %v840 = vsel %vm812, %v805, %v773
        %v841 = vsel %vm812, %v806, %v774
        %v842 = vsel %vm812, %v807, %v775
        %v843 = vsel %vm812, %v808, %v776
        %v844 = vsel %vm812, %v809, %v777
        %v845 = vrot.slane %v714, 1
        %v846 = vrot.slane %v717, 1
        %v847 = vrot.slane %v720, 1
        %v848 = vrot.slane %v723, 1
        %v849 = vrot.slane %v726, 1
        %v850 = vrot.slane %v729, 1
        %v851 = vrot.slane %v732, 1
        %v852 = vrot.slane %v735, 1
        %v853 = vrot.slane %v738, 1
        %v854 = vrot.slane %v741, 1
        %v855 = vrot.slane %v744, 1
        %v856 = vrot.slane %v747, 1
        %v857 = vrot.slane %v750, 1
        %v858 = vrot.slane %v753, 1
        %v859 = vrot.slane %v756, 1
        %v860 = vrot.slane %v759, 1
        %v861 = vrot.slane %v715, 1
        %v862 = vrot.slane %v718, 1
        %v863 = vrot.slane %v721, 1
        %v864 = vrot.slane %v724, 1
        %v865 = vrot.slane %v727, 1
        %v866 = vrot.slane %v730, 1
        %v867 = vrot.slane %v733, 1
        %v868 = vrot.slane %v736, 1
        %v869 = vrot.slane %v739, 1
        %v870 = vrot.slane %v742, 1
        %v871 = vrot.slane %v745, 1
        %v872 = vrot.slane %v748, 1
        %v873 = vrot.slane %v751, 1
        %v874 = vrot.slane %v754, 1
        %v875 = vrot.slane %v757, 1
        %v876 = vrot.slane %v760, 1
        %v877 = vrot.slane %v716, 1
        %v878 = vrot.slane %v719, 1
        %v879 = vrot.slane %v722, 1
        %v880 = vrot.slane %v725, 1
        %v881 = vrot.slane %v728, 1
        %v882 = vrot.slane %v731, 1
        %v883 = vrot.slane %v734, 1
        %v884 = vrot.slane %v737, 1
        %v885 = vrot.slane %v740, 1
        %v886 = vrot.slane %v743, 1
        %v887 = vrot.slane %v746, 1
        %v888 = vrot.slane %v749, 1
        %v889 = vrot.slane %v752, 1
        %v890 = vrot.slane %v755, 1
        %v891 = vrot.slane %v758, 1
        %v892 = vrot.slane %v761, 1
        %vm893 = vcmp.lt.s32.totalorder %v811, 7
        %v894 = vsel %vm893, %v861, %v877
        %v895 = vsel %vm893, %v862, %v878
        %v896 = vsel %vm893, %v863, %v879
        %v897 = vsel %vm893, %v864, %v880
        %v898 = vsel %vm893, %v865, %v881
        %v899 = vsel %vm893, %v866, %v882
        %v900 = vsel %vm893, %v867, %v883
        %v901 = vsel %vm893, %v868, %v884
        %v902 = vsel %vm893, %v869, %v885
        %v903 = vsel %vm893, %v870, %v886
        %v904 = vsel %vm893, %v871, %v887
        %v905 = vsel %vm893, %v872, %v888
        %v906 = vsel %vm893, %v873, %v889
        %v907 = vsel %vm893, %v874, %v890
        %v908 = vsel %vm893, %v875, %v891
        %v909 = vsel %vm893, %v876, %v892
        %v910 = vsel %vm893, %v845, %v861
        %v911 = vsel %vm893, %v846, %v862
        %v912 = vsel %vm893, %v847, %v863
        %v913 = vsel %vm893, %v848, %v864
        %v914 = vsel %vm893, %v849, %v865
        %v915 = vsel %vm893, %v850, %v866
        %v916 = vsel %vm893, %v851, %v867
        %v917 = vsel %vm893, %v852, %v868
        %v918 = vsel %vm893, %v853, %v869
        %v919 = vsel %vm893, %v854, %v870
        %v920 = vsel %vm893, %v855, %v871
        %v921 = vsel %vm893, %v856, %v872
        %v922 = vsel %vm893, %v857, %v873
        %v923 = vsel %vm893, %v858, %v874
        %v924 = vsel %vm893, %v859, %v875
        %v925 = vsel %vm893, %v860, %v876
        %v926 = vlaneseq
        %v927 = vshrl.u32 %v926, 7
        %v928 = vsub.s32 0, %v927
        %v929 = vrot.slane %v680, %v928
        %v930 = vmul.f32 %v829, %v929
        %v931 = vmul.f32 %v813, %v929
        %v932 = vmul.f32 %v830, %v929
        %v933 = vmul.f32 %v814, %v929
        %v934 = vmul.f32 %v831, %v929
        %v935 = vmul.f32 %v815, %v929
        %v936 = vmul.f32 %v832, %v929
        %v937 = vmul.f32 %v816, %v929
        %v938 = vmul.f32 %v833, %v929
        %v939 = vmul.f32 %v817, %v929
        %v940 = vmul.f32 %v834, %v929
        %v941 = vmul.f32 %v818, %v929
        %v942 = vmul.f32 %v835, %v929
        %v943 = vmul.f32 %v819, %v929
        %v944 = vmul.f32 %v836, %v929
        %v945 = vmul.f32 %v820, %v929
        %v946 = vmul.f32 %v837, %v929
        %v947 = vmul.f32 %v821, %v929
        %v948 = vmul.f32 %v838, %v929
        %v949 = vmul.f32 %v822, %v929
        %v950 = vmul.f32 %v839, %v929
        %v951 = vmul.f32 %v823, %v929
        %v952 = vmul.f32 %v840, %v929
        %v953 = vmul.f32 %v824, %v929
        %v954 = vmul.f32 %v841, %v929
        %v955 = vmul.f32 %v825, %v929
        %v956 = vmul.f32 %v842, %v929
        %v957 = vmul.f32 %v826, %v929
        %v958 = vmul.f32 %v843, %v929
        %v959 = vmul.f32 %v827, %v929
        %v960 = vmul.f32 %v844, %v929
        %v961 = vmul.f32 %v828, %v929
        %v962 = vlaneseq
        %v963 = vshrl.u32 %v962, 7
        %v964 = vsub.s32 1, %v963
        %v965 = vrot.slane %v680, %v964
        %v966 = vmul.f32 %v714, %v965
        %v967 = vmul.f32 %v715, %v965
        %v968 = vmul.f32 %v717, %v965
        %v969 = vmul.f32 %v718, %v965
        %v970 = vmul.f32 %v720, %v965
        %v971 = vmul.f32 %v721, %v965
        %v972 = vmul.f32 %v723, %v965
        %v973 = vmul.f32 %v724, %v965
        %v974 = vmul.f32 %v726, %v965
        %v975 = vmul.f32 %v727, %v965
        %v976 = vmul.f32 %v729, %v965
        %v977 = vmul.f32 %v730, %v965
        %v978 = vmul.f32 %v732, %v965
        %v979 = vmul.f32 %v733, %v965
        %v980 = vmul.f32 %v735, %v965
        %v981 = vmul.f32 %v736, %v965
        %v982 = vmul.f32 %v738, %v965
        %v983 = vmul.f32 %v739, %v965
        %v984 = vmul.f32 %v741, %v965
        %v985 = vmul.f32 %v742, %v965
        %v986 = vmul.f32 %v744, %v965
        %v987 = vmul.f32 %v745, %v965
        %v988 = vmul.f32 %v747, %v965
        %v989 = vmul.f32 %v748, %v965
        %v990 = vmul.f32 %v750, %v965
        %v991 = vmul.f32 %v751, %v965
        %v992 = vmul.f32 %v753, %v965
        %v993 = vmul.f32 %v754, %v965
        %v994 = vmul.f32 %v756, %v965
        %v995 = vmul.f32 %v757, %v965
        %v996 = vmul.f32 %v759, %v965
        %v997 = vmul.f32 %v760, %v965
        %v998 = vadd.f32 %v930, %v966
        %v999 = vadd.f32 %v931, %v967
        %v1000 = vadd.f32 %v932, %v968
        %v1001 = vadd.f32 %v933, %v969
        %v1002 = vadd.f32 %v934, %v970
        %v1003 = vadd.f32 %v935, %v971
        %v1004 = vadd.f32 %v936, %v972
        %v1005 = vadd.f32 %v937, %v973
        %v1006 = vadd.f32 %v938, %v974
        %v1007 = vadd.f32 %v939, %v975
        %v1008 = vadd.f32 %v940, %v976
        %v1009 = vadd.f32 %v941, %v977
        %v1010 = vadd.f32 %v942, %v978
        %v1011 = vadd.f32 %v943, %v979
        %v1012 = vadd.f32 %v944, %v980
        %v1013 = vadd.f32 %v945, %v981
        %v1014 = vadd.f32 %v946, %v982
        %v1015 = vadd.f32 %v947, %v983
        %v1016 = vadd.f32 %v948, %v984
        %v1017 = vadd.f32 %v949, %v985
        %v1018 = vadd.f32 %v950, %v986
        %v1019 = vadd.f32 %v951, %v987
        %v1020 = vadd.f32 %v952, %v988
        %v1021 = vadd.f32 %v953, %v989
        %v1022 = vadd.f32 %v954, %v990
        %v1023 = vadd.f32 %v955, %v991
        %v1024 = vadd.f32 %v956, %v992
        %v1025 = vadd.f32 %v957, %v993
        %v1026 = vadd.f32 %v958, %v994
        %v1027 = vadd.f32 %v959, %v995
        %v1028 = vadd.f32 %v960, %v996
        %v1029 = vadd.f32 %v961, %v997
        %v1030 = vlaneseq
        %v1031 = vshrl.u32 %v1030, 7
        %v1032 = vsub.s32 2, %v1031
        %v1033 = vrot.slane %v680, %v1032
        %v1034 = vmul.f32 %v910, %v1033
        %v1035 = vmul.f32 %v894, %v1033
        %v1036 = vmul.f32 %v911, %v1033
        %v1037 = vmul.f32 %v895, %v1033
        %v1038 = vmul.f32 %v912, %v1033
        %v1039 = vmul.f32 %v896, %v1033
        %v1040 = vmul.f32 %v913, %v1033
        %v1041 = vmul.f32 %v897, %v1033
        %v1042 = vmul.f32 %v914, %v1033
        %v1043 = vmul.f32 %v898, %v1033
        %v1044 = vmul.f32 %v915, %v1033
        %v1045 = vmul.f32 %v899, %v1033
        %v1046 = vmul.f32 %v916, %v1033
        %v1047 = vmul.f32 %v900, %v1033
        %v1048 = vmul.f32 %v917, %v1033
        %v1049 = vmul.f32 %v901, %v1033
        %v1050 = vmul.f32 %v918, %v1033
        %v1051 = vmul.f32 %v902, %v1033
        %v1052 = vmul.f32 %v919, %v1033
        %v1053 = vmul.f32 %v903, %v1033
        %v1054 = vmul.f32 %v920, %v1033
        %v1055 = vmul.f32 %v904, %v1033
        %v1056 = vmul.f32 %v921, %v1033
        %v1057 = vmul.f32 %v905, %v1033
        %v1058 = vmul.f32 %v922, %v1033
        %v1059 = vmul.f32 %v906, %v1033
        %v1060 = vmul.f32 %v923, %v1033
        %v1061 = vmul.f32 %v907, %v1033
        %v1062 = vmul.f32 %v924, %v1033
        %v1063 = vmul.f32 %v908, %v1033
        %v1064 = vmul.f32 %v925, %v1033
        %v1065 = vmul.f32 %v909, %v1033
        %v1066 = vadd.f32 %v998, %v1034
        %v1067 = vadd.f32 %v999, %v1035
        %v1068 = vadd.f32 %v1000, %v1036
        %v1069 = vadd.f32 %v1001, %v1037
        %v1070 = vadd.f32 %v1002, %v1038
        %v1071 = vadd.f32 %v1003, %v1039
        %v1072 = vadd.f32 %v1004, %v1040
        %v1073 = vadd.f32 %v1005, %v1041
        %v1074 = vadd.f32 %v1006, %v1042
        %v1075 = vadd.f32 %v1007, %v1043
        %v1076 = vadd.f32 %v1008, %v1044
        %v1077 = vadd.f32 %v1009, %v1045
        %v1078 = vadd.f32 %v1010, %v1046
        %v1079 = vadd.f32 %v1011, %v1047
        %v1080 = vadd.f32 %v1012, %v1048
        %v1081 = vadd.f32 %v1013, %v1049
        %v1082 = vadd.f32 %v1014, %v1050
        %v1083 = vadd.f32 %v1015, %v1051
        %v1084 = vadd.f32 %v1016, %v1052
        %v1085 = vadd.f32 %v1017, %v1053
        %v1086 = vadd.f32 %v1018, %v1054
        %v1087 = vadd.f32 %v1019, %v1055
        %v1088 = vadd.f32 %v1020, %v1056
        %v1089 = vadd.f32 %v1021, %v1057
        %v1090 = vadd.f32 %v1022, %v1058
        %v1091 = vadd.f32 %v1023, %v1059
        %v1092 = vadd.f32 %v1024, %v1060
        %v1093 = vadd.f32 %v1025, %v1061
        %v1094 = vadd.f32 %v1026, %v1062
        %v1095 = vadd.f32 %v1027, %v1063
        %v1096 = vadd.f32 %v1028, %v1064
        %v1097 = vadd.f32 %v1029, %v1065
        %v1098 = vld [vmem:[%s631] sm:$0xff]
        %v1099 = vld [vmem:[%s631 + $0x8] sm:$0xff]
        %v1100 = vld [vmem:[%s631 + $0x10] sm:$0xff]
        %v1101 = vld [vmem:[%s631 + $0x18] sm:$0xff]
        %v1102 = vld [vmem:[%s631 + $0x20] sm:$0xff]
        %v1103 = vld [vmem:[%s631 + $0x28] sm:$0xff]
        %v1104 = vld [vmem:[%s631 + $0x30] sm:$0xff]
        %v1105 = vld [vmem:[%s631 + $0x38] sm:$0xff]
        %v1106 = vld [vmem:[%s631 + $0x40] sm:$0xff]
        %v1107 = vld [vmem:[%s631 + $0x48] sm:$0xff]
        %v1108 = vld [vmem:[%s631 + $0x50] sm:$0xff]
        %v1109 = vld [vmem:[%s631 + $0x58] sm:$0xff]
        %v1110 = vld [vmem:[%s631 + $0x60] sm:$0xff]
        %v1111 = vld [vmem:[%s631 + $0x68] sm:$0xff]
        %v1112 = vld [vmem:[%s631 + $0x70] sm:$0xff]
        %v1113 = vld [vmem:[%s631 + $0x78] sm:$0xff]
        %v1114 = vld [vmem:[%s631 + $0x80] sm:$0xff]
        %v1115 = vld [vmem:[%s631 + $0x88] sm:$0xff]
        %v1116 = vld [vmem:[%s631 + $0x90] sm:$0xff]
        %v1117 = vld [vmem:[%s631 + $0x98] sm:$0xff]
        %v1118 = vld [vmem:[%s631 + $0xa0] sm:$0xff]
        %v1119 = vld [vmem:[%s631 + $0xa8] sm:$0xff]
        %v1120 = vld [vmem:[%s631 + $0xb0] sm:$0xff]
        %v1121 = vld [vmem:[%s631 + $0xb8] sm:$0xff]
        %v1122 = vld [vmem:[%s631 + $0xc0] sm:$0xff]
        %v1123 = vld [vmem:[%s631 + $0xc8] sm:$0xff]
        %v1124 = vld [vmem:[%s631 + $0xd0] sm:$0xff]
        %v1125 = vld [vmem:[%s631 + $0xd8] sm:$0xff]
        %v1126 = vld [vmem:[%s631 + $0xe0] sm:$0xff]
        %v1127 = vld [vmem:[%s631 + $0xe8] sm:$0xff]
        %v1128 = vld [vmem:[%s631 + $0xf0] sm:$0xff]
        %v1129 = vld [vmem:[%s631 + $0xf8] sm:$0xff]
        %v1130 = vld [vmem:[%s631 + $0x100] sm:$0xff]
        %v1131 = vld [vmem:[%s631 + $0x108] sm:$0xff]
        %v1132 = vld [vmem:[%s631 + $0x110] sm:$0xff]
        %v1133 = vld [vmem:[%s631 + $0x118] sm:$0xff]
        %v1134 = vld [vmem:[%s631 + $0x120] sm:$0xff]
        %v1135 = vld [vmem:[%s631 + $0x128] sm:$0xff]
        %v1136 = vld [vmem:[%s631 + $0x130] sm:$0xff]
        %v1137 = vld [vmem:[%s631 + $0x138] sm:$0xff]
        %v1138 = vld [vmem:[%s631 + $0x140] sm:$0xff]
        %v1139 = vld [vmem:[%s631 + $0x148] sm:$0xff]
        %v1140 = vld [vmem:[%s631 + $0x150] sm:$0xff]
        %v1141 = vld [vmem:[%s631 + $0x158] sm:$0xff]
        %v1142 = vld [vmem:[%s631 + $0x160] sm:$0xff]
        %v1143 = vld [vmem:[%s631 + $0x168] sm:$0xff]
        %v1144 = vld [vmem:[%s631 + $0x170] sm:$0xff]
        %v1145 = vld [vmem:[%s631 + $0x178] sm:$0xff]
        %v1146 = vrot.slane %v1098, 7
        %v1147 = vrot.slane %v1101, 7
        %v1148 = vrot.slane %v1104, 7
        %v1149 = vrot.slane %v1107, 7
        %v1150 = vrot.slane %v1110, 7
        %v1151 = vrot.slane %v1113, 7
        %v1152 = vrot.slane %v1116, 7
        %v1153 = vrot.slane %v1119, 7
        %v1154 = vrot.slane %v1122, 7
        %v1155 = vrot.slane %v1125, 7
        %v1156 = vrot.slane %v1128, 7
        %v1157 = vrot.slane %v1131, 7
        %v1158 = vrot.slane %v1134, 7
        %v1159 = vrot.slane %v1137, 7
        %v1160 = vrot.slane %v1140, 7
        %v1161 = vrot.slane %v1143, 7
        %v1162 = vrot.slane %v1099, 7
        %v1163 = vrot.slane %v1102, 7
        %v1164 = vrot.slane %v1105, 7
        %v1165 = vrot.slane %v1108, 7
        %v1166 = vrot.slane %v1111, 7
        %v1167 = vrot.slane %v1114, 7
        %v1168 = vrot.slane %v1117, 7
        %v1169 = vrot.slane %v1120, 7
        %v1170 = vrot.slane %v1123, 7
        %v1171 = vrot.slane %v1126, 7
        %v1172 = vrot.slane %v1129, 7
        %v1173 = vrot.slane %v1132, 7
        %v1174 = vrot.slane %v1135, 7
        %v1175 = vrot.slane %v1138, 7
        %v1176 = vrot.slane %v1141, 7
        %v1177 = vrot.slane %v1144, 7
        %v1178 = vrot.slane %v1100, 7
        %v1179 = vrot.slane %v1103, 7
        %v1180 = vrot.slane %v1106, 7
        %v1181 = vrot.slane %v1109, 7
        %v1182 = vrot.slane %v1112, 7
        %v1183 = vrot.slane %v1115, 7
        %v1184 = vrot.slane %v1118, 7
        %v1185 = vrot.slane %v1121, 7
        %v1186 = vrot.slane %v1124, 7
        %v1187 = vrot.slane %v1127, 7
        %v1188 = vrot.slane %v1130, 7
        %v1189 = vrot.slane %v1133, 7
        %v1190 = vrot.slane %v1136, 7
        %v1191 = vrot.slane %v1139, 7
        %v1192 = vrot.slane %v1142, 7
        %v1193 = vrot.slane %v1145, 7
        %v1194 = vsel %vm812, %v1146, %v1162
        %v1195 = vsel %vm812, %v1147, %v1163
        %v1196 = vsel %vm812, %v1148, %v1164
        %v1197 = vsel %vm812, %v1149, %v1165
        %v1198 = vsel %vm812, %v1150, %v1166
        %v1199 = vsel %vm812, %v1151, %v1167
        %v1200 = vsel %vm812, %v1152, %v1168
        %v1201 = vsel %vm812, %v1153, %v1169
        %v1202 = vsel %vm812, %v1154, %v1170
        %v1203 = vsel %vm812, %v1155, %v1171
        %v1204 = vsel %vm812, %v1156, %v1172
        %v1205 = vsel %vm812, %v1157, %v1173
        %v1206 = vsel %vm812, %v1158, %v1174
        %v1207 = vsel %vm812, %v1159, %v1175
        %v1208 = vsel %vm812, %v1160, %v1176
        %v1209 = vsel %vm812, %v1161, %v1177
        %v1210 = vsel %vm812, %v1178, %v1146
        %v1211 = vsel %vm812, %v1179, %v1147
        %v1212 = vsel %vm812, %v1180, %v1148
        %v1213 = vsel %vm812, %v1181, %v1149
        %v1214 = vsel %vm812, %v1182, %v1150
        %v1215 = vsel %vm812, %v1183, %v1151
        %v1216 = vsel %vm812, %v1184, %v1152
        %v1217 = vsel %vm812, %v1185, %v1153
        %v1218 = vsel %vm812, %v1186, %v1154
        %v1219 = vsel %vm812, %v1187, %v1155
        %v1220 = vsel %vm812, %v1188, %v1156
        %v1221 = vsel %vm812, %v1189, %v1157
        %v1222 = vsel %vm812, %v1190, %v1158
        %v1223 = vsel %vm812, %v1191, %v1159
        %v1224 = vsel %vm812, %v1192, %v1160
        %v1225 = vsel %vm812, %v1193, %v1161
        %v1226 = vrot.slane %v1098, 1
        %v1227 = vrot.slane %v1101, 1
        %v1228 = vrot.slane %v1104, 1
        %v1229 = vrot.slane %v1107, 1
        %v1230 = vrot.slane %v1110, 1
        %v1231 = vrot.slane %v1113, 1
        %v1232 = vrot.slane %v1116, 1
        %v1233 = vrot.slane %v1119, 1
        %v1234 = vrot.slane %v1122, 1
        %v1235 = vrot.slane %v1125, 1
        %v1236 = vrot.slane %v1128, 1
        %v1237 = vrot.slane %v1131, 1
        %v1238 = vrot.slane %v1134, 1
        %v1239 = vrot.slane %v1137, 1
        %v1240 = vrot.slane %v1140, 1
        %v1241 = vrot.slane %v1143, 1
        %v1242 = vrot.slane %v1099, 1
        %v1243 = vrot.slane %v1102, 1
        %v1244 = vrot.slane %v1105, 1
        %v1245 = vrot.slane %v1108, 1
        %v1246 = vrot.slane %v1111, 1
        %v1247 = vrot.slane %v1114, 1
        %v1248 = vrot.slane %v1117, 1
        %v1249 = vrot.slane %v1120, 1
        %v1250 = vrot.slane %v1123, 1
        %v1251 = vrot.slane %v1126, 1
        %v1252 = vrot.slane %v1129, 1
        %v1253 = vrot.slane %v1132, 1
        %v1254 = vrot.slane %v1135, 1
        %v1255 = vrot.slane %v1138, 1
        %v1256 = vrot.slane %v1141, 1
        %v1257 = vrot.slane %v1144, 1
        %v1258 = vrot.slane %v1100, 1
        %v1259 = vrot.slane %v1103, 1
        %v1260 = vrot.slane %v1106, 1
        %v1261 = vrot.slane %v1109, 1
        %v1262 = vrot.slane %v1112, 1
        %v1263 = vrot.slane %v1115, 1
        %v1264 = vrot.slane %v1118, 1
        %v1265 = vrot.slane %v1121, 1
        %v1266 = vrot.slane %v1124, 1
        %v1267 = vrot.slane %v1127, 1
        %v1268 = vrot.slane %v1130, 1
        %v1269 = vrot.slane %v1133, 1
        %v1270 = vrot.slane %v1136, 1
        %v1271 = vrot.slane %v1139, 1
        %v1272 = vrot.slane %v1142, 1
        %v1273 = vrot.slane %v1145, 1
        %v1274 = vsel %vm893, %v1242, %v1258
        %v1275 = vsel %vm893, %v1243, %v1259
        %v1276 = vsel %vm893, %v1244, %v1260
        %v1277 = vsel %vm893, %v1245, %v1261
        %v1278 = vsel %vm893, %v1246, %v1262
        %v1279 = vsel %vm893, %v1247, %v1263
        %v1280 = vsel %vm893, %v1248, %v1264
        %v1281 = vsel %vm893, %v1249, %v1265
        %v1282 = vsel %vm893, %v1250, %v1266
        %v1283 = vsel %vm893, %v1251, %v1267
        %v1284 = vsel %vm893, %v1252, %v1268
        %v1285 = vsel %vm893, %v1253, %v1269
        %v1286 = vsel %vm893, %v1254, %v1270
        %v1287 = vsel %vm893, %v1255, %v1271
        %v1288 = vsel %vm893, %v1256, %v1272
        %v1289 = vsel %vm893, %v1257, %v1273
        %v1290 = vsel %vm893, %v1226, %v1242
        %v1291 = vsel %vm893, %v1227, %v1243
        %v1292 = vsel %vm893, %v1228, %v1244
        %v1293 = vsel %vm893, %v1229, %v1245
        %v1294 = vsel %vm893, %v1230, %v1246
        %v1295 = vsel %vm893, %v1231, %v1247
        %v1296 = vsel %vm893, %v1232, %v1248
        %v1297 = vsel %vm893, %v1233, %v1249
        %v1298 = vsel %vm893, %v1234, %v1250
        %v1299 = vsel %vm893, %v1235, %v1251
        %v1300 = vsel %vm893, %v1236, %v1252
        %v1301 = vsel %vm893, %v1237, %v1253
        %v1302 = vsel %vm893, %v1238, %v1254
        %v1303 = vsel %vm893, %v1239, %v1255
        %v1304 = vsel %vm893, %v1240, %v1256
        %v1305 = vsel %vm893, %v1241, %v1257
        %v1306 = vlaneseq
        %v1307 = vshrl.u32 %v1306, 7
        %v1308 = vsub.s32 3, %v1307
        %v1309 = vrot.slane %v680, %v1308
        %v1310 = vmul.f32 %v1210, %v1309
        %v1311 = vmul.f32 %v1194, %v1309
        %v1312 = vmul.f32 %v1211, %v1309
        %v1313 = vmul.f32 %v1195, %v1309
        %v1314 = vmul.f32 %v1212, %v1309
        %v1315 = vmul.f32 %v1196, %v1309
        %v1316 = vmul.f32 %v1213, %v1309
        %v1317 = vmul.f32 %v1197, %v1309
        %v1318 = vmul.f32 %v1214, %v1309
        %v1319 = vmul.f32 %v1198, %v1309
        %v1320 = vmul.f32 %v1215, %v1309
        %v1321 = vmul.f32 %v1199, %v1309
        %v1322 = vmul.f32 %v1216, %v1309
        %v1323 = vmul.f32 %v1200, %v1309
        %v1324 = vmul.f32 %v1217, %v1309
        %v1325 = vmul.f32 %v1201, %v1309
        %v1326 = vmul.f32 %v1218, %v1309
        %v1327 = vmul.f32 %v1202, %v1309
        %v1328 = vmul.f32 %v1219, %v1309
        %v1329 = vmul.f32 %v1203, %v1309
        %v1330 = vmul.f32 %v1220, %v1309
        %v1331 = vmul.f32 %v1204, %v1309
        %v1332 = vmul.f32 %v1221, %v1309
        %v1333 = vmul.f32 %v1205, %v1309
        %v1334 = vmul.f32 %v1222, %v1309
        %v1335 = vmul.f32 %v1206, %v1309
        %v1336 = vmul.f32 %v1223, %v1309
        %v1337 = vmul.f32 %v1207, %v1309
        %v1338 = vmul.f32 %v1224, %v1309
        %v1339 = vmul.f32 %v1208, %v1309
        %v1340 = vmul.f32 %v1225, %v1309
        %v1341 = vmul.f32 %v1209, %v1309
        %v1342 = vlaneseq
        %v1343 = vshrl.u32 %v1342, 7
        %v1344 = vsub.s32 4, %v1343
        %v1345 = vrot.slane %v680, %v1344
        %v1346 = vmul.f32 %v1098, %v1345
        %v1347 = vmul.f32 %v1099, %v1345
        %v1348 = vmul.f32 %v1101, %v1345
        %v1349 = vmul.f32 %v1102, %v1345
        %v1350 = vmul.f32 %v1104, %v1345
        %v1351 = vmul.f32 %v1105, %v1345
        %v1352 = vmul.f32 %v1107, %v1345
        %v1353 = vmul.f32 %v1108, %v1345
        %v1354 = vmul.f32 %v1110, %v1345
        %v1355 = vmul.f32 %v1111, %v1345
        %v1356 = vmul.f32 %v1113, %v1345
        %v1357 = vmul.f32 %v1114, %v1345
        %v1358 = vmul.f32 %v1116, %v1345
        %v1359 = vmul.f32 %v1117, %v1345
        %v1360 = vmul.f32 %v1119, %v1345
        %v1361 = vmul.f32 %v1120, %v1345
        %v1362 = vmul.f32 %v1122, %v1345
        %v1363 = vmul.f32 %v1123, %v1345
        %v1364 = vmul.f32 %v1125, %v1345
        %v1365 = vmul.f32 %v1126, %v1345
        %v1366 = vmul.f32 %v1128, %v1345
        %v1367 = vmul.f32 %v1129, %v1345
        %v1368 = vmul.f32 %v1131, %v1345
        %v1369 = vmul.f32 %v1132, %v1345
        %v1370 = vmul.f32 %v1134, %v1345
        %v1371 = vmul.f32 %v1135, %v1345
        %v1372 = vmul.f32 %v1137, %v1345
        %v1373 = vmul.f32 %v1138, %v1345
        %v1374 = vmul.f32 %v1140, %v1345
        %v1375 = vmul.f32 %v1141, %v1345
        %v1376 = vmul.f32 %v1143, %v1345
        %v1377 = vmul.f32 %v1144, %v1345
        %v1378 = vadd.f32 %v1310, %v1346
        %v1379 = vadd.f32 %v1311, %v1347
        %v1380 = vadd.f32 %v1312, %v1348
        %v1381 = vadd.f32 %v1313, %v1349
        %v1382 = vadd.f32 %v1314, %v1350
        %v1383 = vadd.f32 %v1315, %v1351
        %v1384 = vadd.f32 %v1316, %v1352
        %v1385 = vadd.f32 %v1317, %v1353
        %v1386 = vadd.f32 %v1318, %v1354
        %v1387 = vadd.f32 %v1319, %v1355
        %v1388 = vadd.f32 %v1320, %v1356
        %v1389 = vadd.f32 %v1321, %v1357
        %v1390 = vadd.f32 %v1322, %v1358
        %v1391 = vadd.f32 %v1323, %v1359
        %v1392 = vadd.f32 %v1324, %v1360
        %v1393 = vadd.f32 %v1325, %v1361
        %v1394 = vadd.f32 %v1326, %v1362
        %v1395 = vadd.f32 %v1327, %v1363
        %v1396 = vadd.f32 %v1328, %v1364
        %v1397 = vadd.f32 %v1329, %v1365
        %v1398 = vadd.f32 %v1330, %v1366
        %v1399 = vadd.f32 %v1331, %v1367
        %v1400 = vadd.f32 %v1332, %v1368
        %v1401 = vadd.f32 %v1333, %v1369
        %v1402 = vadd.f32 %v1334, %v1370
        %v1403 = vadd.f32 %v1335, %v1371
        %v1404 = vadd.f32 %v1336, %v1372
        %v1405 = vadd.f32 %v1337, %v1373
        %v1406 = vadd.f32 %v1338, %v1374
        %v1407 = vadd.f32 %v1339, %v1375
        %v1408 = vadd.f32 %v1340, %v1376
        %v1409 = vadd.f32 %v1341, %v1377
        %v1410 = vlaneseq
        %v1411 = vshrl.u32 %v1410, 7
        %v1412 = vsub.s32 5, %v1411
        %v1413 = vrot.slane %v680, %v1412
        %v1414 = vmul.f32 %v1290, %v1413
        %v1415 = vmul.f32 %v1274, %v1413
        %v1416 = vmul.f32 %v1291, %v1413
        %v1417 = vmul.f32 %v1275, %v1413
        %v1418 = vmul.f32 %v1292, %v1413
        %v1419 = vmul.f32 %v1276, %v1413
        %v1420 = vmul.f32 %v1293, %v1413
        %v1421 = vmul.f32 %v1277, %v1413
        %v1422 = vmul.f32 %v1294, %v1413
        %v1423 = vmul.f32 %v1278, %v1413
        %v1424 = vmul.f32 %v1295, %v1413
        %v1425 = vmul.f32 %v1279, %v1413
        %v1426 = vmul.f32 %v1296, %v1413
        %v1427 = vmul.f32 %v1280, %v1413
        %v1428 = vmul.f32 %v1297, %v1413
        %v1429 = vmul.f32 %v1281, %v1413
        %v1430 = vmul.f32 %v1298, %v1413
        %v1431 = vmul.f32 %v1282, %v1413
        %v1432 = vmul.f32 %v1299, %v1413
        %v1433 = vmul.f32 %v1283, %v1413
        %v1434 = vmul.f32 %v1300, %v1413
        %v1435 = vmul.f32 %v1284, %v1413
        %v1436 = vmul.f32 %v1301, %v1413
        %v1437 = vmul.f32 %v1285, %v1413
        %v1438 = vmul.f32 %v1302, %v1413
        %v1439 = vmul.f32 %v1286, %v1413
        %v1440 = vmul.f32 %v1303, %v1413
        %v1441 = vmul.f32 %v1287, %v1413
        %v1442 = vmul.f32 %v1304, %v1413
        %v1443 = vmul.f32 %v1288, %v1413
        %v1444 = vmul.f32 %v1305, %v1413
        %v1445 = vmul.f32 %v1289, %v1413
        %v1446 = vadd.f32 %v1378, %v1414
        %v1447 = vadd.f32 %v1379, %v1415
        %v1448 = vadd.f32 %v1380, %v1416
        %v1449 = vadd.f32 %v1381, %v1417
        %v1450 = vadd.f32 %v1382, %v1418
        %v1451 = vadd.f32 %v1383, %v1419
        %v1452 = vadd.f32 %v1384, %v1420
        %v1453 = vadd.f32 %v1385, %v1421
        %v1454 = vadd.f32 %v1386, %v1422
        %v1455 = vadd.f32 %v1387, %v1423
        %v1456 = vadd.f32 %v1388, %v1424
        %v1457 = vadd.f32 %v1389, %v1425
        %v1458 = vadd.f32 %v1390, %v1426
        %v1459 = vadd.f32 %v1391, %v1427
        %v1460 = vadd.f32 %v1392, %v1428
        %v1461 = vadd.f32 %v1393, %v1429
        %v1462 = vadd.f32 %v1394, %v1430
        %v1463 = vadd.f32 %v1395, %v1431
        %v1464 = vadd.f32 %v1396, %v1432
        %v1465 = vadd.f32 %v1397, %v1433
        %v1466 = vadd.f32 %v1398, %v1434
        %v1467 = vadd.f32 %v1399, %v1435
        %v1468 = vadd.f32 %v1400, %v1436
        %v1469 = vadd.f32 %v1401, %v1437
        %v1470 = vadd.f32 %v1402, %v1438
        %v1471 = vadd.f32 %v1403, %v1439
        %v1472 = vadd.f32 %v1404, %v1440
        %v1473 = vadd.f32 %v1405, %v1441
        %v1474 = vadd.f32 %v1406, %v1442
        %v1475 = vadd.f32 %v1407, %v1443
        %v1476 = vadd.f32 %v1408, %v1444
        %v1477 = vadd.f32 %v1409, %v1445
        %v1478 = vadd.f32 %v1066, %v1446
        %v1479 = vadd.f32 %v1067, %v1447
        %v1480 = vadd.f32 %v1068, %v1448
        %v1481 = vadd.f32 %v1069, %v1449
        %v1482 = vadd.f32 %v1070, %v1450
        %v1483 = vadd.f32 %v1071, %v1451
        %v1484 = vadd.f32 %v1072, %v1452
        %v1485 = vadd.f32 %v1073, %v1453
        %v1486 = vadd.f32 %v1074, %v1454
        %v1487 = vadd.f32 %v1075, %v1455
        %v1488 = vadd.f32 %v1076, %v1456
        %v1489 = vadd.f32 %v1077, %v1457
        %v1490 = vadd.f32 %v1078, %v1458
        %v1491 = vadd.f32 %v1079, %v1459
        %v1492 = vadd.f32 %v1080, %v1460
        %v1493 = vadd.f32 %v1081, %v1461
        %v1494 = vadd.f32 %v1082, %v1462
        %v1495 = vadd.f32 %v1083, %v1463
        %v1496 = vadd.f32 %v1084, %v1464
        %v1497 = vadd.f32 %v1085, %v1465
        %v1498 = vadd.f32 %v1086, %v1466
        %v1499 = vadd.f32 %v1087, %v1467
        %v1500 = vadd.f32 %v1088, %v1468
        %v1501 = vadd.f32 %v1089, %v1469
        %v1502 = vadd.f32 %v1090, %v1470
        %v1503 = vadd.f32 %v1091, %v1471
        %v1504 = vadd.f32 %v1092, %v1472
        %v1505 = vadd.f32 %v1093, %v1473
        %v1506 = vadd.f32 %v1094, %v1474
        %v1507 = vadd.f32 %v1095, %v1475
        %v1508 = vadd.f32 %v1096, %v1476
        %v1509 = vadd.f32 %v1097, %v1477
        %s1510 = scalar_lea.vmem [#allocation2], 48
        %v1511 = vld [vmem:[%s1510] sm:$0xff]
        %v1512 = vld [vmem:[%s1510 + $0x8] sm:$0xff]
        %v1513 = vld [vmem:[%s1510 + $0x10] sm:$0xff]
        %v1514 = vld [vmem:[%s1510 + $0x18] sm:$0xff]
        %v1515 = vld [vmem:[%s1510 + $0x20] sm:$0xff]
        %v1516 = vld [vmem:[%s1510 + $0x28] sm:$0xff]
        %v1517 = vld [vmem:[%s1510 + $0x30] sm:$0xff]
        %v1518 = vld [vmem:[%s1510 + $0x38] sm:$0xff]
        %v1519 = vld [vmem:[%s1510 + $0x40] sm:$0xff]
        %v1520 = vld [vmem:[%s1510 + $0x48] sm:$0xff]
        %v1521 = vld [vmem:[%s1510 + $0x50] sm:$0xff]
        %v1522 = vld [vmem:[%s1510 + $0x58] sm:$0xff]
        %v1523 = vld [vmem:[%s1510 + $0x60] sm:$0xff]
        %v1524 = vld [vmem:[%s1510 + $0x68] sm:$0xff]
        %v1525 = vld [vmem:[%s1510 + $0x70] sm:$0xff]
        %v1526 = vld [vmem:[%s1510 + $0x78] sm:$0xff]
        %v1527 = vld [vmem:[%s1510 + $0x80] sm:$0xff]
        %v1528 = vld [vmem:[%s1510 + $0x88] sm:$0xff]
        %v1529 = vld [vmem:[%s1510 + $0x90] sm:$0xff]
        %v1530 = vld [vmem:[%s1510 + $0x98] sm:$0xff]
        %v1531 = vld [vmem:[%s1510 + $0xa0] sm:$0xff]
        %v1532 = vld [vmem:[%s1510 + $0xa8] sm:$0xff]
        %v1533 = vld [vmem:[%s1510 + $0xb0] sm:$0xff]
        %v1534 = vld [vmem:[%s1510 + $0xb8] sm:$0xff]
        %v1535 = vld [vmem:[%s1510 + $0xc0] sm:$0xff]
        %v1536 = vld [vmem:[%s1510 + $0xc8] sm:$0xff]
        %v1537 = vld [vmem:[%s1510 + $0xd0] sm:$0xff]
        %v1538 = vld [vmem:[%s1510 + $0xd8] sm:$0xff]
        %v1539 = vld [vmem:[%s1510 + $0xe0] sm:$0xff]
        %v1540 = vld [vmem:[%s1510 + $0xe8] sm:$0xff]
        %v1541 = vld [vmem:[%s1510 + $0xf0] sm:$0xff]
        %v1542 = vld [vmem:[%s1510 + $0xf8] sm:$0xff]
        %v1543 = vld [vmem:[%s1510 + $0x100] sm:$0xff]
        %v1544 = vld [vmem:[%s1510 + $0x108] sm:$0xff]
        %v1545 = vld [vmem:[%s1510 + $0x110] sm:$0xff]
        %v1546 = vld [vmem:[%s1510 + $0x118] sm:$0xff]
        %v1547 = vld [vmem:[%s1510 + $0x120] sm:$0xff]
        %v1548 = vld [vmem:[%s1510 + $0x128] sm:$0xff]
        %v1549 = vld [vmem:[%s1510 + $0x130] sm:$0xff]
        %v1550 = vld [vmem:[%s1510 + $0x138] sm:$0xff]
        %v1551 = vld [vmem:[%s1510 + $0x140] sm:$0xff]
        %v1552 = vld [vmem:[%s1510 + $0x148] sm:$0xff]
        %v1553 = vld [vmem:[%s1510 + $0x150] sm:$0xff]
        %v1554 = vld [vmem:[%s1510 + $0x158] sm:$0xff]
        %v1555 = vld [vmem:[%s1510 + $0x160] sm:$0xff]
        %v1556 = vld [vmem:[%s1510 + $0x168] sm:$0xff]
        %v1557 = vld [vmem:[%s1510 + $0x170] sm:$0xff]
        %v1558 = vld [vmem:[%s1510 + $0x178] sm:$0xff]
        %v1559 = vrot.slane %v1511, 7
        %v1560 = vrot.slane %v1514, 7
        %v1561 = vrot.slane %v1517, 7
        %v1562 = vrot.slane %v1520, 7
        %v1563 = vrot.slane %v1523, 7
        %v1564 = vrot.slane %v1526, 7
        %v1565 = vrot.slane %v1529, 7
        %v1566 = vrot.slane %v1532, 7
        %v1567 = vrot.slane %v1535, 7
        %v1568 = vrot.slane %v1538, 7
        %v1569 = vrot.slane %v1541, 7
        %v1570 = vrot.slane %v1544, 7
        %v1571 = vrot.slane %v1547, 7
        %v1572 = vrot.slane %v1550, 7
        %v1573 = vrot.slane %v1553, 7
        %v1574 = vrot.slane %v1556, 7
        %v1575 = vrot.slane %v1512, 7
        %v1576 = vrot.slane %v1515, 7
        %v1577 = vrot.slane %v1518, 7
        %v1578 = vrot.slane %v1521, 7
        %v1579 = vrot.slane %v1524, 7
        %v1580 = vrot.slane %v1527, 7
        %v1581 = vrot.slane %v1530, 7
        %v1582 = vrot.slane %v1533, 7
        %v1583 = vrot.slane %v1536, 7
        %v1584 = vrot.slane %v1539, 7
        %v1585 = vrot.slane %v1542, 7
        %v1586 = vrot.slane %v1545, 7
        %v1587 = vrot.slane %v1548, 7
        %v1588 = vrot.slane %v1551, 7
        %v1589 = vrot.slane %v1554, 7
        %v1590 = vrot.slane %v1557, 7
        %v1591 = vrot.slane %v1513, 7
        %v1592 = vrot.slane %v1516, 7
        %v1593 = vrot.slane %v1519, 7
        %v1594 = vrot.slane %v1522, 7
        %v1595 = vrot.slane %v1525, 7
        %v1596 = vrot.slane %v1528, 7
        %v1597 = vrot.slane %v1531, 7
        %v1598 = vrot.slane %v1534, 7
        %v1599 = vrot.slane %v1537, 7
        %v1600 = vrot.slane %v1540, 7
        %v1601 = vrot.slane %v1543, 7
        %v1602 = vrot.slane %v1546, 7
        %v1603 = vrot.slane %v1549, 7
        %v1604 = vrot.slane %v1552, 7
        %v1605 = vrot.slane %v1555, 7
        %v1606 = vrot.slane %v1558, 7
        %v1607 = vsel %vm812, %v1559, %v1575
        %v1608 = vsel %vm812, %v1560, %v1576
        %v1609 = vsel %vm812, %v1561, %v1577
        %v1610 = vsel %vm812, %v1562, %v1578
        %v1611 = vsel %vm812, %v1563, %v1579
        %v1612 = vsel %vm812, %v1564, %v1580
        %v1613 = vsel %vm812, %v1565, %v1581
        %v1614 = vsel %vm812, %v1566, %v1582
        %v1615 = vsel %vm812, %v1567, %v1583
        %v1616 = vsel %vm812, %v1568, %v1584
        %v1617 = vsel %vm812, %v1569, %v1585
        %v1618 = vsel %vm812, %v1570, %v1586
        %v1619 = vsel %vm812, %v1571, %v1587
        %v1620 = vsel %vm812, %v1572, %v1588
        %v1621 = vsel %vm812, %v1573, %v1589
        %v1622 = vsel %vm812, %v1574, %v1590
        %v1623 = vsel %vm812, %v1591, %v1559
        %v1624 = vsel %vm812, %v1592, %v1560
        %v1625 = vsel %vm812, %v1593, %v1561
        %v1626 = vsel %vm812, %v1594, %v1562
        %v1627 = vsel %vm812, %v1595, %v1563
        %v1628 = vsel %vm812, %v1596, %v1564
        %v1629 = vsel %vm812, %v1597, %v1565
        %v1630 = vsel %vm812, %v1598, %v1566
        %v1631 = vsel %vm812, %v1599, %v1567
        %v1632 = vsel %vm812, %v1600, %v1568
        %v1633 = vsel %vm812, %v1601, %v1569
        %v1634 = vsel %vm812, %v1602, %v1570
        %v1635 = vsel %vm812, %v1603, %v1571
        %v1636 = vsel %vm812, %v1604, %v1572
        %v1637 = vsel %vm812, %v1605, %v1573
        %v1638 = vsel %vm812, %v1606, %v1574
        %v1639 = vrot.slane %v1511, 1
        %v1640 = vrot.slane %v1514, 1
        %v1641 = vrot.slane %v1517, 1
        %v1642 = vrot.slane %v1520, 1
        %v1643 = vrot.slane %v1523, 1
        %v1644 = vrot.slane %v1526, 1
        %v1645 = vrot.slane %v1529, 1
        %v1646 = vrot.slane %v1532, 1
        %v1647 = vrot.slane %v1535, 1
        %v1648 = vrot.slane %v1538, 1
        %v1649 = vrot.slane %v1541, 1
        %v1650 = vrot.slane %v1544, 1
        %v1651 = vrot.slane %v1547, 1
        %v1652 = vrot.slane %v1550, 1
        %v1653 = vrot.slane %v1553, 1
        %v1654 = vrot.slane %v1556, 1
        %v1655 = vrot.slane %v1512, 1
        %v1656 = vrot.slane %v1515, 1
        %v1657 = vrot.slane %v1518, 1
        %v1658 = vrot.slane %v1521, 1
        %v1659 = vrot.slane %v1524, 1
        %v1660 = vrot.slane %v1527, 1
        %v1661 = vrot.slane %v1530, 1
        %v1662 = vrot.slane %v1533, 1
        %v1663 = vrot.slane %v1536, 1
        %v1664 = vrot.slane %v1539, 1
        %v1665 = vrot.slane %v1542, 1
        %v1666 = vrot.slane %v1545, 1
        %v1667 = vrot.slane %v1548, 1
        %v1668 = vrot.slane %v1551, 1
        %v1669 = vrot.slane %v1554, 1
        %v1670 = vrot.slane %v1557, 1
        %v1671 = vrot.slane %v1513, 1
        %v1672 = vrot.slane %v1516, 1
        %v1673 = vrot.slane %v1519, 1
        %v1674 = vrot.slane %v1522, 1
        %v1675 = vrot.slane %v1525, 1
        %v1676 = vrot.slane %v1528, 1
        %v1677 = vrot.slane %v1531, 1
        %v1678 = vrot.slane %v1534, 1
        %v1679 = vrot.slane %v1537, 1
        %v1680 = vrot.slane %v1540, 1
        %v1681 = vrot.slane %v1543, 1
        %v1682 = vrot.slane %v1546, 1
        %v1683 = vrot.slane %v1549, 1
        %v1684 = vrot.slane %v1552, 1
        %v1685 = vrot.slane %v1555, 1
        %v1686 = vrot.slane %v1558, 1
        %v1687 = vsel %vm893, %v1655, %v1671
        %v1688 = vsel %vm893, %v1656, %v1672
        %v1689 = vsel %vm893, %v1657, %v1673
        %v1690 = vsel %vm893, %v1658, %v1674
        %v1691 = vsel %vm893, %v1659, %v1675
        %v1692 = vsel %vm893, %v1660, %v1676
        %v1693 = vsel %vm893, %v1661, %v1677
        %v1694 = vsel %vm893, %v1662, %v1678
        %v1695 = vsel %vm893, %v1663, %v1679
        %v1696 = vsel %vm893, %v1664, %v1680
        %v1697 = vsel %vm893, %v1665, %v1681
        %v1698 = vsel %vm893, %v1666, %v1682
        %v1699 = vsel %vm893, %v1667, %v1683
        %v1700 = vsel %vm893, %v1668, %v1684
        %v1701 = vsel %vm893, %v1669, %v1685
        %v1702 = vsel %vm893, %v1670, %v1686
        %v1703 = vsel %vm893, %v1639, %v1655
        %v1704 = vsel %vm893, %v1640, %v1656
        %v1705 = vsel %vm893, %v1641, %v1657
        %v1706 = vsel %vm893, %v1642, %v1658
        %v1707 = vsel %vm893, %v1643, %v1659
        %v1708 = vsel %vm893, %v1644, %v1660
        %v1709 = vsel %vm893, %v1645, %v1661
        %v1710 = vsel %vm893, %v1646, %v1662
        %v1711 = vsel %vm893, %v1647, %v1663
        %v1712 = vsel %vm893, %v1648, %v1664
        %v1713 = vsel %vm893, %v1649, %v1665
        %v1714 = vsel %vm893, %v1650, %v1666
        %v1715 = vsel %vm893, %v1651, %v1667
        %v1716 = vsel %vm893, %v1652, %v1668
        %v1717 = vsel %vm893, %v1653, %v1669
        %v1718 = vsel %vm893, %v1654, %v1670
        %v1719 = vlaneseq
        %v1720 = vshrl.u32 %v1719, 7
        %v1721 = vsub.s32 6, %v1720
        %v1722 = vrot.slane %v680, %v1721
        %v1723 = vmul.f32 %v1623, %v1722
        %v1724 = vmul.f32 %v1607, %v1722
        %v1725 = vmul.f32 %v1624, %v1722
        %v1726 = vmul.f32 %v1608, %v1722
        %v1727 = vmul.f32 %v1625, %v1722
        %v1728 = vmul.f32 %v1609, %v1722
        %v1729 = vmul.f32 %v1626, %v1722
        %v1730 = vmul.f32 %v1610, %v1722
        %v1731 = vmul.f32 %v1627, %v1722
        %v1732 = vmul.f32 %v1611, %v1722
        %v1733 = vmul.f32 %v1628, %v1722
        %v1734 = vmul.f32 %v1612, %v1722
        %v1735 = vmul.f32 %v1629, %v1722
        %v1736 = vmul.f32 %v1613, %v1722
        %v1737 = vmul.f32 %v1630, %v1722
        %v1738 = vmul.f32 %v1614, %v1722
        %v1739 = vmul.f32 %v1631, %v1722
        %v1740 = vmul.f32 %v1615, %v1722
        %v1741 = vmul.f32 %v1632, %v1722
        %v1742 = vmul.f32 %v1616, %v1722
        %v1743 = vmul.f32 %v1633, %v1722
        %v1744 = vmul.f32 %v1617, %v1722
        %v1745 = vmul.f32 %v1634, %v1722
        %v1746 = vmul.f32 %v1618, %v1722
        %v1747 = vmul.f32 %v1635, %v1722
        %v1748 = vmul.f32 %v1619, %v1722
        %v1749 = vmul.f32 %v1636, %v1722
        %v1750 = vmul.f32 %v1620, %v1722
        %v1751 = vmul.f32 %v1637, %v1722
        %v1752 = vmul.f32 %v1621, %v1722
        %v1753 = vmul.f32 %v1638, %v1722
        %v1754 = vmul.f32 %v1622, %v1722
        %v1755 = vlaneseq
        %v1756 = vshrl.u32 %v1755, 7
        %v1757 = vsub.s32 7, %v1756
        %v1758 = vrot.slane %v680, %v1757
        %v1759 = vmul.f32 %v1511, %v1758
        %v1760 = vmul.f32 %v1512, %v1758
        %v1761 = vmul.f32 %v1514, %v1758
        %v1762 = vmul.f32 %v1515, %v1758
        %v1763 = vmul.f32 %v1517, %v1758
        %v1764 = vmul.f32 %v1518, %v1758
        %v1765 = vmul.f32 %v1520, %v1758
        %v1766 = vmul.f32 %v1521, %v1758
        %v1767 = vmul.f32 %v1523, %v1758
        %v1768 = vmul.f32 %v1524, %v1758
        %v1769 = vmul.f32 %v1526, %v1758
        %v1770 = vmul.f32 %v1527, %v1758
        %v1771 = vmul.f32 %v1529, %v1758
        %v1772 = vmul.f32 %v1530, %v1758
        %v1773 = vmul.f32 %v1532, %v1758
        %v1774 = vmul.f32 %v1533, %v1758
        %v1775 = vmul.f32 %v1535, %v1758
        %v1776 = vmul.f32 %v1536, %v1758
        %v1777 = vmul.f32 %v1538, %v1758
        %v1778 = vmul.f32 %v1539, %v1758
        %v1779 = vmul.f32 %v1541, %v1758
        %v1780 = vmul.f32 %v1542, %v1758
        %v1781 = vmul.f32 %v1544, %v1758
        %v1782 = vmul.f32 %v1545, %v1758
        %v1783 = vmul.f32 %v1547, %v1758
        %v1784 = vmul.f32 %v1548, %v1758
        %v1785 = vmul.f32 %v1550, %v1758
        %v1786 = vmul.f32 %v1551, %v1758
        %v1787 = vmul.f32 %v1553, %v1758
        %v1788 = vmul.f32 %v1554, %v1758
        %v1789 = vmul.f32 %v1556, %v1758
        %v1790 = vmul.f32 %v1557, %v1758
        %v1791 = vadd.f32 %v1723, %v1759
        %v1792 = vadd.f32 %v1724, %v1760
        %v1793 = vadd.f32 %v1725, %v1761
        %v1794 = vadd.f32 %v1726, %v1762
        %v1795 = vadd.f32 %v1727, %v1763
        %v1796 = vadd.f32 %v1728, %v1764
        %v1797 = vadd.f32 %v1729, %v1765
        %v1798 = vadd.f32 %v1730, %v1766
        %v1799 = vadd.f32 %v1731, %v1767
        %v1800 = vadd.f32 %v1732, %v1768
        %v1801 = vadd.f32 %v1733, %v1769
        %v1802 = vadd.f32 %v1734, %v1770
        %v1803 = vadd.f32 %v1735, %v1771
        %v1804 = vadd.f32 %v1736, %v1772
        %v1805 = vadd.f32 %v1737, %v1773
        %v1806 = vadd.f32 %v1738, %v1774
        %v1807 = vadd.f32 %v1739, %v1775
        %v1808 = vadd.f32 %v1740, %v1776
        %v1809 = vadd.f32 %v1741, %v1777
        %v1810 = vadd.f32 %v1742, %v1778
        %v1811 = vadd.f32 %v1743, %v1779
        %v1812 = vadd.f32 %v1744, %v1780
        %v1813 = vadd.f32 %v1745, %v1781
        %v1814 = vadd.f32 %v1746, %v1782
        %v1815 = vadd.f32 %v1747, %v1783
        %v1816 = vadd.f32 %v1748, %v1784
        %v1817 = vadd.f32 %v1749, %v1785
        %v1818 = vadd.f32 %v1750, %v1786
        %v1819 = vadd.f32 %v1751, %v1787
        %v1820 = vadd.f32 %v1752, %v1788
        %v1821 = vadd.f32 %v1753, %v1789
        %v1822 = vadd.f32 %v1754, %v1790
        %v1823 = vlaneseq
        %v1824 = vshrl.u32 %v1823, 7
        %v1825 = vsub.s32 0, %v1824
        %v1826 = vrot.slane %v681, %v1825
        %v1827 = vmul.f32 %v1703, %v1826
        %v1828 = vmul.f32 %v1687, %v1826
        %v1829 = vmul.f32 %v1704, %v1826
        %v1830 = vmul.f32 %v1688, %v1826
        %v1831 = vmul.f32 %v1705, %v1826
        %v1832 = vmul.f32 %v1689, %v1826
        %v1833 = vmul.f32 %v1706, %v1826
        %v1834 = vmul.f32 %v1690, %v1826
        %v1835 = vmul.f32 %v1707, %v1826
        %v1836 = vmul.f32 %v1691, %v1826
        %v1837 = vmul.f32 %v1708, %v1826
        %v1838 = vmul.f32 %v1692, %v1826
        %v1839 = vmul.f32 %v1709, %v1826
        %v1840 = vmul.f32 %v1693, %v1826
        %v1841 = vmul.f32 %v1710, %v1826
        %v1842 = vmul.f32 %v1694, %v1826
        %v1843 = vmul.f32 %v1711, %v1826
        %v1844 = vmul.f32 %v1695, %v1826
        %v1845 = vmul.f32 %v1712, %v1826
        %v1846 = vmul.f32 %v1696, %v1826
        %v1847 = vmul.f32 %v1713, %v1826
        %v1848 = vmul.f32 %v1697, %v1826
        %v1849 = vmul.f32 %v1714, %v1826
        %v1850 = vmul.f32 %v1698, %v1826
        %v1851 = vmul.f32 %v1715, %v1826
        %v1852 = vmul.f32 %v1699, %v1826
        %v1853 = vmul.f32 %v1716, %v1826
        %v1854 = vmul.f32 %v1700, %v1826
        %v1855 = vmul.f32 %v1717, %v1826
        %v1856 = vmul.f32 %v1701, %v1826
        %v1857 = vmul.f32 %v1718, %v1826
        %v1858 = vmul.f32 %v1702, %v1826
        %v1859 = vadd.f32 %v1791, %v1827
        %v1860 = vadd.f32 %v1792, %v1828
        %v1861 = vadd.f32 %v1793, %v1829
        %v1862 = vadd.f32 %v1794, %v1830
        %v1863 = vadd.f32 %v1795, %v1831
        %v1864 = vadd.f32 %v1796, %v1832
        %v1865 = vadd.f32 %v1797, %v1833
        %v1866 = vadd.f32 %v1798, %v1834
        %v1867 = vadd.f32 %v1799, %v1835
        %v1868 = vadd.f32 %v1800, %v1836
        %v1869 = vadd.f32 %v1801, %v1837
        %v1870 = vadd.f32 %v1802, %v1838
        %v1871 = vadd.f32 %v1803, %v1839
        %v1872 = vadd.f32 %v1804, %v1840
        %v1873 = vadd.f32 %v1805, %v1841
        %v1874 = vadd.f32 %v1806, %v1842
        %v1875 = vadd.f32 %v1807, %v1843
        %v1876 = vadd.f32 %v1808, %v1844
        %v1877 = vadd.f32 %v1809, %v1845
        %v1878 = vadd.f32 %v1810, %v1846
        %v1879 = vadd.f32 %v1811, %v1847
        %v1880 = vadd.f32 %v1812, %v1848
        %v1881 = vadd.f32 %v1813, %v1849
        %v1882 = vadd.f32 %v1814, %v1850
        %v1883 = vadd.f32 %v1815, %v1851
        %v1884 = vadd.f32 %v1816, %v1852
        %v1885 = vadd.f32 %v1817, %v1853
        %v1886 = vadd.f32 %v1818, %v1854
        %v1887 = vadd.f32 %v1819, %v1855
        %v1888 = vadd.f32 %v1820, %v1856
        %v1889 = vadd.f32 %v1821, %v1857
        %v1890 = vadd.f32 %v1822, %v1858
        %v1891 = vadd.f32 %v1478, %v1859
        %v1892 = vadd.f32 %v1479, %v1860
        %v1893 = vadd.f32 %v1480, %v1861
        %v1894 = vadd.f32 %v1481, %v1862
        %v1895 = vadd.f32 %v1482, %v1863
        %v1896 = vadd.f32 %v1483, %v1864
        %v1897 = vadd.f32 %v1484, %v1865
        %v1898 = vadd.f32 %v1485, %v1866
        %v1899 = vadd.f32 %v1486, %v1867
        %v1900 = vadd.f32 %v1487, %v1868
        %v1901 = vadd.f32 %v1488, %v1869
        %v1902 = vadd.f32 %v1489, %v1870
        %v1903 = vadd.f32 %v1490, %v1871
        %v1904 = vadd.f32 %v1491, %v1872
        %v1905 = vadd.f32 %v1492, %v1873
        %v1906 = vadd.f32 %v1493, %v1874
        %v1907 = vadd.f32 %v1494, %v1875
        %v1908 = vadd.f32 %v1495, %v1876
        %v1909 = vadd.f32 %v1496, %v1877
        %v1910 = vadd.f32 %v1497, %v1878
        %v1911 = vadd.f32 %v1498, %v1879
        %v1912 = vadd.f32 %v1499, %v1880
        %v1913 = vadd.f32 %v1500, %v1881
        %v1914 = vadd.f32 %v1501, %v1882
        %v1915 = vadd.f32 %v1502, %v1883
        %v1916 = vadd.f32 %v1503, %v1884
        %v1917 = vadd.f32 %v1504, %v1885
        %v1918 = vadd.f32 %v1505, %v1886
        %v1919 = vadd.f32 %v1506, %v1887
        %v1920 = vadd.f32 %v1507, %v1888
        %v1921 = vadd.f32 %v1508, %v1889
        %v1922 = vadd.f32 %v1509, %v1890
        %v1923 = vld [vmem:[#allocation8] sm:$0x1]
        %v1924 = vld [vmem:[#allocation9] sm:$0x1]
        %v1925 = vadd.f32 %v1891, %v1892
        %v1926 = vadd.f32 %v1925, %v1893
        %v1927 = vadd.f32 %v1926, %v1894
        %v1928 = vadd.f32 %v1927, %v1895
        %v1929 = vadd.f32 %v1928, %v1896
        %v1930 = vadd.f32 %v1929, %v1897
        %v1931 = vadd.f32 %v1930, %v1898
        %v1932 = vadd.f32 %v1931, %v1899
        %v1933 = vadd.f32 %v1932, %v1900
        %v1934 = vadd.f32 %v1933, %v1901
        %v1935 = vadd.f32 %v1934, %v1902
        %v1936 = vadd.f32 %v1935, %v1903
        %v1937 = vadd.f32 %v1936, %v1904
        %v1938 = vadd.f32 %v1937, %v1905
        %v1939 = vadd.f32 %v1938, %v1906
        %v1940 = vadd.f32 %v1939, %v1907
        %v1941 = vadd.f32 %v1940, %v1908
        %v1942 = vadd.f32 %v1941, %v1909
        %v1943 = vadd.f32 %v1942, %v1910
        %v1944 = vadd.f32 %v1943, %v1911
        %v1945 = vadd.f32 %v1944, %v1912
        %v1946 = vadd.f32 %v1945, %v1913
        %v1947 = vadd.f32 %v1946, %v1914
        %v1948 = vadd.f32 %v1947, %v1915
        %v1949 = vadd.f32 %v1948, %v1916
        %v1950 = vadd.f32 %v1949, %v1917
        %v1951 = vadd.f32 %v1950, %v1918
        %v1952 = vadd.f32 %v1951, %v1919
        %v1953 = vadd.f32 %v1952, %v1920
        %v1954 = vadd.f32 %v1953, %v1921
        %v1955 = vadd.f32 %v1954, %v1922
        %1956 = vadd.xlane.f32.xlu0 %v1955
        %v1957 = vpop.xlane.xlu0 %1956
        %v1958 = vrot.slane %v1957, 4
        %v1959 = vadd.f32 %v1957, %v1958
        %v1960 = vrot.slane %v1959, 2
        %v1961 = vadd.f32 %v1959, %v1960
        %v1962 = vrot.slane %v1961, 1
        %v1963 = vadd.f32 %v1961, %v1962
        %s1964 = vtos %v1963
        %v1965 = vmul.f32 %v1891, %v1891
        %v1966 = vmul.f32 %v1892, %v1892
        %v1967 = vmul.f32 %v1893, %v1893
        %v1968 = vmul.f32 %v1894, %v1894
        %v1969 = vmul.f32 %v1895, %v1895
        %v1970 = vmul.f32 %v1896, %v1896
        %v1971 = vmul.f32 %v1897, %v1897
        %v1972 = vmul.f32 %v1898, %v1898
        %v1973 = vmul.f32 %v1899, %v1899
        %v1974 = vmul.f32 %v1900, %v1900
        %v1975 = vmul.f32 %v1901, %v1901
        %v1976 = vmul.f32 %v1902, %v1902
        %v1977 = vmul.f32 %v1903, %v1903
        %v1978 = vmul.f32 %v1904, %v1904
        %v1979 = vmul.f32 %v1905, %v1905
        %v1980 = vmul.f32 %v1906, %v1906
        %v1981 = vmul.f32 %v1907, %v1907
        %v1982 = vmul.f32 %v1908, %v1908
        %v1983 = vmul.f32 %v1909, %v1909
        %v1984 = vmul.f32 %v1910, %v1910
        %v1985 = vmul.f32 %v1911, %v1911
        %v1986 = vmul.f32 %v1912, %v1912
        %v1987 = vmul.f32 %v1913, %v1913
        %v1988 = vmul.f32 %v1914, %v1914
        %v1989 = vmul.f32 %v1915, %v1915
        %v1990 = vmul.f32 %v1916, %v1916
        %v1991 = vmul.f32 %v1917, %v1917
        %v1992 = vmul.f32 %v1918, %v1918
        %v1993 = vmul.f32 %v1919, %v1919
        %v1994 = vmul.f32 %v1920, %v1920
        %v1995 = vmul.f32 %v1921, %v1921
        %v1996 = vmul.f32 %v1922, %v1922
        %v1997 = vadd.f32 %v1965, %v1966
        %v1998 = vadd.f32 %v1997, %v1967
        %v1999 = vadd.f32 %v1998, %v1968
        %v2000 = vadd.f32 %v1999, %v1969
        %v2001 = vadd.f32 %v2000, %v1970
        %v2002 = vadd.f32 %v2001, %v1971
        %v2003 = vadd.f32 %v2002, %v1972
        %v2004 = vadd.f32 %v2003, %v1973
        %v2005 = vadd.f32 %v2004, %v1974
        %v2006 = vadd.f32 %v2005, %v1975
        %v2007 = vadd.f32 %v2006, %v1976
        %v2008 = vadd.f32 %v2007, %v1977
        %v2009 = vadd.f32 %v2008, %v1978
        %v2010 = vadd.f32 %v2009, %v1979
        %v2011 = vadd.f32 %v2010, %v1980
        %v2012 = vadd.f32 %v2011, %v1981
        %v2013 = vadd.f32 %v2012, %v1982
        %v2014 = vadd.f32 %v2013, %v1983
        %v2015 = vadd.f32 %v2014, %v1984
        %v2016 = vadd.f32 %v2015, %v1985
        %v2017 = vadd.f32 %v2016, %v1986
        %v2018 = vadd.f32 %v2017, %v1987
        %v2019 = vadd.f32 %v2018, %v1988
        %v2020 = vadd.f32 %v2019, %v1989
        %v2021 = vadd.f32 %v2020, %v1990
        %v2022 = vadd.f32 %v2021, %v1991
        %v2023 = vadd.f32 %v2022, %v1992
        %v2024 = vadd.f32 %v2023, %v1993
        %v2025 = vadd.f32 %v2024, %v1994
        %v2026 = vadd.f32 %v2025, %v1995
        %v2027 = vadd.f32 %v2026, %v1996
        %2028 = vadd.xlane.f32.xlu0 %v2027
        %v2029 = vpop.xlane.xlu0 %2028
        %v2030 = vrot.slane %v2029, 4
        %v2031 = vadd.f32 %v2029, %v2030
        %v2032 = vrot.slane %v2031, 2
        %v2033 = vadd.f32 %v2031, %v2032
        %v2034 = vrot.slane %v2033, 1
        %v2035 = vadd.f32 %v2033, %v2034
        %s2036 = vtos %v2035
        %v2037 = vrcp.pop 1024.0
        %s2038 = vtos %v2037
        %s2039 = smul.f32 %s1964, %s2038
        %v2040 = vrcp.pop 1024.0
        %s2041 = vtos %v2040
        %s2042 = smul.f32 %s2036, %s2041
        %s2043 = smul.f32 %s2039, %s2039
        %s2044 = ssub.f32 %s2042, %s2043
        %s2045 = smax.f32 %s2044, 0.0
        %s2046 = sadd.f32 %s2045, 1e-05
        %v2047 = vstv %s2046
        %v2048 = vrsqrt.pop %v2047
        %s2049 = vtos %v2048
        %v2050 = vstv %s2049
        %v2051 = vmul.f32 %v1923, %v2050
        %v2052 = vstv %s2039
        %v2053 = vmul.f32 %v2052, %v2051
        %v2054 = vsub.f32 %v1924, %v2053
        %v2056 = vlaneseq
        %v2057 = vshrl.u32 %v2056, 7
        %v2058 = vsub.s32 0, %v2057
        %v2059 = vrot.slane %v2051, %v2058
        %v2061 = vmul.f32 %v1891, %v2059
        %v2062 = vmul.f32 %v1892, %v2059
        %v2063 = vmul.f32 %v1893, %v2059
        %v2064 = vmul.f32 %v1894, %v2059
        %v2065 = vmul.f32 %v1895, %v2059
        %v2066 = vmul.f32 %v1896, %v2059
        %v2067 = vmul.f32 %v1897, %v2059
        %v2068 = vmul.f32 %v1898, %v2059
        %v2069 = vmul.f32 %v1899, %v2059
        %v2070 = vmul.f32 %v1900, %v2059
        %v2071 = vmul.f32 %v1901, %v2059
        %v2072 = vmul.f32 %v1902, %v2059
        %v2073 = vmul.f32 %v1903, %v2059
        %v2074 = vmul.f32 %v1904, %v2059
        %v2075 = vmul.f32 %v1905, %v2059
        %v2076 = vmul.f32 %v1906, %v2059
        %v2077 = vmul.f32 %v1907, %v2059
        %v2078 = vmul.f32 %v1908, %v2059
        %v2079 = vmul.f32 %v1909, %v2059
        %v2080 = vmul.f32 %v1910, %v2059
        %v2081 = vmul.f32 %v1911, %v2059
        %v2082 = vmul.f32 %v1912, %v2059
        %v2083 = vmul.f32 %v1913, %v2059
        %v2084 = vmul.f32 %v1914, %v2059
        %v2085 = vmul.f32 %v1915, %v2059
        %v2086 = vmul.f32 %v1916, %v2059
        %v2087 = vmul.f32 %v1917, %v2059
        %v2088 = vmul.f32 %v1918, %v2059
        %v2089 = vmul.f32 %v1919, %v2059
        %v2090 = vmul.f32 %v1920, %v2059
        %v2091 = vmul.f32 %v1921, %v2059
        %v2092 = vmul.f32 %v1922, %v2059
        %v2094 = vlaneseq
        %v2095 = vshrl.u32 %v2094, 7
        %v2096 = vsub.s32 0, %v2095
        %v2097 = vrot.slane %v2054, %v2096
        %v2099 = vadd.f32 %v2061, %v2097
        %v2100 = vadd.f32 %v2062, %v2097
        %v2101 = vadd.f32 %v2063, %v2097
        %v2102 = vadd.f32 %v2064, %v2097
        %v2103 = vadd.f32 %v2065, %v2097
        %v2104 = vadd.f32 %v2066, %v2097
        %v2105 = vadd.f32 %v2067, %v2097
        %v2106 = vadd.f32 %v2068, %v2097
        %v2107 = vadd.f32 %v2069, %v2097
        %v2108 = vadd.f32 %v2070, %v2097
        %v2109 = vadd.f32 %v2071, %v2097
        %v2110 = vadd.f32 %v2072, %v2097
        %v2111 = vadd.f32 %v2073, %v2097
        %v2112 = vadd.f32 %v2074, %v2097
        %v2113 = vadd.f32 %v2075, %v2097
        %v2114 = vadd.f32 %v2076, %v2097
        %v2115 = vadd.f32 %v2077, %v2097
        %v2116 = vadd.f32 %v2078, %v2097
        %v2117 = vadd.f32 %v2079, %v2097
        %v2118 = vadd.f32 %v2080, %v2097
        %v2119 = vadd.f32 %v2081, %v2097
        %v2120 = vadd.f32 %v2082, %v2097
        %v2121 = vadd.f32 %v2083, %v2097
        %v2122 = vadd.f32 %v2084, %v2097
        %v2123 = vadd.f32 %v2085, %v2097
        %v2124 = vadd.f32 %v2086, %v2097
        %v2125 = vadd.f32 %v2087, %v2097
        %v2126 = vadd.f32 %v2088, %v2097
        %v2127 = vadd.f32 %v2089, %v2097
        %v2128 = vadd.f32 %v2090, %v2097
        %v2129 = vadd.f32 %v2091, %v2097
        %v2130 = vadd.f32 %v2092, %v2097
        %v2131 = vmul.f32 %v2099, 1.442695
        %v2132 = vpow.pop %v2131
        %v2133 = vmul.f32 %v2100, 1.442695
        %v2134 = vpow.pop %v2133
        %v2135 = vmul.f32 %v2101, 1.442695
        %v2136 = vpow.pop %v2135
        %v2137 = vmul.f32 %v2102, 1.442695
        %v2138 = vpow.pop %v2137
        %v2139 = vmul.f32 %v2103, 1.442695
        %v2140 = vpow.pop %v2139
        %v2141 = vmul.f32 %v2104, 1.442695
        %v2142 = vpow.pop %v2141
        %v2143 = vmul.f32 %v2105, 1.442695
        %v2144 = vpow.pop %v2143
        %v2145 = vmul.f32 %v2106, 1.442695
        %v2146 = vpow.pop %v2145
        %v2147 = vmul.f32 %v2107, 1.442695
        %v2148 = vpow.pop %v2147
        %v2149 = vmul.f32 %v2108, 1.442695
        %v2150 = vpow.pop %v2149
        %v2151 = vmul.f32 %v2109, 1.442695
        %v2152 = vpow.pop %v2151
        %v2153 = vmul.f32 %v2110, 1.442695
        %v2154 = vpow.pop %v2153
        %v2155 = vmul.f32 %v2111, 1.442695
        %v2156 = vpow.pop %v2155
        %v2157 = vmul.f32 %v2112, 1.442695
        %v2158 = vpow.pop %v2157
        %v2159 = vmul.f32 %v2113, 1.442695
        %v2160 = vpow.pop %v2159
        %v2161 = vmul.f32 %v2114, 1.442695
        %v2162 = vpow.pop %v2161
        %v2163 = vmul.f32 %v2115, 1.442695
        %v2164 = vpow.pop %v2163
        %v2165 = vmul.f32 %v2116, 1.442695
        %v2166 = vpow.pop %v2165
        %v2167 = vmul.f32 %v2117, 1.442695
        %v2168 = vpow.pop %v2167
        %v2169 = vmul.f32 %v2118, 1.442695
        %v2170 = vpow.pop %v2169
        %v2171 = vmul.f32 %v2119, 1.442695
        %v2172 = vpow.pop %v2171
        %v2173 = vmul.f32 %v2120, 1.442695
        %v2174 = vpow.pop %v2173
        %v2175 = vmul.f32 %v2121, 1.442695
        %v2176 = vpow.pop %v2175
        %v2177 = vmul.f32 %v2122, 1.442695
        %v2178 = vpow.pop %v2177
        %v2179 = vmul.f32 %v2123, 1.442695
        %v2180 = vpow.pop %v2179
        %v2181 = vmul.f32 %v2124, 1.442695
        %v2182 = vpow.pop %v2181
        %v2183 = vmul.f32 %v2125, 1.442695
        %v2184 = vpow.pop %v2183
        %v2185 = vmul.f32 %v2126, 1.442695
        %v2186 = vpow.pop %v2185
        %v2187 = vmul.f32 %v2127, 1.442695
        %v2188 = vpow.pop %v2187
        %v2189 = vmul.f32 %v2128, 1.442695
        %v2190 = vpow.pop %v2189
        %v2191 = vmul.f32 %v2129, 1.442695
        %v2192 = vpow.pop %v2191
        %v2193 = vmul.f32 %v2130, 1.442695
        %v2194 = vpow.pop %v2193
        %v2195 = vtanh.pop %v2132
        %v2196 = vtanh.pop %v2134
        %v2197 = vtanh.pop %v2136
        %v2198 = vtanh.pop %v2138
        %v2199 = vtanh.pop %v2140
        %v2200 = vtanh.pop %v2142
        %v2201 = vtanh.pop %v2144
        %v2202 = vtanh.pop %v2146
        %v2203 = vtanh.pop %v2148
        %v2204 = vtanh.pop %v2150
        %v2205 = vtanh.pop %v2152
        %v2206 = vtanh.pop %v2154
        %v2207 = vtanh.pop %v2156
        %v2208 = vtanh.pop %v2158
        %v2209 = vtanh.pop %v2160
        %v2210 = vtanh.pop %v2162
        %v2211 = vtanh.pop %v2164
        %v2212 = vtanh.pop %v2166
        %v2213 = vtanh.pop %v2168
        %v2214 = vtanh.pop %v2170
        %v2215 = vtanh.pop %v2172
        %v2216 = vtanh.pop %v2174
        %v2217 = vtanh.pop %v2176
        %v2218 = vtanh.pop %v2178
        %v2219 = vtanh.pop %v2180
        %v2220 = vtanh.pop %v2182
        %v2221 = vtanh.pop %v2184
        %v2222 = vtanh.pop %v2186
        %v2223 = vtanh.pop %v2188
        %v2224 = vtanh.pop %v2190
        %v2225 = vtanh.pop %v2192
        %v2226 = vtanh.pop %v2194
        %v2227 = vmul.f32 %v2099, %v2195
        %v2228 = vmul.f32 %v2100, %v2196
        %v2229 = vmul.f32 %v2101, %v2197
        %v2230 = vmul.f32 %v2102, %v2198
        %v2231 = vmul.f32 %v2103, %v2199
        %v2232 = vmul.f32 %v2104, %v2200
        %v2233 = vmul.f32 %v2105, %v2201
        %v2234 = vmul.f32 %v2106, %v2202
        %v2235 = vmul.f32 %v2107, %v2203
        %v2236 = vmul.f32 %v2108, %v2204
        %v2237 = vmul.f32 %v2109, %v2205
        %v2238 = vmul.f32 %v2110, %v2206
        %v2239 = vmul.f32 %v2111, %v2207
        %v2240 = vmul.f32 %v2112, %v2208
        %v2241 = vmul.f32 %v2113, %v2209
        %v2242 = vmul.f32 %v2114, %v2210
        %v2243 = vmul.f32 %v2115, %v2211
        %v2244 = vmul.f32 %v2116, %v2212
        %v2245 = vmul.f32 %v2117, %v2213
        %v2246 = vmul.f32 %v2118, %v2214
        %v2247 = vmul.f32 %v2119, %v2215
        %v2248 = vmul.f32 %v2120, %v2216
        %v2249 = vmul.f32 %v2121, %v2217
        %v2250 = vmul.f32 %v2122, %v2218
        %v2251 = vmul.f32 %v2123, %v2219
        %v2252 = vmul.f32 %v2124, %v2220
        %v2253 = vmul.f32 %v2125, %v2221
        %v2254 = vmul.f32 %v2126, %v2222
        %v2255 = vmul.f32 %v2127, %v2223
        %v2256 = vmul.f32 %v2128, %v2224
        %v2257 = vmul.f32 %v2129, %v2225
        %v2258 = vmul.f32 %v2130, %v2226
        %v2259 = vpack.c.bf16 %v2228, %v2227
        %v2260 = vpack.c.bf16 %v2230, %v2229
        %v2261 = vpack.c.bf16 %v2232, %v2231
        %v2262 = vpack.c.bf16 %v2234, %v2233
        %v2263 = vpack.c.bf16 %v2236, %v2235
        %v2264 = vpack.c.bf16 %v2238, %v2237
        %v2265 = vpack.c.bf16 %v2240, %v2239
        %v2266 = vpack.c.bf16 %v2242, %v2241
        %v2267 = vpack.c.bf16 %v2244, %v2243
        %v2268 = vpack.c.bf16 %v2246, %v2245
        %v2269 = vpack.c.bf16 %v2248, %v2247
        %v2270 = vpack.c.bf16 %v2250, %v2249
        %v2271 = vpack.c.bf16 %v2252, %v2251
        %v2272 = vpack.c.bf16 %v2254, %v2253
        %v2273 = vpack.c.bf16 %v2256, %v2255
        %v2274 = vpack.c.bf16 %v2258, %v2257
        %v2275 = vld [vmem:[#allocation11] sm:$0xf]
        %v2276 = vld [vmem:[#allocation11 + $0x4] sm:$0xf]
        %v2277 = vld [vmem:[#allocation11 + $0x8] sm:$0xf]
        %v2278 = vld [vmem:[#allocation11 + $0xc] sm:$0xf]
        %v2279 = vld [vmem:[#allocation11 + $0x10] sm:$0xf]
        %v2280 = vld [vmem:[#allocation11 + $0x14] sm:$0xf]
        %v2281 = vld [vmem:[#allocation11 + $0x18] sm:$0xf]
        %v2282 = vld [vmem:[#allocation11 + $0x1c] sm:$0xf]
        %v2283 = vld [vmem:[#allocation11 + $0x20] sm:$0xf]
        %v2284 = vld [vmem:[#allocation11 + $0x24] sm:$0xf]
        %v2285 = vld [vmem:[#allocation11 + $0x28] sm:$0xf]
        %v2286 = vld [vmem:[#allocation11 + $0x2c] sm:$0xf]
        %v2287 = vld [vmem:[#allocation11 + $0x30] sm:$0xf]
        %v2288 = vld [vmem:[#allocation11 + $0x34] sm:$0xf]
        %v2289 = vld [vmem:[#allocation11 + $0x38] sm:$0xf]
        %v2290 = vld [vmem:[#allocation11 + $0x3c] sm:$0xf]
        %v2307 = vunpack.c.l.b16 %v2275
        %v2308 = vunpack.c.l.b16 %v2276
        %v2309 = vunpack.c.l.b16 %v2277
        %v2310 = vunpack.c.l.b16 %v2278
        %v2311 = vunpack.c.l.b16 %v2279
        %v2312 = vunpack.c.l.b16 %v2280
        %v2313 = vunpack.c.l.b16 %v2281
        %v2314 = vunpack.c.l.b16 %v2282
        %v2315 = vunpack.c.l.b16 %v2283
        %v2316 = vunpack.c.l.b16 %v2284
        %v2317 = vunpack.c.l.b16 %v2285
        %v2318 = vunpack.c.l.b16 %v2286
        %v2319 = vunpack.c.l.b16 %v2287
        %v2320 = vunpack.c.l.b16 %v2288
        %v2321 = vunpack.c.l.b16 %v2289
        %v2322 = vunpack.c.l.b16 %v2290
        %v2323 = vpack.c.b16 %v2308, %v2307
        %v2324 = vpack.c.b16 %v2310, %v2309
        %v2325 = vpack.c.b16 %v2312, %v2311
        %v2326 = vpack.c.b16 %v2314, %v2313
        %v2327 = vpack.c.b16 %v2316, %v2315
        %v2328 = vpack.c.b16 %v2318, %v2317
        %v2329 = vpack.c.b16 %v2320, %v2319
        %v2330 = vpack.c.b16 %v2322, %v2321
        %2339 = vmatprep.subr.bf16.mxu0 0
        %2340 = vmatpush1.bf16.msra.mxu0 %v2330
        %2341 = vmatprep.subr.bf16.mxu0 0
        %2342 = vmatpush1.bf16.msra.mxu0 %v2329
        %2343 = vmatprep.subr.bf16.mxu0 0
        %2344 = vmatpush1.bf16.msra.mxu0 %v2328
        %2345 = vmatprep.subr.bf16.mxu0 0
        %2346 = vmatpush1.bf16.msra.mxu0 %v2327
        %2347 = vmatprep.subr.bf16.mxu0 0
        %2348 = vmatpush1.bf16.msra.mxu0 %v2326
        %2349 = vmatprep.subr.bf16.mxu0 0
        %2350 = vmatpush1.bf16.msra.mxu0 %v2325
        %2351 = vmatprep.subr.bf16.mxu0 0
        %2352 = vmatpush1.bf16.msra.mxu0 %v2324
        %2353 = vmatprep.subr.bf16.mxu0 0
        %2354 = vmatpush1.bf16.msra.mxu0 %v2323
        %2355 = vmatprep.subr.bf16.mxu0 0
        %2356 = vmatpush2.bf16.msra.mxu0 0
        %2357 = vmatprep.subr.bf16.mxu0 0
        %2358 = vmatpush2.bf16.msra.mxu0 0
        %2359 = vmatprep.subr.bf16.mxu0 0
        %2360 = vmatpush2.bf16.msra.mxu0 0
        %2361 = vmatprep.subr.bf16.mxu0 0
        %2362 = vmatpush2.bf16.msra.mxu0 0
        %2363 = vmatprep.subr.bf16.mxu0 0
        %2364 = vmatpush2.bf16.msra.mxu0 0
        %2365 = vmatprep.subr.bf16.mxu0 0
        %2366 = vmatpush2.bf16.msra.mxu0 0
        %2367 = vmatprep.subr.bf16.mxu0 0
        %2368 = vmatpush2.bf16.msra.mxu0 0
        %2369 = vmatprep.subr.bf16.mxu0 0
        %2370 = vmatpush2.bf16.msra.mxu0 0
        %2371 = vmatprep.mubr.bf16.mxu0 0
        %2372 = vmatmul.mubr.bf16.gmra.mxu0 %v2259
        %v2373 = vpop.f32.mrf.mxu0
        %v2374 = vadd.f32 0.0, %v2373
        %v2375 = vpop.f32.mrf.mxu0
        %v2376 = vpop.f32.mrf.mxu0
        %v2377 = vadd.f32 0.0, %v2376
        %v2378 = vpop.f32.mrf.mxu0
        %2379 = vmatprep.mubr.bf16.mxu0 0
        %2380 = vmatmul.mubr.bf16.gmra.mxu0 %v2260
        %v2381 = vpop.f32.mrf.mxu0
        %v2382 = vadd.f32 0.0, %v2381
        %v2383 = vpop.f32.mrf.mxu0
        %v2384 = vpop.f32.mrf.mxu0
        %v2385 = vadd.f32 0.0, %v2384
        %v2386 = vpop.f32.mrf.mxu0
        %2387 = vmatprep.mubr.bf16.mxu0 0
        %2388 = vmatmul.mubr.bf16.gmra.mxu0 %v2261
        %v2389 = vpop.f32.mrf.mxu0
        %v2390 = vadd.f32 0.0, %v2389
        %v2391 = vpop.f32.mrf.mxu0
        %v2392 = vpop.f32.mrf.mxu0
        %v2393 = vadd.f32 0.0, %v2392
        %v2394 = vpop.f32.mrf.mxu0
        %2395 = vmatprep.mubr.bf16.mxu0 0
        %2396 = vmatmul.mubr.bf16.gmra.mxu0 %v2262
        %v2397 = vpop.f32.mrf.mxu0
        %v2398 = vadd.f32 0.0, %v2397
        %v2399 = vpop.f32.mrf.mxu0
        %v2400 = vpop.f32.mrf.mxu0
        %v2401 = vadd.f32 0.0, %v2400
        %v2402 = vpop.f32.mrf.mxu0
        %2403 = vmatprep.mubr.bf16.mxu0 0
        %2404 = vmatmul.mubr.bf16.gmra.mxu0 %v2263
        %v2405 = vpop.f32.mrf.mxu0
        %v2406 = vadd.f32 0.0, %v2405
        %v2407 = vpop.f32.mrf.mxu0
        %v2408 = vpop.f32.mrf.mxu0
        %v2409 = vadd.f32 0.0, %v2408
        %v2410 = vpop.f32.mrf.mxu0
        %2411 = vmatprep.mubr.bf16.mxu0 0
        %2412 = vmatmul.mubr.bf16.gmra.mxu0 %v2264
        %v2413 = vpop.f32.mrf.mxu0
        %v2414 = vadd.f32 0.0, %v2413
        %v2415 = vpop.f32.mrf.mxu0
        %v2416 = vpop.f32.mrf.mxu0
        %v2417 = vadd.f32 0.0, %v2416
        %v2418 = vpop.f32.mrf.mxu0
        %2419 = vmatprep.mubr.bf16.mxu0 0
        %2420 = vmatmul.mubr.bf16.gmra.mxu0 %v2265
        %v2421 = vpop.f32.mrf.mxu0
        %v2422 = vadd.f32 0.0, %v2421
        %v2423 = vpop.f32.mrf.mxu0
        %v2424 = vpop.f32.mrf.mxu0
        %v2425 = vadd.f32 0.0, %v2424
        %v2426 = vpop.f32.mrf.mxu0
        %2427 = vmatprep.mubr.bf16.mxu0 0
        %2428 = vmatmul.mubr.bf16.gmra.mxu0 %v2266
        %v2429 = vpop.f32.mrf.mxu0
        %v2430 = vadd.f32 0.0, %v2429
        %v2431 = vpop.f32.mrf.mxu0
        %v2432 = vpop.f32.mrf.mxu0
        %v2433 = vadd.f32 0.0, %v2432
        %v2434 = vpop.f32.mrf.mxu0
        %2435 = vmatprep.mubr.bf16.mxu0 0
        %2436 = vmatmul.mubr.bf16.gmra.mxu0 %v2267
        %v2437 = vpop.f32.mrf.mxu0
        %v2438 = vadd.f32 0.0, %v2437
        %v2439 = vpop.f32.mrf.mxu0
        %v2440 = vpop.f32.mrf.mxu0
        %v2441 = vadd.f32 0.0, %v2440
        %v2442 = vpop.f32.mrf.mxu0
        %2443 = vmatprep.mubr.bf16.mxu0 0
        %2444 = vmatmul.mubr.bf16.gmra.mxu0 %v2268
        %v2445 = vpop.f32.mrf.mxu0
        %v2446 = vadd.f32 0.0, %v2445
        %v2447 = vpop.f32.mrf.mxu0
        %v2448 = vpop.f32.mrf.mxu0
        %v2449 = vadd.f32 0.0, %v2448
        %v2450 = vpop.f32.mrf.mxu0
        %2451 = vmatprep.mubr.bf16.mxu0 0
        %2452 = vmatmul.mubr.bf16.gmra.mxu0 %v2269
        %v2453 = vpop.f32.mrf.mxu0
        %v2454 = vadd.f32 0.0, %v2453
        %v2455 = vpop.f32.mrf.mxu0
        %v2456 = vpop.f32.mrf.mxu0
        %v2457 = vadd.f32 0.0, %v2456
        %v2458 = vpop.f32.mrf.mxu0
        %2459 = vmatprep.mubr.bf16.mxu0 0
        %2460 = vmatmul.mubr.bf16.gmra.mxu0 %v2270
        %v2461 = vpop.f32.mrf.mxu0
        %v2462 = vadd.f32 0.0, %v2461
        %v2463 = vpop.f32.mrf.mxu0
        %v2464 = vpop.f32.mrf.mxu0
        %v2465 = vadd.f32 0.0, %v2464
        %v2466 = vpop.f32.mrf.mxu0
        %2467 = vmatprep.mubr.bf16.mxu0 0
        %2468 = vmatmul.mubr.bf16.gmra.mxu0 %v2271
        %v2469 = vpop.f32.mrf.mxu0
        %v2470 = vadd.f32 0.0, %v2469
        %v2471 = vpop.f32.mrf.mxu0
        %v2472 = vpop.f32.mrf.mxu0
        %v2473 = vadd.f32 0.0, %v2472
        %v2474 = vpop.f32.mrf.mxu0
        %2475 = vmatprep.mubr.bf16.mxu0 0
        %2476 = vmatmul.mubr.bf16.gmra.mxu0 %v2272
        %v2477 = vpop.f32.mrf.mxu0
        %v2478 = vadd.f32 0.0, %v2477
        %v2479 = vpop.f32.mrf.mxu0
        %v2480 = vpop.f32.mrf.mxu0
        %v2481 = vadd.f32 0.0, %v2480
        %v2482 = vpop.f32.mrf.mxu0
        %2483 = vmatprep.mubr.bf16.mxu0 0
        %2484 = vmatmul.mubr.bf16.gmra.mxu0 %v2273
        %v2485 = vpop.f32.mrf.mxu0
        %v2486 = vadd.f32 0.0, %v2485
        %v2487 = vpop.f32.mrf.mxu0
        %v2488 = vpop.f32.mrf.mxu0
        %v2489 = vadd.f32 0.0, %v2488
        %v2490 = vpop.f32.mrf.mxu0
        %2491 = vmatprep.mubr.bf16.mxu0 0
        %2492 = vmatmul.mubr.bf16.gmra.mxu0 %v2274
        %v2493 = vpop.f32.mrf.mxu0
        %v2494 = vadd.f32 0.0, %v2493
        %v2495 = vpop.f32.mrf.mxu0
        %v2496 = vpop.f32.mrf.mxu0
        %v2497 = vadd.f32 0.0, %v2496
        %v2498 = vpop.f32.mrf.mxu0
        %2499 = vdwg.mxu0
        %v2500 = vld [vmem:[#allocation12] sm:$0xff]
        %v2501 = vld [vmem:[#allocation12 + $0x8] sm:$0x1]
        %2502 = vst [vmem:[%s631] sm:$0xff] %v2374
        %2503 = vst [vmem:[%s631 + $0x8] sm:$0xff] %v2377
        %2504 = vst [vmem:[%s631 + $0x18] sm:$0xff] %v2382
        %2505 = vst [vmem:[%s631 + $0x20] sm:$0xff] %v2385
        %2506 = vst [vmem:[%s631 + $0x30] sm:$0xff] %v2390
        %2507 = vst [vmem:[%s631 + $0x38] sm:$0xff] %v2393
        %2508 = vst [vmem:[%s631 + $0x48] sm:$0xff] %v2398
        %2509 = vst [vmem:[%s631 + $0x50] sm:$0xff] %v2401
        %2510 = vst [vmem:[%s631 + $0x60] sm:$0xff] %v2406
        %2511 = vst [vmem:[%s631 + $0x68] sm:$0xff] %v2409
        %2512 = vst [vmem:[%s631 + $0x78] sm:$0xff] %v2414
        %2513 = vst [vmem:[%s631 + $0x80] sm:$0xff] %v2417
        %2514 = vst [vmem:[%s631 + $0x90] sm:$0xff] %v2422
        %2515 = vst [vmem:[%s631 + $0x98] sm:$0xff] %v2425
        %2516 = vst [vmem:[%s631 + $0xa8] sm:$0xff] %v2430
        %2517 = vst [vmem:[%s631 + $0xb0] sm:$0xff] %v2433
        %2518 = vst [vmem:[%s631 + $0xc0] sm:$0xff] %v2438
        %2519 = vst [vmem:[%s631 + $0xc8] sm:$0xff] %v2441
        %2520 = vst [vmem:[%s631 + $0xd8] sm:$0xff] %v2446
        %2521 = vst [vmem:[%s631 + $0xe0] sm:$0xff] %v2449
        %2522 = vst [vmem:[%s631 + $0xf0] sm:$0xff] %v2454
        %2523 = vst [vmem:[%s631 + $0xf8] sm:$0xff] %v2457
        %2524 = vst [vmem:[%s631 + $0x108] sm:$0xff] %v2462
        %2525 = vst [vmem:[%s631 + $0x110] sm:$0xff] %v2465
        %2526 = vst [vmem:[%s631 + $0x120] sm:$0xff] %v2470
        %2527 = vst [vmem:[%s631 + $0x128] sm:$0xff] %v2473
        %2528 = vst [vmem:[%s631 + $0x138] sm:$0xff] %v2478
        %2529 = vst [vmem:[%s631 + $0x140] sm:$0xff] %v2481
        %2530 = vst [vmem:[%s631 + $0x150] sm:$0xff] %v2486
        %2531 = vst [vmem:[%s631 + $0x158] sm:$0xff] %v2489
        %2532 = vst [vmem:[%s631 + $0x168] sm:$0xff] %v2494
        %2533 = vst [vmem:[%s631 + $0x170] sm:$0xff] %v2497
        %v2534 = vld [vmem:[#allocation2] sm:$0xff]
        %v2535 = vld [vmem:[#allocation2 + $0x8] sm:$0xff]
        %v2536 = vld [vmem:[#allocation2 + $0x10] sm:$0xff]
        %v2537 = vld [vmem:[#allocation2 + $0x18] sm:$0xff]
        %v2538 = vld [vmem:[#allocation2 + $0x20] sm:$0xff]
        %v2539 = vld [vmem:[#allocation2 + $0x28] sm:$0xff]
        %v2540 = vld [vmem:[#allocation2 + $0x30] sm:$0xff]
        %v2541 = vld [vmem:[#allocation2 + $0x38] sm:$0xff]
        %v2542 = vld [vmem:[#allocation2 + $0x40] sm:$0xff]
        %v2543 = vld [vmem:[#allocation2 + $0x48] sm:$0xff]
        %v2544 = vld [vmem:[#allocation2 + $0x50] sm:$0xff]
        %v2545 = vld [vmem:[#allocation2 + $0x58] sm:$0xff]
        %v2546 = vld [vmem:[#allocation2 + $0x60] sm:$0xff]
        %v2547 = vld [vmem:[#allocation2 + $0x68] sm:$0xff]
        %v2548 = vld [vmem:[#allocation2 + $0x70] sm:$0xff]
        %v2549 = vld [vmem:[#allocation2 + $0x78] sm:$0xff]
        %v2550 = vld [vmem:[#allocation2 + $0x80] sm:$0xff]
        %v2551 = vld [vmem:[#allocation2 + $0x88] sm:$0xff]
        %v2552 = vld [vmem:[#allocation2 + $0x90] sm:$0xff]
        %v2553 = vld [vmem:[#allocation2 + $0x98] sm:$0xff]
        %v2554 = vld [vmem:[#allocation2 + $0xa0] sm:$0xff]
        %v2555 = vld [vmem:[#allocation2 + $0xa8] sm:$0xff]
        %v2556 = vld [vmem:[#allocation2 + $0xb0] sm:$0xff]
        %v2557 = vld [vmem:[#allocation2 + $0xb8] sm:$0xff]
        %v2558 = vld [vmem:[#allocation2 + $0xc0] sm:$0xff]
        %v2559 = vld [vmem:[#allocation2 + $0xc8] sm:$0xff]
        %v2560 = vld [vmem:[#allocation2 + $0xd0] sm:$0xff]
        %v2561 = vld [vmem:[#allocation2 + $0xd8] sm:$0xff]
        %v2562 = vld [vmem:[#allocation2 + $0xe0] sm:$0xff]
        %v2563 = vld [vmem:[#allocation2 + $0xe8] sm:$0xff]
        %v2564 = vld [vmem:[#allocation2 + $0xf0] sm:$0xff]
        %v2565 = vld [vmem:[#allocation2 + $0xf8] sm:$0xff]
        %v2566 = vld [vmem:[#allocation2 + $0x100] sm:$0xff]
        %v2567 = vld [vmem:[#allocation2 + $0x108] sm:$0xff]
        %v2568 = vld [vmem:[#allocation2 + $0x110] sm:$0xff]
        %v2569 = vld [vmem:[#allocation2 + $0x118] sm:$0xff]
        %v2570 = vld [vmem:[#allocation2 + $0x120] sm:$0xff]
        %v2571 = vld [vmem:[#allocation2 + $0x128] sm:$0xff]
        %v2572 = vld [vmem:[#allocation2 + $0x130] sm:$0xff]
        %v2573 = vld [vmem:[#allocation2 + $0x138] sm:$0xff]
        %v2574 = vld [vmem:[#allocation2 + $0x140] sm:$0xff]
        %v2575 = vld [vmem:[#allocation2 + $0x148] sm:$0xff]
        %v2576 = vld [vmem:[#allocation2 + $0x150] sm:$0xff]
        %v2577 = vld [vmem:[#allocation2 + $0x158] sm:$0xff]
        %v2578 = vld [vmem:[#allocation2 + $0x160] sm:$0xff]
        %v2579 = vld [vmem:[#allocation2 + $0x168] sm:$0xff]
        %v2580 = vld [vmem:[#allocation2 + $0x170] sm:$0xff]
        %v2581 = vld [vmem:[#allocation2 + $0x178] sm:$0xff]
        %v2582 = vrot.slane %v2534, 7
        %v2583 = vrot.slane %v2537, 7
        %v2584 = vrot.slane %v2540, 7
        %v2585 = vrot.slane %v2543, 7
        %v2586 = vrot.slane %v2546, 7
        %v2587 = vrot.slane %v2549, 7
        %v2588 = vrot.slane %v2552, 7
        %v2589 = vrot.slane %v2555, 7
        %v2590 = vrot.slane %v2558, 7
        %v2591 = vrot.slane %v2561, 7
        %v2592 = vrot.slane %v2564, 7
        %v2593 = vrot.slane %v2567, 7
        %v2594 = vrot.slane %v2570, 7
        %v2595 = vrot.slane %v2573, 7
        %v2596 = vrot.slane %v2576, 7
        %v2597 = vrot.slane %v2579, 7
        %v2598 = vrot.slane %v2535, 7
        %v2599 = vrot.slane %v2538, 7
        %v2600 = vrot.slane %v2541, 7
        %v2601 = vrot.slane %v2544, 7
        %v2602 = vrot.slane %v2547, 7
        %v2603 = vrot.slane %v2550, 7
        %v2604 = vrot.slane %v2553, 7
        %v2605 = vrot.slane %v2556, 7
        %v2606 = vrot.slane %v2559, 7
        %v2607 = vrot.slane %v2562, 7
        %v2608 = vrot.slane %v2565, 7
        %v2609 = vrot.slane %v2568, 7
        %v2610 = vrot.slane %v2571, 7
        %v2611 = vrot.slane %v2574, 7
        %v2612 = vrot.slane %v2577, 7
        %v2613 = vrot.slane %v2580, 7
        %v2614 = vrot.slane %v2536, 7
        %v2615 = vrot.slane %v2539, 7
        %v2616 = vrot.slane %v2542, 7
        %v2617 = vrot.slane %v2545, 7
        %v2618 = vrot.slane %v2548, 7
        %v2619 = vrot.slane %v2551, 7
        %v2620 = vrot.slane %v2554, 7
        %v2621 = vrot.slane %v2557, 7
        %v2622 = vrot.slane %v2560, 7
        %v2623 = vrot.slane %v2563, 7
        %v2624 = vrot.slane %v2566, 7
        %v2625 = vrot.slane %v2569, 7
        %v2626 = vrot.slane %v2572, 7
        %v2627 = vrot.slane %v2575, 7
        %v2628 = vrot.slane %v2578, 7
        %v2629 = vrot.slane %v2581, 7
        %v2630 = vsel %vm812, %v2582, %v2598
        %v2631 = vsel %vm812, %v2583, %v2599
        %v2632 = vsel %vm812, %v2584, %v2600
        %v2633 = vsel %vm812, %v2585, %v2601
        %v2634 = vsel %vm812, %v2586, %v2602
        %v2635 = vsel %vm812, %v2587, %v2603
        %v2636 = vsel %vm812, %v2588, %v2604
        %v2637 = vsel %vm812, %v2589, %v2605
        %v2638 = vsel %vm812, %v2590, %v2606
        %v2639 = vsel %vm812, %v2591, %v2607
        %v2640 = vsel %vm812, %v2592, %v2608
        %v2641 = vsel %vm812, %v2593, %v2609
        %v2642 = vsel %vm812, %v2594, %v2610
        %v2643 = vsel %vm812, %v2595, %v2611
        %v2644 = vsel %vm812, %v2596, %v2612
        %v2645 = vsel %vm812, %v2597, %v2613
        %v2646 = vsel %vm812, %v2614, %v2582
        %v2647 = vsel %vm812, %v2615, %v2583
        %v2648 = vsel %vm812, %v2616, %v2584
        %v2649 = vsel %vm812, %v2617, %v2585
        %v2650 = vsel %vm812, %v2618, %v2586
        %v2651 = vsel %vm812, %v2619, %v2587
        %v2652 = vsel %vm812, %v2620, %v2588
        %v2653 = vsel %vm812, %v2621, %v2589
        %v2654 = vsel %vm812, %v2622, %v2590
        %v2655 = vsel %vm812, %v2623, %v2591
        %v2656 = vsel %vm812, %v2624, %v2592
        %v2657 = vsel %vm812, %v2625, %v2593
        %v2658 = vsel %vm812, %v2626, %v2594
        %v2659 = vsel %vm812, %v2627, %v2595
        %v2660 = vsel %vm812, %v2628, %v2596
        %v2661 = vsel %vm812, %v2629, %v2597
        %v2662 = vrot.slane %v2534, 1
        %v2663 = vrot.slane %v2537, 1
        %v2664 = vrot.slane %v2540, 1
        %v2665 = vrot.slane %v2543, 1
        %v2666 = vrot.slane %v2546, 1
        %v2667 = vrot.slane %v2549, 1
        %v2668 = vrot.slane %v2552, 1
        %v2669 = vrot.slane %v2555, 1
        %v2670 = vrot.slane %v2558, 1
        %v2671 = vrot.slane %v2561, 1
        %v2672 = vrot.slane %v2564, 1
        %v2673 = vrot.slane %v2567, 1
        %v2674 = vrot.slane %v2570, 1
        %v2675 = vrot.slane %v2573, 1
        %v2676 = vrot.slane %v2576, 1
        %v2677 = vrot.slane %v2579, 1
        %v2678 = vrot.slane %v2535, 1
        %v2679 = vrot.slane %v2538, 1
        %v2680 = vrot.slane %v2541, 1
        %v2681 = vrot.slane %v2544, 1
        %v2682 = vrot.slane %v2547, 1
        %v2683 = vrot.slane %v2550, 1
        %v2684 = vrot.slane %v2553, 1
        %v2685 = vrot.slane %v2556, 1
        %v2686 = vrot.slane %v2559, 1
        %v2687 = vrot.slane %v2562, 1
        %v2688 = vrot.slane %v2565, 1
        %v2689 = vrot.slane %v2568, 1
        %v2690 = vrot.slane %v2571, 1
        %v2691 = vrot.slane %v2574, 1
        %v2692 = vrot.slane %v2577, 1
        %v2693 = vrot.slane %v2580, 1
        %v2694 = vrot.slane %v2536, 1
        %v2695 = vrot.slane %v2539, 1
        %v2696 = vrot.slane %v2542, 1
        %v2697 = vrot.slane %v2545, 1
        %v2698 = vrot.slane %v2548, 1
        %v2699 = vrot.slane %v2551, 1
        %v2700 = vrot.slane %v2554, 1
        %v2701 = vrot.slane %v2557, 1
        %v2702 = vrot.slane %v2560, 1
        %v2703 = vrot.slane %v2563, 1
        %v2704 = vrot.slane %v2566, 1
        %v2705 = vrot.slane %v2569, 1
        %v2706 = vrot.slane %v2572, 1
        %v2707 = vrot.slane %v2575, 1
        %v2708 = vrot.slane %v2578, 1
        %v2709 = vrot.slane %v2581, 1
        %v2710 = vsel %vm893, %v2678, %v2694
        %v2711 = vsel %vm893, %v2679, %v2695
        %v2712 = vsel %vm893, %v2680, %v2696
        %v2713 = vsel %vm893, %v2681, %v2697
        %v2714 = vsel %vm893, %v2682, %v2698
        %v2715 = vsel %vm893, %v2683, %v2699
        %v2716 = vsel %vm893, %v2684, %v2700
        %v2717 = vsel %vm893, %v2685, %v2701
        %v2718 = vsel %vm893, %v2686, %v2702
        %v2719 = vsel %vm893, %v2687, %v2703
        %v2720 = vsel %vm893, %v2688, %v2704
        %v2721 = vsel %vm893, %v2689, %v2705
        %v2722 = vsel %vm893, %v2690, %v2706
        %v2723 = vsel %vm893, %v2691, %v2707
        %v2724 = vsel %vm893, %v2692, %v2708
        %v2725 = vsel %vm893, %v2693, %v2709
        %v2726 = vsel %vm893, %v2662, %v2678
        %v2727 = vsel %vm893, %v2663, %v2679
        %v2728 = vsel %vm893, %v2664, %v2680
        %v2729 = vsel %vm893, %v2665, %v2681
        %v2730 = vsel %vm893, %v2666, %v2682
        %v2731 = vsel %vm893, %v2667, %v2683
        %v2732 = vsel %vm893, %v2668, %v2684
        %v2733 = vsel %vm893, %v2669, %v2685
        %v2734 = vsel %vm893, %v2670, %v2686
        %v2735 = vsel %vm893, %v2671, %v2687
        %v2736 = vsel %vm893, %v2672, %v2688
        %v2737 = vsel %vm893, %v2673, %v2689
        %v2738 = vsel %vm893, %v2674, %v2690
        %v2739 = vsel %vm893, %v2675, %v2691
        %v2740 = vsel %vm893, %v2676, %v2692
        %v2741 = vsel %vm893, %v2677, %v2693
        %v2742 = vlaneseq
        %v2743 = vshrl.u32 %v2742, 7
        %v2744 = vsub.s32 0, %v2743
        %v2745 = vrot.slane %v2500, %v2744
        %v2746 = vmul.f32 %v2646, %v2745
        %v2747 = vmul.f32 %v2630, %v2745
        %v2748 = vmul.f32 %v2647, %v2745
        %v2749 = vmul.f32 %v2631, %v2745
        %v2750 = vmul.f32 %v2648, %v2745
        %v2751 = vmul.f32 %v2632, %v2745
        %v2752 = vmul.f32 %v2649, %v2745
        %v2753 = vmul.f32 %v2633, %v2745
        %v2754 = vmul.f32 %v2650, %v2745
        %v2755 = vmul.f32 %v2634, %v2745
        %v2756 = vmul.f32 %v2651, %v2745
        %v2757 = vmul.f32 %v2635, %v2745
        %v2758 = vmul.f32 %v2652, %v2745
        %v2759 = vmul.f32 %v2636, %v2745
        %v2760 = vmul.f32 %v2653, %v2745
        %v2761 = vmul.f32 %v2637, %v2745
        %v2762 = vmul.f32 %v2654, %v2745
        %v2763 = vmul.f32 %v2638, %v2745
        %v2764 = vmul.f32 %v2655, %v2745
        %v2765 = vmul.f32 %v2639, %v2745
        %v2766 = vmul.f32 %v2656, %v2745
        %v2767 = vmul.f32 %v2640, %v2745
        %v2768 = vmul.f32 %v2657, %v2745
        %v2769 = vmul.f32 %v2641, %v2745
        %v2770 = vmul.f32 %v2658, %v2745
        %v2771 = vmul.f32 %v2642, %v2745
        %v2772 = vmul.f32 %v2659, %v2745
        %v2773 = vmul.f32 %v2643, %v2745
        %v2774 = vmul.f32 %v2660, %v2745
        %v2775 = vmul.f32 %v2644, %v2745
        %v2776 = vmul.f32 %v2661, %v2745
        %v2777 = vmul.f32 %v2645, %v2745
        %v2778 = vlaneseq
        %v2779 = vshrl.u32 %v2778, 7
        %v2780 = vsub.s32 1, %v2779
        %v2781 = vrot.slane %v2500, %v2780
        %v2782 = vmul.f32 %v2534, %v2781
        %v2783 = vmul.f32 %v2535, %v2781
        %v2784 = vmul.f32 %v2537, %v2781
        %v2785 = vmul.f32 %v2538, %v2781
        %v2786 = vmul.f32 %v2540, %v2781
        %v2787 = vmul.f32 %v2541, %v2781
        %v2788 = vmul.f32 %v2543, %v2781
        %v2789 = vmul.f32 %v2544, %v2781
        %v2790 = vmul.f32 %v2546, %v2781
        %v2791 = vmul.f32 %v2547, %v2781
        %v2792 = vmul.f32 %v2549, %v2781
        %v2793 = vmul.f32 %v2550, %v2781
        %v2794 = vmul.f32 %v2552, %v2781
        %v2795 = vmul.f32 %v2553, %v2781
        %v2796 = vmul.f32 %v2555, %v2781
        %v2797 = vmul.f32 %v2556, %v2781
        %v2798 = vmul.f32 %v2558, %v2781
        %v2799 = vmul.f32 %v2559, %v2781
        %v2800 = vmul.f32 %v2561, %v2781
        %v2801 = vmul.f32 %v2562, %v2781
        %v2802 = vmul.f32 %v2564, %v2781
        %v2803 = vmul.f32 %v2565, %v2781
        %v2804 = vmul.f32 %v2567, %v2781
        %v2805 = vmul.f32 %v2568, %v2781
        %v2806 = vmul.f32 %v2570, %v2781
        %v2807 = vmul.f32 %v2571, %v2781
        %v2808 = vmul.f32 %v2573, %v2781
        %v2809 = vmul.f32 %v2574, %v2781
        %v2810 = vmul.f32 %v2576, %v2781
        %v2811 = vmul.f32 %v2577, %v2781
        %v2812 = vmul.f32 %v2579, %v2781
        %v2813 = vmul.f32 %v2580, %v2781
        %v2814 = vadd.f32 %v2746, %v2782
        %v2815 = vadd.f32 %v2747, %v2783
        %v2816 = vadd.f32 %v2748, %v2784
        %v2817 = vadd.f32 %v2749, %v2785
        %v2818 = vadd.f32 %v2750, %v2786
        %v2819 = vadd.f32 %v2751, %v2787
        %v2820 = vadd.f32 %v2752, %v2788
        %v2821 = vadd.f32 %v2753, %v2789
        %v2822 = vadd.f32 %v2754, %v2790
        %v2823 = vadd.f32 %v2755, %v2791
        %v2824 = vadd.f32 %v2756, %v2792
        %v2825 = vadd.f32 %v2757, %v2793
        %v2826 = vadd.f32 %v2758, %v2794
        %v2827 = vadd.f32 %v2759, %v2795
        %v2828 = vadd.f32 %v2760, %v2796
        %v2829 = vadd.f32 %v2761, %v2797
        %v2830 = vadd.f32 %v2762, %v2798
        %v2831 = vadd.f32 %v2763, %v2799
        %v2832 = vadd.f32 %v2764, %v2800
        %v2833 = vadd.f32 %v2765, %v2801
        %v2834 = vadd.f32 %v2766, %v2802
        %v2835 = vadd.f32 %v2767, %v2803
        %v2836 = vadd.f32 %v2768, %v2804
        %v2837 = vadd.f32 %v2769, %v2805
        %v2838 = vadd.f32 %v2770, %v2806
        %v2839 = vadd.f32 %v2771, %v2807
        %v2840 = vadd.f32 %v2772, %v2808
        %v2841 = vadd.f32 %v2773, %v2809
        %v2842 = vadd.f32 %v2774, %v2810
        %v2843 = vadd.f32 %v2775, %v2811
        %v2844 = vadd.f32 %v2776, %v2812
        %v2845 = vadd.f32 %v2777, %v2813
        %v2846 = vlaneseq
        %v2847 = vshrl.u32 %v2846, 7
        %v2848 = vsub.s32 2, %v2847
        %v2849 = vrot.slane %v2500, %v2848
        %v2850 = vmul.f32 %v2726, %v2849
        %v2851 = vmul.f32 %v2710, %v2849
        %v2852 = vmul.f32 %v2727, %v2849
        %v2853 = vmul.f32 %v2711, %v2849
        %v2854 = vmul.f32 %v2728, %v2849
        %v2855 = vmul.f32 %v2712, %v2849
        %v2856 = vmul.f32 %v2729, %v2849
        %v2857 = vmul.f32 %v2713, %v2849
        %v2858 = vmul.f32 %v2730, %v2849
        %v2859 = vmul.f32 %v2714, %v2849
        %v2860 = vmul.f32 %v2731, %v2849
        %v2861 = vmul.f32 %v2715, %v2849
        %v2862 = vmul.f32 %v2732, %v2849
        %v2863 = vmul.f32 %v2716, %v2849
        %v2864 = vmul.f32 %v2733, %v2849
        %v2865 = vmul.f32 %v2717, %v2849
        %v2866 = vmul.f32 %v2734, %v2849
        %v2867 = vmul.f32 %v2718, %v2849
        %v2868 = vmul.f32 %v2735, %v2849
        %v2869 = vmul.f32 %v2719, %v2849
        %v2870 = vmul.f32 %v2736, %v2849
        %v2871 = vmul.f32 %v2720, %v2849
        %v2872 = vmul.f32 %v2737, %v2849
        %v2873 = vmul.f32 %v2721, %v2849
        %v2874 = vmul.f32 %v2738, %v2849
        %v2875 = vmul.f32 %v2722, %v2849
        %v2876 = vmul.f32 %v2739, %v2849
        %v2877 = vmul.f32 %v2723, %v2849
        %v2878 = vmul.f32 %v2740, %v2849
        %v2879 = vmul.f32 %v2724, %v2849
        %v2880 = vmul.f32 %v2741, %v2849
        %v2881 = vmul.f32 %v2725, %v2849
        %v2882 = vadd.f32 %v2814, %v2850
        %v2883 = vadd.f32 %v2815, %v2851
        %v2884 = vadd.f32 %v2816, %v2852
        %v2885 = vadd.f32 %v2817, %v2853
        %v2886 = vadd.f32 %v2818, %v2854
        %v2887 = vadd.f32 %v2819, %v2855
        %v2888 = vadd.f32 %v2820, %v2856
        %v2889 = vadd.f32 %v2821, %v2857
        %v2890 = vadd.f32 %v2822, %v2858
        %v2891 = vadd.f32 %v2823, %v2859
        %v2892 = vadd.f32 %v2824, %v2860
        %v2893 = vadd.f32 %v2825, %v2861
        %v2894 = vadd.f32 %v2826, %v2862
        %v2895 = vadd.f32 %v2827, %v2863
        %v2896 = vadd.f32 %v2828, %v2864
        %v2897 = vadd.f32 %v2829, %v2865
        %v2898 = vadd.f32 %v2830, %v2866
        %v2899 = vadd.f32 %v2831, %v2867
        %v2900 = vadd.f32 %v2832, %v2868
        %v2901 = vadd.f32 %v2833, %v2869
        %v2902 = vadd.f32 %v2834, %v2870
        %v2903 = vadd.f32 %v2835, %v2871
        %v2904 = vadd.f32 %v2836, %v2872
        %v2905 = vadd.f32 %v2837, %v2873
        %v2906 = vadd.f32 %v2838, %v2874
        %v2907 = vadd.f32 %v2839, %v2875
        %v2908 = vadd.f32 %v2840, %v2876
        %v2909 = vadd.f32 %v2841, %v2877
        %v2910 = vadd.f32 %v2842, %v2878
        %v2911 = vadd.f32 %v2843, %v2879
        %v2912 = vadd.f32 %v2844, %v2880
        %v2913 = vadd.f32 %v2845, %v2881
        %v2914 = vld [vmem:[%s631] sm:$0xff]
        %v2915 = vld [vmem:[%s631 + $0x8] sm:$0xff]
        %v2916 = vld [vmem:[%s631 + $0x10] sm:$0xff]
        %v2917 = vld [vmem:[%s631 + $0x18] sm:$0xff]
        %v2918 = vld [vmem:[%s631 + $0x20] sm:$0xff]
        %v2919 = vld [vmem:[%s631 + $0x28] sm:$0xff]
        %v2920 = vld [vmem:[%s631 + $0x30] sm:$0xff]
        %v2921 = vld [vmem:[%s631 + $0x38] sm:$0xff]
        %v2922 = vld [vmem:[%s631 + $0x40] sm:$0xff]
        %v2923 = vld [vmem:[%s631 + $0x48] sm:$0xff]
        %v2924 = vld [vmem:[%s631 + $0x50] sm:$0xff]
        %v2925 = vld [vmem:[%s631 + $0x58] sm:$0xff]
        %v2926 = vld [vmem:[%s631 + $0x60] sm:$0xff]
        %v2927 = vld [vmem:[%s631 + $0x68] sm:$0xff]
        %v2928 = vld [vmem:[%s631 + $0x70] sm:$0xff]
        %v2929 = vld [vmem:[%s631 + $0x78] sm:$0xff]
        %v2930 = vld [vmem:[%s631 + $0x80] sm:$0xff]
        %v2931 = vld [vmem:[%s631 + $0x88] sm:$0xff]
        %v2932 = vld [vmem:[%s631 + $0x90] sm:$0xff]
        %v2933 = vld [vmem:[%s631 + $0x98] sm:$0xff]
        %v2934 = vld [vmem:[%s631 + $0xa0] sm:$0xff]
        %v2935 = vld [vmem:[%s631 + $0xa8] sm:$0xff]
        %v2936 = vld [vmem:[%s631 + $0xb0] sm:$0xff]
        %v2937 = vld [vmem:[%s631 + $0xb8] sm:$0xff]
        %v2938 = vld [vmem:[%s631 + $0xc0] sm:$0xff]
        %v2939 = vld [vmem:[%s631 + $0xc8] sm:$0xff]
        %v2940 = vld [vmem:[%s631 + $0xd0] sm:$0xff]
        %v2941 = vld [vmem:[%s631 + $0xd8] sm:$0xff]
        %v2942 = vld [vmem:[%s631 + $0xe0] sm:$0xff]
        %v2943 = vld [vmem:[%s631 + $0xe8] sm:$0xff]
        %v2944 = vld [vmem:[%s631 + $0xf0] sm:$0xff]
        %v2945 = vld [vmem:[%s631 + $0xf8] sm:$0xff]
        %v2946 = vld [vmem:[%s631 + $0x100] sm:$0xff]
        %v2947 = vld [vmem:[%s631 + $0x108] sm:$0xff]
        %v2948 = vld [vmem:[%s631 + $0x110] sm:$0xff]
        %v2949 = vld [vmem:[%s631 + $0x118] sm:$0xff]
        %v2950 = vld [vmem:[%s631 + $0x120] sm:$0xff]
        %v2951 = vld [vmem:[%s631 + $0x128] sm:$0xff]
        %v2952 = vld [vmem:[%s631 + $0x130] sm:$0xff]
        %v2953 = vld [vmem:[%s631 + $0x138] sm:$0xff]
        %v2954 = vld [vmem:[%s631 + $0x140] sm:$0xff]
        %v2955 = vld [vmem:[%s631 + $0x148] sm:$0xff]
        %v2956 = vld [vmem:[%s631 + $0x150] sm:$0xff]
        %v2957 = vld [vmem:[%s631 + $0x158] sm:$0xff]
        %v2958 = vld [vmem:[%s631 + $0x160] sm:$0xff]
        %v2959 = vld [vmem:[%s631 + $0x168] sm:$0xff]
        %v2960 = vld [vmem:[%s631 + $0x170] sm:$0xff]
        %v2961 = vld [vmem:[%s631 + $0x178] sm:$0xff]
        %v2962 = vrot.slane %v2914, 7
        %v2963 = vrot.slane %v2917, 7
        %v2964 = vrot.slane %v2920, 7
        %v2965 = vrot.slane %v2923, 7
        %v2966 = vrot.slane %v2926, 7
        %v2967 = vrot.slane %v2929, 7
        %v2968 = vrot.slane %v2932, 7
        %v2969 = vrot.slane %v2935, 7
        %v2970 = vrot.slane %v2938, 7
        %v2971 = vrot.slane %v2941, 7
        %v2972 = vrot.slane %v2944, 7
        %v2973 = vrot.slane %v2947, 7
        %v2974 = vrot.slane %v2950, 7
        %v2975 = vrot.slane %v2953, 7
        %v2976 = vrot.slane %v2956, 7
        %v2977 = vrot.slane %v2959, 7
        %v2978 = vrot.slane %v2915, 7
        %v2979 = vrot.slane %v2918, 7
        %v2980 = vrot.slane %v2921, 7
        %v2981 = vrot.slane %v2924, 7
        %v2982 = vrot.slane %v2927, 7
        %v2983 = vrot.slane %v2930, 7
        %v2984 = vrot.slane %v2933, 7
        %v2985 = vrot.slane %v2936, 7
        %v2986 = vrot.slane %v2939, 7
        %v2987 = vrot.slane %v2942, 7
        %v2988 = vrot.slane %v2945, 7
        %v2989 = vrot.slane %v2948, 7
        %v2990 = vrot.slane %v2951, 7
        %v2991 = vrot.slane %v2954, 7
        %v2992 = vrot.slane %v2957, 7
        %v2993 = vrot.slane %v2960, 7
        %v2994 = vrot.slane %v2916, 7
        %v2995 = vrot.slane %v2919, 7
        %v2996 = vrot.slane %v2922, 7
        %v2997 = vrot.slane %v2925, 7
        %v2998 = vrot.slane %v2928, 7
        %v2999 = vrot.slane %v2931, 7
        %v3000 = vrot.slane %v2934, 7
        %v3001 = vrot.slane %v2937, 7
        %v3002 = vrot.slane %v2940, 7
        %v3003 = vrot.slane %v2943, 7
        %v3004 = vrot.slane %v2946, 7
        %v3005 = vrot.slane %v2949, 7
        %v3006 = vrot.slane %v2952, 7
        %v3007 = vrot.slane %v2955, 7
        %v3008 = vrot.slane %v2958, 7
        %v3009 = vrot.slane %v2961, 7
        %v3010 = vsel %vm812, %v2962, %v2978
        %v3011 = vsel %vm812, %v2963, %v2979
        %v3012 = vsel %vm812, %v2964, %v2980
        %v3013 = vsel %vm812, %v2965, %v2981
        %v3014 = vsel %vm812, %v2966, %v2982
        %v3015 = vsel %vm812, %v2967, %v2983
        %v3016 = vsel %vm812, %v2968, %v2984
        %v3017 = vsel %vm812, %v2969, %v2985
        %v3018 = vsel %vm812, %v2970, %v2986
        %v3019 = vsel %vm812, %v2971, %v2987
        %v3020 = vsel %vm812, %v2972, %v2988
        %v3021 = vsel %vm812, %v2973, %v2989
        %v3022 = vsel %vm812, %v2974, %v2990
        %v3023 = vsel %vm812, %v2975, %v2991
        %v3024 = vsel %vm812, %v2976, %v2992
        %v3025 = vsel %vm812, %v2977, %v2993
        %v3026 = vsel %vm812, %v2994, %v2962
        %v3027 = vsel %vm812, %v2995, %v2963
        %v3028 = vsel %vm812, %v2996, %v2964
        %v3029 = vsel %vm812, %v2997, %v2965
        %v3030 = vsel %vm812, %v2998, %v2966
        %v3031 = vsel %vm812, %v2999, %v2967
        %v3032 = vsel %vm812, %v3000, %v2968
        %v3033 = vsel %vm812, %v3001, %v2969
        %v3034 = vsel %vm812, %v3002, %v2970
        %v3035 = vsel %vm812, %v3003, %v2971
        %v3036 = vsel %vm812, %v3004, %v2972
        %v3037 = vsel %vm812, %v3005, %v2973
        %v3038 = vsel %vm812, %v3006, %v2974
        %v3039 = vsel %vm812, %v3007, %v2975
        %v3040 = vsel %vm812, %v3008, %v2976
        %v3041 = vsel %vm812, %v3009, %v2977
        %v3042 = vrot.slane %v2914, 1
        %v3043 = vrot.slane %v2917, 1
        %v3044 = vrot.slane %v2920, 1
        %v3045 = vrot.slane %v2923, 1
        %v3046 = vrot.slane %v2926, 1
        %v3047 = vrot.slane %v2929, 1
        %v3048 = vrot.slane %v2932, 1
        %v3049 = vrot.slane %v2935, 1
        %v3050 = vrot.slane %v2938, 1
        %v3051 = vrot.slane %v2941, 1
        %v3052 = vrot.slane %v2944, 1
        %v3053 = vrot.slane %v2947, 1
        %v3054 = vrot.slane %v2950, 1
        %v3055 = vrot.slane %v2953, 1
        %v3056 = vrot.slane %v2956, 1
        %v3057 = vrot.slane %v2959, 1
        %v3058 = vrot.slane %v2915, 1
        %v3059 = vrot.slane %v2918, 1
        %v3060 = vrot.slane %v2921, 1
        %v3061 = vrot.slane %v2924, 1
        %v3062 = vrot.slane %v2927, 1
        %v3063 = vrot.slane %v2930, 1
        %v3064 = vrot.slane %v2933, 1
        %v3065 = vrot.slane %v2936, 1
        %v3066 = vrot.slane %v2939, 1
        %v3067 = vrot.slane %v2942, 1
        %v3068 = vrot.slane %v2945, 1
        %v3069 = vrot.slane %v2948, 1
        %v3070 = vrot.slane %v2951, 1
        %v3071 = vrot.slane %v2954, 1
        %v3072 = vrot.slane %v2957, 1
        %v3073 = vrot.slane %v2960, 1
        %v3074 = vrot.slane %v2916, 1
        %v3075 = vrot.slane %v2919, 1
        %v3076 = vrot.slane %v2922, 1
        %v3077 = vrot.slane %v2925, 1
        %v3078 = vrot.slane %v2928, 1
        %v3079 = vrot.slane %v2931, 1
        %v3080 = vrot.slane %v2934, 1
        %v3081 = vrot.slane %v2937, 1
        %v3082 = vrot.slane %v2940, 1
        %v3083 = vrot.slane %v2943, 1
        %v3084 = vrot.slane %v2946, 1
        %v3085 = vrot.slane %v2949, 1
        %v3086 = vrot.slane %v2952, 1
        %v3087 = vrot.slane %v2955, 1
        %v3088 = vrot.slane %v2958, 1
        %v3089 = vrot.slane %v2961, 1
        %v3090 = vsel %vm893, %v3058, %v3074
        %v3091 = vsel %vm893, %v3059, %v3075
        %v3092 = vsel %vm893, %v3060, %v3076
        %v3093 = vsel %vm893, %v3061, %v3077
        %v3094 = vsel %vm893, %v3062, %v3078
        %v3095 = vsel %vm893, %v3063, %v3079
        %v3096 = vsel %vm893, %v3064, %v3080
        %v3097 = vsel %vm893, %v3065, %v3081
        %v3098 = vsel %vm893, %v3066, %v3082
        %v3099 = vsel %vm893, %v3067, %v3083
        %v3100 = vsel %vm893, %v3068, %v3084
        %v3101 = vsel %vm893, %v3069, %v3085
        %v3102 = vsel %vm893, %v3070, %v3086
        %v3103 = vsel %vm893, %v3071, %v3087
        %v3104 = vsel %vm893, %v3072, %v3088
        %v3105 = vsel %vm893, %v3073, %v3089
        %v3106 = vsel %vm893, %v3042, %v3058
        %v3107 = vsel %vm893, %v3043, %v3059
        %v3108 = vsel %vm893, %v3044, %v3060
        %v3109 = vsel %vm893, %v3045, %v3061
        %v3110 = vsel %vm893, %v3046, %v3062
        %v3111 = vsel %vm893, %v3047, %v3063
        %v3112 = vsel %vm893, %v3048, %v3064
        %v3113 = vsel %vm893, %v3049, %v3065
        %v3114 = vsel %vm893, %v3050, %v3066
        %v3115 = vsel %vm893, %v3051, %v3067
        %v3116 = vsel %vm893, %v3052, %v3068
        %v3117 = vsel %vm893, %v3053, %v3069
        %v3118 = vsel %vm893, %v3054, %v3070
        %v3119 = vsel %vm893, %v3055, %v3071
        %v3120 = vsel %vm893, %v3056, %v3072
        %v3121 = vsel %vm893, %v3057, %v3073
        %v3122 = vlaneseq
        %v3123 = vshrl.u32 %v3122, 7
        %v3124 = vsub.s32 3, %v3123
        %v3125 = vrot.slane %v2500, %v3124
        %v3126 = vmul.f32 %v3026, %v3125
        %v3127 = vmul.f32 %v3010, %v3125
        %v3128 = vmul.f32 %v3027, %v3125
        %v3129 = vmul.f32 %v3011, %v3125
        %v3130 = vmul.f32 %v3028, %v3125
        %v3131 = vmul.f32 %v3012, %v3125
        %v3132 = vmul.f32 %v3029, %v3125
        %v3133 = vmul.f32 %v3013, %v3125
        %v3134 = vmul.f32 %v3030, %v3125
        %v3135 = vmul.f32 %v3014, %v3125
        %v3136 = vmul.f32 %v3031, %v3125
        %v3137 = vmul.f32 %v3015, %v3125
        %v3138 = vmul.f32 %v3032, %v3125
        %v3139 = vmul.f32 %v3016, %v3125
        %v3140 = vmul.f32 %v3033, %v3125
        %v3141 = vmul.f32 %v3017, %v3125
        %v3142 = vmul.f32 %v3034, %v3125
        %v3143 = vmul.f32 %v3018, %v3125
        %v3144 = vmul.f32 %v3035, %v3125
        %v3145 = vmul.f32 %v3019, %v3125
        %v3146 = vmul.f32 %v3036, %v3125
        %v3147 = vmul.f32 %v3020, %v3125
        %v3148 = vmul.f32 %v3037, %v3125
        %v3149 = vmul.f32 %v3021, %v3125
        %v3150 = vmul.f32 %v3038, %v3125
        %v3151 = vmul.f32 %v3022, %v3125
        %v3152 = vmul.f32 %v3039, %v3125
        %v3153 = vmul.f32 %v3023, %v3125
        %v3154 = vmul.f32 %v3040, %v3125
        %v3155 = vmul.f32 %v3024, %v3125
        %v3156 = vmul.f32 %v3041, %v3125
        %v3157 = vmul.f32 %v3025, %v3125
        %v3158 = vlaneseq
        %v3159 = vshrl.u32 %v3158, 7
        %v3160 = vsub.s32 4, %v3159
        %v3161 = vrot.slane %v2500, %v3160
        %v3162 = vmul.f32 %v2914, %v3161
        %v3163 = vmul.f32 %v2915, %v3161
        %v3164 = vmul.f32 %v2917, %v3161
        %v3165 = vmul.f32 %v2918, %v3161
        %v3166 = vmul.f32 %v2920, %v3161
        %v3167 = vmul.f32 %v2921, %v3161
        %v3168 = vmul.f32 %v2923, %v3161
        %v3169 = vmul.f32 %v2924, %v3161
        %v3170 = vmul.f32 %v2926, %v3161
        %v3171 = vmul.f32 %v2927, %v3161
        %v3172 = vmul.f32 %v2929, %v3161
        %v3173 = vmul.f32 %v2930, %v3161
        %v3174 = vmul.f32 %v2932, %v3161
        %v3175 = vmul.f32 %v2933, %v3161
        %v3176 = vmul.f32 %v2935, %v3161
        %v3177 = vmul.f32 %v2936, %v3161
        %v3178 = vmul.f32 %v2938, %v3161
        %v3179 = vmul.f32 %v2939, %v3161
        %v3180 = vmul.f32 %v2941, %v3161
        %v3181 = vmul.f32 %v2942, %v3161
        %v3182 = vmul.f32 %v2944, %v3161
        %v3183 = vmul.f32 %v2945, %v3161
        %v3184 = vmul.f32 %v2947, %v3161
        %v3185 = vmul.f32 %v2948, %v3161
        %v3186 = vmul.f32 %v2950, %v3161
        %v3187 = vmul.f32 %v2951, %v3161
        %v3188 = vmul.f32 %v2953, %v3161
        %v3189 = vmul.f32 %v2954, %v3161
        %v3190 = vmul.f32 %v2956, %v3161
        %v3191 = vmul.f32 %v2957, %v3161
        %v3192 = vmul.f32 %v2959, %v3161
        %v3193 = vmul.f32 %v2960, %v3161
        %v3194 = vadd.f32 %v3126, %v3162
        %v3195 = vadd.f32 %v3127, %v3163
        %v3196 = vadd.f32 %v3128, %v3164
        %v3197 = vadd.f32 %v3129, %v3165
        %v3198 = vadd.f32 %v3130, %v3166
        %v3199 = vadd.f32 %v3131, %v3167
        %v3200 = vadd.f32 %v3132, %v3168
        %v3201 = vadd.f32 %v3133, %v3169
        %v3202 = vadd.f32 %v3134, %v3170
        %v3203 = vadd.f32 %v3135, %v3171
        %v3204 = vadd.f32 %v3136, %v3172
        %v3205 = vadd.f32 %v3137, %v3173
        %v3206 = vadd.f32 %v3138, %v3174
        %v3207 = vadd.f32 %v3139, %v3175
        %v3208 = vadd.f32 %v3140, %v3176
        %v3209 = vadd.f32 %v3141, %v3177
        %v3210 = vadd.f32 %v3142, %v3178
        %v3211 = vadd.f32 %v3143, %v3179
        %v3212 = vadd.f32 %v3144, %v3180
        %v3213 = vadd.f32 %v3145, %v3181
        %v3214 = vadd.f32 %v3146, %v3182
        %v3215 = vadd.f32 %v3147, %v3183
        %v3216 = vadd.f32 %v3148, %v3184
        %v3217 = vadd.f32 %v3149, %v3185
        %v3218 = vadd.f32 %v3150, %v3186
        %v3219 = vadd.f32 %v3151, %v3187
        %v3220 = vadd.f32 %v3152, %v3188
        %v3221 = vadd.f32 %v3153, %v3189
        %v3222 = vadd.f32 %v3154, %v3190
        %v3223 = vadd.f32 %v3155, %v3191
        %v3224 = vadd.f32 %v3156, %v3192
        %v3225 = vadd.f32 %v3157, %v3193
        %v3226 = vlaneseq
        %v3227 = vshrl.u32 %v3226, 7
        %v3228 = vsub.s32 5, %v3227
        %v3229 = vrot.slane %v2500, %v3228
        %v3230 = vmul.f32 %v3106, %v3229
        %v3231 = vmul.f32 %v3090, %v3229
        %v3232 = vmul.f32 %v3107, %v3229
        %v3233 = vmul.f32 %v3091, %v3229
        %v3234 = vmul.f32 %v3108, %v3229
        %v3235 = vmul.f32 %v3092, %v3229
        %v3236 = vmul.f32 %v3109, %v3229
        %v3237 = vmul.f32 %v3093, %v3229
        %v3238 = vmul.f32 %v3110, %v3229
        %v3239 = vmul.f32 %v3094, %v3229
        %v3240 = vmul.f32 %v3111, %v3229
        %v3241 = vmul.f32 %v3095, %v3229
        %v3242 = vmul.f32 %v3112, %v3229
        %v3243 = vmul.f32 %v3096, %v3229
        %v3244 = vmul.f32 %v3113, %v3229
        %v3245 = vmul.f32 %v3097, %v3229
        %v3246 = vmul.f32 %v3114, %v3229
        %v3247 = vmul.f32 %v3098, %v3229
        %v3248 = vmul.f32 %v3115, %v3229
        %v3249 = vmul.f32 %v3099, %v3229
        %v3250 = vmul.f32 %v3116, %v3229
        %v3251 = vmul.f32 %v3100, %v3229
        %v3252 = vmul.f32 %v3117, %v3229
        %v3253 = vmul.f32 %v3101, %v3229
        %v3254 = vmul.f32 %v3118, %v3229
        %v3255 = vmul.f32 %v3102, %v3229
        %v3256 = vmul.f32 %v3119, %v3229
        %v3257 = vmul.f32 %v3103, %v3229
        %v3258 = vmul.f32 %v3120, %v3229
        %v3259 = vmul.f32 %v3104, %v3229
        %v3260 = vmul.f32 %v3121, %v3229
        %v3261 = vmul.f32 %v3105, %v3229
        %v3262 = vadd.f32 %v3194, %v3230
        %v3263 = vadd.f32 %v3195, %v3231
        %v3264 = vadd.f32 %v3196, %v3232
        %v3265 = vadd.f32 %v3197, %v3233
        %v3266 = vadd.f32 %v3198, %v3234
        %v3267 = vadd.f32 %v3199, %v3235
        %v3268 = vadd.f32 %v3200, %v3236
        %v3269 = vadd.f32 %v3201, %v3237
        %v3270 = vadd.f32 %v3202, %v3238
        %v3271 = vadd.f32 %v3203, %v3239
        %v3272 = vadd.f32 %v3204, %v3240
        %v3273 = vadd.f32 %v3205, %v3241
        %v3274 = vadd.f32 %v3206, %v3242
        %v3275 = vadd.f32 %v3207, %v3243
        %v3276 = vadd.f32 %v3208, %v3244
        %v3277 = vadd.f32 %v3209, %v3245
        %v3278 = vadd.f32 %v3210, %v3246
        %v3279 = vadd.f32 %v3211, %v3247
        %v3280 = vadd.f32 %v3212, %v3248
        %v3281 = vadd.f32 %v3213, %v3249
        %v3282 = vadd.f32 %v3214, %v3250
        %v3283 = vadd.f32 %v3215, %v3251
        %v3284 = vadd.f32 %v3216, %v3252
        %v3285 = vadd.f32 %v3217, %v3253
        %v3286 = vadd.f32 %v3218, %v3254
        %v3287 = vadd.f32 %v3219, %v3255
        %v3288 = vadd.f32 %v3220, %v3256
        %v3289 = vadd.f32 %v3221, %v3257
        %v3290 = vadd.f32 %v3222, %v3258
        %v3291 = vadd.f32 %v3223, %v3259
        %v3292 = vadd.f32 %v3224, %v3260
        %v3293 = vadd.f32 %v3225, %v3261
        %v3294 = vadd.f32 %v2882, %v3262
        %v3295 = vadd.f32 %v2883, %v3263
        %v3296 = vadd.f32 %v2884, %v3264
        %v3297 = vadd.f32 %v2885, %v3265
        %v3298 = vadd.f32 %v2886, %v3266
        %v3299 = vadd.f32 %v2887, %v3267
        %v3300 = vadd.f32 %v2888, %v3268
        %v3301 = vadd.f32 %v2889, %v3269
        %v3302 = vadd.f32 %v2890, %v3270
        %v3303 = vadd.f32 %v2891, %v3271
        %v3304 = vadd.f32 %v2892, %v3272
        %v3305 = vadd.f32 %v2893, %v3273
        %v3306 = vadd.f32 %v2894, %v3274
        %v3307 = vadd.f32 %v2895, %v3275
        %v3308 = vadd.f32 %v2896, %v3276
        %v3309 = vadd.f32 %v2897, %v3277
        %v3310 = vadd.f32 %v2898, %v3278
        %v3311 = vadd.f32 %v2899, %v3279
        %v3312 = vadd.f32 %v2900, %v3280
        %v3313 = vadd.f32 %v2901, %v3281
        %v3314 = vadd.f32 %v2902, %v3282
        %v3315 = vadd.f32 %v2903, %v3283
        %v3316 = vadd.f32 %v2904, %v3284
        %v3317 = vadd.f32 %v2905, %v3285
        %v3318 = vadd.f32 %v2906, %v3286
        %v3319 = vadd.f32 %v2907, %v3287
        %v3320 = vadd.f32 %v2908, %v3288
        %v3321 = vadd.f32 %v2909, %v3289
        %v3322 = vadd.f32 %v2910, %v3290
        %v3323 = vadd.f32 %v2911, %v3291
        %v3324 = vadd.f32 %v2912, %v3292
        %v3325 = vadd.f32 %v2913, %v3293
        %v3326 = vld [vmem:[%s1510] sm:$0xff]
        %v3327 = vld [vmem:[%s1510 + $0x8] sm:$0xff]
        %v3328 = vld [vmem:[%s1510 + $0x10] sm:$0xff]
        %v3329 = vld [vmem:[%s1510 + $0x18] sm:$0xff]
        %v3330 = vld [vmem:[%s1510 + $0x20] sm:$0xff]
        %v3331 = vld [vmem:[%s1510 + $0x28] sm:$0xff]
        %v3332 = vld [vmem:[%s1510 + $0x30] sm:$0xff]
        %v3333 = vld [vmem:[%s1510 + $0x38] sm:$0xff]
        %v3334 = vld [vmem:[%s1510 + $0x40] sm:$0xff]
        %v3335 = vld [vmem:[%s1510 + $0x48] sm:$0xff]
        %v3336 = vld [vmem:[%s1510 + $0x50] sm:$0xff]
        %v3337 = vld [vmem:[%s1510 + $0x58] sm:$0xff]
        %v3338 = vld [vmem:[%s1510 + $0x60] sm:$0xff]
        %v3339 = vld [vmem:[%s1510 + $0x68] sm:$0xff]
        %v3340 = vld [vmem:[%s1510 + $0x70] sm:$0xff]
        %v3341 = vld [vmem:[%s1510 + $0x78] sm:$0xff]
        %v3342 = vld [vmem:[%s1510 + $0x80] sm:$0xff]
        %v3343 = vld [vmem:[%s1510 + $0x88] sm:$0xff]
        %v3344 = vld [vmem:[%s1510 + $0x90] sm:$0xff]
        %v3345 = vld [vmem:[%s1510 + $0x98] sm:$0xff]
        %v3346 = vld [vmem:[%s1510 + $0xa0] sm:$0xff]
        %v3347 = vld [vmem:[%s1510 + $0xa8] sm:$0xff]
        %v3348 = vld [vmem:[%s1510 + $0xb0] sm:$0xff]
        %v3349 = vld [vmem:[%s1510 + $0xb8] sm:$0xff]
        %v3350 = vld [vmem:[%s1510 + $0xc0] sm:$0xff]
        %v3351 = vld [vmem:[%s1510 + $0xc8] sm:$0xff]
        %v3352 = vld [vmem:[%s1510 + $0xd0] sm:$0xff]
        %v3353 = vld [vmem:[%s1510 + $0xd8] sm:$0xff]
        %v3354 = vld [vmem:[%s1510 + $0xe0] sm:$0xff]
        %v3355 = vld [vmem:[%s1510 + $0xe8] sm:$0xff]
        %v3356 = vld [vmem:[%s1510 + $0xf0] sm:$0xff]
        %v3357 = vld [vmem:[%s1510 + $0xf8] sm:$0xff]
        %v3358 = vld [vmem:[%s1510 + $0x100] sm:$0xff]
        %v3359 = vld [vmem:[%s1510 + $0x108] sm:$0xff]
        %v3360 = vld [vmem:[%s1510 + $0x110] sm:$0xff]
        %v3361 = vld [vmem:[%s1510 + $0x118] sm:$0xff]
        %v3362 = vld [vmem:[%s1510 + $0x120] sm:$0xff]
        %v3363 = vld [vmem:[%s1510 + $0x128] sm:$0xff]
        %v3364 = vld [vmem:[%s1510 + $0x130] sm:$0xff]
        %v3365 = vld [vmem:[%s1510 + $0x138] sm:$0xff]
        %v3366 = vld [vmem:[%s1510 + $0x140] sm:$0xff]
        %v3367 = vld [vmem:[%s1510 + $0x148] sm:$0xff]
        %v3368 = vld [vmem:[%s1510 + $0x150] sm:$0xff]
        %v3369 = vld [vmem:[%s1510 + $0x158] sm:$0xff]
        %v3370 = vld [vmem:[%s1510 + $0x160] sm:$0xff]
        %v3371 = vld [vmem:[%s1510 + $0x168] sm:$0xff]
        %v3372 = vld [vmem:[%s1510 + $0x170] sm:$0xff]
        %v3373 = vld [vmem:[%s1510 + $0x178] sm:$0xff]
        %v3374 = vrot.slane %v3326, 7
        %v3375 = vrot.slane %v3329, 7
        %v3376 = vrot.slane %v3332, 7
        %v3377 = vrot.slane %v3335, 7
        %v3378 = vrot.slane %v3338, 7
        %v3379 = vrot.slane %v3341, 7
        %v3380 = vrot.slane %v3344, 7
        %v3381 = vrot.slane %v3347, 7
        %v3382 = vrot.slane %v3350, 7
        %v3383 = vrot.slane %v3353, 7
        %v3384 = vrot.slane %v3356, 7
        %v3385 = vrot.slane %v3359, 7
        %v3386 = vrot.slane %v3362, 7
        %v3387 = vrot.slane %v3365, 7
        %v3388 = vrot.slane %v3368, 7
        %v3389 = vrot.slane %v3371, 7
        %v3390 = vrot.slane %v3327, 7
        %v3391 = vrot.slane %v3330, 7
        %v3392 = vrot.slane %v3333, 7
        %v3393 = vrot.slane %v3336, 7
        %v3394 = vrot.slane %v3339, 7
        %v3395 = vrot.slane %v3342, 7
        %v3396 = vrot.slane %v3345, 7
        %v3397 = vrot.slane %v3348, 7
        %v3398 = vrot.slane %v3351, 7
        %v3399 = vrot.slane %v3354, 7
        %v3400 = vrot.slane %v3357, 7
        %v3401 = vrot.slane %v3360, 7
        %v3402 = vrot.slane %v3363, 7
        %v3403 = vrot.slane %v3366, 7
        %v3404 = vrot.slane %v3369, 7
        %v3405 = vrot.slane %v3372, 7
        %v3406 = vrot.slane %v3328, 7
        %v3407 = vrot.slane %v3331, 7
        %v3408 = vrot.slane %v3334, 7
        %v3409 = vrot.slane %v3337, 7
        %v3410 = vrot.slane %v3340, 7
        %v3411 = vrot.slane %v3343, 7
        %v3412 = vrot.slane %v3346, 7
        %v3413 = vrot.slane %v3349, 7
        %v3414 = vrot.slane %v3352, 7
        %v3415 = vrot.slane %v3355, 7
        %v3416 = vrot.slane %v3358, 7
        %v3417 = vrot.slane %v3361, 7
        %v3418 = vrot.slane %v3364, 7
        %v3419 = vrot.slane %v3367, 7
        %v3420 = vrot.slane %v3370, 7
        %v3421 = vrot.slane %v3373, 7
        %v3422 = vsel %vm812, %v3374, %v3390
        %v3423 = vsel %vm812, %v3375, %v3391
        %v3424 = vsel %vm812, %v3376, %v3392
        %v3425 = vsel %vm812, %v3377, %v3393
        %v3426 = vsel %vm812, %v3378, %v3394
        %v3427 = vsel %vm812, %v3379, %v3395
        %v3428 = vsel %vm812, %v3380, %v3396
        %v3429 = vsel %vm812, %v3381, %v3397
        %v3430 = vsel %vm812, %v3382, %v3398
        %v3431 = vsel %vm812, %v3383, %v3399
        %v3432 = vsel %vm812, %v3384, %v3400
        %v3433 = vsel %vm812, %v3385, %v3401
        %v3434 = vsel %vm812, %v3386, %v3402
        %v3435 = vsel %vm812, %v3387, %v3403
        %v3436 = vsel %vm812, %v3388, %v3404
        %v3437 = vsel %vm812, %v3389, %v3405
        %v3438 = vsel %vm812, %v3406, %v3374
        %v3439 = vsel %vm812, %v3407, %v3375
        %v3440 = vsel %vm812, %v3408, %v3376
        %v3441 = vsel %vm812, %v3409, %v3377
        %v3442 = vsel %vm812, %v3410, %v3378
        %v3443 = vsel %vm812, %v3411, %v3379
        %v3444 = vsel %vm812, %v3412, %v3380
        %v3445 = vsel %vm812, %v3413, %v3381
        %v3446 = vsel %vm812, %v3414, %v3382
        %v3447 = vsel %vm812, %v3415, %v3383
        %v3448 = vsel %vm812, %v3416, %v3384
        %v3449 = vsel %vm812, %v3417, %v3385
        %v3450 = vsel %vm812, %v3418, %v3386
        %v3451 = vsel %vm812, %v3419, %v3387
        %v3452 = vsel %vm812, %v3420, %v3388
        %v3453 = vsel %vm812, %v3421, %v3389
        %v3454 = vrot.slane %v3326, 1
        %v3455 = vrot.slane %v3329, 1
        %v3456 = vrot.slane %v3332, 1
        %v3457 = vrot.slane %v3335, 1
        %v3458 = vrot.slane %v3338, 1
        %v3459 = vrot.slane %v3341, 1
        %v3460 = vrot.slane %v3344, 1
        %v3461 = vrot.slane %v3347, 1
        %v3462 = vrot.slane %v3350, 1
        %v3463 = vrot.slane %v3353, 1
        %v3464 = vrot.slane %v3356, 1
        %v3465 = vrot.slane %v3359, 1
        %v3466 = vrot.slane %v3362, 1
        %v3467 = vrot.slane %v3365, 1
        %v3468 = vrot.slane %v3368, 1
        %v3469 = vrot.slane %v3371, 1
        %v3470 = vrot.slane %v3327, 1
        %v3471 = vrot.slane %v3330, 1
        %v3472 = vrot.slane %v3333, 1
        %v3473 = vrot.slane %v3336, 1
        %v3474 = vrot.slane %v3339, 1
        %v3475 = vrot.slane %v3342, 1
        %v3476 = vrot.slane %v3345, 1
        %v3477 = vrot.slane %v3348, 1
        %v3478 = vrot.slane %v3351, 1
        %v3479 = vrot.slane %v3354, 1
        %v3480 = vrot.slane %v3357, 1
        %v3481 = vrot.slane %v3360, 1
        %v3482 = vrot.slane %v3363, 1
        %v3483 = vrot.slane %v3366, 1
        %v3484 = vrot.slane %v3369, 1
        %v3485 = vrot.slane %v3372, 1
        %v3486 = vrot.slane %v3328, 1
        %v3487 = vrot.slane %v3331, 1
        %v3488 = vrot.slane %v3334, 1
        %v3489 = vrot.slane %v3337, 1
        %v3490 = vrot.slane %v3340, 1
        %v3491 = vrot.slane %v3343, 1
        %v3492 = vrot.slane %v3346, 1
        %v3493 = vrot.slane %v3349, 1
        %v3494 = vrot.slane %v3352, 1
        %v3495 = vrot.slane %v3355, 1
        %v3496 = vrot.slane %v3358, 1
        %v3497 = vrot.slane %v3361, 1
        %v3498 = vrot.slane %v3364, 1
        %v3499 = vrot.slane %v3367, 1
        %v3500 = vrot.slane %v3370, 1
        %v3501 = vrot.slane %v3373, 1
        %v3502 = vsel %vm893, %v3470, %v3486
        %v3503 = vsel %vm893, %v3471, %v3487
        %v3504 = vsel %vm893, %v3472, %v3488
        %v3505 = vsel %vm893, %v3473, %v3489
        %v3506 = vsel %vm893, %v3474, %v3490
        %v3507 = vsel %vm893, %v3475, %v3491
        %v3508 = vsel %vm893, %v3476, %v3492
        %v3509 = vsel %vm893, %v3477, %v3493
        %v3510 = vsel %vm893, %v3478, %v3494
        %v3511 = vsel %vm893, %v3479, %v3495
        %v3512 = vsel %vm893, %v3480, %v3496
        %v3513 = vsel %vm893, %v3481, %v3497
        %v3514 = vsel %vm893, %v3482, %v3498
        %v3515 = vsel %vm893, %v3483, %v3499
        %v3516 = vsel %vm893, %v3484, %v3500
        %v3517 = vsel %vm893, %v3485, %v3501
        %v3518 = vsel %vm893, %v3454, %v3470
        %v3519 = vsel %vm893, %v3455, %v3471
        %v3520 = vsel %vm893, %v3456, %v3472
        %v3521 = vsel %vm893, %v3457, %v3473
        %v3522 = vsel %vm893, %v3458, %v3474
        %v3523 = vsel %vm893, %v3459, %v3475
        %v3524 = vsel %vm893, %v3460, %v3476
        %v3525 = vsel %vm893, %v3461, %v3477
        %v3526 = vsel %vm893, %v3462, %v3478
        %v3527 = vsel %vm893, %v3463, %v3479
        %v3528 = vsel %vm893, %v3464, %v3480
        %v3529 = vsel %vm893, %v3465, %v3481
        %v3530 = vsel %vm893, %v3466, %v3482
        %v3531 = vsel %vm893, %v3467, %v3483
        %v3532 = vsel %vm893, %v3468, %v3484
        %v3533 = vsel %vm893, %v3469, %v3485
        %v3534 = vlaneseq
        %v3535 = vshrl.u32 %v3534, 7
        %v3536 = vsub.s32 6, %v3535
        %v3537 = vrot.slane %v2500, %v3536
        %v3538 = vmul.f32 %v3438, %v3537
        %v3539 = vmul.f32 %v3422, %v3537
        %v3540 = vmul.f32 %v3439, %v3537
        %v3541 = vmul.f32 %v3423, %v3537
        %v3542 = vmul.f32 %v3440, %v3537
        %v3543 = vmul.f32 %v3424, %v3537
        %v3544 = vmul.f32 %v3441, %v3537
        %v3545 = vmul.f32 %v3425, %v3537
        %v3546 = vmul.f32 %v3442, %v3537
        %v3547 = vmul.f32 %v3426, %v3537
        %v3548 = vmul.f32 %v3443, %v3537
        %v3549 = vmul.f32 %v3427, %v3537
        %v3550 = vmul.f32 %v3444, %v3537
        %v3551 = vmul.f32 %v3428, %v3537
        %v3552 = vmul.f32 %v3445, %v3537
        %v3553 = vmul.f32 %v3429, %v3537
        %v3554 = vmul.f32 %v3446, %v3537
        %v3555 = vmul.f32 %v3430, %v3537
        %v3556 = vmul.f32 %v3447, %v3537
        %v3557 = vmul.f32 %v3431, %v3537
        %v3558 = vmul.f32 %v3448, %v3537
        %v3559 = vmul.f32 %v3432, %v3537
        %v3560 = vmul.f32 %v3449, %v3537
        %v3561 = vmul.f32 %v3433, %v3537
        %v3562 = vmul.f32 %v3450, %v3537
        %v3563 = vmul.f32 %v3434, %v3537
        %v3564 = vmul.f32 %v3451, %v3537
        %v3565 = vmul.f32 %v3435, %v3537
        %v3566 = vmul.f32 %v3452, %v3537
        %v3567 = vmul.f32 %v3436, %v3537
        %v3568 = vmul.f32 %v3453, %v3537
        %v3569 = vmul.f32 %v3437, %v3537
        %v3570 = vlaneseq
        %v3571 = vshrl.u32 %v3570, 7
        %v3572 = vsub.s32 7, %v3571
        %v3573 = vrot.slane %v2500, %v3572
        %v3574 = vmul.f32 %v3326, %v3573
        %v3575 = vmul.f32 %v3327, %v3573
        %v3576 = vmul.f32 %v3329, %v3573
        %v3577 = vmul.f32 %v3330, %v3573
        %v3578 = vmul.f32 %v3332, %v3573
        %v3579 = vmul.f32 %v3333, %v3573
        %v3580 = vmul.f32 %v3335, %v3573
        %v3581 = vmul.f32 %v3336, %v3573
        %v3582 = vmul.f32 %v3338, %v3573
        %v3583 = vmul.f32 %v3339, %v3573
        %v3584 = vmul.f32 %v3341, %v3573
        %v3585 = vmul.f32 %v3342, %v3573
        %v3586 = vmul.f32 %v3344, %v3573
        %v3587 = vmul.f32 %v3345, %v3573
        %v3588 = vmul.f32 %v3347, %v3573
        %v3589 = vmul.f32 %v3348, %v3573
        %v3590 = vmul.f32 %v3350, %v3573
        %v3591 = vmul.f32 %v3351, %v3573
        %v3592 = vmul.f32 %v3353, %v3573
        %v3593 = vmul.f32 %v3354, %v3573
        %v3594 = vmul.f32 %v3356, %v3573
        %v3595 = vmul.f32 %v3357, %v3573
        %v3596 = vmul.f32 %v3359, %v3573
        %v3597 = vmul.f32 %v3360, %v3573
        %v3598 = vmul.f32 %v3362, %v3573
        %v3599 = vmul.f32 %v3363, %v3573
        %v3600 = vmul.f32 %v3365, %v3573
        %v3601 = vmul.f32 %v3366, %v3573
        %v3602 = vmul.f32 %v3368, %v3573
        %v3603 = vmul.f32 %v3369, %v3573
        %v3604 = vmul.f32 %v3371, %v3573
        %v3605 = vmul.f32 %v3372, %v3573
        %v3606 = vadd.f32 %v3538, %v3574
        %v3607 = vadd.f32 %v3539, %v3575
        %v3608 = vadd.f32 %v3540, %v3576
        %v3609 = vadd.f32 %v3541, %v3577
        %v3610 = vadd.f32 %v3542, %v3578
        %v3611 = vadd.f32 %v3543, %v3579
        %v3612 = vadd.f32 %v3544, %v3580
        %v3613 = vadd.f32 %v3545, %v3581
        %v3614 = vadd.f32 %v3546, %v3582
        %v3615 = vadd.f32 %v3547, %v3583
        %v3616 = vadd.f32 %v3548, %v3584
        %v3617 = vadd.f32 %v3549, %v3585
        %v3618 = vadd.f32 %v3550, %v3586
        %v3619 = vadd.f32 %v3551, %v3587
        %v3620 = vadd.f32 %v3552, %v3588
        %v3621 = vadd.f32 %v3553, %v3589
        %v3622 = vadd.f32 %v3554, %v3590
        %v3623 = vadd.f32 %v3555, %v3591
        %v3624 = vadd.f32 %v3556, %v3592
        %v3625 = vadd.f32 %v3557, %v3593
        %v3626 = vadd.f32 %v3558, %v3594
        %v3627 = vadd.f32 %v3559, %v3595
        %v3628 = vadd.f32 %v3560, %v3596
        %v3629 = vadd.f32 %v3561, %v3597
        %v3630 = vadd.f32 %v3562, %v3598
        %v3631 = vadd.f32 %v3563, %v3599
        %v3632 = vadd.f32 %v3564, %v3600
        %v3633 = vadd.f32 %v3565, %v3601
        %v3634 = vadd.f32 %v3566, %v3602
        %v3635 = vadd.f32 %v3567, %v3603
        %v3636 = vadd.f32 %v3568, %v3604
        %v3637 = vadd.f32 %v3569, %v3605
        %v3638 = vlaneseq
        %v3639 = vshrl.u32 %v3638, 7
        %v3640 = vsub.s32 0, %v3639
        %v3641 = vrot.slane %v2501, %v3640
        %v3642 = vmul.f32 %v3518, %v3641
        %v3643 = vmul.f32 %v3502, %v3641
        %v3644 = vmul.f32 %v3519, %v3641
        %v3645 = vmul.f32 %v3503, %v3641
        %v3646 = vmul.f32 %v3520, %v3641
        %v3647 = vmul.f32 %v3504, %v3641
        %v3648 = vmul.f32 %v3521, %v3641
        %v3649 = vmul.f32 %v3505, %v3641
        %v3650 = vmul.f32 %v3522, %v3641
        %v3651 = vmul.f32 %v3506, %v3641
        %v3652 = vmul.f32 %v3523, %v3641
        %v3653 = vmul.f32 %v3507, %v3641
        %v3654 = vmul.f32 %v3524, %v3641
        %v3655 = vmul.f32 %v3508, %v3641
        %v3656 = vmul.f32 %v3525, %v3641
        %v3657 = vmul.f32 %v3509, %v3641
        %v3658 = vmul.f32 %v3526, %v3641
        %v3659 = vmul.f32 %v3510, %v3641
        %v3660 = vmul.f32 %v3527, %v3641
        %v3661 = vmul.f32 %v3511, %v3641
        %v3662 = vmul.f32 %v3528, %v3641
        %v3663 = vmul.f32 %v3512, %v3641
        %v3664 = vmul.f32 %v3529, %v3641
        %v3665 = vmul.f32 %v3513, %v3641
        %v3666 = vmul.f32 %v3530, %v3641
        %v3667 = vmul.f32 %v3514, %v3641
        %v3668 = vmul.f32 %v3531, %v3641
        %v3669 = vmul.f32 %v3515, %v3641
        %v3670 = vmul.f32 %v3532, %v3641
        %v3671 = vmul.f32 %v3516, %v3641
        %v3672 = vmul.f32 %v3533, %v3641
        %v3673 = vmul.f32 %v3517, %v3641
        %v3674 = vadd.f32 %v3606, %v3642
        %v3675 = vadd.f32 %v3607, %v3643
        %v3676 = vadd.f32 %v3608, %v3644
        %v3677 = vadd.f32 %v3609, %v3645
        %v3678 = vadd.f32 %v3610, %v3646
        %v3679 = vadd.f32 %v3611, %v3647
        %v3680 = vadd.f32 %v3612, %v3648
        %v3681 = vadd.f32 %v3613, %v3649
        %v3682 = vadd.f32 %v3614, %v3650
        %v3683 = vadd.f32 %v3615, %v3651
        %v3684 = vadd.f32 %v3616, %v3652
        %v3685 = vadd.f32 %v3617, %v3653
        %v3686 = vadd.f32 %v3618, %v3654
        %v3687 = vadd.f32 %v3619, %v3655
        %v3688 = vadd.f32 %v3620, %v3656
        %v3689 = vadd.f32 %v3621, %v3657
        %v3690 = vadd.f32 %v3622, %v3658
        %v3691 = vadd.f32 %v3623, %v3659
        %v3692 = vadd.f32 %v3624, %v3660
        %v3693 = vadd.f32 %v3625, %v3661
        %v3694 = vadd.f32 %v3626, %v3662
        %v3695 = vadd.f32 %v3627, %v3663
        %v3696 = vadd.f32 %v3628, %v3664
        %v3697 = vadd.f32 %v3629, %v3665
        %v3698 = vadd.f32 %v3630, %v3666
        %v3699 = vadd.f32 %v3631, %v3667
        %v3700 = vadd.f32 %v3632, %v3668
        %v3701 = vadd.f32 %v3633, %v3669
        %v3702 = vadd.f32 %v3634, %v3670
        %v3703 = vadd.f32 %v3635, %v3671
        %v3704 = vadd.f32 %v3636, %v3672
        %v3705 = vadd.f32 %v3637, %v3673
        %v3706 = vadd.f32 %v3294, %v3674
        %v3707 = vadd.f32 %v3295, %v3675
        %v3708 = vadd.f32 %v3296, %v3676
        %v3709 = vadd.f32 %v3297, %v3677
        %v3710 = vadd.f32 %v3298, %v3678
        %v3711 = vadd.f32 %v3299, %v3679
        %v3712 = vadd.f32 %v3300, %v3680
        %v3713 = vadd.f32 %v3301, %v3681
        %v3714 = vadd.f32 %v3302, %v3682
        %v3715 = vadd.f32 %v3303, %v3683
        %v3716 = vadd.f32 %v3304, %v3684
        %v3717 = vadd.f32 %v3305, %v3685
        %v3718 = vadd.f32 %v3306, %v3686
        %v3719 = vadd.f32 %v3307, %v3687
        %v3720 = vadd.f32 %v3308, %v3688
        %v3721 = vadd.f32 %v3309, %v3689
        %v3722 = vadd.f32 %v3310, %v3690
        %v3723 = vadd.f32 %v3311, %v3691
        %v3724 = vadd.f32 %v3312, %v3692
        %v3725 = vadd.f32 %v3313, %v3693
        %v3726 = vadd.f32 %v3314, %v3694
        %v3727 = vadd.f32 %v3315, %v3695
        %v3728 = vadd.f32 %v3316, %v3696
        %v3729 = vadd.f32 %v3317, %v3697
        %v3730 = vadd.f32 %v3318, %v3698
        %v3731 = vadd.f32 %v3319, %v3699
        %v3732 = vadd.f32 %v3320, %v3700
        %v3733 = vadd.f32 %v3321, %v3701
        %v3734 = vadd.f32 %v3322, %v3702
        %v3735 = vadd.f32 %v3323, %v3703
        %v3736 = vadd.f32 %v3324, %v3704
        %v3737 = vadd.f32 %v3325, %v3705
        %v3738 = vld [vmem:[#allocation14] sm:$0x1]
        %v3739 = vld [vmem:[#allocation15] sm:$0x1]
        %v3740 = vadd.f32 %v3706, %v3707
        %v3741 = vadd.f32 %v3740, %v3708
        %v3742 = vadd.f32 %v3741, %v3709
        %v3743 = vadd.f32 %v3742, %v3710
        %v3744 = vadd.f32 %v3743, %v3711
        %v3745 = vadd.f32 %v3744, %v3712
        %v3746 = vadd.f32 %v3745, %v3713
        %v3747 = vadd.f32 %v3746, %v3714
        %v3748 = vadd.f32 %v3747, %v3715
        %v3749 = vadd.f32 %v3748, %v3716
        %v3750 = vadd.f32 %v3749, %v3717
        %v3751 = vadd.f32 %v3750, %v3718
        %v3752 = vadd.f32 %v3751, %v3719
        %v3753 = vadd.f32 %v3752, %v3720
        %v3754 = vadd.f32 %v3753, %v3721
        %v3755 = vadd.f32 %v3754, %v3722
        %v3756 = vadd.f32 %v3755, %v3723
        %v3757 = vadd.f32 %v3756, %v3724
        %v3758 = vadd.f32 %v3757, %v3725
        %v3759 = vadd.f32 %v3758, %v3726
        %v3760 = vadd.f32 %v3759, %v3727
        %v3761 = vadd.f32 %v3760, %v3728
        %v3762 = vadd.f32 %v3761, %v3729
        %v3763 = vadd.f32 %v3762, %v3730
        %v3764 = vadd.f32 %v3763, %v3731
        %v3765 = vadd.f32 %v3764, %v3732
        %v3766 = vadd.f32 %v3765, %v3733
        %v3767 = vadd.f32 %v3766, %v3734
        %v3768 = vadd.f32 %v3767, %v3735
        %v3769 = vadd.f32 %v3768, %v3736
        %v3770 = vadd.f32 %v3769, %v3737
        %3771 = vadd.xlane.f32.xlu0 %v3770
        %v3772 = vpop.xlane.xlu0 %3771
        %v3773 = vrot.slane %v3772, 4
        %v3774 = vadd.f32 %v3772, %v3773
        %v3775 = vrot.slane %v3774, 2
        %v3776 = vadd.f32 %v3774, %v3775
        %v3777 = vrot.slane %v3776, 1
        %v3778 = vadd.f32 %v3776, %v3777
        %s3779 = vtos %v3778
        %v3780 = vmul.f32 %v3706, %v3706
        %v3781 = vmul.f32 %v3707, %v3707
        %v3782 = vmul.f32 %v3708, %v3708
        %v3783 = vmul.f32 %v3709, %v3709
        %v3784 = vmul.f32 %v3710, %v3710
        %v3785 = vmul.f32 %v3711, %v3711
        %v3786 = vmul.f32 %v3712, %v3712
        %v3787 = vmul.f32 %v3713, %v3713
        %v3788 = vmul.f32 %v3714, %v3714
        %v3789 = vmul.f32 %v3715, %v3715
        %v3790 = vmul.f32 %v3716, %v3716
        %v3791 = vmul.f32 %v3717, %v3717
        %v3792 = vmul.f32 %v3718, %v3718
        %v3793 = vmul.f32 %v3719, %v3719
        %v3794 = vmul.f32 %v3720, %v3720
        %v3795 = vmul.f32 %v3721, %v3721
        %v3796 = vmul.f32 %v3722, %v3722
        %v3797 = vmul.f32 %v3723, %v3723
        %v3798 = vmul.f32 %v3724, %v3724
        %v3799 = vmul.f32 %v3725, %v3725
        %v3800 = vmul.f32 %v3726, %v3726
        %v3801 = vmul.f32 %v3727, %v3727
        %v3802 = vmul.f32 %v3728, %v3728
        %v3803 = vmul.f32 %v3729, %v3729
        %v3804 = vmul.f32 %v3730, %v3730
        %v3805 = vmul.f32 %v3731, %v3731
        %v3806 = vmul.f32 %v3732, %v3732
        %v3807 = vmul.f32 %v3733, %v3733
        %v3808 = vmul.f32 %v3734, %v3734
        %v3809 = vmul.f32 %v3735, %v3735
        %v3810 = vmul.f32 %v3736, %v3736
        %v3811 = vmul.f32 %v3737, %v3737
        %v3812 = vadd.f32 %v3780, %v3781
        %v3813 = vadd.f32 %v3812, %v3782
        %v3814 = vadd.f32 %v3813, %v3783
        %v3815 = vadd.f32 %v3814, %v3784
        %v3816 = vadd.f32 %v3815, %v3785
        %v3817 = vadd.f32 %v3816, %v3786
        %v3818 = vadd.f32 %v3817, %v3787
        %v3819 = vadd.f32 %v3818, %v3788
        %v3820 = vadd.f32 %v3819, %v3789
        %v3821 = vadd.f32 %v3820, %v3790
        %v3822 = vadd.f32 %v3821, %v3791
        %v3823 = vadd.f32 %v3822, %v3792
        %v3824 = vadd.f32 %v3823, %v3793
        %v3825 = vadd.f32 %v3824, %v3794
        %v3826 = vadd.f32 %v3825, %v3795
        %v3827 = vadd.f32 %v3826, %v3796
        %v3828 = vadd.f32 %v3827, %v3797
        %v3829 = vadd.f32 %v3828, %v3798
        %v3830 = vadd.f32 %v3829, %v3799
        %v3831 = vadd.f32 %v3830, %v3800
        %v3832 = vadd.f32 %v3831, %v3801
        %v3833 = vadd.f32 %v3832, %v3802
        %v3834 = vadd.f32 %v3833, %v3803
        %v3835 = vadd.f32 %v3834, %v3804
        %v3836 = vadd.f32 %v3835, %v3805
        %v3837 = vadd.f32 %v3836, %v3806
        %v3838 = vadd.f32 %v3837, %v3807
        %v3839 = vadd.f32 %v3838, %v3808
        %v3840 = vadd.f32 %v3839, %v3809
        %v3841 = vadd.f32 %v3840, %v3810
        %v3842 = vadd.f32 %v3841, %v3811
        %3843 = vadd.xlane.f32.xlu0 %v3842
        %v3844 = vpop.xlane.xlu0 %3843
        %v3845 = vrot.slane %v3844, 4
        %v3846 = vadd.f32 %v3844, %v3845
        %v3847 = vrot.slane %v3846, 2
        %v3848 = vadd.f32 %v3846, %v3847
        %v3849 = vrot.slane %v3848, 1
        %v3850 = vadd.f32 %v3848, %v3849
        %s3851 = vtos %v3850
        %v3852 = vrcp.pop 2048.0
        %s3853 = vtos %v3852
        %s3854 = smul.f32 %s3779, %s3853
        %v3855 = vrcp.pop 2048.0
        %s3856 = vtos %v3855
        %s3857 = smul.f32 %s3851, %s3856
        %s3858 = smul.f32 %s3854, %s3854
        %s3859 = ssub.f32 %s3857, %s3858
        %s3860 = smax.f32 %s3859, 0.0
        %s3861 = sadd.f32 %s3860, 1e-05
        %v3862 = vstv %s3861
        %v3863 = vrsqrt.pop %v3862
        %s3864 = vtos %v3863
        %v3865 = vstv %s3864
        %v3866 = vmul.f32 %v3738, %v3865
        %v3867 = vstv %s3854
        %v3868 = vmul.f32 %v3867, %v3866
        %v3869 = vsub.f32 %v3739, %v3868
        %v3871 = vlaneseq
        %v3872 = vshrl.u32 %v3871, 7
        %v3873 = vsub.s32 0, %v3872
        %v3874 = vrot.slane %v3866, %v3873
        %v3876 = vmul.f32 %v3706, %v3874
        %v3877 = vmul.f32 %v3707, %v3874
        %v3878 = vmul.f32 %v3708, %v3874
        %v3879 = vmul.f32 %v3709, %v3874
        %v3880 = vmul.f32 %v3710, %v3874
        %v3881 = vmul.f32 %v3711, %v3874
        %v3882 = vmul.f32 %v3712, %v3874
        %v3883 = vmul.f32 %v3713, %v3874
        %v3884 = vmul.f32 %v3714, %v3874
        %v3885 = vmul.f32 %v3715, %v3874
        %v3886 = vmul.f32 %v3716, %v3874
        %v3887 = vmul.f32 %v3717, %v3874
        %v3888 = vmul.f32 %v3718, %v3874
        %v3889 = vmul.f32 %v3719, %v3874
        %v3890 = vmul.f32 %v3720, %v3874
        %v3891 = vmul.f32 %v3721, %v3874
        %v3892 = vmul.f32 %v3722, %v3874
        %v3893 = vmul.f32 %v3723, %v3874
        %v3894 = vmul.f32 %v3724, %v3874
        %v3895 = vmul.f32 %v3725, %v3874
        %v3896 = vmul.f32 %v3726, %v3874
        %v3897 = vmul.f32 %v3727, %v3874
        %v3898 = vmul.f32 %v3728, %v3874
        %v3899 = vmul.f32 %v3729, %v3874
        %v3900 = vmul.f32 %v3730, %v3874
        %v3901 = vmul.f32 %v3731, %v3874
        %v3902 = vmul.f32 %v3732, %v3874
        %v3903 = vmul.f32 %v3733, %v3874
        %v3904 = vmul.f32 %v3734, %v3874
        %v3905 = vmul.f32 %v3735, %v3874
        %v3906 = vmul.f32 %v3736, %v3874
        %v3907 = vmul.f32 %v3737, %v3874
        %v3909 = vlaneseq
        %v3910 = vshrl.u32 %v3909, 7
        %v3911 = vsub.s32 0, %v3910
        %v3912 = vrot.slane %v3869, %v3911
        %v3914 = vadd.f32 %v3876, %v3912
        %v3915 = vadd.f32 %v3877, %v3912
        %v3916 = vadd.f32 %v3878, %v3912
        %v3917 = vadd.f32 %v3879, %v3912
        %v3918 = vadd.f32 %v3880, %v3912
        %v3919 = vadd.f32 %v3881, %v3912
        %v3920 = vadd.f32 %v3882, %v3912
        %v3921 = vadd.f32 %v3883, %v3912
        %v3922 = vadd.f32 %v3884, %v3912
        %v3923 = vadd.f32 %v3885, %v3912
        %v3924 = vadd.f32 %v3886, %v3912
        %v3925 = vadd.f32 %v3887, %v3912
        %v3926 = vadd.f32 %v3888, %v3912
        %v3927 = vadd.f32 %v3889, %v3912
        %v3928 = vadd.f32 %v3890, %v3912
        %v3929 = vadd.f32 %v3891, %v3912
        %v3930 = vadd.f32 %v3892, %v3912
        %v3931 = vadd.f32 %v3893, %v3912
        %v3932 = vadd.f32 %v3894, %v3912
        %v3933 = vadd.f32 %v3895, %v3912
        %v3934 = vadd.f32 %v3896, %v3912
        %v3935 = vadd.f32 %v3897, %v3912
        %v3936 = vadd.f32 %v3898, %v3912
        %v3937 = vadd.f32 %v3899, %v3912
        %v3938 = vadd.f32 %v3900, %v3912
        %v3939 = vadd.f32 %v3901, %v3912
        %v3940 = vadd.f32 %v3902, %v3912
        %v3941 = vadd.f32 %v3903, %v3912
        %v3942 = vadd.f32 %v3904, %v3912
        %v3943 = vadd.f32 %v3905, %v3912
        %v3944 = vadd.f32 %v3906, %v3912
        %v3945 = vadd.f32 %v3907, %v3912
        %v3946 = vmul.f32 %v3914, 1.442695
        %v3947 = vpow.pop %v3946
        %v3948 = vmul.f32 %v3915, 1.442695
        %v3949 = vpow.pop %v3948
        %v3950 = vmul.f32 %v3916, 1.442695
        %v3951 = vpow.pop %v3950
        %v3952 = vmul.f32 %v3917, 1.442695
        %v3953 = vpow.pop %v3952
        %v3954 = vmul.f32 %v3918, 1.442695
        %v3955 = vpow.pop %v3954
        %v3956 = vmul.f32 %v3919, 1.442695
        %v3957 = vpow.pop %v3956
        %v3958 = vmul.f32 %v3920, 1.442695
        %v3959 = vpow.pop %v3958
        %v3960 = vmul.f32 %v3921, 1.442695
        %v3961 = vpow.pop %v3960
        %v3962 = vmul.f32 %v3922, 1.442695
        %v3963 = vpow.pop %v3962
        %v3964 = vmul.f32 %v3923, 1.442695
        %v3965 = vpow.pop %v3964
        %v3966 = vmul.f32 %v3924, 1.442695
        %v3967 = vpow.pop %v3966
        %v3968 = vmul.f32 %v3925, 1.442695
        %v3969 = vpow.pop %v3968
        %v3970 = vmul.f32 %v3926, 1.442695
        %v3971 = vpow.pop %v3970
        %v3972 = vmul.f32 %v3927, 1.442695
        %v3973 = vpow.pop %v3972
        %v3974 = vmul.f32 %v3928, 1.442695
        %v3975 = vpow.pop %v3974
        %v3976 = vmul.f32 %v3929, 1.442695
        %v3977 = vpow.pop %v3976
        %v3978 = vmul.f32 %v3930, 1.442695
        %v3979 = vpow.pop %v3978
        %v3980 = vmul.f32 %v3931, 1.442695
        %v3981 = vpow.pop %v3980
        %v3982 = vmul.f32 %v3932, 1.442695
        %v3983 = vpow.pop %v3982
        %v3984 = vmul.f32 %v3933, 1.442695
        %v3985 = vpow.pop %v3984
        %v3986 = vmul.f32 %v3934, 1.442695
        %v3987 = vpow.pop %v3986
        %v3988 = vmul.f32 %v3935, 1.442695
        %v3989 = vpow.pop %v3988
        %v3990 = vmul.f32 %v3936, 1.442695
        %v3991 = vpow.pop %v3990
        %v3992 = vmul.f32 %v3937, 1.442695
        %v3993 = vpow.pop %v3992
        %v3994 = vmul.f32 %v3938, 1.442695
        %v3995 = vpow.pop %v3994
        %v3996 = vmul.f32 %v3939, 1.442695
        %v3997 = vpow.pop %v3996
        %v3998 = vmul.f32 %v3940, 1.442695
        %v3999 = vpow.pop %v3998
        %v4000 = vmul.f32 %v3941, 1.442695
        %v4001 = vpow.pop %v4000
        %v4002 = vmul.f32 %v3942, 1.442695
        %v4003 = vpow.pop %v4002
        %v4004 = vmul.f32 %v3943, 1.442695
        %v4005 = vpow.pop %v4004
        %v4006 = vmul.f32 %v3944, 1.442695
        %v4007 = vpow.pop %v4006
        %v4008 = vmul.f32 %v3945, 1.442695
        %v4009 = vpow.pop %v4008
        %v4010 = vtanh.pop %v3947
        %v4011 = vtanh.pop %v3949
        %v4012 = vtanh.pop %v3951
        %v4013 = vtanh.pop %v3953
        %v4014 = vtanh.pop %v3955
        %v4015 = vtanh.pop %v3957
        %v4016 = vtanh.pop %v3959
        %v4017 = vtanh.pop %v3961
        %v4018 = vtanh.pop %v3963
        %v4019 = vtanh.pop %v3965
        %v4020 = vtanh.pop %v3967
        %v4021 = vtanh.pop %v3969
        %v4022 = vtanh.pop %v3971
        %v4023 = vtanh.pop %v3973
        %v4024 = vtanh.pop %v3975
        %v4025 = vtanh.pop %v3977
        %v4026 = vtanh.pop %v3979
        %v4027 = vtanh.pop %v3981
        %v4028 = vtanh.pop %v3983
        %v4029 = vtanh.pop %v3985
        %v4030 = vtanh.pop %v3987
        %v4031 = vtanh.pop %v3989
        %v4032 = vtanh.pop %v3991
        %v4033 = vtanh.pop %v3993
        %v4034 = vtanh.pop %v3995
        %v4035 = vtanh.pop %v3997
        %v4036 = vtanh.pop %v3999
        %v4037 = vtanh.pop %v4001
        %v4038 = vtanh.pop %v4003
        %v4039 = vtanh.pop %v4005
        %v4040 = vtanh.pop %v4007
        %v4041 = vtanh.pop %v4009
        %v4042 = vmul.f32 %v3914, %v4010
        %v4043 = vmul.f32 %v3915, %v4011
        %v4044 = vmul.f32 %v3916, %v4012
        %v4045 = vmul.f32 %v3917, %v4013
        %v4046 = vmul.f32 %v3918, %v4014
        %v4047 = vmul.f32 %v3919, %v4015
        %v4048 = vmul.f32 %v3920, %v4016
        %v4049 = vmul.f32 %v3921, %v4017
        %v4050 = vmul.f32 %v3922, %v4018
        %v4051 = vmul.f32 %v3923, %v4019
        %v4052 = vmul.f32 %v3924, %v4020
        %v4053 = vmul.f32 %v3925, %v4021
        %v4054 = vmul.f32 %v3926, %v4022
        %v4055 = vmul.f32 %v3927, %v4023
        %v4056 = vmul.f32 %v3928, %v4024
        %v4057 = vmul.f32 %v3929, %v4025
        %v4058 = vmul.f32 %v3930, %v4026
        %v4059 = vmul.f32 %v3931, %v4027
        %v4060 = vmul.f32 %v3932, %v4028
        %v4061 = vmul.f32 %v3933, %v4029
        %v4062 = vmul.f32 %v3934, %v4030
        %v4063 = vmul.f32 %v3935, %v4031
        %v4064 = vmul.f32 %v3936, %v4032
        %v4065 = vmul.f32 %v3937, %v4033
        %v4066 = vmul.f32 %v3938, %v4034
        %v4067 = vmul.f32 %v3939, %v4035
        %v4068 = vmul.f32 %v3940, %v4036
        %v4069 = vmul.f32 %v3941, %v4037
        %v4070 = vmul.f32 %v3942, %v4038
        %v4071 = vmul.f32 %v3943, %v4039
        %v4072 = vmul.f32 %v3944, %v4040
        %v4073 = vmul.f32 %v3945, %v4041
        %v4074 = vpack.c.bf16 %v4043, %v4042
        %v4075 = vpack.c.bf16 %v4045, %v4044
        %v4076 = vpack.c.bf16 %v4047, %v4046
        %v4077 = vpack.c.bf16 %v4049, %v4048
        %v4078 = vpack.c.bf16 %v4051, %v4050
        %v4079 = vpack.c.bf16 %v4053, %v4052
        %v4080 = vpack.c.bf16 %v4055, %v4054
        %v4081 = vpack.c.bf16 %v4057, %v4056
        %v4082 = vpack.c.bf16 %v4059, %v4058
        %v4083 = vpack.c.bf16 %v4061, %v4060
        %v4084 = vpack.c.bf16 %v4063, %v4062
        %v4085 = vpack.c.bf16 %v4065, %v4064
        %v4086 = vpack.c.bf16 %v4067, %v4066
        %v4087 = vpack.c.bf16 %v4069, %v4068
        %v4088 = vpack.c.bf16 %v4071, %v4070
        %v4089 = vpack.c.bf16 %v4073, %v4072
        %v4090 = vld [vmem:[#allocation17] sm:$0xf]
        %v4091 = vld [vmem:[#allocation17 + $0x4] sm:$0xf]
        %v4092 = vld [vmem:[#allocation17 + $0x8] sm:$0xf]
        %v4093 = vld [vmem:[#allocation17 + $0xc] sm:$0xf]
        %v4094 = vld [vmem:[#allocation17 + $0x10] sm:$0xf]
        %v4095 = vld [vmem:[#allocation17 + $0x14] sm:$0xf]
        %v4096 = vld [vmem:[#allocation17 + $0x18] sm:$0xf]
        %v4097 = vld [vmem:[#allocation17 + $0x1c] sm:$0xf]
        %v4098 = vld [vmem:[#allocation17 + $0x20] sm:$0xf]
        %v4099 = vld [vmem:[#allocation17 + $0x24] sm:$0xf]
        %v4100 = vld [vmem:[#allocation17 + $0x28] sm:$0xf]
        %v4101 = vld [vmem:[#allocation17 + $0x2c] sm:$0xf]
        %v4102 = vld [vmem:[#allocation17 + $0x30] sm:$0xf]
        %v4103 = vld [vmem:[#allocation17 + $0x34] sm:$0xf]
        %v4104 = vld [vmem:[#allocation17 + $0x38] sm:$0xf]
        %v4105 = vld [vmem:[#allocation17 + $0x3c] sm:$0xf]
        %v4122 = vunpack.c.l.b16 %v4090
        %v4123 = vunpack.c.l.b16 %v4091
        %v4124 = vunpack.c.l.b16 %v4092
        %v4125 = vunpack.c.l.b16 %v4093
        %v4126 = vunpack.c.l.b16 %v4094
        %v4127 = vunpack.c.l.b16 %v4095
        %v4128 = vunpack.c.l.b16 %v4096
        %v4129 = vunpack.c.l.b16 %v4097
        %v4130 = vunpack.c.l.b16 %v4098
        %v4131 = vunpack.c.l.b16 %v4099
        %v4132 = vunpack.c.l.b16 %v4100
        %v4133 = vunpack.c.l.b16 %v4101
        %v4134 = vunpack.c.l.b16 %v4102
        %v4135 = vunpack.c.l.b16 %v4103
        %v4136 = vunpack.c.l.b16 %v4104
        %v4137 = vunpack.c.l.b16 %v4105
        %v4138 = vpack.c.b16 %v4123, %v4122
        %v4139 = vpack.c.b16 %v4125, %v4124
        %v4140 = vpack.c.b16 %v4127, %v4126
        %v4141 = vpack.c.b16 %v4129, %v4128
        %v4142 = vpack.c.b16 %v4131, %v4130
        %v4143 = vpack.c.b16 %v4133, %v4132
        %v4144 = vpack.c.b16 %v4135, %v4134
        %v4145 = vpack.c.b16 %v4137, %v4136
        %4154 = vmatprep.subr.bf16.mxu0 0
        %4155 = vmatpush1.bf16.msra.mxu0 %v4145
        %4156 = vmatprep.subr.bf16.mxu0 0
        %4157 = vmatpush1.bf16.msra.mxu0 %v4144
        %4158 = vmatprep.subr.bf16.mxu0 0
        %4159 = vmatpush1.bf16.msra.mxu0 %v4143
        %4160 = vmatprep.subr.bf16.mxu0 0
        %4161 = vmatpush1.bf16.msra.mxu0 %v4142
        %4162 = vmatprep.subr.bf16.mxu0 0
        %4163 = vmatpush1.bf16.msra.mxu0 %v4141
        %4164 = vmatprep.subr.bf16.mxu0 0
        %4165 = vmatpush1.bf16.msra.mxu0 %v4140
        %4166 = vmatprep.subr.bf16.mxu0 0
        %4167 = vmatpush1.bf16.msra.mxu0 %v4139
        %4168 = vmatprep.subr.bf16.mxu0 0
        %4169 = vmatpush1.bf16.msra.mxu0 %v4138
        %4170 = vmatprep.subr.bf16.mxu0 0
        %4171 = vmatpush2.bf16.msra.mxu0 0
        %4172 = vmatprep.subr.bf16.mxu0 0
        %4173 = vmatpush2.bf16.msra.mxu0 0
        %4174 = vmatprep.subr.bf16.mxu0 0
        %4175 = vmatpush2.bf16.msra.mxu0 0
        %4176 = vmatprep.subr.bf16.mxu0 0
        %4177 = vmatpush2.bf16.msra.mxu0 0
        %4178 = vmatprep.subr.bf16.mxu0 0
        %4179 = vmatpush2.bf16.msra.mxu0 0
        %4180 = vmatprep.subr.bf16.mxu0 0
        %4181 = vmatpush2.bf16.msra.mxu0 0
        %4182 = vmatprep.subr.bf16.mxu0 0
        %4183 = vmatpush2.bf16.msra.mxu0 0
        %4184 = vmatprep.subr.bf16.mxu0 0
        %4185 = vmatpush2.bf16.msra.mxu0 0
        %4186 = vmatprep.mubr.bf16.mxu0 0
        %4187 = vmatmul.mubr.bf16.gmra.mxu0 %v4074
        %v4188 = vpop.f32.mrf.mxu0
        %v4189 = vadd.f32 0.0, %v4188
        %v4190 = vpop.f32.mrf.mxu0
        %v4191 = vpop.f32.mrf.mxu0
        %v4192 = vadd.f32 0.0, %v4191
        %v4193 = vpop.f32.mrf.mxu0
        %4194 = vmatprep.mubr.bf16.mxu0 0
        %4195 = vmatmul.mubr.bf16.gmra.mxu0 %v4075
        %v4196 = vpop.f32.mrf.mxu0
        %v4197 = vadd.f32 0.0, %v4196
        %v4198 = vpop.f32.mrf.mxu0
        %v4199 = vpop.f32.mrf.mxu0
        %v4200 = vadd.f32 0.0, %v4199
        %v4201 = vpop.f32.mrf.mxu0
        %4202 = vmatprep.mubr.bf16.mxu0 0
        %4203 = vmatmul.mubr.bf16.gmra.mxu0 %v4076
        %v4204 = vpop.f32.mrf.mxu0
        %v4205 = vadd.f32 0.0, %v4204
        %v4206 = vpop.f32.mrf.mxu0
        %v4207 = vpop.f32.mrf.mxu0
        %v4208 = vadd.f32 0.0, %v4207
        %v4209 = vpop.f32.mrf.mxu0
        %4210 = vmatprep.mubr.bf16.mxu0 0
        %4211 = vmatmul.mubr.bf16.gmra.mxu0 %v4077
        %v4212 = vpop.f32.mrf.mxu0
        %v4213 = vadd.f32 0.0, %v4212
        %v4214 = vpop.f32.mrf.mxu0
        %v4215 = vpop.f32.mrf.mxu0
        %v4216 = vadd.f32 0.0, %v4215
        %v4217 = vpop.f32.mrf.mxu0
        %4218 = vmatprep.mubr.bf16.mxu0 0
        %4219 = vmatmul.mubr.bf16.gmra.mxu0 %v4078
        %v4220 = vpop.f32.mrf.mxu0
        %v4221 = vadd.f32 0.0, %v4220
        %v4222 = vpop.f32.mrf.mxu0
        %v4223 = vpop.f32.mrf.mxu0
        %v4224 = vadd.f32 0.0, %v4223
        %v4225 = vpop.f32.mrf.mxu0
        %4226 = vmatprep.mubr.bf16.mxu0 0
        %4227 = vmatmul.mubr.bf16.gmra.mxu0 %v4079
        %v4228 = vpop.f32.mrf.mxu0
        %v4229 = vadd.f32 0.0, %v4228
        %v4230 = vpop.f32.mrf.mxu0
        %v4231 = vpop.f32.mrf.mxu0
        %v4232 = vadd.f32 0.0, %v4231
        %v4233 = vpop.f32.mrf.mxu0
        %4234 = vmatprep.mubr.bf16.mxu0 0
        %4235 = vmatmul.mubr.bf16.gmra.mxu0 %v4080
        %v4236 = vpop.f32.mrf.mxu0
        %v4237 = vadd.f32 0.0, %v4236
        %v4238 = vpop.f32.mrf.mxu0
        %v4239 = vpop.f32.mrf.mxu0
        %v4240 = vadd.f32 0.0, %v4239
        %v4241 = vpop.f32.mrf.mxu0
        %4242 = vmatprep.mubr.bf16.mxu0 0
        %4243 = vmatmul.mubr.bf16.gmra.mxu0 %v4081
        %v4244 = vpop.f32.mrf.mxu0
        %v4245 = vadd.f32 0.0, %v4244
        %v4246 = vpop.f32.mrf.mxu0
        %v4247 = vpop.f32.mrf.mxu0
        %v4248 = vadd.f32 0.0, %v4247
        %v4249 = vpop.f32.mrf.mxu0
        %4250 = vmatprep.mubr.bf16.mxu0 0
        %4251 = vmatmul.mubr.bf16.gmra.mxu0 %v4082
        %v4252 = vpop.f32.mrf.mxu0
        %v4253 = vadd.f32 0.0, %v4252
        %v4254 = vpop.f32.mrf.mxu0
        %v4255 = vpop.f32.mrf.mxu0
        %v4256 = vadd.f32 0.0, %v4255
        %v4257 = vpop.f32.mrf.mxu0
        %4258 = vmatprep.mubr.bf16.mxu0 0
        %4259 = vmatmul.mubr.bf16.gmra.mxu0 %v4083
        %v4260 = vpop.f32.mrf.mxu0
        %v4261 = vadd.f32 0.0, %v4260
        %v4262 = vpop.f32.mrf.mxu0
        %v4263 = vpop.f32.mrf.mxu0
        %v4264 = vadd.f32 0.0, %v4263
        %v4265 = vpop.f32.mrf.mxu0
        %4266 = vmatprep.mubr.bf16.mxu0 0
        %4267 = vmatmul.mubr.bf16.gmra.mxu0 %v4084
        %v4268 = vpop.f32.mrf.mxu0
        %v4269 = vadd.f32 0.0, %v4268
        %v4270 = vpop.f32.mrf.mxu0
        %v4271 = vpop.f32.mrf.mxu0
        %v4272 = vadd.f32 0.0, %v4271
        %v4273 = vpop.f32.mrf.mxu0
        %4274 = vmatprep.mubr.bf16.mxu0 0
        %4275 = vmatmul.mubr.bf16.gmra.mxu0 %v4085
        %v4276 = vpop.f32.mrf.mxu0
        %v4277 = vadd.f32 0.0, %v4276
        %v4278 = vpop.f32.mrf.mxu0
        %v4279 = vpop.f32.mrf.mxu0
        %v4280 = vadd.f32 0.0, %v4279
        %v4281 = vpop.f32.mrf.mxu0
        %4282 = vmatprep.mubr.bf16.mxu0 0
        %4283 = vmatmul.mubr.bf16.gmra.mxu0 %v4086
        %v4284 = vpop.f32.mrf.mxu0
        %v4285 = vadd.f32 0.0, %v4284
        %v4286 = vpop.f32.mrf.mxu0
        %v4287 = vpop.f32.mrf.mxu0
        %v4288 = vadd.f32 0.0, %v4287
        %v4289 = vpop.f32.mrf.mxu0
        %4290 = vmatprep.mubr.bf16.mxu0 0
        %4291 = vmatmul.mubr.bf16.gmra.mxu0 %v4087
        %v4292 = vpop.f32.mrf.mxu0
        %v4293 = vadd.f32 0.0, %v4292
        %v4294 = vpop.f32.mrf.mxu0
        %v4295 = vpop.f32.mrf.mxu0
        %v4296 = vadd.f32 0.0, %v4295
        %v4297 = vpop.f32.mrf.mxu0
        %4298 = vmatprep.mubr.bf16.mxu0 0
        %4299 = vmatmul.mubr.bf16.gmra.mxu0 %v4088
        %v4300 = vpop.f32.mrf.mxu0
        %v4301 = vadd.f32 0.0, %v4300
        %v4302 = vpop.f32.mrf.mxu0
        %v4303 = vpop.f32.mrf.mxu0
        %v4304 = vadd.f32 0.0, %v4303
        %v4305 = vpop.f32.mrf.mxu0
        %4306 = vmatprep.mubr.bf16.mxu0 0
        %4307 = vmatmul.mubr.bf16.gmra.mxu0 %v4089
        %v4308 = vpop.f32.mrf.mxu0
        %v4309 = vadd.f32 0.0, %v4308
        %v4310 = vpop.f32.mrf.mxu0
        %v4311 = vpop.f32.mrf.mxu0
        %v4312 = vadd.f32 0.0, %v4311
        %v4313 = vpop.f32.mrf.mxu0
        %4314 = vdwg.mxu0
        %v4315 = vld [vmem:[%s9] sm:$0xff]
        %v4316 = vld [vmem:[%s9 + $0x8] sm:$0x1]
        %4317 = vst [vmem:[%s631] sm:$0xff] %v4189
        %4318 = vst [vmem:[%s631 + $0x8] sm:$0xff] %v4192
        %4319 = vst [vmem:[%s631 + $0x18] sm:$0xff] %v4197
        %4320 = vst [vmem:[%s631 + $0x20] sm:$0xff] %v4200
        %4321 = vst [vmem:[%s631 + $0x30] sm:$0xff] %v4205
        %4322 = vst [vmem:[%s631 + $0x38] sm:$0xff] %v4208
        %4323 = vst [vmem:[%s631 + $0x48] sm:$0xff] %v4213
        %4324 = vst [vmem:[%s631 + $0x50] sm:$0xff] %v4216
        %4325 = vst [vmem:[%s631 + $0x60] sm:$0xff] %v4221
        %4326 = vst [vmem:[%s631 + $0x68] sm:$0xff] %v4224
        %4327 = vst [vmem:[%s631 + $0x78] sm:$0xff] %v4229
        %4328 = vst [vmem:[%s631 + $0x80] sm:$0xff] %v4232
        %4329 = vst [vmem:[%s631 + $0x90] sm:$0xff] %v4237
        %4330 = vst [vmem:[%s631 + $0x98] sm:$0xff] %v4240
        %4331 = vst [vmem:[%s631 + $0xa8] sm:$0xff] %v4245
        %4332 = vst [vmem:[%s631 + $0xb0] sm:$0xff] %v4248
        %4333 = vst [vmem:[%s631 + $0xc0] sm:$0xff] %v4253
        %4334 = vst [vmem:[%s631 + $0xc8] sm:$0xff] %v4256
        %4335 = vst [vmem:[%s631 + $0xd8] sm:$0xff] %v4261
        %4336 = vst [vmem:[%s631 + $0xe0] sm:$0xff] %v4264
        %4337 = vst [vmem:[%s631 + $0xf0] sm:$0xff] %v4269
        %4338 = vst [vmem:[%s631 + $0xf8] sm:$0xff] %v4272
        %4339 = vst [vmem:[%s631 + $0x108] sm:$0xff] %v4277
        %4340 = vst [vmem:[%s631 + $0x110] sm:$0xff] %v4280
        %4341 = vst [vmem:[%s631 + $0x120] sm:$0xff] %v4285
        %4342 = vst [vmem:[%s631 + $0x128] sm:$0xff] %v4288
        %4343 = vst [vmem:[%s631 + $0x138] sm:$0xff] %v4293
        %4344 = vst [vmem:[%s631 + $0x140] sm:$0xff] %v4296
        %4345 = vst [vmem:[%s631 + $0x150] sm:$0xff] %v4301
        %4346 = vst [vmem:[%s631 + $0x158] sm:$0xff] %v4304
        %4347 = vst [vmem:[%s631 + $0x168] sm:$0xff] %v4309
        %4348 = vst [vmem:[%s631 + $0x170] sm:$0xff] %v4312
        %v4349 = vld [vmem:[#allocation2] sm:$0xff]
        %v4350 = vld [vmem:[#allocation2 + $0x8] sm:$0xff]
        %v4351 = vld [vmem:[#allocation2 + $0x10] sm:$0xff]
        %v4352 = vld [vmem:[#allocation2 + $0x18] sm:$0xff]
        %v4353 = vld [vmem:[#allocation2 + $0x20] sm:$0xff]
        %v4354 = vld [vmem:[#allocation2 + $0x28] sm:$0xff]
        %v4355 = vld [vmem:[#allocation2 + $0x30] sm:$0xff]
        %v4356 = vld [vmem:[#allocation2 + $0x38] sm:$0xff]
        %v4357 = vld [vmem:[#allocation2 + $0x40] sm:$0xff]
        %v4358 = vld [vmem:[#allocation2 + $0x48] sm:$0xff]
        %v4359 = vld [vmem:[#allocation2 + $0x50] sm:$0xff]
        %v4360 = vld [vmem:[#allocation2 + $0x58] sm:$0xff]
        %v4361 = vld [vmem:[#allocation2 + $0x60] sm:$0xff]
        %v4362 = vld [vmem:[#allocation2 + $0x68] sm:$0xff]
        %v4363 = vld [vmem:[#allocation2 + $0x70] sm:$0xff]
        %v4364 = vld [vmem:[#allocation2 + $0x78] sm:$0xff]
        %v4365 = vld [vmem:[#allocation2 + $0x80] sm:$0xff]
        %v4366 = vld [vmem:[#allocation2 + $0x88] sm:$0xff]
        %v4367 = vld [vmem:[#allocation2 + $0x90] sm:$0xff]
        %v4368 = vld [vmem:[#allocation2 + $0x98] sm:$0xff]
        %v4369 = vld [vmem:[#allocation2 + $0xa0] sm:$0xff]
        %v4370 = vld [vmem:[#allocation2 + $0xa8] sm:$0xff]
        %v4371 = vld [vmem:[#allocation2 + $0xb0] sm:$0xff]
        %v4372 = vld [vmem:[#allocation2 + $0xb8] sm:$0xff]
        %v4373 = vld [vmem:[#allocation2 + $0xc0] sm:$0xff]
        %v4374 = vld [vmem:[#allocation2 + $0xc8] sm:$0xff]
        %v4375 = vld [vmem:[#allocation2 + $0xd0] sm:$0xff]
        %v4376 = vld [vmem:[#allocation2 + $0xd8] sm:$0xff]
        %v4377 = vld [vmem:[#allocation2 + $0xe0] sm:$0xff]
        %v4378 = vld [vmem:[#allocation2 + $0xe8] sm:$0xff]
        %v4379 = vld [vmem:[#allocation2 + $0xf0] sm:$0xff]
        %v4380 = vld [vmem:[#allocation2 + $0xf8] sm:$0xff]
        %v4381 = vld [vmem:[#allocation2 + $0x100] sm:$0xff]
        %v4382 = vld [vmem:[#allocation2 + $0x108] sm:$0xff]
        %v4383 = vld [vmem:[#allocation2 + $0x110] sm:$0xff]
        %v4384 = vld [vmem:[#allocation2 + $0x118] sm:$0xff]
        %v4385 = vld [vmem:[#allocation2 + $0x120] sm:$0xff]
        %v4386 = vld [vmem:[#allocation2 + $0x128] sm:$0xff]
        %v4387 = vld [vmem:[#allocation2 + $0x130] sm:$0xff]
        %v4388 = vld [vmem:[#allocation2 + $0x138] sm:$0xff]
        %v4389 = vld [vmem:[#allocation2 + $0x140] sm:$0xff]
        %v4390 = vld [vmem:[#allocation2 + $0x148] sm:$0xff]
        %v4391 = vld [vmem:[#allocation2 + $0x150] sm:$0xff]
        %v4392 = vld [vmem:[#allocation2 + $0x158] sm:$0xff]
        %v4393 = vld [vmem:[#allocation2 + $0x160] sm:$0xff]
        %v4394 = vld [vmem:[#allocation2 + $0x168] sm:$0xff]
        %v4395 = vld [vmem:[#allocation2 + $0x170] sm:$0xff]
        %v4396 = vld [vmem:[#allocation2 + $0x178] sm:$0xff]
        %v4397 = vrot.slane %v4349, 7
        %v4398 = vrot.slane %v4352, 7
        %v4399 = vrot.slane %v4355, 7
        %v4400 = vrot.slane %v4358, 7
        %v4401 = vrot.slane %v4361, 7
        %v4402 = vrot.slane %v4364, 7
        %v4403 = vrot.slane %v4367, 7
        %v4404 = vrot.slane %v4370, 7
        %v4405 = vrot.slane %v4373, 7
        %v4406 = vrot.slane %v4376, 7
        %v4407 = vrot.slane %v4379, 7
        %v4408 = vrot.slane %v4382, 7
        %v4409 = vrot.slane %v4385, 7
        %v4410 = vrot.slane %v4388, 7
        %v4411 = vrot.slane %v4391, 7
        %v4412 = vrot.slane %v4394, 7
        %v4413 = vrot.slane %v4350, 7
        %v4414 = vrot.slane %v4353, 7
        %v4415 = vrot.slane %v4356, 7
        %v4416 = vrot.slane %v4359, 7
        %v4417 = vrot.slane %v4362, 7
        %v4418 = vrot.slane %v4365, 7
        %v4419 = vrot.slane %v4368, 7
        %v4420 = vrot.slane %v4371, 7
        %v4421 = vrot.slane %v4374, 7
        %v4422 = vrot.slane %v4377, 7
        %v4423 = vrot.slane %v4380, 7
        %v4424 = vrot.slane %v4383, 7
        %v4425 = vrot.slane %v4386, 7
        %v4426 = vrot.slane %v4389, 7
        %v4427 = vrot.slane %v4392, 7
        %v4428 = vrot.slane %v4395, 7
        %v4429 = vrot.slane %v4351, 7
        %v4430 = vrot.slane %v4354, 7
        %v4431 = vrot.slane %v4357, 7
        %v4432 = vrot.slane %v4360, 7
        %v4433 = vrot.slane %v4363, 7
        %v4434 = vrot.slane %v4366, 7
        %v4435 = vrot.slane %v4369, 7
        %v4436 = vrot.slane %v4372, 7
        %v4437 = vrot.slane %v4375, 7
        %v4438 = vrot.slane %v4378, 7
        %v4439 = vrot.slane %v4381, 7
        %v4440 = vrot.slane %v4384, 7
        %v4441 = vrot.slane %v4387, 7
        %v4442 = vrot.slane %v4390, 7
        %v4443 = vrot.slane %v4393, 7
        %v4444 = vrot.slane %v4396, 7
        %v4445 = vsel %vm812, %v4397, %v4413
        %v4446 = vsel %vm812, %v4398, %v4414
        %v4447 = vsel %vm812, %v4399, %v4415
        %v4448 = vsel %vm812, %v4400, %v4416
        %v4449 = vsel %vm812, %v4401, %v4417
        %v4450 = vsel %vm812, %v4402, %v4418
        %v4451 = vsel %vm812, %v4403, %v4419
        %v4452 = vsel %vm812, %v4404, %v4420
        %v4453 = vsel %vm812, %v4405, %v4421
        %v4454 = vsel %vm812, %v4406, %v4422
        %v4455 = vsel %vm812, %v4407, %v4423
        %v4456 = vsel %vm812, %v4408, %v4424
        %v4457 = vsel %vm812, %v4409, %v4425
        %v4458 = vsel %vm812, %v4410, %v4426
        %v4459 = vsel %vm812, %v4411, %v4427
        %v4460 = vsel %vm812, %v4412, %v4428
        %v4461 = vsel %vm812, %v4429, %v4397
        %v4462 = vsel %vm812, %v4430, %v4398
        %v4463 = vsel %vm812, %v4431, %v4399
        %v4464 = vsel %vm812, %v4432, %v4400
        %v4465 = vsel %vm812, %v4433, %v4401
        %v4466 = vsel %vm812, %v4434, %v4402
        %v4467 = vsel %vm812, %v4435, %v4403
        %v4468 = vsel %vm812, %v4436, %v4404
        %v4469 = vsel %vm812, %v4437, %v4405
        %v4470 = vsel %vm812, %v4438, %v4406
        %v4471 = vsel %vm812, %v4439, %v4407
        %v4472 = vsel %vm812, %v4440, %v4408
        %v4473 = vsel %vm812, %v4441, %v4409
        %v4474 = vsel %vm812, %v4442, %v4410
        %v4475 = vsel %vm812, %v4443, %v4411
        %v4476 = vsel %vm812, %v4444, %v4412
        %v4477 = vrot.slane %v4349, 1
        %v4478 = vrot.slane %v4352, 1
        %v4479 = vrot.slane %v4355, 1
        %v4480 = vrot.slane %v4358, 1
        %v4481 = vrot.slane %v4361, 1
        %v4482 = vrot.slane %v4364, 1
        %v4483 = vrot.slane %v4367, 1
        %v4484 = vrot.slane %v4370, 1
        %v4485 = vrot.slane %v4373, 1
        %v4486 = vrot.slane %v4376, 1
        %v4487 = vrot.slane %v4379, 1
        %v4488 = vrot.slane %v4382, 1
        %v4489 = vrot.slane %v4385, 1
        %v4490 = vrot.slane %v4388, 1
        %v4491 = vrot.slane %v4391, 1
        %v4492 = vrot.slane %v4394, 1
        %v4493 = vrot.slane %v4350, 1
        %v4494 = vrot.slane %v4353, 1
        %v4495 = vrot.slane %v4356, 1
        %v4496 = vrot.slane %v4359, 1
        %v4497 = vrot.slane %v4362, 1
        %v4498 = vrot.slane %v4365, 1
        %v4499 = vrot.slane %v4368, 1
        %v4500 = vrot.slane %v4371, 1
        %v4501 = vrot.slane %v4374, 1
        %v4502 = vrot.slane %v4377, 1
        %v4503 = vrot.slane %v4380, 1
        %v4504 = vrot.slane %v4383, 1
        %v4505 = vrot.slane %v4386, 1
        %v4506 = vrot.slane %v4389, 1
        %v4507 = vrot.slane %v4392, 1
        %v4508 = vrot.slane %v4395, 1
        %v4509 = vrot.slane %v4351, 1
        %v4510 = vrot.slane %v4354, 1
        %v4511 = vrot.slane %v4357, 1
        %v4512 = vrot.slane %v4360, 1
        %v4513 = vrot.slane %v4363, 1
        %v4514 = vrot.slane %v4366, 1
        %v4515 = vrot.slane %v4369, 1
        %v4516 = vrot.slane %v4372, 1
        %v4517 = vrot.slane %v4375, 1
        %v4518 = vrot.slane %v4378, 1
        %v4519 = vrot.slane %v4381, 1
        %v4520 = vrot.slane %v4384, 1
        %v4521 = vrot.slane %v4387, 1
        %v4522 = vrot.slane %v4390, 1
        %v4523 = vrot.slane %v4393, 1
        %v4524 = vrot.slane %v4396, 1
        %v4525 = vsel %vm893, %v4493, %v4509
        %v4526 = vsel %vm893, %v4494, %v4510
        %v4527 = vsel %vm893, %v4495, %v4511
        %v4528 = vsel %vm893, %v4496, %v4512
        %v4529 = vsel %vm893, %v4497, %v4513
        %v4530 = vsel %vm893, %v4498, %v4514
        %v4531 = vsel %vm893, %v4499, %v4515
        %v4532 = vsel %vm893, %v4500, %v4516
        %v4533 = vsel %vm893, %v4501, %v4517
        %v4534 = vsel %vm893, %v4502, %v4518
        %v4535 = vsel %vm893, %v4503, %v4519
        %v4536 = vsel %vm893, %v4504, %v4520
        %v4537 = vsel %vm893, %v4505, %v4521
        %v4538 = vsel %vm893, %v4506, %v4522
        %v4539 = vsel %vm893, %v4507, %v4523
        %v4540 = vsel %vm893, %v4508, %v4524
        %v4541 = vsel %vm893, %v4477, %v4493
        %v4542 = vsel %vm893, %v4478, %v4494
        %v4543 = vsel %vm893, %v4479, %v4495
        %v4544 = vsel %vm893, %v4480, %v4496
        %v4545 = vsel %vm893, %v4481, %v4497
        %v4546 = vsel %vm893, %v4482, %v4498
        %v4547 = vsel %vm893, %v4483, %v4499
        %v4548 = vsel %vm893, %v4484, %v4500
        %v4549 = vsel %vm893, %v4485, %v4501
        %v4550 = vsel %vm893, %v4486, %v4502
        %v4551 = vsel %vm893, %v4487, %v4503
        %v4552 = vsel %vm893, %v4488, %v4504
        %v4553 = vsel %vm893, %v4489, %v4505
        %v4554 = vsel %vm893, %v4490, %v4506
        %v4555 = vsel %vm893, %v4491, %v4507
        %v4556 = vsel %vm893, %v4492, %v4508
        %v4557 = vlaneseq
        %v4558 = vshrl.u32 %v4557, 7
        %v4559 = vsub.s32 0, %v4558
        %v4560 = vrot.slane %v4315, %v4559
        %v4561 = vmul.f32 %v4461, %v4560
        %v4562 = vmul.f32 %v4445, %v4560
        %v4563 = vmul.f32 %v4462, %v4560
        %v4564 = vmul.f32 %v4446, %v4560
        %v4565 = vmul.f32 %v4463, %v4560
        %v4566 = vmul.f32 %v4447, %v4560
        %v4567 = vmul.f32 %v4464, %v4560
        %v4568 = vmul.f32 %v4448, %v4560
        %v4569 = vmul.f32 %v4465, %v4560
        %v4570 = vmul.f32 %v4449, %v4560
        %v4571 = vmul.f32 %v4466, %v4560
        %v4572 = vmul.f32 %v4450, %v4560
        %v4573 = vmul.f32 %v4467, %v4560
        %v4574 = vmul.f32 %v4451, %v4560
        %v4575 = vmul.f32 %v4468, %v4560
        %v4576 = vmul.f32 %v4452, %v4560
        %v4577 = vmul.f32 %v4469, %v4560
        %v4578 = vmul.f32 %v4453, %v4560
        %v4579 = vmul.f32 %v4470, %v4560
        %v4580 = vmul.f32 %v4454, %v4560
        %v4581 = vmul.f32 %v4471, %v4560
        %v4582 = vmul.f32 %v4455, %v4560
        %v4583 = vmul.f32 %v4472, %v4560
        %v4584 = vmul.f32 %v4456, %v4560
        %v4585 = vmul.f32 %v4473, %v4560
        %v4586 = vmul.f32 %v4457, %v4560
        %v4587 = vmul.f32 %v4474, %v4560
        %v4588 = vmul.f32 %v4458, %v4560
        %v4589 = vmul.f32 %v4475, %v4560
        %v4590 = vmul.f32 %v4459, %v4560
        %v4591 = vmul.f32 %v4476, %v4560
        %v4592 = vmul.f32 %v4460, %v4560
        %v4593 = vlaneseq
        %v4594 = vshrl.u32 %v4593, 7
        %v4595 = vsub.s32 1, %v4594
        %v4596 = vrot.slane %v4315, %v4595
        %v4597 = vmul.f32 %v4349, %v4596
        %v4598 = vmul.f32 %v4350, %v4596
        %v4599 = vmul.f32 %v4352, %v4596
        %v4600 = vmul.f32 %v4353, %v4596
        %v4601 = vmul.f32 %v4355, %v4596
        %v4602 = vmul.f32 %v4356, %v4596
        %v4603 = vmul.f32 %v4358, %v4596
        %v4604 = vmul.f32 %v4359, %v4596
        %v4605 = vmul.f32 %v4361, %v4596
        %v4606 = vmul.f32 %v4362, %v4596
        %v4607 = vmul.f32 %v4364, %v4596
        %v4608 = vmul.f32 %v4365, %v4596
        %v4609 = vmul.f32 %v4367, %v4596
        %v4610 = vmul.f32 %v4368, %v4596
        %v4611 = vmul.f32 %v4370, %v4596
        %v4612 = vmul.f32 %v4371, %v4596
        %v4613 = vmul.f32 %v4373, %v4596
        %v4614 = vmul.f32 %v4374, %v4596
        %v4615 = vmul.f32 %v4376, %v4596
        %v4616 = vmul.f32 %v4377, %v4596
        %v4617 = vmul.f32 %v4379, %v4596
        %v4618 = vmul.f32 %v4380, %v4596
        %v4619 = vmul.f32 %v4382, %v4596
        %v4620 = vmul.f32 %v4383, %v4596
        %v4621 = vmul.f32 %v4385, %v4596
        %v4622 = vmul.f32 %v4386, %v4596
        %v4623 = vmul.f32 %v4388, %v4596
        %v4624 = vmul.f32 %v4389, %v4596
        %v4625 = vmul.f32 %v4391, %v4596
        %v4626 = vmul.f32 %v4392, %v4596
        %v4627 = vmul.f32 %v4394, %v4596
        %v4628 = vmul.f32 %v4395, %v4596
        %v4629 = vadd.f32 %v4561, %v4597
        %v4630 = vadd.f32 %v4562, %v4598
        %v4631 = vadd.f32 %v4563, %v4599
        %v4632 = vadd.f32 %v4564, %v4600
        %v4633 = vadd.f32 %v4565, %v4601
        %v4634 = vadd.f32 %v4566, %v4602
        %v4635 = vadd.f32 %v4567, %v4603
        %v4636 = vadd.f32 %v4568, %v4604
        %v4637 = vadd.f32 %v4569, %v4605
        %v4638 = vadd.f32 %v4570, %v4606
        %v4639 = vadd.f32 %v4571, %v4607
        %v4640 = vadd.f32 %v4572, %v4608
        %v4641 = vadd.f32 %v4573, %v4609
        %v4642 = vadd.f32 %v4574, %v4610
        %v4643 = vadd.f32 %v4575, %v4611
        %v4644 = vadd.f32 %v4576, %v4612
        %v4645 = vadd.f32 %v4577, %v4613
        %v4646 = vadd.f32 %v4578, %v4614
        %v4647 = vadd.f32 %v4579, %v4615
        %v4648 = vadd.f32 %v4580, %v4616
        %v4649 = vadd.f32 %v4581, %v4617
        %v4650 = vadd.f32 %v4582, %v4618
        %v4651 = vadd.f32 %v4583, %v4619
        %v4652 = vadd.f32 %v4584, %v4620
        %v4653 = vadd.f32 %v4585, %v4621
        %v4654 = vadd.f32 %v4586, %v4622
        %v4655 = vadd.f32 %v4587, %v4623
        %v4656 = vadd.f32 %v4588, %v4624
        %v4657 = vadd.f32 %v4589, %v4625
        %v4658 = vadd.f32 %v4590, %v4626
        %v4659 = vadd.f32 %v4591, %v4627
        %v4660 = vadd.f32 %v4592, %v4628
        %v4661 = vlaneseq
        %v4662 = vshrl.u32 %v4661, 7
        %v4663 = vsub.s32 2, %v4662
        %v4664 = vrot.slane %v4315, %v4663
        %v4665 = vmul.f32 %v4541, %v4664
        %v4666 = vmul.f32 %v4525, %v4664
        %v4667 = vmul.f32 %v4542, %v4664
        %v4668 = vmul.f32 %v4526, %v4664
        %v4669 = vmul.f32 %v4543, %v4664
        %v4670 = vmul.f32 %v4527, %v4664
        %v4671 = vmul.f32 %v4544, %v4664
        %v4672 = vmul.f32 %v4528, %v4664
        %v4673 = vmul.f32 %v4545, %v4664
        %v4674 = vmul.f32 %v4529, %v4664
        %v4675 = vmul.f32 %v4546, %v4664
        %v4676 = vmul.f32 %v4530, %v4664
        %v4677 = vmul.f32 %v4547, %v4664
        %v4678 = vmul.f32 %v4531, %v4664
        %v4679 = vmul.f32 %v4548, %v4664
        %v4680 = vmul.f32 %v4532, %v4664
        %v4681 = vmul.f32 %v4549, %v4664
        %v4682 = vmul.f32 %v4533, %v4664
        %v4683 = vmul.f32 %v4550, %v4664
        %v4684 = vmul.f32 %v4534, %v4664
        %v4685 = vmul.f32 %v4551, %v4664
        %v4686 = vmul.f32 %v4535, %v4664
        %v4687 = vmul.f32 %v4552, %v4664
        %v4688 = vmul.f32 %v4536, %v4664
        %v4689 = vmul.f32 %v4553, %v4664
        %v4690 = vmul.f32 %v4537, %v4664
        %v4691 = vmul.f32 %v4554, %v4664
        %v4692 = vmul.f32 %v4538, %v4664
        %v4693 = vmul.f32 %v4555, %v4664
        %v4694 = vmul.f32 %v4539, %v4664
        %v4695 = vmul.f32 %v4556, %v4664
        %v4696 = vmul.f32 %v4540, %v4664
        %v4697 = vadd.f32 %v4629, %v4665
        %v4698 = vadd.f32 %v4630, %v4666
        %v4699 = vadd.f32 %v4631, %v4667
        %v4700 = vadd.f32 %v4632, %v4668
        %v4701 = vadd.f32 %v4633, %v4669
        %v4702 = vadd.f32 %v4634, %v4670
        %v4703 = vadd.f32 %v4635, %v4671
        %v4704 = vadd.f32 %v4636, %v4672
        %v4705 = vadd.f32 %v4637, %v4673
        %v4706 = vadd.f32 %v4638, %v4674
        %v4707 = vadd.f32 %v4639, %v4675
        %v4708 = vadd.f32 %v4640, %v4676
        %v4709 = vadd.f32 %v4641, %v4677
        %v4710 = vadd.f32 %v4642, %v4678
        %v4711 = vadd.f32 %v4643, %v4679
        %v4712 = vadd.f32 %v4644, %v4680
        %v4713 = vadd.f32 %v4645, %v4681
        %v4714 = vadd.f32 %v4646, %v4682
        %v4715 = vadd.f32 %v4647, %v4683
        %v4716 = vadd.f32 %v4648, %v4684
        %v4717 = vadd.f32 %v4649, %v4685
        %v4718 = vadd.f32 %v4650, %v4686
        %v4719 = vadd.f32 %v4651, %v4687
        %v4720 = vadd.f32 %v4652, %v4688
        %v4721 = vadd.f32 %v4653, %v4689
        %v4722 = vadd.f32 %v4654, %v4690
        %v4723 = vadd.f32 %v4655, %v4691
        %v4724 = vadd.f32 %v4656, %v4692
        %v4725 = vadd.f32 %v4657, %v4693
        %v4726 = vadd.f32 %v4658, %v4694
        %v4727 = vadd.f32 %v4659, %v4695
        %v4728 = vadd.f32 %v4660, %v4696
        %v4729 = vld [vmem:[%s631] sm:$0xff]
        %v4730 = vld [vmem:[%s631 + $0x8] sm:$0xff]
        %v4731 = vld [vmem:[%s631 + $0x10] sm:$0xff]
        %v4732 = vld [vmem:[%s631 + $0x18] sm:$0xff]
        %v4733 = vld [vmem:[%s631 + $0x20] sm:$0xff]
        %v4734 = vld [vmem:[%s631 + $0x28] sm:$0xff]
        %v4735 = vld [vmem:[%s631 + $0x30] sm:$0xff]
        %v4736 = vld [vmem:[%s631 + $0x38] sm:$0xff]
        %v4737 = vld [vmem:[%s631 + $0x40] sm:$0xff]
        %v4738 = vld [vmem:[%s631 + $0x48] sm:$0xff]
        %v4739 = vld [vmem:[%s631 + $0x50] sm:$0xff]
        %v4740 = vld [vmem:[%s631 + $0x58] sm:$0xff]
        %v4741 = vld [vmem:[%s631 + $0x60] sm:$0xff]
        %v4742 = vld [vmem:[%s631 + $0x68] sm:$0xff]
        %v4743 = vld [vmem:[%s631 + $0x70] sm:$0xff]
        %v4744 = vld [vmem:[%s631 + $0x78] sm:$0xff]
        %v4745 = vld [vmem:[%s631 + $0x80] sm:$0xff]
        %v4746 = vld [vmem:[%s631 + $0x88] sm:$0xff]
        %v4747 = vld [vmem:[%s631 + $0x90] sm:$0xff]
        %v4748 = vld [vmem:[%s631 + $0x98] sm:$0xff]
        %v4749 = vld [vmem:[%s631 + $0xa0] sm:$0xff]
        %v4750 = vld [vmem:[%s631 + $0xa8] sm:$0xff]
        %v4751 = vld [vmem:[%s631 + $0xb0] sm:$0xff]
        %v4752 = vld [vmem:[%s631 + $0xb8] sm:$0xff]
        %v4753 = vld [vmem:[%s631 + $0xc0] sm:$0xff]
        %v4754 = vld [vmem:[%s631 + $0xc8] sm:$0xff]
        %v4755 = vld [vmem:[%s631 + $0xd0] sm:$0xff]
        %v4756 = vld [vmem:[%s631 + $0xd8] sm:$0xff]
        %v4757 = vld [vmem:[%s631 + $0xe0] sm:$0xff]
        %v4758 = vld [vmem:[%s631 + $0xe8] sm:$0xff]
        %v4759 = vld [vmem:[%s631 + $0xf0] sm:$0xff]
        %v4760 = vld [vmem:[%s631 + $0xf8] sm:$0xff]
        %v4761 = vld [vmem:[%s631 + $0x100] sm:$0xff]
        %v4762 = vld [vmem:[%s631 + $0x108] sm:$0xff]
        %v4763 = vld [vmem:[%s631 + $0x110] sm:$0xff]
        %v4764 = vld [vmem:[%s631 + $0x118] sm:$0xff]
        %v4765 = vld [vmem:[%s631 + $0x120] sm:$0xff]
        %v4766 = vld [vmem:[%s631 + $0x128] sm:$0xff]
        %v4767 = vld [vmem:[%s631 + $0x130] sm:$0xff]
        %v4768 = vld [vmem:[%s631 + $0x138] sm:$0xff]
        %v4769 = vld [vmem:[%s631 + $0x140] sm:$0xff]
        %v4770 = vld [vmem:[%s631 + $0x148] sm:$0xff]
        %v4771 = vld [vmem:[%s631 + $0x150] sm:$0xff]
        %v4772 = vld [vmem:[%s631 + $0x158] sm:$0xff]
        %v4773 = vld [vmem:[%s631 + $0x160] sm:$0xff]
        %v4774 = vld [vmem:[%s631 + $0x168] sm:$0xff]
        %v4775 = vld [vmem:[%s631 + $0x170] sm:$0xff]
        %v4776 = vld [vmem:[%s631 + $0x178] sm:$0xff]
        %v4777 = vrot.slane %v4729, 7
        %v4778 = vrot.slane %v4732, 7
        %v4779 = vrot.slane %v4735, 7
        %v4780 = vrot.slane %v4738, 7
        %v4781 = vrot.slane %v4741, 7
        %v4782 = vrot.slane %v4744, 7
        %v4783 = vrot.slane %v4747, 7
        %v4784 = vrot.slane %v4750, 7
        %v4785 = vrot.slane %v4753, 7
        %v4786 = vrot.slane %v4756, 7
        %v4787 = vrot.slane %v4759, 7
        %v4788 = vrot.slane %v4762, 7
        %v4789 = vrot.slane %v4765, 7
        %v4790 = vrot.slane %v4768, 7
        %v4791 = vrot.slane %v4771, 7
        %v4792 = vrot.slane %v4774, 7
        %v4793 = vrot.slane %v4730, 7
        %v4794 = vrot.slane %v4733, 7
        %v4795 = vrot.slane %v4736, 7
        %v4796 = vrot.slane %v4739, 7
        %v4797 = vrot.slane %v4742, 7
        %v4798 = vrot.slane %v4745, 7
        %v4799 = vrot.slane %v4748, 7
        %v4800 = vrot.slane %v4751, 7
        %v4801 = vrot.slane %v4754, 7
        %v4802 = vrot.slane %v4757, 7
        %v4803 = vrot.slane %v4760, 7
        %v4804 = vrot.slane %v4763, 7
        %v4805 = vrot.slane %v4766, 7
        %v4806 = vrot.slane %v4769, 7
        %v4807 = vrot.slane %v4772, 7
        %v4808 = vrot.slane %v4775, 7
        %v4809 = vrot.slane %v4731, 7
        %v4810 = vrot.slane %v4734, 7
        %v4811 = vrot.slane %v4737, 7
        %v4812 = vrot.slane %v4740, 7
        %v4813 = vrot.slane %v4743, 7
        %v4814 = vrot.slane %v4746, 7
        %v4815 = vrot.slane %v4749, 7
        %v4816 = vrot.slane %v4752, 7
        %v4817 = vrot.slane %v4755, 7
        %v4818 = vrot.slane %v4758, 7
        %v4819 = vrot.slane %v4761, 7
        %v4820 = vrot.slane %v4764, 7
        %v4821 = vrot.slane %v4767, 7
        %v4822 = vrot.slane %v4770, 7
        %v4823 = vrot.slane %v4773, 7
        %v4824 = vrot.slane %v4776, 7
        %v4825 = vsel %vm812, %v4777, %v4793
        %v4826 = vsel %vm812, %v4778, %v4794
        %v4827 = vsel %vm812, %v4779, %v4795
        %v4828 = vsel %vm812, %v4780, %v4796
        %v4829 = vsel %vm812, %v4781, %v4797
        %v4830 = vsel %vm812, %v4782, %v4798
        %v4831 = vsel %vm812, %v4783, %v4799
        %v4832 = vsel %vm812, %v4784, %v4800
        %v4833 = vsel %vm812, %v4785, %v4801
        %v4834 = vsel %vm812, %v4786, %v4802
        %v4835 = vsel %vm812, %v4787, %v4803
        %v4836 = vsel %vm812, %v4788, %v4804
        %v4837 = vsel %vm812, %v4789, %v4805
        %v4838 = vsel %vm812, %v4790, %v4806
        %v4839 = vsel %vm812, %v4791, %v4807
        %v4840 = vsel %vm812, %v4792, %v4808
        %v4841 = vsel %vm812, %v4809, %v4777
        %v4842 = vsel %vm812, %v4810, %v4778
        %v4843 = vsel %vm812, %v4811, %v4779
        %v4844 = vsel %vm812, %v4812, %v4780
        %v4845 = vsel %vm812, %v4813, %v4781
        %v4846 = vsel %vm812, %v4814, %v4782
        %v4847 = vsel %vm812, %v4815, %v4783
        %v4848 = vsel %vm812, %v4816, %v4784
        %v4849 = vsel %vm812, %v4817, %v4785
        %v4850 = vsel %vm812, %v4818, %v4786
        %v4851 = vsel %vm812, %v4819, %v4787
        %v4852 = vsel %vm812, %v4820, %v4788
        %v4853 = vsel %vm812, %v4821, %v4789
        %v4854 = vsel %vm812, %v4822, %v4790
        %v4855 = vsel %vm812, %v4823, %v4791
        %v4856 = vsel %vm812, %v4824, %v4792
        %v4857 = vrot.slane %v4729, 1
        %v4858 = vrot.slane %v4732, 1
        %v4859 = vrot.slane %v4735, 1
        %v4860 = vrot.slane %v4738, 1
        %v4861 = vrot.slane %v4741, 1
        %v4862 = vrot.slane %v4744, 1
        %v4863 = vrot.slane %v4747, 1
        %v4864 = vrot.slane %v4750, 1
        %v4865 = vrot.slane %v4753, 1
        %v4866 = vrot.slane %v4756, 1
        %v4867 = vrot.slane %v4759, 1
        %v4868 = vrot.slane %v4762, 1
        %v4869 = vrot.slane %v4765, 1
        %v4870 = vrot.slane %v4768, 1
        %v4871 = vrot.slane %v4771, 1
        %v4872 = vrot.slane %v4774, 1
        %v4873 = vrot.slane %v4730, 1
        %v4874 = vrot.slane %v4733, 1
        %v4875 = vrot.slane %v4736, 1
        %v4876 = vrot.slane %v4739, 1
        %v4877 = vrot.slane %v4742, 1
        %v4878 = vrot.slane %v4745, 1
        %v4879 = vrot.slane %v4748, 1
        %v4880 = vrot.slane %v4751, 1
        %v4881 = vrot.slane %v4754, 1
        %v4882 = vrot.slane %v4757, 1
        %v4883 = vrot.slane %v4760, 1
        %v4884 = vrot.slane %v4763, 1
        %v4885 = vrot.slane %v4766, 1
        %v4886 = vrot.slane %v4769, 1
        %v4887 = vrot.slane %v4772, 1
        %v4888 = vrot.slane %v4775, 1
        %v4889 = vrot.slane %v4731, 1
        %v4890 = vrot.slane %v4734, 1
        %v4891 = vrot.slane %v4737, 1
        %v4892 = vrot.slane %v4740, 1
        %v4893 = vrot.slane %v4743, 1
        %v4894 = vrot.slane %v4746, 1
        %v4895 = vrot.slane %v4749, 1
        %v4896 = vrot.slane %v4752, 1
        %v4897 = vrot.slane %v4755, 1
        %v4898 = vrot.slane %v4758, 1
        %v4899 = vrot.slane %v4761, 1
        %v4900 = vrot.slane %v4764, 1
        %v4901 = vrot.slane %v4767, 1
        %v4902 = vrot.slane %v4770, 1
        %v4903 = vrot.slane %v4773, 1
        %v4904 = vrot.slane %v4776, 1
        %v4905 = vsel %vm893, %v4873, %v4889
        %v4906 = vsel %vm893, %v4874, %v4890
        %v4907 = vsel %vm893, %v4875, %v4891
        %v4908 = vsel %vm893, %v4876, %v4892
        %v4909 = vsel %vm893, %v4877, %v4893
        %v4910 = vsel %vm893, %v4878, %v4894
        %v4911 = vsel %vm893, %v4879, %v4895
        %v4912 = vsel %vm893, %v4880, %v4896
        %v4913 = vsel %vm893, %v4881, %v4897
        %v4914 = vsel %vm893, %v4882, %v4898
        %v4915 = vsel %vm893, %v4883, %v4899
        %v4916 = vsel %vm893, %v4884, %v4900
        %v4917 = vsel %vm893, %v4885, %v4901
        %v4918 = vsel %vm893, %v4886, %v4902
        %v4919 = vsel %vm893, %v4887, %v4903
        %v4920 = vsel %vm893, %v4888, %v4904
        %v4921 = vsel %vm893, %v4857, %v4873
        %v4922 = vsel %vm893, %v4858, %v4874
        %v4923 = vsel %vm893, %v4859, %v4875
        %v4924 = vsel %vm893, %v4860, %v4876
        %v4925 = vsel %vm893, %v4861, %v4877
        %v4926 = vsel %vm893, %v4862, %v4878
        %v4927 = vsel %vm893, %v4863, %v4879
        %v4928 = vsel %vm893, %v4864, %v4880
        %v4929 = vsel %vm893, %v4865, %v4881
        %v4930 = vsel %vm893, %v4866, %v4882
        %v4931 = vsel %vm893, %v4867, %v4883
        %v4932 = vsel %vm893, %v4868, %v4884
        %v4933 = vsel %vm893, %v4869, %v4885
        %v4934 = vsel %vm893, %v4870, %v4886
        %v4935 = vsel %vm893, %v4871, %v4887
        %v4936 = vsel %vm893, %v4872, %v4888
        %v4937 = vlaneseq
        %v4938 = vshrl.u32 %v4937, 7
        %v4939 = vsub.s32 3, %v4938
        %v4940 = vrot.slane %v4315, %v4939
        %v4941 = vmul.f32 %v4841, %v4940
        %v4942 = vmul.f32 %v4825, %v4940
        %v4943 = vmul.f32 %v4842, %v4940
        %v4944 = vmul.f32 %v4826, %v4940
        %v4945 = vmul.f32 %v4843, %v4940
        %v4946 = vmul.f32 %v4827, %v4940
        %v4947 = vmul.f32 %v4844, %v4940
        %v4948 = vmul.f32 %v4828, %v4940
        %v4949 = vmul.f32 %v4845, %v4940
        %v4950 = vmul.f32 %v4829, %v4940
        %v4951 = vmul.f32 %v4846, %v4940
        %v4952 = vmul.f32 %v4830, %v4940
        %v4953 = vmul.f32 %v4847, %v4940
        %v4954 = vmul.f32 %v4831, %v4940
        %v4955 = vmul.f32 %v4848, %v4940
        %v4956 = vmul.f32 %v4832, %v4940
        %v4957 = vmul.f32 %v4849, %v4940
        %v4958 = vmul.f32 %v4833, %v4940
        %v4959 = vmul.f32 %v4850, %v4940
        %v4960 = vmul.f32 %v4834, %v4940
        %v4961 = vmul.f32 %v4851, %v4940
        %v4962 = vmul.f32 %v4835, %v4940
        %v4963 = vmul.f32 %v4852, %v4940
        %v4964 = vmul.f32 %v4836, %v4940
        %v4965 = vmul.f32 %v4853, %v4940
        %v4966 = vmul.f32 %v4837, %v4940
        %v4967 = vmul.f32 %v4854, %v4940
        %v4968 = vmul.f32 %v4838, %v4940
        %v4969 = vmul.f32 %v4855, %v4940
        %v4970 = vmul.f32 %v4839, %v4940
        %v4971 = vmul.f32 %v4856, %v4940
        %v4972 = vmul.f32 %v4840, %v4940
        %v4973 = vlaneseq
        %v4974 = vshrl.u32 %v4973, 7
        %v4975 = vsub.s32 4, %v4974
        %v4976 = vrot.slane %v4315, %v4975
        %v4977 = vmul.f32 %v4729, %v4976
        %v4978 = vmul.f32 %v4730, %v4976
        %v4979 = vmul.f32 %v4732, %v4976
        %v4980 = vmul.f32 %v4733, %v4976
        %v4981 = vmul.f32 %v4735, %v4976
        %v4982 = vmul.f32 %v4736, %v4976
        %v4983 = vmul.f32 %v4738, %v4976
        %v4984 = vmul.f32 %v4739, %v4976
        %v4985 = vmul.f32 %v4741, %v4976
        %v4986 = vmul.f32 %v4742, %v4976
        %v4987 = vmul.f32 %v4744, %v4976
        %v4988 = vmul.f32 %v4745, %v4976
        %v4989 = vmul.f32 %v4747, %v4976
        %v4990 = vmul.f32 %v4748, %v4976
        %v4991 = vmul.f32 %v4750, %v4976
        %v4992 = vmul.f32 %v4751, %v4976
        %v4993 = vmul.f32 %v4753, %v4976
        %v4994 = vmul.f32 %v4754, %v4976
        %v4995 = vmul.f32 %v4756, %v4976
        %v4996 = vmul.f32 %v4757, %v4976
        %v4997 = vmul.f32 %v4759, %v4976
        %v4998 = vmul.f32 %v4760, %v4976
        %v4999 = vmul.f32 %v4762, %v4976
        %v5000 = vmul.f32 %v4763, %v4976
        %v5001 = vmul.f32 %v4765, %v4976
        %v5002 = vmul.f32 %v4766, %v4976
        %v5003 = vmul.f32 %v4768, %v4976
        %v5004 = vmul.f32 %v4769, %v4976
        %v5005 = vmul.f32 %v4771, %v4976
        %v5006 = vmul.f32 %v4772, %v4976
        %v5007 = vmul.f32 %v4774, %v4976
        %v5008 = vmul.f32 %v4775, %v4976
        %v5009 = vadd.f32 %v4941, %v4977
        %v5010 = vadd.f32 %v4942, %v4978
        %v5011 = vadd.f32 %v4943, %v4979
        %v5012 = vadd.f32 %v4944, %v4980
        %v5013 = vadd.f32 %v4945, %v4981
        %v5014 = vadd.f32 %v4946, %v4982
        %v5015 = vadd.f32 %v4947, %v4983
        %v5016 = vadd.f32 %v4948, %v4984
        %v5017 = vadd.f32 %v4949, %v4985
        %v5018 = vadd.f32 %v4950, %v4986
        %v5019 = vadd.f32 %v4951, %v4987
        %v5020 = vadd.f32 %v4952, %v4988
        %v5021 = vadd.f32 %v4953, %v4989
        %v5022 = vadd.f32 %v4954, %v4990
        %v5023 = vadd.f32 %v4955, %v4991
        %v5024 = vadd.f32 %v4956, %v4992
        %v5025 = vadd.f32 %v4957, %v4993
        %v5026 = vadd.f32 %v4958, %v4994
        %v5027 = vadd.f32 %v4959, %v4995
        %v5028 = vadd.f32 %v4960, %v4996
        %v5029 = vadd.f32 %v4961, %v4997
        %v5030 = vadd.f32 %v4962, %v4998
        %v5031 = vadd.f32 %v4963, %v4999
        %v5032 = vadd.f32 %v4964, %v5000
        %v5033 = vadd.f32 %v4965, %v5001
        %v5034 = vadd.f32 %v4966, %v5002
        %v5035 = vadd.f32 %v4967, %v5003
        %v5036 = vadd.f32 %v4968, %v5004
        %v5037 = vadd.f32 %v4969, %v5005
        %v5038 = vadd.f32 %v4970, %v5006
        %v5039 = vadd.f32 %v4971, %v5007
        %v5040 = vadd.f32 %v4972, %v5008
        %v5041 = vlaneseq
        %v5042 = vshrl.u32 %v5041, 7
        %v5043 = vsub.s32 5, %v5042
        %v5044 = vrot.slane %v4315, %v5043
        %v5045 = vmul.f32 %v4921, %v5044
        %v5046 = vmul.f32 %v4905, %v5044
        %v5047 = vmul.f32 %v4922, %v5044
        %v5048 = vmul.f32 %v4906, %v5044
        %v5049 = vmul.f32 %v4923, %v5044
        %v5050 = vmul.f32 %v4907, %v5044
        %v5051 = vmul.f32 %v4924, %v5044
        %v5052 = vmul.f32 %v4908, %v5044
        %v5053 = vmul.f32 %v4925, %v5044
        %v5054 = vmul.f32 %v4909, %v5044
        %v5055 = vmul.f32 %v4926, %v5044
        %v5056 = vmul.f32 %v4910, %v5044
        %v5057 = vmul.f32 %v4927, %v5044
        %v5058 = vmul.f32 %v4911, %v5044
        %v5059 = vmul.f32 %v4928, %v5044
        %v5060 = vmul.f32 %v4912, %v5044
        %v5061 = vmul.f32 %v4929, %v5044
        %v5062 = vmul.f32 %v4913, %v5044
        %v5063 = vmul.f32 %v4930, %v5044
        %v5064 = vmul.f32 %v4914, %v5044
        %v5065 = vmul.f32 %v4931, %v5044
        %v5066 = vmul.f32 %v4915, %v5044
        %v5067 = vmul.f32 %v4932, %v5044
        %v5068 = vmul.f32 %v4916, %v5044
        %v5069 = vmul.f32 %v4933, %v5044
        %v5070 = vmul.f32 %v4917, %v5044
        %v5071 = vmul.f32 %v4934, %v5044
        %v5072 = vmul.f32 %v4918, %v5044
        %v5073 = vmul.f32 %v4935, %v5044
        %v5074 = vmul.f32 %v4919, %v5044
        %v5075 = vmul.f32 %v4936, %v5044
        %v5076 = vmul.f32 %v4920, %v5044
        %v5077 = vadd.f32 %v5009, %v5045
        %v5078 = vadd.f32 %v5010, %v5046
        %v5079 = vadd.f32 %v5011, %v5047
        %v5080 = vadd.f32 %v5012, %v5048
        %v5081 = vadd.f32 %v5013, %v5049
        %v5082 = vadd.f32 %v5014, %v5050
        %v5083 = vadd.f32 %v5015, %v5051
        %v5084 = vadd.f32 %v5016, %v5052
        %v5085 = vadd.f32 %v5017, %v5053
        %v5086 = vadd.f32 %v5018, %v5054
        %v5087 = vadd.f32 %v5019, %v5055
        %v5088 = vadd.f32 %v5020, %v5056
        %v5089 = vadd.f32 %v5021, %v5057
        %v5090 = vadd.f32 %v5022, %v5058
        %v5091 = vadd.f32 %v5023, %v5059
        %v5092 = vadd.f32 %v5024, %v5060
        %v5093 = vadd.f32 %v5025, %v5061
        %v5094 = vadd.f32 %v5026, %v5062
        %v5095 = vadd.f32 %v5027, %v5063
        %v5096 = vadd.f32 %v5028, %v5064
        %v5097 = vadd.f32 %v5029, %v5065
        %v5098 = vadd.f32 %v5030, %v5066
        %v5099 = vadd.f32 %v5031, %v5067
        %v5100 = vadd.f32 %v5032, %v5068
        %v5101 = vadd.f32 %v5033, %v5069
        %v5102 = vadd.f32 %v5034, %v5070
        %v5103 = vadd.f32 %v5035, %v5071
        %v5104 = vadd.f32 %v5036, %v5072
        %v5105 = vadd.f32 %v5037, %v5073
        %v5106 = vadd.f32 %v5038, %v5074
        %v5107 = vadd.f32 %v5039, %v5075
        %v5108 = vadd.f32 %v5040, %v5076
        %v5109 = vadd.f32 %v4697, %v5077
        %v5110 = vadd.f32 %v4698, %v5078
        %v5111 = vadd.f32 %v4699, %v5079
        %v5112 = vadd.f32 %v4700, %v5080
        %v5113 = vadd.f32 %v4701, %v5081
        %v5114 = vadd.f32 %v4702, %v5082
        %v5115 = vadd.f32 %v4703, %v5083
        %v5116 = vadd.f32 %v4704, %v5084
        %v5117 = vadd.f32 %v4705, %v5085
        %v5118 = vadd.f32 %v4706, %v5086
        %v5119 = vadd.f32 %v4707, %v5087
        %v5120 = vadd.f32 %v4708, %v5088
        %v5121 = vadd.f32 %v4709, %v5089
        %v5122 = vadd.f32 %v4710, %v5090
        %v5123 = vadd.f32 %v4711, %v5091
        %v5124 = vadd.f32 %v4712, %v5092
        %v5125 = vadd.f32 %v4713, %v5093
        %v5126 = vadd.f32 %v4714, %v5094
        %v5127 = vadd.f32 %v4715, %v5095
        %v5128 = vadd.f32 %v4716, %v5096
        %v5129 = vadd.f32 %v4717, %v5097
        %v5130 = vadd.f32 %v4718, %v5098
        %v5131 = vadd.f32 %v4719, %v5099
        %v5132 = vadd.f32 %v4720, %v5100
        %v5133 = vadd.f32 %v4721, %v5101
        %v5134 = vadd.f32 %v4722, %v5102
        %v5135 = vadd.f32 %v4723, %v5103
        %v5136 = vadd.f32 %v4724, %v5104
        %v5137 = vadd.f32 %v4725, %v5105
        %v5138 = vadd.f32 %v4726, %v5106
        %v5139 = vadd.f32 %v4727, %v5107
        %v5140 = vadd.f32 %v4728, %v5108
        %v5141 = vld [vmem:[%s1510] sm:$0xff]
        %v5142 = vld [vmem:[%s1510 + $0x8] sm:$0xff]
        %v5143 = vld [vmem:[%s1510 + $0x10] sm:$0xff]
        %v5144 = vld [vmem:[%s1510 + $0x18] sm:$0xff]
        %v5145 = vld [vmem:[%s1510 + $0x20] sm:$0xff]
        %v5146 = vld [vmem:[%s1510 + $0x28] sm:$0xff]
        %v5147 = vld [vmem:[%s1510 + $0x30] sm:$0xff]
        %v5148 = vld [vmem:[%s1510 + $0x38] sm:$0xff]
        %v5149 = vld [vmem:[%s1510 + $0x40] sm:$0xff]
        %v5150 = vld [vmem:[%s1510 + $0x48] sm:$0xff]
        %v5151 = vld [vmem:[%s1510 + $0x50] sm:$0xff]
        %v5152 = vld [vmem:[%s1510 + $0x58] sm:$0xff]
        %v5153 = vld [vmem:[%s1510 + $0x60] sm:$0xff]
        %v5154 = vld [vmem:[%s1510 + $0x68] sm:$0xff]
        %v5155 = vld [vmem:[%s1510 + $0x70] sm:$0xff]
        %v5156 = vld [vmem:[%s1510 + $0x78] sm:$0xff]
        %v5157 = vld [vmem:[%s1510 + $0x80] sm:$0xff]
        %v5158 = vld [vmem:[%s1510 + $0x88] sm:$0xff]
        %v5159 = vld [vmem:[%s1510 + $0x90] sm:$0xff]
        %v5160 = vld [vmem:[%s1510 + $0x98] sm:$0xff]
        %v5161 = vld [vmem:[%s1510 + $0xa0] sm:$0xff]
        %v5162 = vld [vmem:[%s1510 + $0xa8] sm:$0xff]
        %v5163 = vld [vmem:[%s1510 + $0xb0] sm:$0xff]
        %v5164 = vld [vmem:[%s1510 + $0xb8] sm:$0xff]
        %v5165 = vld [vmem:[%s1510 + $0xc0] sm:$0xff]
        %v5166 = vld [vmem:[%s1510 + $0xc8] sm:$0xff]
        %v5167 = vld [vmem:[%s1510 + $0xd0] sm:$0xff]
        %v5168 = vld [vmem:[%s1510 + $0xd8] sm:$0xff]
        %v5169 = vld [vmem:[%s1510 + $0xe0] sm:$0xff]
        %v5170 = vld [vmem:[%s1510 + $0xe8] sm:$0xff]
        %v5171 = vld [vmem:[%s1510 + $0xf0] sm:$0xff]
        %v5172 = vld [vmem:[%s1510 + $0xf8] sm:$0xff]
        %v5173 = vld [vmem:[%s1510 + $0x100] sm:$0xff]
        %v5174 = vld [vmem:[%s1510 + $0x108] sm:$0xff]
        %v5175 = vld [vmem:[%s1510 + $0x110] sm:$0xff]
        %v5176 = vld [vmem:[%s1510 + $0x118] sm:$0xff]
        %v5177 = vld [vmem:[%s1510 + $0x120] sm:$0xff]
        %v5178 = vld [vmem:[%s1510 + $0x128] sm:$0xff]
        %v5179 = vld [vmem:[%s1510 + $0x130] sm:$0xff]
        %v5180 = vld [vmem:[%s1510 + $0x138] sm:$0xff]
        %v5181 = vld [vmem:[%s1510 + $0x140] sm:$0xff]
        %v5182 = vld [vmem:[%s1510 + $0x148] sm:$0xff]
        %v5183 = vld [vmem:[%s1510 + $0x150] sm:$0xff]
        %v5184 = vld [vmem:[%s1510 + $0x158] sm:$0xff]
        %v5185 = vld [vmem:[%s1510 + $0x160] sm:$0xff]
        %v5186 = vld [vmem:[%s1510 + $0x168] sm:$0xff]
        %v5187 = vld [vmem:[%s1510 + $0x170] sm:$0xff]
        %v5188 = vld [vmem:[%s1510 + $0x178] sm:$0xff]
        %v5189 = vrot.slane %v5141, 7
        %v5190 = vrot.slane %v5144, 7
        %v5191 = vrot.slane %v5147, 7
        %v5192 = vrot.slane %v5150, 7
        %v5193 = vrot.slane %v5153, 7
        %v5194 = vrot.slane %v5156, 7
        %v5195 = vrot.slane %v5159, 7
        %v5196 = vrot.slane %v5162, 7
        %v5197 = vrot.slane %v5165, 7
        %v5198 = vrot.slane %v5168, 7
        %v5199 = vrot.slane %v5171, 7
        %v5200 = vrot.slane %v5174, 7
        %v5201 = vrot.slane %v5177, 7
        %v5202 = vrot.slane %v5180, 7
        %v5203 = vrot.slane %v5183, 7
        %v5204 = vrot.slane %v5186, 7
        %v5205 = vrot.slane %v5142, 7
        %v5206 = vrot.slane %v5145, 7
        %v5207 = vrot.slane %v5148, 7
        %v5208 = vrot.slane %v5151, 7
        %v5209 = vrot.slane %v5154, 7
        %v5210 = vrot.slane %v5157, 7
        %v5211 = vrot.slane %v5160, 7
        %v5212 = vrot.slane %v5163, 7
        %v5213 = vrot.slane %v5166, 7
        %v5214 = vrot.slane %v5169, 7
        %v5215 = vrot.slane %v5172, 7
        %v5216 = vrot.slane %v5175, 7
        %v5217 = vrot.slane %v5178, 7
        %v5218 = vrot.slane %v5181, 7
        %v5219 = vrot.slane %v5184, 7
        %v5220 = vrot.slane %v5187, 7
        %v5221 = vrot.slane %v5143, 7
        %v5222 = vrot.slane %v5146, 7
        %v5223 = vrot.slane %v5149, 7
        %v5224 = vrot.slane %v5152, 7
        %v5225 = vrot.slane %v5155, 7
        %v5226 = vrot.slane %v5158, 7
        %v5227 = vrot.slane %v5161, 7
        %v5228 = vrot.slane %v5164, 7
        %v5229 = vrot.slane %v5167, 7
        %v5230 = vrot.slane %v5170, 7
        %v5231 = vrot.slane %v5173, 7
        %v5232 = vrot.slane %v5176, 7
        %v5233 = vrot.slane %v5179, 7
        %v5234 = vrot.slane %v5182, 7
        %v5235 = vrot.slane %v5185, 7
        %v5236 = vrot.slane %v5188, 7
        %v5237 = vsel %vm812, %v5189, %v5205
        %v5238 = vsel %vm812, %v5190, %v5206
        %v5239 = vsel %vm812, %v5191, %v5207
        %v5240 = vsel %vm812, %v5192, %v5208
        %v5241 = vsel %vm812, %v5193, %v5209
        %v5242 = vsel %vm812, %v5194, %v5210
        %v5243 = vsel %vm812, %v5195, %v5211
        %v5244 = vsel %vm812, %v5196, %v5212
        %v5245 = vsel %vm812, %v5197, %v5213
        %v5246 = vsel %vm812, %v5198, %v5214
        %v5247 = vsel %vm812, %v5199, %v5215
        %v5248 = vsel %vm812, %v5200, %v5216
        %v5249 = vsel %vm812, %v5201, %v5217
        %v5250 = vsel %vm812, %v5202, %v5218
        %v5251 = vsel %vm812, %v5203, %v5219
        %v5252 = vsel %vm812, %v5204, %v5220
        %v5253 = vsel %vm812, %v5221, %v5189
        %v5254 = vsel %vm812, %v5222, %v5190
        %v5255 = vsel %vm812, %v5223, %v5191
        %v5256 = vsel %vm812, %v5224, %v5192
        %v5257 = vsel %vm812, %v5225, %v5193
        %v5258 = vsel %vm812, %v5226, %v5194
        %v5259 = vsel %vm812, %v5227, %v5195
        %v5260 = vsel %vm812, %v5228, %v5196
        %v5261 = vsel %vm812, %v5229, %v5197
        %v5262 = vsel %vm812, %v5230, %v5198
        %v5263 = vsel %vm812, %v5231, %v5199
        %v5264 = vsel %vm812, %v5232, %v5200
        %v5265 = vsel %vm812, %v5233, %v5201
        %v5266 = vsel %vm812, %v5234, %v5202
        %v5267 = vsel %vm812, %v5235, %v5203
        %v5268 = vsel %vm812, %v5236, %v5204
        %v5269 = vrot.slane %v5141, 1
        %v5270 = vrot.slane %v5144, 1
        %v5271 = vrot.slane %v5147, 1
        %v5272 = vrot.slane %v5150, 1
        %v5273 = vrot.slane %v5153, 1
        %v5274 = vrot.slane %v5156, 1
        %v5275 = vrot.slane %v5159, 1
        %v5276 = vrot.slane %v5162, 1
        %v5277 = vrot.slane %v5165, 1
        %v5278 = vrot.slane %v5168, 1
        %v5279 = vrot.slane %v5171, 1
        %v5280 = vrot.slane %v5174, 1
        %v5281 = vrot.slane %v5177, 1
        %v5282 = vrot.slane %v5180, 1
        %v5283 = vrot.slane %v5183, 1
        %v5284 = vrot.slane %v5186, 1
        %v5285 = vrot.slane %v5142, 1
        %v5286 = vrot.slane %v5145, 1
        %v5287 = vrot.slane %v5148, 1
        %v5288 = vrot.slane %v5151, 1
        %v5289 = vrot.slane %v5154, 1
        %v5290 = vrot.slane %v5157, 1
        %v5291 = vrot.slane %v5160, 1
        %v5292 = vrot.slane %v5163, 1
        %v5293 = vrot.slane %v5166, 1
        %v5294 = vrot.slane %v5169, 1
        %v5295 = vrot.slane %v5172, 1
        %v5296 = vrot.slane %v5175, 1
        %v5297 = vrot.slane %v5178, 1
        %v5298 = vrot.slane %v5181, 1
        %v5299 = vrot.slane %v5184, 1
        %v5300 = vrot.slane %v5187, 1
        %v5301 = vrot.slane %v5143, 1
        %v5302 = vrot.slane %v5146, 1
        %v5303 = vrot.slane %v5149, 1
        %v5304 = vrot.slane %v5152, 1
        %v5305 = vrot.slane %v5155, 1
        %v5306 = vrot.slane %v5158, 1
        %v5307 = vrot.slane %v5161, 1
        %v5308 = vrot.slane %v5164, 1
        %v5309 = vrot.slane %v5167, 1
        %v5310 = vrot.slane %v5170, 1
        %v5311 = vrot.slane %v5173, 1
        %v5312 = vrot.slane %v5176, 1
        %v5313 = vrot.slane %v5179, 1
        %v5314 = vrot.slane %v5182, 1
        %v5315 = vrot.slane %v5185, 1
        %v5316 = vrot.slane %v5188, 1
        %v5317 = vsel %vm893, %v5285, %v5301
        %v5318 = vsel %vm893, %v5286, %v5302
        %v5319 = vsel %vm893, %v5287, %v5303
        %v5320 = vsel %vm893, %v5288, %v5304
        %v5321 = vsel %vm893, %v5289, %v5305
        %v5322 = vsel %vm893, %v5290, %v5306
        %v5323 = vsel %vm893, %v5291, %v5307
        %v5324 = vsel %vm893, %v5292, %v5308
        %v5325 = vsel %vm893, %v5293, %v5309
        %v5326 = vsel %vm893, %v5294, %v5310
        %v5327 = vsel %vm893, %v5295, %v5311
        %v5328 = vsel %vm893, %v5296, %v5312
        %v5329 = vsel %vm893, %v5297, %v5313
        %v5330 = vsel %vm893, %v5298, %v5314
        %v5331 = vsel %vm893, %v5299, %v5315
        %v5332 = vsel %vm893, %v5300, %v5316
        %v5333 = vsel %vm893, %v5269, %v5285
        %v5334 = vsel %vm893, %v5270, %v5286
        %v5335 = vsel %vm893, %v5271, %v5287
        %v5336 = vsel %vm893, %v5272, %v5288
        %v5337 = vsel %vm893, %v5273, %v5289
        %v5338 = vsel %vm893, %v5274, %v5290
        %v5339 = vsel %vm893, %v5275, %v5291
        %v5340 = vsel %vm893, %v5276, %v5292
        %v5341 = vsel %vm893, %v5277, %v5293
        %v5342 = vsel %vm893, %v5278, %v5294
        %v5343 = vsel %vm893, %v5279, %v5295
        %v5344 = vsel %vm893, %v5280, %v5296
        %v5345 = vsel %vm893, %v5281, %v5297
        %v5346 = vsel %vm893, %v5282, %v5298
        %v5347 = vsel %vm893, %v5283, %v5299
        %v5348 = vsel %vm893, %v5284, %v5300
        %v5349 = vlaneseq
        %v5350 = vshrl.u32 %v5349, 7
        %v5351 = vsub.s32 6, %v5350
        %v5352 = vrot.slane %v4315, %v5351
        %v5353 = vmul.f32 %v5253, %v5352
        %v5354 = vmul.f32 %v5237, %v5352
        %v5355 = vmul.f32 %v5254, %v5352
        %v5356 = vmul.f32 %v5238, %v5352
        %v5357 = vmul.f32 %v5255, %v5352
        %v5358 = vmul.f32 %v5239, %v5352
        %v5359 = vmul.f32 %v5256, %v5352
        %v5360 = vmul.f32 %v5240, %v5352
        %v5361 = vmul.f32 %v5257, %v5352
        %v5362 = vmul.f32 %v5241, %v5352
        %v5363 = vmul.f32 %v5258, %v5352
        %v5364 = vmul.f32 %v5242, %v5352
        %v5365 = vmul.f32 %v5259, %v5352
        %v5366 = vmul.f32 %v5243, %v5352
        %v5367 = vmul.f32 %v5260, %v5352
        %v5368 = vmul.f32 %v5244, %v5352
        %v5369 = vmul.f32 %v5261, %v5352
        %v5370 = vmul.f32 %v5245, %v5352
        %v5371 = vmul.f32 %v5262, %v5352
        %v5372 = vmul.f32 %v5246, %v5352
        %v5373 = vmul.f32 %v5263, %v5352
        %v5374 = vmul.f32 %v5247, %v5352
        %v5375 = vmul.f32 %v5264, %v5352
        %v5376 = vmul.f32 %v5248, %v5352
        %v5377 = vmul.f32 %v5265, %v5352
        %v5378 = vmul.f32 %v5249, %v5352
        %v5379 = vmul.f32 %v5266, %v5352
        %v5380 = vmul.f32 %v5250, %v5352
        %v5381 = vmul.f32 %v5267, %v5352
        %v5382 = vmul.f32 %v5251, %v5352
        %v5383 = vmul.f32 %v5268, %v5352
        %v5384 = vmul.f32 %v5252, %v5352
        %v5385 = vlaneseq
        %v5386 = vshrl.u32 %v5385, 7
        %v5387 = vsub.s32 7, %v5386
        %v5388 = vrot.slane %v4315, %v5387
        %v5389 = vmul.f32 %v5141, %v5388
        %v5390 = vmul.f32 %v5142, %v5388
        %v5391 = vmul.f32 %v5144, %v5388
        %v5392 = vmul.f32 %v5145, %v5388
        %v5393 = vmul.f32 %v5147, %v5388
        %v5394 = vmul.f32 %v5148, %v5388
        %v5395 = vmul.f32 %v5150, %v5388
        %v5396 = vmul.f32 %v5151, %v5388
        %v5397 = vmul.f32 %v5153, %v5388
        %v5398 = vmul.f32 %v5154, %v5388
        %v5399 = vmul.f32 %v5156, %v5388
        %v5400 = vmul.f32 %v5157, %v5388
        %v5401 = vmul.f32 %v5159, %v5388
        %v5402 = vmul.f32 %v5160, %v5388
        %v5403 = vmul.f32 %v5162, %v5388
        %v5404 = vmul.f32 %v5163, %v5388
        %v5405 = vmul.f32 %v5165, %v5388
        %v5406 = vmul.f32 %v5166, %v5388
        %v5407 = vmul.f32 %v5168, %v5388
        %v5408 = vmul.f32 %v5169, %v5388
        %v5409 = vmul.f32 %v5171, %v5388
        %v5410 = vmul.f32 %v5172, %v5388
        %v5411 = vmul.f32 %v5174, %v5388
        %v5412 = vmul.f32 %v5175, %v5388
        %v5413 = vmul.f32 %v5177, %v5388
        %v5414 = vmul.f32 %v5178, %v5388
        %v5415 = vmul.f32 %v5180, %v5388
        %v5416 = vmul.f32 %v5181, %v5388
        %v5417 = vmul.f32 %v5183, %v5388
        %v5418 = vmul.f32 %v5184, %v5388
        %v5419 = vmul.f32 %v5186, %v5388
        %v5420 = vmul.f32 %v5187, %v5388
        %v5421 = vadd.f32 %v5353, %v5389
        %v5422 = vadd.f32 %v5354, %v5390
        %v5423 = vadd.f32 %v5355, %v5391
        %v5424 = vadd.f32 %v5356, %v5392
        %v5425 = vadd.f32 %v5357, %v5393
        %v5426 = vadd.f32 %v5358, %v5394
        %v5427 = vadd.f32 %v5359, %v5395
        %v5428 = vadd.f32 %v5360, %v5396
        %v5429 = vadd.f32 %v5361, %v5397
        %v5430 = vadd.f32 %v5362, %v5398
        %v5431 = vadd.f32 %v5363, %v5399
        %v5432 = vadd.f32 %v5364, %v5400
        %v5433 = vadd.f32 %v5365, %v5401
        %v5434 = vadd.f32 %v5366, %v5402
        %v5435 = vadd.f32 %v5367, %v5403
        %v5436 = vadd.f32 %v5368, %v5404
        %v5437 = vadd.f32 %v5369, %v5405
        %v5438 = vadd.f32 %v5370, %v5406
        %v5439 = vadd.f32 %v5371, %v5407
        %v5440 = vadd.f32 %v5372, %v5408
        %v5441 = vadd.f32 %v5373, %v5409
        %v5442 = vadd.f32 %v5374, %v5410
        %v5443 = vadd.f32 %v5375, %v5411
        %v5444 = vadd.f32 %v5376, %v5412
        %v5445 = vadd.f32 %v5377, %v5413
        %v5446 = vadd.f32 %v5378, %v5414
        %v5447 = vadd.f32 %v5379, %v5415
        %v5448 = vadd.f32 %v5380, %v5416
        %v5449 = vadd.f32 %v5381, %v5417
        %v5450 = vadd.f32 %v5382, %v5418
        %v5451 = vadd.f32 %v5383, %v5419
        %v5452 = vadd.f32 %v5384, %v5420
        %v5453 = vlaneseq
        %v5454 = vshrl.u32 %v5453, 7
        %v5455 = vsub.s32 0, %v5454
        %v5456 = vrot.slane %v4316, %v5455
        %v5457 = vmul.f32 %v5333, %v5456
        %v5458 = vmul.f32 %v5317, %v5456
        %v5459 = vmul.f32 %v5334, %v5456
        %v5460 = vmul.f32 %v5318, %v5456
        %v5461 = vmul.f32 %v5335, %v5456
        %v5462 = vmul.f32 %v5319, %v5456
        %v5463 = vmul.f32 %v5336, %v5456
        %v5464 = vmul.f32 %v5320, %v5456
        %v5465 = vmul.f32 %v5337, %v5456
        %v5466 = vmul.f32 %v5321, %v5456
        %v5467 = vmul.f32 %v5338, %v5456
        %v5468 = vmul.f32 %v5322, %v5456
        %v5469 = vmul.f32 %v5339, %v5456
        %v5470 = vmul.f32 %v5323, %v5456
        %v5471 = vmul.f32 %v5340, %v5456
        %v5472 = vmul.f32 %v5324, %v5456
        %v5473 = vmul.f32 %v5341, %v5456
        %v5474 = vmul.f32 %v5325, %v5456
        %v5475 = vmul.f32 %v5342, %v5456
        %v5476 = vmul.f32 %v5326, %v5456
        %v5477 = vmul.f32 %v5343, %v5456
        %v5478 = vmul.f32 %v5327, %v5456
        %v5479 = vmul.f32 %v5344, %v5456
        %v5480 = vmul.f32 %v5328, %v5456
        %v5481 = vmul.f32 %v5345, %v5456
        %v5482 = vmul.f32 %v5329, %v5456
        %v5483 = vmul.f32 %v5346, %v5456
        %v5484 = vmul.f32 %v5330, %v5456
        %v5485 = vmul.f32 %v5347, %v5456
        %v5486 = vmul.f32 %v5331, %v5456
        %v5487 = vmul.f32 %v5348, %v5456
        %v5488 = vmul.f32 %v5332, %v5456
        %v5489 = vadd.f32 %v5421, %v5457
        %v5490 = vadd.f32 %v5422, %v5458
        %v5491 = vadd.f32 %v5423, %v5459
        %v5492 = vadd.f32 %v5424, %v5460
        %v5493 = vadd.f32 %v5425, %v5461
        %v5494 = vadd.f32 %v5426, %v5462
        %v5495 = vadd.f32 %v5427, %v5463
        %v5496 = vadd.f32 %v5428, %v5464
        %v5497 = vadd.f32 %v5429, %v5465
        %v5498 = vadd.f32 %v5430, %v5466
        %v5499 = vadd.f32 %v5431, %v5467
        %v5500 = vadd.f32 %v5432, %v5468
        %v5501 = vadd.f32 %v5433, %v5469
        %v5502 = vadd.f32 %v5434, %v5470
        %v5503 = vadd.f32 %v5435, %v5471
        %v5504 = vadd.f32 %v5436, %v5472
        %v5505 = vadd.f32 %v5437, %v5473
        %v5506 = vadd.f32 %v5438, %v5474
        %v5507 = vadd.f32 %v5439, %v5475
        %v5508 = vadd.f32 %v5440, %v5476
        %v5509 = vadd.f32 %v5441, %v5477
        %v5510 = vadd.f32 %v5442, %v5478
        %v5511 = vadd.f32 %v5443, %v5479
        %v5512 = vadd.f32 %v5444, %v5480
        %v5513 = vadd.f32 %v5445, %v5481
        %v5514 = vadd.f32 %v5446, %v5482
        %v5515 = vadd.f32 %v5447, %v5483
        %v5516 = vadd.f32 %v5448, %v5484
        %v5517 = vadd.f32 %v5449, %v5485
        %v5518 = vadd.f32 %v5450, %v5486
        %v5519 = vadd.f32 %v5451, %v5487
        %v5520 = vadd.f32 %v5452, %v5488
        %v5521 = vadd.f32 %v5109, %v5489
        %v5522 = vadd.f32 %v5110, %v5490
        %v5523 = vadd.f32 %v5111, %v5491
        %v5524 = vadd.f32 %v5112, %v5492
        %v5525 = vadd.f32 %v5113, %v5493
        %v5526 = vadd.f32 %v5114, %v5494
        %v5527 = vadd.f32 %v5115, %v5495
        %v5528 = vadd.f32 %v5116, %v5496
        %v5529 = vadd.f32 %v5117, %v5497
        %v5530 = vadd.f32 %v5118, %v5498
        %v5531 = vadd.f32 %v5119, %v5499
        %v5532 = vadd.f32 %v5120, %v5500
        %v5533 = vadd.f32 %v5121, %v5501
        %v5534 = vadd.f32 %v5122, %v5502
        %v5535 = vadd.f32 %v5123, %v5503
        %v5536 = vadd.f32 %v5124, %v5504
        %v5537 = vadd.f32 %v5125, %v5505
        %v5538 = vadd.f32 %v5126, %v5506
        %v5539 = vadd.f32 %v5127, %v5507
        %v5540 = vadd.f32 %v5128, %v5508
        %v5541 = vadd.f32 %v5129, %v5509
        %v5542 = vadd.f32 %v5130, %v5510
        %v5543 = vadd.f32 %v5131, %v5511
        %v5544 = vadd.f32 %v5132, %v5512
        %v5545 = vadd.f32 %v5133, %v5513
        %v5546 = vadd.f32 %v5134, %v5514
        %v5547 = vadd.f32 %v5135, %v5515
        %v5548 = vadd.f32 %v5136, %v5516
        %v5549 = vadd.f32 %v5137, %v5517
        %v5550 = vadd.f32 %v5138, %v5518
        %v5551 = vadd.f32 %v5139, %v5519
        %v5552 = vadd.f32 %v5140, %v5520
        %v5553 = vld [vmem:[%s10] sm:$0x1]
        %v5554 = vld [vmem:[%s11] sm:$0x1]
        %v5555 = vadd.f32 %v5521, %v5522
        %v5556 = vadd.f32 %v5555, %v5523
        %v5557 = vadd.f32 %v5556, %v5524
        %v5558 = vadd.f32 %v5557, %v5525
        %v5559 = vadd.f32 %v5558, %v5526
        %v5560 = vadd.f32 %v5559, %v5527
        %v5561 = vadd.f32 %v5560, %v5528
        %v5562 = vadd.f32 %v5561, %v5529
        %v5563 = vadd.f32 %v5562, %v5530
        %v5564 = vadd.f32 %v5563, %v5531
        %v5565 = vadd.f32 %v5564, %v5532
        %v5566 = vadd.f32 %v5565, %v5533
        %v5567 = vadd.f32 %v5566, %v5534
        %v5568 = vadd.f32 %v5567, %v5535
        %v5569 = vadd.f32 %v5568, %v5536
        %v5570 = vadd.f32 %v5569, %v5537
        %v5571 = vadd.f32 %v5570, %v5538
        %v5572 = vadd.f32 %v5571, %v5539
        %v5573 = vadd.f32 %v5572, %v5540
        %v5574 = vadd.f32 %v5573, %v5541
        %v5575 = vadd.f32 %v5574, %v5542
        %v5576 = vadd.f32 %v5575, %v5543
        %v5577 = vadd.f32 %v5576, %v5544
        %v5578 = vadd.f32 %v5577, %v5545
        %v5579 = vadd.f32 %v5578, %v5546
        %v5580 = vadd.f32 %v5579, %v5547
        %v5581 = vadd.f32 %v5580, %v5548
        %v5582 = vadd.f32 %v5581, %v5549
        %v5583 = vadd.f32 %v5582, %v5550
        %v5584 = vadd.f32 %v5583, %v5551
        %v5585 = vadd.f32 %v5584, %v5552
        %5586 = vadd.xlane.f32.xlu0 %v5585
        %v5587 = vpop.xlane.xlu0 %5586
        %v5588 = vrot.slane %v5587, 4
        %v5589 = vadd.f32 %v5587, %v5588
        %v5590 = vrot.slane %v5589, 2
        %v5591 = vadd.f32 %v5589, %v5590
        %v5592 = vrot.slane %v5591, 1
        %v5593 = vadd.f32 %v5591, %v5592
        %s5594 = vtos %v5593
        %v5595 = vmul.f32 %v5521, %v5521
        %v5596 = vmul.f32 %v5522, %v5522
        %v5597 = vmul.f32 %v5523, %v5523
        %v5598 = vmul.f32 %v5524, %v5524
        %v5599 = vmul.f32 %v5525, %v5525
        %v5600 = vmul.f32 %v5526, %v5526
        %v5601 = vmul.f32 %v5527, %v5527
        %v5602 = vmul.f32 %v5528, %v5528
        %v5603 = vmul.f32 %v5529, %v5529
        %v5604 = vmul.f32 %v5530, %v5530
        %v5605 = vmul.f32 %v5531, %v5531
        %v5606 = vmul.f32 %v5532, %v5532
        %v5607 = vmul.f32 %v5533, %v5533
        %v5608 = vmul.f32 %v5534, %v5534
        %v5609 = vmul.f32 %v5535, %v5535
        %v5610 = vmul.f32 %v5536, %v5536
        %v5611 = vmul.f32 %v5537, %v5537
        %v5612 = vmul.f32 %v5538, %v5538
        %v5613 = vmul.f32 %v5539, %v5539
        %v5614 = vmul.f32 %v5540, %v5540
        %v5615 = vmul.f32 %v5541, %v5541
        %v5616 = vmul.f32 %v5542, %v5542
        %v5617 = vmul.f32 %v5543, %v5543
        %v5618 = vmul.f32 %v5544, %v5544
        %v5619 = vmul.f32 %v5545, %v5545
        %v5620 = vmul.f32 %v5546, %v5546
        %v5621 = vmul.f32 %v5547, %v5547
        %v5622 = vmul.f32 %v5548, %v5548
        %v5623 = vmul.f32 %v5549, %v5549
        %v5624 = vmul.f32 %v5550, %v5550
        %v5625 = vmul.f32 %v5551, %v5551
        %v5626 = vmul.f32 %v5552, %v5552
        %v5627 = vadd.f32 %v5595, %v5596
        %v5628 = vadd.f32 %v5627, %v5597
        %v5629 = vadd.f32 %v5628, %v5598
        %v5630 = vadd.f32 %v5629, %v5599
        %v5631 = vadd.f32 %v5630, %v5600
        %v5632 = vadd.f32 %v5631, %v5601
        %v5633 = vadd.f32 %v5632, %v5602
        %v5634 = vadd.f32 %v5633, %v5603
        %v5635 = vadd.f32 %v5634, %v5604
        %v5636 = vadd.f32 %v5635, %v5605
        %v5637 = vadd.f32 %v5636, %v5606
        %v5638 = vadd.f32 %v5637, %v5607
        %v5639 = vadd.f32 %v5638, %v5608
        %v5640 = vadd.f32 %v5639, %v5609
        %v5641 = vadd.f32 %v5640, %v5610
        %v5642 = vadd.f32 %v5641, %v5611
        %v5643 = vadd.f32 %v5642, %v5612
        %v5644 = vadd.f32 %v5643, %v5613
        %v5645 = vadd.f32 %v5644, %v5614
        %v5646 = vadd.f32 %v5645, %v5615
        %v5647 = vadd.f32 %v5646, %v5616
        %v5648 = vadd.f32 %v5647, %v5617
        %v5649 = vadd.f32 %v5648, %v5618
        %v5650 = vadd.f32 %v5649, %v5619
        %v5651 = vadd.f32 %v5650, %v5620
        %v5652 = vadd.f32 %v5651, %v5621
        %v5653 = vadd.f32 %v5652, %v5622
        %v5654 = vadd.f32 %v5653, %v5623
        %v5655 = vadd.f32 %v5654, %v5624
        %v5656 = vadd.f32 %v5655, %v5625
        %v5657 = vadd.f32 %v5656, %v5626
        %5658 = vadd.xlane.f32.xlu0 %v5657
        %v5659 = vpop.xlane.xlu0 %5658
        %v5660 = vrot.slane %v5659, 4
        %v5661 = vadd.f32 %v5659, %v5660
        %v5662 = vrot.slane %v5661, 2
        %v5663 = vadd.f32 %v5661, %v5662
        %v5664 = vrot.slane %v5663, 1
        %v5665 = vadd.f32 %v5663, %v5664
        %s5666 = vtos %v5665
        %v5667 = vrcp.pop 2048.0
        %s5668 = vtos %v5667
        %s5669 = smul.f32 %s5594, %s5668
        %v5670 = vrcp.pop 2048.0
        %s5671 = vtos %v5670
        %s5672 = smul.f32 %s5666, %s5671
        %s5673 = smul.f32 %s5669, %s5669
        %s5674 = ssub.f32 %s5672, %s5673
        %s5675 = smax.f32 %s5674, 0.0
        %s5676 = sadd.f32 %s5675, 1e-05
        %v5677 = vstv %s5676
        %v5678 = vrsqrt.pop %v5677
        %s5679 = vtos %v5678
        %v5680 = vstv %s5679
        %v5681 = vmul.f32 %v5553, %v5680
        %v5682 = vstv %s5669
        %v5683 = vmul.f32 %v5682, %v5681
        %v5684 = vsub.f32 %v5554, %v5683
        %v5686 = vlaneseq
        %v5687 = vshrl.u32 %v5686, 7
        %v5688 = vsub.s32 0, %v5687
        %v5689 = vrot.slane %v5681, %v5688
        %v5691 = vmul.f32 %v5521, %v5689
        %v5692 = vmul.f32 %v5522, %v5689
        %v5693 = vmul.f32 %v5523, %v5689
        %v5694 = vmul.f32 %v5524, %v5689
        %v5695 = vmul.f32 %v5525, %v5689
        %v5696 = vmul.f32 %v5526, %v5689
        %v5697 = vmul.f32 %v5527, %v5689
        %v5698 = vmul.f32 %v5528, %v5689
        %v5699 = vmul.f32 %v5529, %v5689
        %v5700 = vmul.f32 %v5530, %v5689
        %v5701 = vmul.f32 %v5531, %v5689
        %v5702 = vmul.f32 %v5532, %v5689
        %v5703 = vmul.f32 %v5533, %v5689
        %v5704 = vmul.f32 %v5534, %v5689
        %v5705 = vmul.f32 %v5535, %v5689
        %v5706 = vmul.f32 %v5536, %v5689
        %v5707 = vmul.f32 %v5537, %v5689
        %v5708 = vmul.f32 %v5538, %v5689
        %v5709 = vmul.f32 %v5539, %v5689
        %v5710 = vmul.f32 %v5540, %v5689
        %v5711 = vmul.f32 %v5541, %v5689
        %v5712 = vmul.f32 %v5542, %v5689
        %v5713 = vmul.f32 %v5543, %v5689
        %v5714 = vmul.f32 %v5544, %v5689
        %v5715 = vmul.f32 %v5545, %v5689
        %v5716 = vmul.f32 %v5546, %v5689
        %v5717 = vmul.f32 %v5547, %v5689
        %v5718 = vmul.f32 %v5548, %v5689
        %v5719 = vmul.f32 %v5549, %v5689
        %v5720 = vmul.f32 %v5550, %v5689
        %v5721 = vmul.f32 %v5551, %v5689
        %v5722 = vmul.f32 %v5552, %v5689
        %v5724 = vlaneseq
        %v5725 = vshrl.u32 %v5724, 7
        %v5726 = vsub.s32 0, %v5725
        %v5727 = vrot.slane %v5684, %v5726
        %v5729 = vadd.f32 %v5691, %v5727
        %v5730 = vadd.f32 %v5692, %v5727
        %v5731 = vadd.f32 %v5693, %v5727
        %v5732 = vadd.f32 %v5694, %v5727
        %v5733 = vadd.f32 %v5695, %v5727
        %v5734 = vadd.f32 %v5696, %v5727
        %v5735 = vadd.f32 %v5697, %v5727
        %v5736 = vadd.f32 %v5698, %v5727
        %v5737 = vadd.f32 %v5699, %v5727
        %v5738 = vadd.f32 %v5700, %v5727
        %v5739 = vadd.f32 %v5701, %v5727
        %v5740 = vadd.f32 %v5702, %v5727
        %v5741 = vadd.f32 %v5703, %v5727
        %v5742 = vadd.f32 %v5704, %v5727
        %v5743 = vadd.f32 %v5705, %v5727
        %v5744 = vadd.f32 %v5706, %v5727
        %v5745 = vadd.f32 %v5707, %v5727
        %v5746 = vadd.f32 %v5708, %v5727
        %v5747 = vadd.f32 %v5709, %v5727
        %v5748 = vadd.f32 %v5710, %v5727
        %v5749 = vadd.f32 %v5711, %v5727
        %v5750 = vadd.f32 %v5712, %v5727
        %v5751 = vadd.f32 %v5713, %v5727
        %v5752 = vadd.f32 %v5714, %v5727
        %v5753 = vadd.f32 %v5715, %v5727
        %v5754 = vadd.f32 %v5716, %v5727
        %v5755 = vadd.f32 %v5717, %v5727
        %v5756 = vadd.f32 %v5718, %v5727
        %v5757 = vadd.f32 %v5719, %v5727
        %v5758 = vadd.f32 %v5720, %v5727
        %v5759 = vadd.f32 %v5721, %v5727
        %v5760 = vadd.f32 %v5722, %v5727
        %v5761 = vmul.f32 %v5729, 1.442695
        %v5762 = vpow.pop %v5761
        %v5763 = vmul.f32 %v5730, 1.442695
        %v5764 = vpow.pop %v5763
        %v5765 = vmul.f32 %v5731, 1.442695
        %v5766 = vpow.pop %v5765
        %v5767 = vmul.f32 %v5732, 1.442695
        %v5768 = vpow.pop %v5767
        %v5769 = vmul.f32 %v5733, 1.442695
        %v5770 = vpow.pop %v5769
        %v5771 = vmul.f32 %v5734, 1.442695
        %v5772 = vpow.pop %v5771
        %v5773 = vmul.f32 %v5735, 1.442695
        %v5774 = vpow.pop %v5773
        %v5775 = vmul.f32 %v5736, 1.442695
        %v5776 = vpow.pop %v5775
        %v5777 = vmul.f32 %v5737, 1.442695
        %v5778 = vpow.pop %v5777
        %v5779 = vmul.f32 %v5738, 1.442695
        %v5780 = vpow.pop %v5779
        %v5781 = vmul.f32 %v5739, 1.442695
        %v5782 = vpow.pop %v5781
        %v5783 = vmul.f32 %v5740, 1.442695
        %v5784 = vpow.pop %v5783
        %v5785 = vmul.f32 %v5741, 1.442695
        %v5786 = vpow.pop %v5785
        %v5787 = vmul.f32 %v5742, 1.442695
        %v5788 = vpow.pop %v5787
        %v5789 = vmul.f32 %v5743, 1.442695
        %v5790 = vpow.pop %v5789
        %v5791 = vmul.f32 %v5744, 1.442695
        %v5792 = vpow.pop %v5791
        %v5793 = vmul.f32 %v5745, 1.442695
        %v5794 = vpow.pop %v5793
        %v5795 = vmul.f32 %v5746, 1.442695
        %v5796 = vpow.pop %v5795
        %v5797 = vmul.f32 %v5747, 1.442695
        %v5798 = vpow.pop %v5797
        %v5799 = vmul.f32 %v5748, 1.442695
        %v5800 = vpow.pop %v5799
        %v5801 = vmul.f32 %v5749, 1.442695
        %v5802 = vpow.pop %v5801
        %v5803 = vmul.f32 %v5750, 1.442695
        %v5804 = vpow.pop %v5803
        %v5805 = vmul.f32 %v5751, 1.442695
        %v5806 = vpow.pop %v5805
        %v5807 = vmul.f32 %v5752, 1.442695
        %v5808 = vpow.pop %v5807
        %v5809 = vmul.f32 %v5753, 1.442695
        %v5810 = vpow.pop %v5809
        %v5811 = vmul.f32 %v5754, 1.442695
        %v5812 = vpow.pop %v5811
        %v5813 = vmul.f32 %v5755, 1.442695
        %v5814 = vpow.pop %v5813
        %v5815 = vmul.f32 %v5756, 1.442695
        %v5816 = vpow.pop %v5815
        %v5817 = vmul.f32 %v5757, 1.442695
        %v5818 = vpow.pop %v5817
        %v5819 = vmul.f32 %v5758, 1.442695
        %v5820 = vpow.pop %v5819
        %v5821 = vmul.f32 %v5759, 1.442695
        %v5822 = vpow.pop %v5821
        %v5823 = vmul.f32 %v5760, 1.442695
        %v5824 = vpow.pop %v5823
        %v5825 = vtanh.pop %v5762
        %v5826 = vtanh.pop %v5764
        %v5827 = vtanh.pop %v5766
        %v5828 = vtanh.pop %v5768
        %v5829 = vtanh.pop %v5770
        %v5830 = vtanh.pop %v5772
        %v5831 = vtanh.pop %v5774
        %v5832 = vtanh.pop %v5776
        %v5833 = vtanh.pop %v5778
        %v5834 = vtanh.pop %v5780
        %v5835 = vtanh.pop %v5782
        %v5836 = vtanh.pop %v5784
        %v5837 = vtanh.pop %v5786
        %v5838 = vtanh.pop %v5788
        %v5839 = vtanh.pop %v5790
        %v5840 = vtanh.pop %v5792
        %v5841 = vtanh.pop %v5794
        %v5842 = vtanh.pop %v5796
        %v5843 = vtanh.pop %v5798
        %v5844 = vtanh.pop %v5800
        %v5845 = vtanh.pop %v5802
        %v5846 = vtanh.pop %v5804
        %v5847 = vtanh.pop %v5806
        %v5848 = vtanh.pop %v5808
        %v5849 = vtanh.pop %v5810
        %v5850 = vtanh.pop %v5812
        %v5851 = vtanh.pop %v5814
        %v5852 = vtanh.pop %v5816
        %v5853 = vtanh.pop %v5818
        %v5854 = vtanh.pop %v5820
        %v5855 = vtanh.pop %v5822
        %v5856 = vtanh.pop %v5824
        %v5857 = vmul.f32 %v5729, %v5825
        %v5858 = vmul.f32 %v5730, %v5826
        %v5859 = vmul.f32 %v5731, %v5827
        %v5860 = vmul.f32 %v5732, %v5828
        %v5861 = vmul.f32 %v5733, %v5829
        %v5862 = vmul.f32 %v5734, %v5830
        %v5863 = vmul.f32 %v5735, %v5831
        %v5864 = vmul.f32 %v5736, %v5832
        %v5865 = vmul.f32 %v5737, %v5833
        %v5866 = vmul.f32 %v5738, %v5834
        %v5867 = vmul.f32 %v5739, %v5835
        %v5868 = vmul.f32 %v5740, %v5836
        %v5869 = vmul.f32 %v5741, %v5837
        %v5870 = vmul.f32 %v5742, %v5838
        %v5871 = vmul.f32 %v5743, %v5839
        %v5872 = vmul.f32 %v5744, %v5840
        %v5873 = vmul.f32 %v5745, %v5841
        %v5874 = vmul.f32 %v5746, %v5842
        %v5875 = vmul.f32 %v5747, %v5843
        %v5876 = vmul.f32 %v5748, %v5844
        %v5877 = vmul.f32 %v5749, %v5845
        %v5878 = vmul.f32 %v5750, %v5846
        %v5879 = vmul.f32 %v5751, %v5847
        %v5880 = vmul.f32 %v5752, %v5848
        %v5881 = vmul.f32 %v5753, %v5849
        %v5882 = vmul.f32 %v5754, %v5850
        %v5883 = vmul.f32 %v5755, %v5851
        %v5884 = vmul.f32 %v5756, %v5852
        %v5885 = vmul.f32 %v5757, %v5853
        %v5886 = vmul.f32 %v5758, %v5854
        %v5887 = vmul.f32 %v5759, %v5855
        %v5888 = vmul.f32 %v5760, %v5856
        %v5889 = vpack.c.bf16 %v5858, %v5857
        %v5890 = vpack.c.bf16 %v5860, %v5859
        %v5891 = vpack.c.bf16 %v5862, %v5861
        %v5892 = vpack.c.bf16 %v5864, %v5863
        %v5893 = vpack.c.bf16 %v5866, %v5865
        %v5894 = vpack.c.bf16 %v5868, %v5867
        %v5895 = vpack.c.bf16 %v5870, %v5869
        %v5896 = vpack.c.bf16 %v5872, %v5871
        %v5897 = vpack.c.bf16 %v5874, %v5873
        %v5898 = vpack.c.bf16 %v5876, %v5875
        %v5899 = vpack.c.bf16 %v5878, %v5877
        %v5900 = vpack.c.bf16 %v5880, %v5879
        %v5901 = vpack.c.bf16 %v5882, %v5881
        %v5902 = vpack.c.bf16 %v5884, %v5883
        %v5903 = vpack.c.bf16 %v5886, %v5885
        %v5904 = vpack.c.bf16 %v5888, %v5887
        %v5905 = vld [vmem:[#allocation18] sm:$0xf]
        %v5906 = vld [vmem:[#allocation18 + $0x4] sm:$0xf]
        %v5907 = vld [vmem:[#allocation18 + $0x8] sm:$0xf]
        %v5908 = vld [vmem:[#allocation18 + $0xc] sm:$0xf]
        %v5909 = vld [vmem:[#allocation18 + $0x10] sm:$0xf]
        %v5910 = vld [vmem:[#allocation18 + $0x14] sm:$0xf]
        %v5911 = vld [vmem:[#allocation18 + $0x18] sm:$0xf]
        %v5912 = vld [vmem:[#allocation18 + $0x1c] sm:$0xf]
        %v5913 = vld [vmem:[#allocation18 + $0x20] sm:$0xf]
        %v5914 = vld [vmem:[#allocation18 + $0x24] sm:$0xf]
        %v5915 = vld [vmem:[#allocation18 + $0x28] sm:$0xf]
        %v5916 = vld [vmem:[#allocation18 + $0x2c] sm:$0xf]
        %v5917 = vld [vmem:[#allocation18 + $0x30] sm:$0xf]
        %v5918 = vld [vmem:[#allocation18 + $0x34] sm:$0xf]
        %v5919 = vld [vmem:[#allocation18 + $0x38] sm:$0xf]
        %v5920 = vld [vmem:[#allocation18 + $0x3c] sm:$0xf]
        %v5937 = vunpack.c.l.b16 %v5905
        %v5938 = vunpack.c.l.b16 %v5906
        %v5939 = vunpack.c.l.b16 %v5907
        %v5940 = vunpack.c.l.b16 %v5908
        %v5941 = vunpack.c.l.b16 %v5909
        %v5942 = vunpack.c.l.b16 %v5910
        %v5943 = vunpack.c.l.b16 %v5911
        %v5944 = vunpack.c.l.b16 %v5912
        %v5945 = vunpack.c.l.b16 %v5913
        %v5946 = vunpack.c.l.b16 %v5914
        %v5947 = vunpack.c.l.b16 %v5915
        %v5948 = vunpack.c.l.b16 %v5916
        %v5949 = vunpack.c.l.b16 %v5917
        %v5950 = vunpack.c.l.b16 %v5918
        %v5951 = vunpack.c.l.b16 %v5919
        %v5952 = vunpack.c.l.b16 %v5920
        %v5953 = vpack.c.b16 %v5938, %v5937
        %v5954 = vpack.c.b16 %v5940, %v5939
        %v5955 = vpack.c.b16 %v5942, %v5941
        %v5956 = vpack.c.b16 %v5944, %v5943
        %v5957 = vpack.c.b16 %v5946, %v5945
        %v5958 = vpack.c.b16 %v5948, %v5947
        %v5959 = vpack.c.b16 %v5950, %v5949
        %v5960 = vpack.c.b16 %v5952, %v5951
        %5969 = vmatprep.subr.bf16.mxu0 0
        %5970 = vmatpush1.bf16.msra.mxu0 %v5960
        %5971 = vmatprep.subr.bf16.mxu0 0
        %5972 = vmatpush1.bf16.msra.mxu0 %v5959
        %5973 = vmatprep.subr.bf16.mxu0 0
        %5974 = vmatpush1.bf16.msra.mxu0 %v5958
        %5975 = vmatprep.subr.bf16.mxu0 0
        %5976 = vmatpush1.bf16.msra.mxu0 %v5957
        %5977 = vmatprep.subr.bf16.mxu0 0
        %5978 = vmatpush1.bf16.msra.mxu0 %v5956
        %5979 = vmatprep.subr.bf16.mxu0 0
        %5980 = vmatpush1.bf16.msra.mxu0 %v5955
        %5981 = vmatprep.subr.bf16.mxu0 0
        %5982 = vmatpush1.bf16.msra.mxu0 %v5954
        %5983 = vmatprep.subr.bf16.mxu0 0
        %5984 = vmatpush1.bf16.msra.mxu0 %v5953
        %5985 = vmatprep.subr.bf16.mxu0 0
        %5986 = vmatpush2.bf16.msra.mxu0 0
        %5987 = vmatprep.subr.bf16.mxu0 0
        %5988 = vmatpush2.bf16.msra.mxu0 0
        %5989 = vmatprep.subr.bf16.mxu0 0
        %5990 = vmatpush2.bf16.msra.mxu0 0
        %5991 = vmatprep.subr.bf16.mxu0 0
        %5992 = vmatpush2.bf16.msra.mxu0 0
        %5993 = vmatprep.subr.bf16.mxu0 0
        %5994 = vmatpush2.bf16.msra.mxu0 0
        %5995 = vmatprep.subr.bf16.mxu0 0
        %5996 = vmatpush2.bf16.msra.mxu0 0
        %5997 = vmatprep.subr.bf16.mxu0 0
        %5998 = vmatpush2.bf16.msra.mxu0 0
        %5999 = vmatprep.subr.bf16.mxu0 0
        %6000 = vmatpush2.bf16.msra.mxu0 0
        %6001 = vmatprep.mubr.bf16.mxu0 0
        %6002 = vmatmul.mubr.bf16.gmra.mxu0 %v5889
        %v6003 = vpop.f32.mrf.mxu0
        %v6004 = vadd.f32 0.0, %v6003
        %v6005 = vpop.f32.mrf.mxu0
        %v6006 = vpop.f32.mrf.mxu0
        %v6007 = vadd.f32 0.0, %v6006
        %v6008 = vpop.f32.mrf.mxu0
        %6009 = vmatprep.mubr.bf16.mxu0 0
        %6010 = vmatmul.mubr.bf16.gmra.mxu0 %v5890
        %v6011 = vpop.f32.mrf.mxu0
        %v6012 = vadd.f32 0.0, %v6011
        %v6013 = vpop.f32.mrf.mxu0
        %v6014 = vpop.f32.mrf.mxu0
        %v6015 = vadd.f32 0.0, %v6014
        %v6016 = vpop.f32.mrf.mxu0
        %6017 = vmatprep.mubr.bf16.mxu0 0
        %6018 = vmatmul.mubr.bf16.gmra.mxu0 %v5891
        %v6019 = vpop.f32.mrf.mxu0
        %v6020 = vadd.f32 0.0, %v6019
        %v6021 = vpop.f32.mrf.mxu0
        %v6022 = vpop.f32.mrf.mxu0
        %v6023 = vadd.f32 0.0, %v6022
        %v6024 = vpop.f32.mrf.mxu0
        %6025 = vmatprep.mubr.bf16.mxu0 0
        %6026 = vmatmul.mubr.bf16.gmra.mxu0 %v5892
        %v6027 = vpop.f32.mrf.mxu0
        %v6028 = vadd.f32 0.0, %v6027
        %v6029 = vpop.f32.mrf.mxu0
        %v6030 = vpop.f32.mrf.mxu0
        %v6031 = vadd.f32 0.0, %v6030
        %v6032 = vpop.f32.mrf.mxu0
        %6033 = vmatprep.mubr.bf16.mxu0 0
        %6034 = vmatmul.mubr.bf16.gmra.mxu0 %v5893
        %v6035 = vpop.f32.mrf.mxu0
        %v6036 = vadd.f32 0.0, %v6035
        %v6037 = vpop.f32.mrf.mxu0
        %v6038 = vpop.f32.mrf.mxu0
        %v6039 = vadd.f32 0.0, %v6038
        %v6040 = vpop.f32.mrf.mxu0
        %6041 = vmatprep.mubr.bf16.mxu0 0
        %6042 = vmatmul.mubr.bf16.gmra.mxu0 %v5894
        %v6043 = vpop.f32.mrf.mxu0
        %v6044 = vadd.f32 0.0, %v6043
        %v6045 = vpop.f32.mrf.mxu0
        %v6046 = vpop.f32.mrf.mxu0
        %v6047 = vadd.f32 0.0, %v6046
        %v6048 = vpop.f32.mrf.mxu0
        %6049 = vmatprep.mubr.bf16.mxu0 0
        %6050 = vmatmul.mubr.bf16.gmra.mxu0 %v5895
        %v6051 = vpop.f32.mrf.mxu0
        %v6052 = vadd.f32 0.0, %v6051
        %v6053 = vpop.f32.mrf.mxu0
        %v6054 = vpop.f32.mrf.mxu0
        %v6055 = vadd.f32 0.0, %v6054
        %v6056 = vpop.f32.mrf.mxu0
        %6057 = vmatprep.mubr.bf16.mxu0 0
        %6058 = vmatmul.mubr.bf16.gmra.mxu0 %v5896
        %v6059 = vpop.f32.mrf.mxu0
        %v6060 = vadd.f32 0.0, %v6059
        %v6061 = vpop.f32.mrf.mxu0
        %v6062 = vpop.f32.mrf.mxu0
        %v6063 = vadd.f32 0.0, %v6062
        %v6064 = vpop.f32.mrf.mxu0
        %6065 = vmatprep.mubr.bf16.mxu0 0
        %6066 = vmatmul.mubr.bf16.gmra.mxu0 %v5897
        %v6067 = vpop.f32.mrf.mxu0
        %v6068 = vadd.f32 0.0, %v6067
        %v6069 = vpop.f32.mrf.mxu0
        %v6070 = vpop.f32.mrf.mxu0
        %v6071 = vadd.f32 0.0, %v6070
        %v6072 = vpop.f32.mrf.mxu0
        %6073 = vmatprep.mubr.bf16.mxu0 0
        %6074 = vmatmul.mubr.bf16.gmra.mxu0 %v5898
        %v6075 = vpop.f32.mrf.mxu0
        %v6076 = vadd.f32 0.0, %v6075
        %v6077 = vpop.f32.mrf.mxu0
        %v6078 = vpop.f32.mrf.mxu0
        %v6079 = vadd.f32 0.0, %v6078
        %v6080 = vpop.f32.mrf.mxu0
        %6081 = vmatprep.mubr.bf16.mxu0 0
        %6082 = vmatmul.mubr.bf16.gmra.mxu0 %v5899
        %v6083 = vpop.f32.mrf.mxu0
        %v6084 = vadd.f32 0.0, %v6083
        %v6085 = vpop.f32.mrf.mxu0
        %v6086 = vpop.f32.mrf.mxu0
        %v6087 = vadd.f32 0.0, %v6086
        %v6088 = vpop.f32.mrf.mxu0
        %6089 = vmatprep.mubr.bf16.mxu0 0
        %6090 = vmatmul.mubr.bf16.gmra.mxu0 %v5900
        %v6091 = vpop.f32.mrf.mxu0
        %v6092 = vadd.f32 0.0, %v6091
        %v6093 = vpop.f32.mrf.mxu0
        %v6094 = vpop.f32.mrf.mxu0
        %v6095 = vadd.f32 0.0, %v6094
        %v6096 = vpop.f32.mrf.mxu0
        %6097 = vmatprep.mubr.bf16.mxu0 0
        %6098 = vmatmul.mubr.bf16.gmra.mxu0 %v5901
        %v6099 = vpop.f32.mrf.mxu0
        %v6100 = vadd.f32 0.0, %v6099
        %v6101 = vpop.f32.mrf.mxu0
        %v6102 = vpop.f32.mrf.mxu0
        %v6103 = vadd.f32 0.0, %v6102
        %v6104 = vpop.f32.mrf.mxu0
        %6105 = vmatprep.mubr.bf16.mxu0 0
        %6106 = vmatmul.mubr.bf16.gmra.mxu0 %v5902
        %v6107 = vpop.f32.mrf.mxu0
        %v6108 = vadd.f32 0.0, %v6107
        %v6109 = vpop.f32.mrf.mxu0
        %v6110 = vpop.f32.mrf.mxu0
        %v6111 = vadd.f32 0.0, %v6110
        %v6112 = vpop.f32.mrf.mxu0
        %6113 = vmatprep.mubr.bf16.mxu0 0
        %6114 = vmatmul.mubr.bf16.gmra.mxu0 %v5903
        %v6115 = vpop.f32.mrf.mxu0
        %v6116 = vadd.f32 0.0, %v6115
        %v6117 = vpop.f32.mrf.mxu0
        %v6118 = vpop.f32.mrf.mxu0
        %v6119 = vadd.f32 0.0, %v6118
        %v6120 = vpop.f32.mrf.mxu0
        %6121 = vmatprep.mubr.bf16.mxu0 0
        %6122 = vmatmul.mubr.bf16.gmra.mxu0 %v5904
        %v6123 = vpop.f32.mrf.mxu0
        %v6124 = vadd.f32 0.0, %v6123
        %v6125 = vpop.f32.mrf.mxu0
        %v6126 = vpop.f32.mrf.mxu0
        %v6127 = vadd.f32 0.0, %v6126
        %v6128 = vpop.f32.mrf.mxu0
        %6129 = vdwg.mxu0
        %v6130 = vld [vmem:[%s538] sm:$0xff]
        %v6131 = vld [vmem:[%s538 + $0x8] sm:$0xff]
        %v6132 = vld [vmem:[%s538 + $0x10] sm:$0xff]
        %v6133 = vld [vmem:[%s538 + $0x18] sm:$0xff]
        %v6134 = vld [vmem:[%s538 + $0x20] sm:$0xff]
        %v6135 = vld [vmem:[%s538 + $0x28] sm:$0xff]
        %v6136 = vld [vmem:[%s538 + $0x30] sm:$0xff]
        %v6137 = vld [vmem:[%s538 + $0x38] sm:$0xff]
        %v6138 = vld [vmem:[%s538 + $0x40] sm:$0xff]
        %v6139 = vld [vmem:[%s538 + $0x48] sm:$0xff]
        %v6140 = vld [vmem:[%s538 + $0x50] sm:$0xff]
        %v6141 = vld [vmem:[%s538 + $0x58] sm:$0xff]
        %v6142 = vld [vmem:[%s538 + $0x60] sm:$0xff]
        %v6143 = vld [vmem:[%s538 + $0x68] sm:$0xff]
        %v6144 = vld [vmem:[%s538 + $0x70] sm:$0xff]
        %v6145 = vld [vmem:[%s538 + $0x78] sm:$0xff]
        %v6146 = vld [vmem:[%s538 + $0x80] sm:$0xff]
        %v6147 = vld [vmem:[%s538 + $0x88] sm:$0xff]
        %v6148 = vld [vmem:[%s538 + $0x90] sm:$0xff]
        %v6149 = vld [vmem:[%s538 + $0x98] sm:$0xff]
        %v6150 = vld [vmem:[%s538 + $0xa0] sm:$0xff]
        %v6151 = vld [vmem:[%s538 + $0xa8] sm:$0xff]
        %v6152 = vld [vmem:[%s538 + $0xb0] sm:$0xff]
        %v6153 = vld [vmem:[%s538 + $0xb8] sm:$0xff]
        %v6154 = vld [vmem:[%s538 + $0xc0] sm:$0xff]
        %v6155 = vld [vmem:[%s538 + $0xc8] sm:$0xff]
        %v6156 = vld [vmem:[%s538 + $0xd0] sm:$0xff]
        %v6157 = vld [vmem:[%s538 + $0xd8] sm:$0xff]
        %v6158 = vld [vmem:[%s538 + $0xe0] sm:$0xff]
        %v6159 = vld [vmem:[%s538 + $0xe8] sm:$0xff]
        %v6160 = vld [vmem:[%s538 + $0xf0] sm:$0xff]
        %v6161 = vld [vmem:[%s538 + $0xf8] sm:$0xff]
        %v6162 = vpack.c.bf16 %v6131, %v6130
        %v6163 = vpack.c.bf16 %v6133, %v6132
        %v6164 = vpack.c.bf16 %v6135, %v6134
        %v6165 = vpack.c.bf16 %v6137, %v6136
        %v6166 = vpack.c.bf16 %v6139, %v6138
        %v6167 = vpack.c.bf16 %v6141, %v6140
        %v6168 = vpack.c.bf16 %v6143, %v6142
        %v6169 = vpack.c.bf16 %v6145, %v6144
        %v6170 = vpack.c.bf16 %v6147, %v6146
        %v6171 = vpack.c.bf16 %v6149, %v6148
        %v6172 = vpack.c.bf16 %v6151, %v6150
        %v6173 = vpack.c.bf16 %v6153, %v6152
        %v6174 = vpack.c.bf16 %v6155, %v6154
        %v6175 = vpack.c.bf16 %v6157, %v6156
        %v6176 = vpack.c.bf16 %v6159, %v6158
        %v6177 = vpack.c.bf16 %v6161, %v6160
        %v6178 = vld [vmem:[#allocation20] sm:$0xf]
        %v6179 = vld [vmem:[#allocation20 + $0x4] sm:$0xf]
        %v6180 = vld [vmem:[#allocation20 + $0x8] sm:$0xf]
        %v6181 = vld [vmem:[#allocation20 + $0xc] sm:$0xf]
        %v6182 = vld [vmem:[#allocation20 + $0x10] sm:$0xf]
        %v6183 = vld [vmem:[#allocation20 + $0x14] sm:$0xf]
        %v6184 = vld [vmem:[#allocation20 + $0x18] sm:$0xf]
        %v6185 = vld [vmem:[#allocation20 + $0x1c] sm:$0xf]
        %v6186 = vld [vmem:[#allocation20 + $0x20] sm:$0xf]
        %v6187 = vld [vmem:[#allocation20 + $0x24] sm:$0xf]
        %v6188 = vld [vmem:[#allocation20 + $0x28] sm:$0xf]
        %v6189 = vld [vmem:[#allocation20 + $0x2c] sm:$0xf]
        %v6190 = vld [vmem:[#allocation20 + $0x30] sm:$0xf]
        %v6191 = vld [vmem:[#allocation20 + $0x34] sm:$0xf]
        %v6192 = vld [vmem:[#allocation20 + $0x38] sm:$0xf]
        %v6193 = vld [vmem:[#allocation20 + $0x3c] sm:$0xf]
        %v6210 = vunpack.c.l.b16 %v6178
        %v6211 = vunpack.c.l.b16 %v6179
        %v6212 = vunpack.c.l.b16 %v6180
        %v6213 = vunpack.c.l.b16 %v6181
        %v6214 = vunpack.c.l.b16 %v6182
        %v6215 = vunpack.c.l.b16 %v6183
        %v6216 = vunpack.c.l.b16 %v6184
        %v6217 = vunpack.c.l.b16 %v6185
        %v6218 = vunpack.c.l.b16 %v6186
        %v6219 = vunpack.c.l.b16 %v6187
        %v6220 = vunpack.c.l.b16 %v6188
        %v6221 = vunpack.c.l.b16 %v6189
        %v6222 = vunpack.c.l.b16 %v6190
        %v6223 = vunpack.c.l.b16 %v6191
        %v6224 = vunpack.c.l.b16 %v6192
        %v6225 = vunpack.c.l.b16 %v6193
        %v6226 = vpack.c.b16 %v6211, %v6210
        %v6227 = vpack.c.b16 %v6213, %v6212
        %v6228 = vpack.c.b16 %v6215, %v6214
        %v6229 = vpack.c.b16 %v6217, %v6216
        %v6230 = vpack.c.b16 %v6219, %v6218
        %v6231 = vpack.c.b16 %v6221, %v6220
        %v6232 = vpack.c.b16 %v6223, %v6222
        %v6233 = vpack.c.b16 %v6225, %v6224
        %6242 = vmatprep.subr.bf16.mxu0 0
        %6243 = vmatpush1.bf16.msra.mxu0 %v6233
        %6244 = vmatprep.subr.bf16.mxu0 0
        %6245 = vmatpush1.bf16.msra.mxu0 %v6232
        %6246 = vmatprep.subr.bf16.mxu0 0
        %6247 = vmatpush1.bf16.msra.mxu0 %v6231
        %6248 = vmatprep.subr.bf16.mxu0 0
        %6249 = vmatpush1.bf16.msra.mxu0 %v6230
        %6250 = vmatprep.subr.bf16.mxu0 0
        %6251 = vmatpush1.bf16.msra.mxu0 %v6229
        %6252 = vmatprep.subr.bf16.mxu0 0
        %6253 = vmatpush1.bf16.msra.mxu0 %v6228
        %6254 = vmatprep.subr.bf16.mxu0 0
        %6255 = vmatpush1.bf16.msra.mxu0 %v6227
        %6256 = vmatprep.subr.bf16.mxu0 0
        %6257 = vmatpush1.bf16.msra.mxu0 %v6226
        %6258 = vmatprep.subr.bf16.mxu0 0
        %6259 = vmatpush2.bf16.msra.mxu0 0
        %6260 = vmatprep.subr.bf16.mxu0 0
        %6261 = vmatpush2.bf16.msra.mxu0 0
        %6262 = vmatprep.subr.bf16.mxu0 0
        %6263 = vmatpush2.bf16.msra.mxu0 0
        %6264 = vmatprep.subr.bf16.mxu0 0
        %6265 = vmatpush2.bf16.msra.mxu0 0
        %6266 = vmatprep.subr.bf16.mxu0 0
        %6267 = vmatpush2.bf16.msra.mxu0 0
        %6268 = vmatprep.subr.bf16.mxu0 0
        %6269 = vmatpush2.bf16.msra.mxu0 0
        %6270 = vmatprep.subr.bf16.mxu0 0
        %6271 = vmatpush2.bf16.msra.mxu0 0
        %6272 = vmatprep.subr.bf16.mxu0 0
        %6273 = vmatpush2.bf16.msra.mxu0 0
        %6274 = vmatprep.mubr.bf16.mxu0 0
        %6275 = vmatmul.mubr.bf16.gmra.mxu0 %v6162
        %v6276 = vpop.f32.mrf.mxu0
        %v6277 = vadd.f32 0.0, %v6276
        %v6278 = vpop.f32.mrf.mxu0
        %v6279 = vpop.f32.mrf.mxu0
        %v6280 = vadd.f32 0.0, %v6279
        %v6281 = vpop.f32.mrf.mxu0
        %6282 = vmatprep.mubr.bf16.mxu0 0
        %6283 = vmatmul.mubr.bf16.gmra.mxu0 %v6163
        %v6284 = vpop.f32.mrf.mxu0
        %v6285 = vadd.f32 0.0, %v6284
        %v6286 = vpop.f32.mrf.mxu0
        %v6287 = vpop.f32.mrf.mxu0
        %v6288 = vadd.f32 0.0, %v6287
        %v6289 = vpop.f32.mrf.mxu0
        %6290 = vmatprep.mubr.bf16.mxu0 0
        %6291 = vmatmul.mubr.bf16.gmra.mxu0 %v6164
        %v6292 = vpop.f32.mrf.mxu0
        %v6293 = vadd.f32 0.0, %v6292
        %v6294 = vpop.f32.mrf.mxu0
        %v6295 = vpop.f32.mrf.mxu0
        %v6296 = vadd.f32 0.0, %v6295
        %v6297 = vpop.f32.mrf.mxu0
        %6298 = vmatprep.mubr.bf16.mxu0 0
        %6299 = vmatmul.mubr.bf16.gmra.mxu0 %v6165
        %v6300 = vpop.f32.mrf.mxu0
        %v6301 = vadd.f32 0.0, %v6300
        %v6302 = vpop.f32.mrf.mxu0
        %v6303 = vpop.f32.mrf.mxu0
        %v6304 = vadd.f32 0.0, %v6303
        %v6305 = vpop.f32.mrf.mxu0
        %6306 = vmatprep.mubr.bf16.mxu0 0
        %6307 = vmatmul.mubr.bf16.gmra.mxu0 %v6166
        %v6308 = vpop.f32.mrf.mxu0
        %v6309 = vadd.f32 0.0, %v6308
        %v6310 = vpop.f32.mrf.mxu0
        %v6311 = vpop.f32.mrf.mxu0
        %v6312 = vadd.f32 0.0, %v6311
        %v6313 = vpop.f32.mrf.mxu0
        %6314 = vmatprep.mubr.bf16.mxu0 0
        %6315 = vmatmul.mubr.bf16.gmra.mxu0 %v6167
        %v6316 = vpop.f32.mrf.mxu0
        %v6317 = vadd.f32 0.0, %v6316
        %v6318 = vpop.f32.mrf.mxu0
        %v6319 = vpop.f32.mrf.mxu0
        %v6320 = vadd.f32 0.0, %v6319
        %v6321 = vpop.f32.mrf.mxu0
        %6322 = vmatprep.mubr.bf16.mxu0 0
        %6323 = vmatmul.mubr.bf16.gmra.mxu0 %v6168
        %v6324 = vpop.f32.mrf.mxu0
        %v6325 = vadd.f32 0.0, %v6324
        %v6326 = vpop.f32.mrf.mxu0
        %v6327 = vpop.f32.mrf.mxu0
        %v6328 = vadd.f32 0.0, %v6327
        %v6329 = vpop.f32.mrf.mxu0
        %6330 = vmatprep.mubr.bf16.mxu0 0
        %6331 = vmatmul.mubr.bf16.gmra.mxu0 %v6169
        %v6332 = vpop.f32.mrf.mxu0
        %v6333 = vadd.f32 0.0, %v6332
        %v6334 = vpop.f32.mrf.mxu0
        %v6335 = vpop.f32.mrf.mxu0
        %v6336 = vadd.f32 0.0, %v6335
        %v6337 = vpop.f32.mrf.mxu0
        %6338 = vmatprep.mubr.bf16.mxu0 0
        %6339 = vmatmul.mubr.bf16.gmra.mxu0 %v6170
        %v6340 = vpop.f32.mrf.mxu0
        %v6341 = vadd.f32 0.0, %v6340
        %v6342 = vpop.f32.mrf.mxu0
        %v6343 = vpop.f32.mrf.mxu0
        %v6344 = vadd.f32 0.0, %v6343
        %v6345 = vpop.f32.mrf.mxu0
        %6346 = vmatprep.mubr.bf16.mxu0 0
        %6347 = vmatmul.mubr.bf16.gmra.mxu0 %v6171
        %v6348 = vpop.f32.mrf.mxu0
        %v6349 = vadd.f32 0.0, %v6348
        %v6350 = vpop.f32.mrf.mxu0
        %v6351 = vpop.f32.mrf.mxu0
        %v6352 = vadd.f32 0.0, %v6351
        %v6353 = vpop.f32.mrf.mxu0
        %6354 = vmatprep.mubr.bf16.mxu0 0
        %6355 = vmatmul.mubr.bf16.gmra.mxu0 %v6172
        %v6356 = vpop.f32.mrf.mxu0
        %v6357 = vadd.f32 0.0, %v6356
        %v6358 = vpop.f32.mrf.mxu0
        %v6359 = vpop.f32.mrf.mxu0
        %v6360 = vadd.f32 0.0, %v6359
        %v6361 = vpop.f32.mrf.mxu0
        %6362 = vmatprep.mubr.bf16.mxu0 0
        %6363 = vmatmul.mubr.bf16.gmra.mxu0 %v6173
        %v6364 = vpop.f32.mrf.mxu0
        %v6365 = vadd.f32 0.0, %v6364
        %v6366 = vpop.f32.mrf.mxu0
        %v6367 = vpop.f32.mrf.mxu0
        %v6368 = vadd.f32 0.0, %v6367
        %v6369 = vpop.f32.mrf.mxu0
        %6370 = vmatprep.mubr.bf16.mxu0 0
        %6371 = vmatmul.mubr.bf16.gmra.mxu0 %v6174
        %v6372 = vpop.f32.mrf.mxu0
        %v6373 = vadd.f32 0.0, %v6372
        %v6374 = vpop.f32.mrf.mxu0
        %v6375 = vpop.f32.mrf.mxu0
        %v6376 = vadd.f32 0.0, %v6375
        %v6377 = vpop.f32.mrf.mxu0
        %6378 = vmatprep.mubr.bf16.mxu0 0
        %6379 = vmatmul.mubr.bf16.gmra.mxu0 %v6175
        %v6380 = vpop.f32.mrf.mxu0
        %v6381 = vadd.f32 0.0, %v6380
        %v6382 = vpop.f32.mrf.mxu0
        %v6383 = vpop.f32.mrf.mxu0
        %v6384 = vadd.f32 0.0, %v6383
        %v6385 = vpop.f32.mrf.mxu0
        %6386 = vmatprep.mubr.bf16.mxu0 0
        %6387 = vmatmul.mubr.bf16.gmra.mxu0 %v6176
        %v6388 = vpop.f32.mrf.mxu0
        %v6389 = vadd.f32 0.0, %v6388
        %v6390 = vpop.f32.mrf.mxu0
        %v6391 = vpop.f32.mrf.mxu0
        %v6392 = vadd.f32 0.0, %v6391
        %v6393 = vpop.f32.mrf.mxu0
        %6394 = vmatprep.mubr.bf16.mxu0 0
        %6395 = vmatmul.mubr.bf16.gmra.mxu0 %v6177
        %v6396 = vpop.f32.mrf.mxu0
        %v6397 = vadd.f32 0.0, %v6396
        %v6398 = vpop.f32.mrf.mxu0
        %v6399 = vpop.f32.mrf.mxu0
        %v6400 = vadd.f32 0.0, %v6399
        %v6401 = vpop.f32.mrf.mxu0
        %6402 = vdwg.mxu0
        %v6403 = vadd.f32 %v6004, %v6277
        %v6404 = vadd.f32 %v6007, %v6280
        %v6405 = vadd.f32 %v6012, %v6285
        %v6406 = vadd.f32 %v6015, %v6288
        %v6407 = vadd.f32 %v6020, %v6293
        %v6408 = vadd.f32 %v6023, %v6296
        %v6409 = vadd.f32 %v6028, %v6301
        %v6410 = vadd.f32 %v6031, %v6304
        %v6411 = vadd.f32 %v6036, %v6309
        %v6412 = vadd.f32 %v6039, %v6312
        %v6413 = vadd.f32 %v6044, %v6317
        %v6414 = vadd.f32 %v6047, %v6320
        %v6415 = vadd.f32 %v6052, %v6325
        %v6416 = vadd.f32 %v6055, %v6328
        %v6417 = vadd.f32 %v6060, %v6333
        %v6418 = vadd.f32 %v6063, %v6336
        %v6419 = vadd.f32 %v6068, %v6341
        %v6420 = vadd.f32 %v6071, %v6344
        %v6421 = vadd.f32 %v6076, %v6349
        %v6422 = vadd.f32 %v6079, %v6352
        %v6423 = vadd.f32 %v6084, %v6357
        %v6424 = vadd.f32 %v6087, %v6360
        %v6425 = vadd.f32 %v6092, %v6365
        %v6426 = vadd.f32 %v6095, %v6368
        %v6427 = vadd.f32 %v6100, %v6373
        %v6428 = vadd.f32 %v6103, %v6376
        %v6429 = vadd.f32 %v6108, %v6381
        %v6430 = vadd.f32 %v6111, %v6384
        %v6431 = vadd.f32 %v6116, %v6389
        %v6432 = vadd.f32 %v6119, %v6392
        %v6433 = vadd.f32 %v6124, %v6397
        %v6434 = vadd.f32 %v6127, %v6400
        %6435 = vst [vmem:[%s622] sm:$0xff] %v6403
        %6436 = vst [vmem:[%s622 + $0x8] sm:$0xff] %v6404
        %6437 = vst [vmem:[%s622 + $0x10] sm:$0xff] %v6405
        %6438 = vst [vmem:[%s622 + $0x18] sm:$0xff] %v6406
        %6439 = vst [vmem:[%s622 + $0x20] sm:$0xff] %v6407
        %6440 = vst [vmem:[%s622 + $0x28] sm:$0xff] %v6408
        %6441 = vst [vmem:[%s622 + $0x30] sm:$0xff] %v6409
        %6442 = vst [vmem:[%s622 + $0x38] sm:$0xff] %v6410
        %6443 = vst [vmem:[%s622 + $0x40] sm:$0xff] %v6411
        %6444 = vst [vmem:[%s622 + $0x48] sm:$0xff] %v6412
        %6445 = vst [vmem:[%s622 + $0x50] sm:$0xff] %v6413
        %6446 = vst [vmem:[%s622 + $0x58] sm:$0xff] %v6414
        %6447 = vst [vmem:[%s622 + $0x60] sm:$0xff] %v6415
        %6448 = vst [vmem:[%s622 + $0x68] sm:$0xff] %v6416
        %6449 = vst [vmem:[%s622 + $0x70] sm:$0xff] %v6417
        %6450 = vst [vmem:[%s622 + $0x78] sm:$0xff] %v6418
        %6451 = vst [vmem:[%s622 + $0x80] sm:$0xff] %v6419
        %6452 = vst [vmem:[%s622 + $0x88] sm:$0xff] %v6420
        %6453 = vst [vmem:[%s622 + $0x90] sm:$0xff] %v6421
        %6454 = vst [vmem:[%s622 + $0x98] sm:$0xff] %v6422
        %6455 = vst [vmem:[%s622 + $0xa0] sm:$0xff] %v6423
        %6456 = vst [vmem:[%s622 + $0xa8] sm:$0xff] %v6424
        %6457 = vst [vmem:[%s622 + $0xb0] sm:$0xff] %v6425
        %6458 = vst [vmem:[%s622 + $0xb8] sm:$0xff] %v6426
        %6459 = vst [vmem:[%s622 + $0xc0] sm:$0xff] %v6427
        %6460 = vst [vmem:[%s622 + $0xc8] sm:$0xff] %v6428
        %6461 = vst [vmem:[%s622 + $0xd0] sm:$0xff] %v6429
        %6462 = vst [vmem:[%s622 + $0xd8] sm:$0xff] %v6430
        %6463 = vst [vmem:[%s622 + $0xe0] sm:$0xff] %v6431
        %6464 = vst [vmem:[%s622 + $0xe8] sm:$0xff] %v6432
        %6465 = vst [vmem:[%s622 + $0xf0] sm:$0xff] %v6433
        %6466 = vst [vmem:[%s622 + $0xf8] sm:$0xff] %v6434
        %s6467 = sand.u32 %s343, 1
        %s6468 = scalar_lea.sflag [#allocation5], %s6467
        %s6469 = sand.u32 %s343, 1
        %s6470 = smul.addr %s6469, 256
        %s6471 = scalar_lea.vmem [#allocation21], %s6470
        // Predicated region
        $region121: #{tpu_custom_call.1} parent=75 // pred_check
          %p6472 = pneg %p353
        $region122: #{tpu_custom_call.1} parent=75 // pred_check_branch
          %6474 = sbr.rel (%p6472) target = $region124
        $region123: #{tpu_custom_call.1} parent=75 // pred_region
          %s6476 = ssub.s32 4096, 4096
          %6477 = vsyncadd %s6468, %s6476
          %s6478 = smul.addr %s36, 32
          %s6479 = smul.addr %s6478, 128
          %s6480 = scalar_lea.hbm %s14, %s6479
          %s6481 = sshll.u32 %s6471, 4
          %s6482 = int_to_ptr.vmem [resolvable:$true] %s6481
          %6487 = dma.vmem_to_hbm [thread:$0]  %s6482, 4096, %s6480, %s6468, 128, 128, 8
        $region124: #{tpu_custom_call.1} parent=75 // pred_fallthru
          _
      $region76: #{tpu_custom_call.1} parent=5 // pred_fallthru
        _
      %p6488 = scmp.le.s32.totalorder 2, %s31
      // Predicated region
      $region125: #{tpu_custom_call.1} parent=5 // pred_check
        %p6489 = pneg %p6488
      $region126: #{tpu_custom_call.1} parent=5 // pred_check_branch
        %6491 = sbr.rel (%p6489) target = $region128
      $region127: #{tpu_custom_call.1} parent=5 // pred_region
        %s6492 = ssub.s32 %s31, 2
        // Predicated region
        $region129: #{tpu_custom_call.1} parent=127 // pred_check
          %p6493 = pneg %p359
        $region130: #{tpu_custom_call.1} parent=127 // pred_check_branch
          %6495 = sbr.rel (%p6493) target = $region132
        $region131: #{tpu_custom_call.1} parent=127 // pred_region
          %s6496 = sand.u32 %s344, 1
          %s6497 = scalar_lea.sflag [#allocation5], %s6496
          %s6498 = sand.u32 %s344, 1
          %s6499 = smul.addr %s6498, 256
          %s6500 = scalar_lea.vmem [#allocation21], %s6499
          %6501 = dma.done %s6497, 4096
        $region132: #{tpu_custom_call.1} parent=127 // pred_fallthru
          _
      $region128: #{tpu_custom_call.1} parent=5 // pred_fallthru
        _
    $region6: #{tpu_custom_call.1} parent=1 // loop_footer
      %s35 = sadd.s32 1, %s31
    $region7: #{tpu_custom_call.1} parent=1 // loop_footer_branch
      %30 = sbr.rel target = $region3
    $region8: #{tpu_custom_call.1} parent=1 // loop_exit
      _
    %6502 = vsyncpa [#allocation4], 1
    %s6503 = scalar_lea.sflag [#allocation4], 1
    %6504 = vsyncpa %s6503, 1
    %6505 = vsyncpa [#allocation7], 1
    %6506 = vsyncpa [#allocation10], 1
    %6507 = vsyncpa [#allocation13], 1
    %6508 = vsyncpa [#allocation16], 1
    %6509 = vsyncpa [#allocation19], 1
    %6510 = vsyncpa [#allocation5], 1
    %s6511 = scalar_lea.sflag [#allocation5], 1
    %6512 = vsyncpa %s6511, 1

</llo_original>
